<compile_context>
chip_gen: v5e
topology: v5e:2x2
jax: 0.10.0
libtpu: 0.0.40
codegen_flags: <defaults>
</compile_context>

<pallas_src>
import functools

import numpy as np

import jax
import jax.numpy as jnp
from jax import lax
from jax.experimental import pallas as pl
from jax.experimental.pallas import tpu as pltpu


# ---------------------------------------------------------------------------
# Host-side weight / constant preprocessing (runs once at init)
# ---------------------------------------------------------------------------
def _build_urow_taps(h):
    """Row-direction nearest-2x upsample + zero-pad, split into 3 row taps.

    Returns (3, 2h, h): tap[dy] @ x gives rows [dy, dy+2h) of the zero-padded,
    row-upsampled image (padded height is 2h+2)."""
    hp = 2 * h + 2
    u = np.zeros((hp, h), np.float32)
    idx = np.arange(h)
    u[1 + 2 * idx, idx] = 1.0
    u[2 + 2 * idx, idx] = 1.0
    return np.stack([u[dy:dy + 2 * h, :] for dy in range(3)], axis=0)


def _build_ucol(cin, w):
    """Column-direction upsample + pad, block-diagonal per channel:
    (cin*w, cin*(2w+2))."""
    wp = 2 * w + 2
    u = np.zeros((cin * w, cin * wp), np.float32)
    for ci in range(cin):
        for j in range(w):
            u[ci * w + j, ci * wp + 1 + 2 * j] = 1.0
            u[ci * w + j, ci * wp + 2 + 2 * j] = 1.0
    return u


def _build_gmats(w_oihw, win):
    """Fold [column upsample + pad] + [3x3 conv column taps + channel mixing]
    into three matrices G[dy] of shape (cin*win, cout*W), W = 2*win, so that
        conv_out_row_i = sum_dy (row_padded_upsampled_row_{i+dy}) @ G[dy]
    where rows live in a (row, channel*column) lane-dense layout."""
    w = np.asarray(w_oihw, np.float32)
    cout, cin = w.shape[:2]
    W = 2 * win
    wp = W + 2
    g = np.zeros((3, cin * wp, cout * W), np.float32)
    rows = np.arange(cin)[:, None] * wp
    cols = np.arange(cout)[None, :] * W
    for dy in range(3):
        for dx in range(3):
            wt = w[:, :, dy, dx].T                       # (cin, cout)
            for j in range(W):
                g[dy, rows + (j + dx), cols + j] = wt
    ucol = _build_ucol(cin, win)
    return np.einsum("pq,dqm->dpm", ucol, g)             # (3, cin*win, cout*W)


def init_generator_params(key, nz, ngf, nc, n_batch=2):
    c0 = ngf * 8
    chans = [c0, c0 // 2, c0 // 4, c0 // 8, c0 // 16, nc]
    L = 4 * c0                      # lane width of every internal activation
    ks = jax.random.split(key, 6)
    std = 0.02

    # Raw weights in PyTorch layouts (DCGAN-style init, BN gamma=1, beta=0).
    w_ct = np.asarray(jax.random.normal(ks[0], (nz, c0, 4, 4), jnp.float32)) * std
    conv_ws = [np.asarray(jax.random.normal(
        ks[b + 1], (chans[b + 1], chans[b], 3, 3), jnp.float32)) * std
        for b in range(5)]

    # ConvTranspose2d(nz, c0, 4, 1, 0) on a 1x1 input is a matmul; arrange the
    # weight so zblk (4, 4*nz) @ wct (4*nz, c0*4) is already in the
    # (row, channel*col) layout.
    wct = np.transpose(w_ct, (2, 0, 1, 3)).reshape(4 * nz, c0 * 4)
    p = {"wct": jnp.asarray(wct, jnp.float32)}

    # Row-tap matrices, block-diagonal over the batch (batch is stacked along
    # rows), stored bf16 (entries are exact 0/1, so bf16 is lossless).
    urs = []
    for b in range(5):
        h = 4 * 2 ** b
        u3 = _build_urow_taps(h)                          # (3, 2h, h)
        ub = np.zeros((3, n_batch * 2 * h, n_batch * h), np.float32)
        for n in range(n_batch):
            ub[:, n * 2 * h:(n + 1) * 2 * h, n * h:(n + 1) * h] = u3
        urs.append(jnp.asarray(ub, jnp.bfloat16))
    p["ur"] = urs

    # Fused upsample+pad+conv matrices, K-stacked over the 3 row taps
    # ((3, L, nout) -> (3L, nout)) and lane-concatenated into two buffers:
    # early (blocks 0-2, prologue DMA) and late (blocks 3-4, streamed in-kernel).
    gstacks = []
    for b in range(5):
        g = _build_gmats(conv_ws[b], 4 * 2 ** b)          # (3, L, nout_b)
        gstacks.append(g.reshape(3 * L, -1))
    p["g_early"] = jnp.asarray(np.concatenate(gstacks[:3], axis=1), jnp.bfloat16)
    p["g_late"] = jnp.asarray(np.concatenate(gstacks[3:], axis=1), jnp.bfloat16)

    # One packed BN "segment" matrix: row r is channel r's lane-group indicator
    # (1 within its w lanes).  Used transposed for the stats reduction and
    # directly for the lane expansion.  All 5 BN layers have c*w == L.
    segt_all = np.zeros((sum(chans[:5]), L), np.float32)
    off = 0
    for k in range(5):
        c, w = chans[k], 4 * 2 ** k
        for ci in range(c):
            segt_all[off + ci, ci * w:(ci + 1) * w] = 1.0
        off += c
    p["segt"] = jnp.asarray(segt_all, jnp.float32)

    # gamma / beta per channel (PyTorch BatchNorm2d defaults), padded to c0.
    gb = np.zeros((5, 2, c0), np.float32)
    for k in range(5):
        gb[k, 0, :chans[k]] = 1.0
    p["gb"] = jnp.asarray(gb, jnp.float32)

    p["dims"] = {"nz": nz, "ngf": ngf, "nc": nc, "n_batch": n_batch}
    return p


# ---------------------------------------------------------------------------
# Fused generator kernel
# ---------------------------------------------------------------------------
def _make_generator_kernel(n_batch, nz, ngf, nc):
    c0 = ngf * 8
    chans = [c0, c0 // 2, c0 // 4, c0 // 8, c0 // 16, nc]
    L = 4 * c0
    bn_off = [0]
    for c in chans[:4]:
        bn_off.append(bn_off[-1] + c)
    eps = 1e-5

    def kernel(zblk_ref, wct_ref, ur0, ur1, ur2, ur3, ur4,
               gearly_ref, glate_hbm, segt_ref, gb_ref,
               out_ref, glate_vmem, glate_sem):
        ur = (ur0, ur1, ur2, ur3, ur4)

        # Start streaming the late-block conv matrices (~1 MB) from HBM while
        # the early blocks compute (grid=(1,) has no auto-pipelining to hide it).
        glate_cp = pltpu.make_async_copy(glate_hbm, glate_vmem, glate_sem)
        glate_cp.start()

        def bn_relu(x, k, hw):
            # Training-mode BatchNorm2d (batch stats over both elements,
            # biased variance) + ReLU on the lane-dense (rows, channel*width)
            # layout.  Two small batched matmuls per BN layer.
            c = chans[k]
            segt = segt_ref[bn_off[k]:bn_off[k] + c, :]            # (c, L)
            inv_cnt = 1.0 / float(n_batch * hw * hw)
            s = jnp.sum(x, axis=0, keepdims=True)                  # (1, L)
            q = jnp.sum(x * x, axis=0, keepdims=True)              # (1, L)
            sq = jnp.concatenate([s, q], axis=0)                   # (2, L)
            ch = jnp.dot(sq, segt.T,
                         preferred_element_type=jnp.float32) * inv_cnt  # (2, c)
            mean_c = ch[0:1, :]
            var_c = jnp.maximum(ch[1:2, :] - mean_c * mean_c, 0.0)
            inv_c = lax.rsqrt(var_c + eps)
            gb = gb_ref[k]                                         # (2, c0)
            a_c = gb[0:1, :c] * inv_c                              # gamma / std
            b_c = gb[1:2, :c] - mean_c * a_c                       # beta - mean*A
            ab = jnp.concatenate([a_c, b_c], axis=0)               # (2, c)
            abl = jnp.dot(ab, segt,
                          preferred_element_type=jnp.float32)      # (2, L)
            return jnp.maximum(x * abl[0:1, :] + abl[1:2, :], 0.0)

        # Stage 0: ConvTranspose2d(nz, c0, 4, 1, 0, bias=False) on the 1x1
        # latent == one matmul on the batch-stacked block-diagonal latent.
        x = jnp.dot(zblk_ref[...], wct_ref[...],
                    preferred_element_type=jnp.float32)            # (n*4, L)
        x = bn_relu(x, 0, 4)

        for b in range(5):
            hin = 4 * 2 ** b
            hout = 2 * hin
            nout = chans[b + 1] * hout
            xb = x.astype(jnp.bfloat16)                            # cast once
            # Three exact 0/1 row-tap matmuls (bf16 x bf16) -> K-stacked
            # operand for a single 3L-deep contraction per block.
            rs = [jnp.dot(ur[b][dy], xb, preferred_element_type=jnp.float32)
                  for dy in range(3)]
            rstack = jnp.concatenate(rs, axis=-1).astype(jnp.bfloat16)
            if b < 3:
                gstack = gearly_ref[:, b * L:(b + 1) * L]
            else:
                if b == 3:
                    glate_cp.wait()        # late weights needed from here on
                off = 0 if b == 3 else L
                gstack = glate_vmem[:, off:off + nout]
            y = jnp.dot(rstack, gstack,
                        preferred_element_type=jnp.float32)        # (n*hout, nout)
            if b < 4:
                x = bn_relu(y, b + 1, hout)
                # TODO(synk): nn.Dropout(0.5) after the ngf*2 -> ngf block
                # (b == 2) is stochastic in train mode; treated as identity
                # (eval semantics).
            else:
                # Final block: Tanh, write NCHW output directly.  Row and lane
                # offsets are 128-aligned -> unmasked vector stores.
                yt = jnp.tanh(y)                                   # (n*128, nc*128)
                for n in range(n_batch):
                    for cc in range(nc):
                        out_ref[n, cc, :, :] = yt[n * 128:(n + 1) * 128,
                                                  cc * 128:(cc + 1) * 128]

    return kernel


def generator_forward(params, z_nchw):
    d = params["dims"]
    nz, ngf, nc, n_batch = d["nz"], d["ngf"], d["nc"], d["n_batch"]
    assert z_nchw.shape[0] == n_batch and z_nchw.shape[1] == nz

    # Batch-stacked block-diagonal latent so the ConvTranspose is one in-kernel
    # matmul: zblk[n*4 + i, i*nz:(i+1)*nz] = z[n]  (tiny, built by XLA).
    z2 = z_nchw.reshape(n_batch, nz).astype(jnp.float32)
    zblk = jnp.zeros((n_batch, 4, 4 * nz), jnp.float32)
    for i in range(4):
        zblk = zblk.at[:, i, i * nz:(i + 1) * nz].set(z2)
    zblk = zblk.reshape(n_batch * 4, 4 * nz)

    inputs = ([zblk, params["wct"]] + list(params["ur"])
              + [params["g_early"], params["g_late"],
                 params["segt"], params["gb"]])

    def _vmem_spec(a):
        nd = a.ndim
        return pl.BlockSpec(a.shape, lambda i, nd=nd: (0,) * nd)

    in_specs = ([_vmem_spec(zblk), _vmem_spec(params["wct"])]
                + [_vmem_spec(u) for u in params["ur"]]
                + [_vmem_spec(params["g_early"]),
                   pl.BlockSpec(memory_space=pl.ANY),   # g_late streamed manually
                   _vmem_spec(params["segt"]),
                   _vmem_spec(params["gb"])])

    out_size = 128
    return pl.pallas_call(
        _make_generator_kernel(n_batch, nz, ngf, nc),
        out_shape=jax.ShapeDtypeStruct((n_batch, nc, out_size, out_size),
                                       jnp.float32),
        grid=(1,),
        in_specs=in_specs,
        out_specs=pl.BlockSpec((n_batch, nc, out_size, out_size),
                               lambda i: (0, 0, 0, 0)),
        scratch_shapes=[pltpu.VMEM(params["g_late"].shape, jnp.bfloat16),
                        pltpu.SemaphoreType.DMA(())],
        compiler_params=pltpu.CompilerParams(
            dimension_semantics=("arbitrary",)),
    )(*inputs)


if __name__ == "__main__":
    ngpu, nz, ngf, nc = 1, 8, 8, 3
    key = jax.random.PRNGKey(0)
    pkey, zkey = jax.random.split(key)
    params = init_generator_params(pkey, nz, ngf, nc, n_batch=2)
    z = jax.random.normal(zkey, (2, nz, 1, 1), jnp.float32)   # DCGAN latent

    fwd = jax.jit(functools.partial(generator_forward, params))
    out = jax.block_until_ready(fwd(z))
    assert out.shape == (2, nc, 128, 128), out.shape
    assert bool(jnp.all(jnp.isfinite(out)))
    assert bool(jnp.all(jnp.abs(out) <= 1.0))   # tanh range
    print("KERNEL_OK")
</pallas_src>

<mosaic_0001>
module attributes {stable_mosaic.version = 11 : i64} {
  func.func @kernel(%arg0: i32, %arg1: memref<8x32xf32, #tpu.memory_space<vmem>>, %arg2: memref<32x256xf32, #tpu.memory_space<vmem>>, %arg3: memref<3x16x8xbf16, #tpu.memory_space<vmem>>, %arg4: memref<3x32x16xbf16, #tpu.memory_space<vmem>>, %arg5: memref<3x64x32xbf16, #tpu.memory_space<vmem>>, %arg6: memref<3x128x64xbf16, #tpu.memory_space<vmem>>, %arg7: memref<3x256x128xbf16, #tpu.memory_space<vmem>>, %arg8: memref<768x768xbf16, #tpu.memory_space<vmem>>, %arg9: memref<768x640xbf16, #tpu.memory_space<any>>, %arg10: memref<124x256xf32, #tpu.memory_space<vmem>>, %arg11: memref<5x2x64xf32, #tpu.memory_space<vmem>>, %arg12: memref<2x3x128x128xf32, #tpu.memory_space<vmem>>, %arg13: memref<768x640xbf16, #tpu.memory_space<vmem>>, %arg14: memref<!tpu.dma_semaphore, #tpu.memory_space<semaphore_mem>>) attributes {dimension_semantics = [#tpu.dimension_semantics<arbitrary>], iteration_bounds = array<i64: 1>, scalar_prefetch = 0 : i64, scratch_operands = 2 : i64, tpu.core_type = #tpu.core_type<tc>, window_params = [{pipeline_mode = #tpu.pipeline_mode<synchronous>, transform_indices = @transform_0, window_bounds = array<i64: 8, 32>}, {pipeline_mode = #tpu.pipeline_mode<synchronous>, transform_indices = @transform_1, window_bounds = array<i64: 32, 256>}, {pipeline_mode = #tpu.pipeline_mode<synchronous>, transform_indices = @transform_2, window_bounds = array<i64: 3, 16, 8>}, {pipeline_mode = #tpu.pipeline_mode<synchronous>, transform_indices = @transform_3, window_bounds = array<i64: 3, 32, 16>}, {pipeline_mode = #tpu.pipeline_mode<synchronous>, transform_indices = @transform_4, window_bounds = array<i64: 3, 64, 32>}, {pipeline_mode = #tpu.pipeline_mode<synchronous>, transform_indices = @transform_5, window_bounds = array<i64: 3, 128, 64>}, {pipeline_mode = #tpu.pipeline_mode<synchronous>, transform_indices = @transform_6, window_bounds = array<i64: 3, 256, 128>}, {pipeline_mode = #tpu.pipeline_mode<synchronous>, transform_indices = @transform_7, window_bounds = array<i64: 768, 768>}, {}, {pipeline_mode = #tpu.pipeline_mode<synchronous>, transform_indices = @transform_9, window_bounds = array<i64: 124, 256>}, {pipeline_mode = #tpu.pipeline_mode<synchronous>, transform_indices = @transform_10, window_bounds = array<i64: 5, 2, 64>}, {pipeline_mode = #tpu.pipeline_mode<synchronous>, transform_indices = @transform_11, window_bounds = array<i64: 2, 3, 128, 128>}]} {
    tpu.enqueue_dma source(%arg9 : memref<768x640xbf16, #tpu.memory_space<any>>) target(%arg13 : memref<768x640xbf16, #tpu.memory_space<vmem>>) target_semaphore(%arg14 : memref<!tpu.dma_semaphore, #tpu.memory_space<semaphore_mem>>)
    %c0 = arith.constant 0 : index
    %c0_0 = arith.constant 0 : index
    %0 = vector.load %arg1[%c0, %c0_0] : memref<8x32xf32, #tpu.memory_space<vmem>>, vector<8x32xf32>
    %c0_1 = arith.constant 0 : index
    %c0_2 = arith.constant 0 : index
    %1 = vector.load %arg2[%c0_1, %c0_2] : memref<32x256xf32, #tpu.memory_space<vmem>>, vector<32x256xf32>
    %cst = arith.constant dense<0.000000e+00> : vector<8x256xf32>
    %2 = tpu.matmul %0, %1, %cst {dimension_numbers = #tpu.dot_dimension_numbers<[1], [0], [0], [1], [0, 0, 1, 1], [], []>} : vector<8x32xf32>, vector<32x256xf32>, vector<8x256xf32> -> vector<8x256xf32>
    %c0_3 = arith.constant 0 : index
    %c0_4 = arith.constant 0 : index
    %3 = vector.load %arg10[%c0_3, %c0_4] : memref<124x256xf32, #tpu.memory_space<vmem>>, vector<64x256xf32>
    %cst_5 = arith.constant dense<0.000000e+00> : vector<256xf32>
    %4 = vector.multi_reduction <add>, %2, %cst_5 [0] : vector<8x256xf32> to vector<256xf32>
    %5 = vector.shape_cast %4 : vector<256xf32> to vector<1x256xf32>
    %6 = arith.mulf %2, %2 : vector<8x256xf32>
    %cst_6 = arith.constant dense<0.000000e+00> : vector<256xf32>
    %7 = vector.multi_reduction <add>, %6, %cst_6 [0] : vector<8x256xf32> to vector<256xf32>
    %8 = vector.shape_cast %7 : vector<256xf32> to vector<1x256xf32>
    %9 = tpu.concatenate %5, %8 in 0 : vector<1x256xf32>, vector<1x256xf32> -> vector<2x256xf32>
    %10 = tpu.transpose %3, [1, 0] : vector<64x256xf32> -> vector<256x64xf32>
    %cst_7 = arith.constant dense<0.000000e+00> : vector<2x64xf32>
    %11 = tpu.matmul %9, %10, %cst_7 {dimension_numbers = #tpu.dot_dimension_numbers<[1], [0], [0], [1], [0, 0, 1, 1], [], []>} : vector<2x256xf32>, vector<256x64xf32>, vector<2x64xf32> -> vector<2x64xf32>
    %cst_8 = arith.constant 3.125000e-02 : f32
    %12 = vector.broadcast %cst_8 : f32 to vector<2x64xf32>
    %13 = arith.mulf %11, %12 : vector<2x64xf32>
    %14 = vector.extract_strided_slice %13 {offsets = [0, 0], sizes = [1, 64], strides = [1, 1]} : vector<2x64xf32> to vector<1x64xf32>
    %15 = vector.extract_strided_slice %13 {offsets = [1, 0], sizes = [1, 64], strides = [1, 1]} : vector<2x64xf32> to vector<1x64xf32>
    %16 = arith.mulf %14, %14 : vector<1x64xf32>
    %17 = arith.subf %15, %16 : vector<1x64xf32>
    %cst_9 = arith.constant 0.000000e+00 : f32
    %18 = vector.broadcast %cst_9 : f32 to vector<1x64xf32>
    %19 = arith.maximumf %17, %18 : vector<1x64xf32>
    %cst_10 = arith.constant 9.99999974E-6 : f32
    %20 = vector.broadcast %cst_10 : f32 to vector<1x64xf32>
    %21 = arith.addf %19, %20 : vector<1x64xf32>
    %22 = math.rsqrt %21 : vector<1x64xf32>
    %c0_11 = arith.constant 0 : index
    %c0_12 = arith.constant 0 : index
    %c0_13 = arith.constant 0 : index
    %23 = vector.load %arg11[%c0_11, %c0_12, %c0_13] : memref<5x2x64xf32, #tpu.memory_space<vmem>>, vector<1x2x64xf32>
    %24 = vector.shape_cast %23 : vector<1x2x64xf32> to vector<2x64xf32>
    %25 = vector.extract_strided_slice %24 {offsets = [0, 0], sizes = [1, 64], strides = [1, 1]} : vector<2x64xf32> to vector<1x64xf32>
    %26 = arith.mulf %25, %22 : vector<1x64xf32>
    %27 = vector.extract_strided_slice %24 {offsets = [1, 0], sizes = [1, 64], strides = [1, 1]} : vector<2x64xf32> to vector<1x64xf32>
    %28 = arith.mulf %14, %26 : vector<1x64xf32>
    %29 = arith.subf %27, %28 : vector<1x64xf32>
    %30 = tpu.concatenate %26, %29 in 0 : vector<1x64xf32>, vector<1x64xf32> -> vector<2x64xf32>
    %cst_14 = arith.constant dense<0.000000e+00> : vector<2x256xf32>
    %31 = tpu.matmul %30, %3, %cst_14 {dimension_numbers = #tpu.dot_dimension_numbers<[1], [0], [0], [1], [0, 0, 1, 1], [], []>} : vector<2x64xf32>, vector<64x256xf32>, vector<2x256xf32> -> vector<2x256xf32>
    %32 = vector.extract_strided_slice %31 {offsets = [0, 0], sizes = [1, 256], strides = [1, 1]} : vector<2x256xf32> to vector<1x256xf32>
    %33 = vector.broadcast %32 : vector<1x256xf32> to vector<8x256xf32>
    %34 = arith.mulf %2, %33 : vector<8x256xf32>
    %35 = vector.extract_strided_slice %31 {offsets = [1, 0], sizes = [1, 256], strides = [1, 1]} : vector<2x256xf32> to vector<1x256xf32>
    %36 = vector.broadcast %35 : vector<1x256xf32> to vector<8x256xf32>
    %37 = arith.addf %34, %36 : vector<8x256xf32>
    %cst_15 = arith.constant 0.000000e+00 : f32
    %38 = vector.broadcast %cst_15 : f32 to vector<8x256xf32>
    %39 = arith.maximumf %37, %38 : vector<8x256xf32>
    %40 = arith.truncf %39 : vector<8x256xf32> to vector<8x256xbf16>
    %c0_16 = arith.constant 0 : index
    %c0_17 = arith.constant 0 : index
    %c0_18 = arith.constant 0 : index
    %41 = vector.load %arg3[%c0_16, %c0_17, %c0_18] : memref<3x16x8xbf16, #tpu.memory_space<vmem>>, vector<1x16x8xbf16>
    %42 = vector.shape_cast %41 : vector<1x16x8xbf16> to vector<16x8xbf16>
    %cst_19 = arith.constant dense<0.000000e+00> : vector<16x256xf32>
    %43 = tpu.matmul %42, %40, %cst_19 {dimension_numbers = #tpu.dot_dimension_numbers<[1], [0], [0], [1], [0, 0, 1, 1], [], []>} : vector<16x8xbf16>, vector<8x256xbf16>, vector<16x256xf32> -> vector<16x256xf32>
    %c1 = arith.constant 1 : index
    %c0_20 = arith.constant 0 : index
    %c0_21 = arith.constant 0 : index
    %44 = vector.load %arg3[%c1, %c0_20, %c0_21] : memref<3x16x8xbf16, #tpu.memory_space<vmem>>, vector<1x16x8xbf16>
    %45 = vector.shape_cast %44 : vector<1x16x8xbf16> to vector<16x8xbf16>
    %cst_22 = arith.constant dense<0.000000e+00> : vector<16x256xf32>
    %46 = tpu.matmul %45, %40, %cst_22 {dimension_numbers = #tpu.dot_dimension_numbers<[1], [0], [0], [1], [0, 0, 1, 1], [], []>} : vector<16x8xbf16>, vector<8x256xbf16>, vector<16x256xf32> -> vector<16x256xf32>
    %c2 = arith.constant 2 : index
    %c0_23 = arith.constant 0 : index
    %c0_24 = arith.constant 0 : index
    %47 = vector.load %arg3[%c2, %c0_23, %c0_24] : memref<3x16x8xbf16, #tpu.memory_space<vmem>>, vector<1x16x8xbf16>
    %48 = vector.shape_cast %47 : vector<1x16x8xbf16> to vector<16x8xbf16>
    %cst_25 = arith.constant dense<0.000000e+00> : vector<16x256xf32>
    %49 = tpu.matmul %48, %40, %cst_25 {dimension_numbers = #tpu.dot_dimension_numbers<[1], [0], [0], [1], [0, 0, 1, 1], [], []>} : vector<16x8xbf16>, vector<8x256xbf16>, vector<16x256xf32> -> vector<16x256xf32>
    %50 = tpu.concatenate %43, %46, %49 in 1 : vector<16x256xf32>, vector<16x256xf32>, vector<16x256xf32> -> vector<16x768xf32>
    %51 = arith.truncf %50 : vector<16x768xf32> to vector<16x768xbf16>
    %c0_26 = arith.constant 0 : index
    %c0_27 = arith.constant 0 : index
    %52 = vector.load %arg8[%c0_26, %c0_27] : memref<768x768xbf16, #tpu.memory_space<vmem>>, vector<768x256xbf16>
    %cst_28 = arith.constant dense<0.000000e+00> : vector<16x256xf32>
    %53 = tpu.matmul %51, %52, %cst_28 {dimension_numbers = #tpu.dot_dimension_numbers<[1], [0], [0], [1], [0, 0, 1, 1], [], []>} : vector<16x768xbf16>, vector<768x256xbf16>, vector<16x256xf32> -> vector<16x256xf32>
    %c64 = arith.constant 64 : index
    %c0_29 = arith.constant 0 : index
    %54 = vector.load %arg10[%c64, %c0_29] : memref<124x256xf32, #tpu.memory_space<vmem>>, vector<32x256xf32>
    %cst_30 = arith.constant dense<0.000000e+00> : vector<256xf32>
    %55 = vector.multi_reduction <add>, %53, %cst_30 [0] : vector<16x256xf32> to vector<256xf32>
    %56 = vector.shape_cast %55 : vector<256xf32> to vector<1x256xf32>
    %57 = arith.mulf %53, %53 : vector<16x256xf32>
    %cst_31 = arith.constant dense<0.000000e+00> : vector<256xf32>
    %58 = vector.multi_reduction <add>, %57, %cst_31 [0] : vector<16x256xf32> to vector<256xf32>
    %59 = vector.shape_cast %58 : vector<256xf32> to vector<1x256xf32>
    %60 = tpu.concatenate %56, %59 in 0 : vector<1x256xf32>, vector<1x256xf32> -> vector<2x256xf32>
    %61 = tpu.transpose %54, [1, 0] : vector<32x256xf32> -> vector<256x32xf32>
    %cst_32 = arith.constant dense<0.000000e+00> : vector<2x32xf32>
    %62 = tpu.matmul %60, %61, %cst_32 {dimension_numbers = #tpu.dot_dimension_numbers<[1], [0], [0], [1], [0, 0, 1, 1], [], []>} : vector<2x256xf32>, vector<256x32xf32>, vector<2x32xf32> -> vector<2x32xf32>
    %cst_33 = arith.constant 7.812500e-03 : f32
    %63 = vector.broadcast %cst_33 : f32 to vector<2x32xf32>
    %64 = arith.mulf %62, %63 : vector<2x32xf32>
    %65 = vector.extract_strided_slice %64 {offsets = [0, 0], sizes = [1, 32], strides = [1, 1]} : vector<2x32xf32> to vector<1x32xf32>
    %66 = vector.extract_strided_slice %64 {offsets = [1, 0], sizes = [1, 32], strides = [1, 1]} : vector<2x32xf32> to vector<1x32xf32>
    %67 = arith.mulf %65, %65 : vector<1x32xf32>
    %68 = arith.subf %66, %67 : vector<1x32xf32>
    %cst_34 = arith.constant 0.000000e+00 : f32
    %69 = vector.broadcast %cst_34 : f32 to vector<1x32xf32>
    %70 = arith.maximumf %68, %69 : vector<1x32xf32>
    %cst_35 = arith.constant 9.99999974E-6 : f32
    %71 = vector.broadcast %cst_35 : f32 to vector<1x32xf32>
    %72 = arith.addf %70, %71 : vector<1x32xf32>
    %73 = math.rsqrt %72 : vector<1x32xf32>
    %c1_36 = arith.constant 1 : index
    %c0_37 = arith.constant 0 : index
    %c0_38 = arith.constant 0 : index
    %74 = vector.load %arg11[%c1_36, %c0_37, %c0_38] : memref<5x2x64xf32, #tpu.memory_space<vmem>>, vector<1x2x64xf32>
    %75 = vector.shape_cast %74 : vector<1x2x64xf32> to vector<2x64xf32>
    %76 = vector.extract_strided_slice %75 {offsets = [0, 0], sizes = [1, 32], strides = [1, 1]} : vector<2x64xf32> to vector<1x32xf32>
    %77 = arith.mulf %76, %73 : vector<1x32xf32>
    %78 = vector.extract_strided_slice %75 {offsets = [1, 0], sizes = [1, 32], strides = [1, 1]} : vector<2x64xf32> to vector<1x32xf32>
    %79 = arith.mulf %65, %77 : vector<1x32xf32>
    %80 = arith.subf %78, %79 : vector<1x32xf32>
    %81 = tpu.concatenate %77, %80 in 0 : vector<1x32xf32>, vector<1x32xf32> -> vector<2x32xf32>
    %cst_39 = arith.constant dense<0.000000e+00> : vector<2x256xf32>
    %82 = tpu.matmul %81, %54, %cst_39 {dimension_numbers = #tpu.dot_dimension_numbers<[1], [0], [0], [1], [0, 0, 1, 1], [], []>} : vector<2x32xf32>, vector<32x256xf32>, vector<2x256xf32> -> vector<2x256xf32>
    %83 = vector.extract_strided_slice %82 {offsets = [0, 0], sizes = [1, 256], strides = [1, 1]} : vector<2x256xf32> to vector<1x256xf32>
    %84 = vector.broadcast %83 : vector<1x256xf32> to vector<16x256xf32>
    %85 = arith.mulf %53, %84 : vector<16x256xf32>
    %86 = vector.extract_strided_slice %82 {offsets = [1, 0], sizes = [1, 256], strides = [1, 1]} : vector<2x256xf32> to vector<1x256xf32>
    %87 = vector.broadcast %86 : vector<1x256xf32> to vector<16x256xf32>
    %88 = arith.addf %85, %87 : vector<16x256xf32>
    %cst_40 = arith.constant 0.000000e+00 : f32
    %89 = vector.broadcast %cst_40 : f32 to vector<16x256xf32>
    %90 = arith.maximumf %88, %89 : vector<16x256xf32>
    %91 = arith.truncf %90 : vector<16x256xf32> to vector<16x256xbf16>
    %c0_41 = arith.constant 0 : index
    %c0_42 = arith.constant 0 : index
    %c0_43 = arith.constant 0 : index
    %92 = vector.load %arg4[%c0_41, %c0_42, %c0_43] : memref<3x32x16xbf16, #tpu.memory_space<vmem>>, vector<1x32x16xbf16>
    %93 = vector.shape_cast %92 : vector<1x32x16xbf16> to vector<32x16xbf16>
    %cst_44 = arith.constant dense<0.000000e+00> : vector<32x256xf32>
    %94 = tpu.matmul %93, %91, %cst_44 {dimension_numbers = #tpu.dot_dimension_numbers<[1], [0], [0], [1], [0, 0, 1, 1], [], []>} : vector<32x16xbf16>, vector<16x256xbf16>, vector<32x256xf32> -> vector<32x256xf32>
    %c1_45 = arith.constant 1 : index
    %c0_46 = arith.constant 0 : index
    %c0_47 = arith.constant 0 : index
    %95 = vector.load %arg4[%c1_45, %c0_46, %c0_47] : memref<3x32x16xbf16, #tpu.memory_space<vmem>>, vector<1x32x16xbf16>
    %96 = vector.shape_cast %95 : vector<1x32x16xbf16> to vector<32x16xbf16>
    %cst_48 = arith.constant dense<0.000000e+00> : vector<32x256xf32>
    %97 = tpu.matmul %96, %91, %cst_48 {dimension_numbers = #tpu.dot_dimension_numbers<[1], [0], [0], [1], [0, 0, 1, 1], [], []>} : vector<32x16xbf16>, vector<16x256xbf16>, vector<32x256xf32> -> vector<32x256xf32>
    %c2_49 = arith.constant 2 : index
    %c0_50 = arith.constant 0 : index
    %c0_51 = arith.constant 0 : index
    %98 = vector.load %arg4[%c2_49, %c0_50, %c0_51] : memref<3x32x16xbf16, #tpu.memory_space<vmem>>, vector<1x32x16xbf16>
    %99 = vector.shape_cast %98 : vector<1x32x16xbf16> to vector<32x16xbf16>
    %cst_52 = arith.constant dense<0.000000e+00> : vector<32x256xf32>
    %100 = tpu.matmul %99, %91, %cst_52 {dimension_numbers = #tpu.dot_dimension_numbers<[1], [0], [0], [1], [0, 0, 1, 1], [], []>} : vector<32x16xbf16>, vector<16x256xbf16>, vector<32x256xf32> -> vector<32x256xf32>
    %101 = tpu.concatenate %94, %97, %100 in 1 : vector<32x256xf32>, vector<32x256xf32>, vector<32x256xf32> -> vector<32x768xf32>
    %102 = arith.truncf %101 : vector<32x768xf32> to vector<32x768xbf16>
    %c0_53 = arith.constant 0 : index
    %c256 = arith.constant 256 : index
    %103 = vector.load %arg8[%c0_53, %c256] : memref<768x768xbf16, #tpu.memory_space<vmem>>, vector<768x256xbf16>
    %cst_54 = arith.constant dense<0.000000e+00> : vector<32x256xf32>
    %104 = tpu.matmul %102, %103, %cst_54 {dimension_numbers = #tpu.dot_dimension_numbers<[1], [0], [0], [1], [0, 0, 1, 1], [], []>} : vector<32x768xbf16>, vector<768x256xbf16>, vector<32x256xf32> -> vector<32x256xf32>
    %c96 = arith.constant 96 : index
    %c0_55 = arith.constant 0 : index
    %105 = vector.load %arg10[%c96, %c0_55] : memref<124x256xf32, #tpu.memory_space<vmem>>, vector<16x256xf32>
    %cst_56 = arith.constant dense<0.000000e+00> : vector<256xf32>
    %106 = vector.multi_reduction <add>, %104, %cst_56 [0] : vector<32x256xf32> to vector<256xf32>
    %107 = vector.shape_cast %106 : vector<256xf32> to vector<1x256xf32>
    %108 = arith.mulf %104, %104 : vector<32x256xf32>
    %cst_57 = arith.constant dense<0.000000e+00> : vector<256xf32>
    %109 = vector.multi_reduction <add>, %108, %cst_57 [0] : vector<32x256xf32> to vector<256xf32>
    %110 = vector.shape_cast %109 : vector<256xf32> to vector<1x256xf32>
    %111 = tpu.concatenate %107, %110 in 0 : vector<1x256xf32>, vector<1x256xf32> -> vector<2x256xf32>
    %112 = tpu.transpose %105, [1, 0] : vector<16x256xf32> -> vector<256x16xf32>
    %cst_58 = arith.constant dense<0.000000e+00> : vector<2x16xf32>
    %113 = tpu.matmul %111, %112, %cst_58 {dimension_numbers = #tpu.dot_dimension_numbers<[1], [0], [0], [1], [0, 0, 1, 1], [], []>} : vector<2x256xf32>, vector<256x16xf32>, vector<2x16xf32> -> vector<2x16xf32>
    %cst_59 = arith.constant 0.001953125 : f32
    %114 = vector.broadcast %cst_59 : f32 to vector<2x16xf32>
    %115 = arith.mulf %113, %114 : vector<2x16xf32>
    %116 = vector.extract_strided_slice %115 {offsets = [0, 0], sizes = [1, 16], strides = [1, 1]} : vector<2x16xf32> to vector<1x16xf32>
    %117 = vector.extract_strided_slice %115 {offsets = [1, 0], sizes = [1, 16], strides = [1, 1]} : vector<2x16xf32> to vector<1x16xf32>
    %118 = arith.mulf %116, %116 : vector<1x16xf32>
    %119 = arith.subf %117, %118 : vector<1x16xf32>
    %cst_60 = arith.constant 0.000000e+00 : f32
    %120 = vector.broadcast %cst_60 : f32 to vector<1x16xf32>
    %121 = arith.maximumf %119, %120 : vector<1x16xf32>
    %cst_61 = arith.constant 9.99999974E-6 : f32
    %122 = vector.broadcast %cst_61 : f32 to vector<1x16xf32>
    %123 = arith.addf %121, %122 : vector<1x16xf32>
    %124 = math.rsqrt %123 : vector<1x16xf32>
    %c2_62 = arith.constant 2 : index
    %c0_63 = arith.constant 0 : index
    %c0_64 = arith.constant 0 : index
    %125 = vector.load %arg11[%c2_62, %c0_63, %c0_64] : memref<5x2x64xf32, #tpu.memory_space<vmem>>, vector<1x2x64xf32>
    %126 = vector.shape_cast %125 : vector<1x2x64xf32> to vector<2x64xf32>
    %127 = vector.extract_strided_slice %126 {offsets = [0, 0], sizes = [1, 16], strides = [1, 1]} : vector<2x64xf32> to vector<1x16xf32>
    %128 = arith.mulf %127, %124 : vector<1x16xf32>
    %129 = vector.extract_strided_slice %126 {offsets = [1, 0], sizes = [1, 16], strides = [1, 1]} : vector<2x64xf32> to vector<1x16xf32>
    %130 = arith.mulf %116, %128 : vector<1x16xf32>
    %131 = arith.subf %129, %130 : vector<1x16xf32>
    %132 = tpu.concatenate %128, %131 in 0 : vector<1x16xf32>, vector<1x16xf32> -> vector<2x16xf32>
    %cst_65 = arith.constant dense<0.000000e+00> : vector<2x256xf32>
    %133 = tpu.matmul %132, %105, %cst_65 {dimension_numbers = #tpu.dot_dimension_numbers<[1], [0], [0], [1], [0, 0, 1, 1], [], []>} : vector<2x16xf32>, vector<16x256xf32>, vector<2x256xf32> -> vector<2x256xf32>
    %134 = vector.extract_strided_slice %133 {offsets = [0, 0], sizes = [1, 256], strides = [1, 1]} : vector<2x256xf32> to vector<1x256xf32>
    %135 = vector.broadcast %134 : vector<1x256xf32> to vector<32x256xf32>
    %136 = arith.mulf %104, %135 : vector<32x256xf32>
    %137 = vector.extract_strided_slice %133 {offsets = [1, 0], sizes = [1, 256], strides = [1, 1]} : vector<2x256xf32> to vector<1x256xf32>
    %138 = vector.broadcast %137 : vector<1x256xf32> to vector<32x256xf32>
    %139 = arith.addf %136, %138 : vector<32x256xf32>
    %cst_66 = arith.constant 0.000000e+00 : f32
    %140 = vector.broadcast %cst_66 : f32 to vector<32x256xf32>
    %141 = arith.maximumf %139, %140 : vector<32x256xf32>
    %142 = arith.truncf %141 : vector<32x256xf32> to vector<32x256xbf16>
    %c0_67 = arith.constant 0 : index
    %c0_68 = arith.constant 0 : index
    %c0_69 = arith.constant 0 : index
    %143 = vector.load %arg5[%c0_67, %c0_68, %c0_69] : memref<3x64x32xbf16, #tpu.memory_space<vmem>>, vector<1x64x32xbf16>
    %144 = vector.shape_cast %143 : vector<1x64x32xbf16> to vector<64x32xbf16>
    %cst_70 = arith.constant dense<0.000000e+00> : vector<64x256xf32>
    %145 = tpu.matmul %144, %142, %cst_70 {dimension_numbers = #tpu.dot_dimension_numbers<[1], [0], [0], [1], [0, 0, 1, 1], [], []>} : vector<64x32xbf16>, vector<32x256xbf16>, vector<64x256xf32> -> vector<64x256xf32>
    %c1_71 = arith.constant 1 : index
    %c0_72 = arith.constant 0 : index
    %c0_73 = arith.constant 0 : index
    %146 = vector.load %arg5[%c1_71, %c0_72, %c0_73] : memref<3x64x32xbf16, #tpu.memory_space<vmem>>, vector<1x64x32xbf16>
    %147 = vector.shape_cast %146 : vector<1x64x32xbf16> to vector<64x32xbf16>
    %cst_74 = arith.constant dense<0.000000e+00> : vector<64x256xf32>
    %148 = tpu.matmul %147, %142, %cst_74 {dimension_numbers = #tpu.dot_dimension_numbers<[1], [0], [0], [1], [0, 0, 1, 1], [], []>} : vector<64x32xbf16>, vector<32x256xbf16>, vector<64x256xf32> -> vector<64x256xf32>
    %c2_75 = arith.constant 2 : index
    %c0_76 = arith.constant 0 : index
    %c0_77 = arith.constant 0 : index
    %149 = vector.load %arg5[%c2_75, %c0_76, %c0_77] : memref<3x64x32xbf16, #tpu.memory_space<vmem>>, vector<1x64x32xbf16>
    %150 = vector.shape_cast %149 : vector<1x64x32xbf16> to vector<64x32xbf16>
    %cst_78 = arith.constant dense<0.000000e+00> : vector<64x256xf32>
    %151 = tpu.matmul %150, %142, %cst_78 {dimension_numbers = #tpu.dot_dimension_numbers<[1], [0], [0], [1], [0, 0, 1, 1], [], []>} : vector<64x32xbf16>, vector<32x256xbf16>, vector<64x256xf32> -> vector<64x256xf32>
    %152 = tpu.concatenate %145, %148, %151 in 1 : vector<64x256xf32>, vector<64x256xf32>, vector<64x256xf32> -> vector<64x768xf32>
    %153 = arith.truncf %152 : vector<64x768xf32> to vector<64x768xbf16>
    %c0_79 = arith.constant 0 : index
    %c512 = arith.constant 512 : index
    %154 = vector.load %arg8[%c0_79, %c512] : memref<768x768xbf16, #tpu.memory_space<vmem>>, vector<768x256xbf16>
    %cst_80 = arith.constant dense<0.000000e+00> : vector<64x256xf32>
    %155 = tpu.matmul %153, %154, %cst_80 {dimension_numbers = #tpu.dot_dimension_numbers<[1], [0], [0], [1], [0, 0, 1, 1], [], []>} : vector<64x768xbf16>, vector<768x256xbf16>, vector<64x256xf32> -> vector<64x256xf32>
    %c112 = arith.constant 112 : index
    %c0_81 = arith.constant 0 : index
    %156 = vector.load %arg10[%c112, %c0_81] : memref<124x256xf32, #tpu.memory_space<vmem>>, vector<8x256xf32>
    %cst_82 = arith.constant dense<0.000000e+00> : vector<256xf32>
    %157 = vector.multi_reduction <add>, %155, %cst_82 [0] : vector<64x256xf32> to vector<256xf32>
    %158 = vector.shape_cast %157 : vector<256xf32> to vector<1x256xf32>
    %159 = arith.mulf %155, %155 : vector<64x256xf32>
    %cst_83 = arith.constant dense<0.000000e+00> : vector<256xf32>
    %160 = vector.multi_reduction <add>, %159, %cst_83 [0] : vector<64x256xf32> to vector<256xf32>
    %161 = vector.shape_cast %160 : vector<256xf32> to vector<1x256xf32>
    %162 = tpu.concatenate %158, %161 in 0 : vector<1x256xf32>, vector<1x256xf32> -> vector<2x256xf32>
    %163 = tpu.transpose %156, [1, 0] : vector<8x256xf32> -> vector<256x8xf32>
    %cst_84 = arith.constant dense<0.000000e+00> : vector<2x8xf32>
    %164 = tpu.matmul %162, %163, %cst_84 {dimension_numbers = #tpu.dot_dimension_numbers<[1], [0], [0], [1], [0, 0, 1, 1], [], []>} : vector<2x256xf32>, vector<256x8xf32>, vector<2x8xf32> -> vector<2x8xf32>
    %cst_85 = arith.constant 4.8828125E-4 : f32
    %165 = vector.broadcast %cst_85 : f32 to vector<2x8xf32>
    %166 = arith.mulf %164, %165 : vector<2x8xf32>
    %167 = vector.extract_strided_slice %166 {offsets = [0, 0], sizes = [1, 8], strides = [1, 1]} : vector<2x8xf32> to vector<1x8xf32>
    %168 = vector.extract_strided_slice %166 {offsets = [1, 0], sizes = [1, 8], strides = [1, 1]} : vector<2x8xf32> to vector<1x8xf32>
    %169 = arith.mulf %167, %167 : vector<1x8xf32>
    %170 = arith.subf %168, %169 : vector<1x8xf32>
    %cst_86 = arith.constant 0.000000e+00 : f32
    %171 = vector.broadcast %cst_86 : f32 to vector<1x8xf32>
    %172 = arith.maximumf %170, %171 : vector<1x8xf32>
    %cst_87 = arith.constant 9.99999974E-6 : f32
    %173 = vector.broadcast %cst_87 : f32 to vector<1x8xf32>
    %174 = arith.addf %172, %173 : vector<1x8xf32>
    %175 = math.rsqrt %174 : vector<1x8xf32>
    %c3 = arith.constant 3 : index
    %c0_88 = arith.constant 0 : index
    %c0_89 = arith.constant 0 : index
    %176 = vector.load %arg11[%c3, %c0_88, %c0_89] : memref<5x2x64xf32, #tpu.memory_space<vmem>>, vector<1x2x64xf32>
    %177 = vector.shape_cast %176 : vector<1x2x64xf32> to vector<2x64xf32>
    %178 = vector.extract_strided_slice %177 {offsets = [0, 0], sizes = [1, 8], strides = [1, 1]} : vector<2x64xf32> to vector<1x8xf32>
    %179 = arith.mulf %178, %175 : vector<1x8xf32>
    %180 = vector.extract_strided_slice %177 {offsets = [1, 0], sizes = [1, 8], strides = [1, 1]} : vector<2x64xf32> to vector<1x8xf32>
    %181 = arith.mulf %167, %179 : vector<1x8xf32>
    %182 = arith.subf %180, %181 : vector<1x8xf32>
    %183 = tpu.concatenate %179, %182 in 0 : vector<1x8xf32>, vector<1x8xf32> -> vector<2x8xf32>
    %cst_90 = arith.constant dense<0.000000e+00> : vector<2x256xf32>
    %184 = tpu.matmul %183, %156, %cst_90 {dimension_numbers = #tpu.dot_dimension_numbers<[1], [0], [0], [1], [0, 0, 1, 1], [], []>} : vector<2x8xf32>, vector<8x256xf32>, vector<2x256xf32> -> vector<2x256xf32>
    %185 = vector.extract_strided_slice %184 {offsets = [0, 0], sizes = [1, 256], strides = [1, 1]} : vector<2x256xf32> to vector<1x256xf32>
    %186 = vector.broadcast %185 : vector<1x256xf32> to vector<64x256xf32>
    %187 = arith.mulf %155, %186 : vector<64x256xf32>
    %188 = vector.extract_strided_slice %184 {offsets = [1, 0], sizes = [1, 256], strides = [1, 1]} : vector<2x256xf32> to vector<1x256xf32>
    %189 = vector.broadcast %188 : vector<1x256xf32> to vector<64x256xf32>
    %190 = arith.addf %187, %189 : vector<64x256xf32>
    %cst_91 = arith.constant 0.000000e+00 : f32
    %191 = vector.broadcast %cst_91 : f32 to vector<64x256xf32>
    %192 = arith.maximumf %190, %191 : vector<64x256xf32>
    %193 = arith.truncf %192 : vector<64x256xf32> to vector<64x256xbf16>
    %c0_92 = arith.constant 0 : index
    %c0_93 = arith.constant 0 : index
    %c0_94 = arith.constant 0 : index
    %194 = vector.load %arg6[%c0_92, %c0_93, %c0_94] : memref<3x128x64xbf16, #tpu.memory_space<vmem>>, vector<1x128x64xbf16>
    %195 = vector.shape_cast %194 : vector<1x128x64xbf16> to vector<128x64xbf16>
    %cst_95 = arith.constant dense<0.000000e+00> : vector<128x256xf32>
    %196 = tpu.matmul %195, %193, %cst_95 {dimension_numbers = #tpu.dot_dimension_numbers<[1], [0], [0], [1], [0, 0, 1, 1], [], []>} : vector<128x64xbf16>, vector<64x256xbf16>, vector<128x256xf32> -> vector<128x256xf32>
    %c1_96 = arith.constant 1 : index
    %c0_97 = arith.constant 0 : index
    %c0_98 = arith.constant 0 : index
    %197 = vector.load %arg6[%c1_96, %c0_97, %c0_98] : memref<3x128x64xbf16, #tpu.memory_space<vmem>>, vector<1x128x64xbf16>
    %198 = vector.shape_cast %197 : vector<1x128x64xbf16> to vector<128x64xbf16>
    %cst_99 = arith.constant dense<0.000000e+00> : vector<128x256xf32>
    %199 = tpu.matmul %198, %193, %cst_99 {dimension_numbers = #tpu.dot_dimension_numbers<[1], [0], [0], [1], [0, 0, 1, 1], [], []>} : vector<128x64xbf16>, vector<64x256xbf16>, vector<128x256xf32> -> vector<128x256xf32>
    %c2_100 = arith.constant 2 : index
    %c0_101 = arith.constant 0 : index
    %c0_102 = arith.constant 0 : index
    %200 = vector.load %arg6[%c2_100, %c0_101, %c0_102] : memref<3x128x64xbf16, #tpu.memory_space<vmem>>, vector<1x128x64xbf16>
    %201 = vector.shape_cast %200 : vector<1x128x64xbf16> to vector<128x64xbf16>
    %cst_103 = arith.constant dense<0.000000e+00> : vector<128x256xf32>
    %202 = tpu.matmul %201, %193, %cst_103 {dimension_numbers = #tpu.dot_dimension_numbers<[1], [0], [0], [1], [0, 0, 1, 1], [], []>} : vector<128x64xbf16>, vector<64x256xbf16>, vector<128x256xf32> -> vector<128x256xf32>
    %203 = tpu.concatenate %196, %199, %202 in 1 : vector<128x256xf32>, vector<128x256xf32>, vector<128x256xf32> -> vector<128x768xf32>
    %204 = arith.truncf %203 : vector<128x768xf32> to vector<128x768xbf16>
    tpu.wait_dma2 semaphore(%arg14 : memref<!tpu.dma_semaphore, #tpu.memory_space<semaphore_mem>>) src(%arg9 : memref<768x640xbf16, #tpu.memory_space<any>>) dst(%arg13 : memref<768x640xbf16, #tpu.memory_space<vmem>>)
    %c0_104 = arith.constant 0 : index
    %c0_105 = arith.constant 0 : index
    %205 = vector.load %arg13[%c0_104, %c0_105] : memref<768x640xbf16, #tpu.memory_space<vmem>>, vector<768x256xbf16>
    %cst_106 = arith.constant dense<0.000000e+00> : vector<128x256xf32>
    %206 = tpu.matmul %204, %205, %cst_106 {dimension_numbers = #tpu.dot_dimension_numbers<[1], [0], [0], [1], [0, 0, 1, 1], [], []>} : vector<128x768xbf16>, vector<768x256xbf16>, vector<128x256xf32> -> vector<128x256xf32>
    %c120 = arith.constant 120 : index
    %c0_107 = arith.constant 0 : index
    %207 = vector.load %arg10[%c120, %c0_107] : memref<124x256xf32, #tpu.memory_space<vmem>>, vector<4x256xf32>
    %cst_108 = arith.constant dense<0.000000e+00> : vector<256xf32>
    %208 = vector.multi_reduction <add>, %206, %cst_108 [0] : vector<128x256xf32> to vector<256xf32>
    %209 = vector.shape_cast %208 : vector<256xf32> to vector<1x256xf32>
    %210 = arith.mulf %206, %206 : vector<128x256xf32>
    %cst_109 = arith.constant dense<0.000000e+00> : vector<256xf32>
    %211 = vector.multi_reduction <add>, %210, %cst_109 [0] : vector<128x256xf32> to vector<256xf32>
    %212 = vector.shape_cast %211 : vector<256xf32> to vector<1x256xf32>
    %213 = tpu.concatenate %209, %212 in 0 : vector<1x256xf32>, vector<1x256xf32> -> vector<2x256xf32>
    %214 = tpu.transpose %207, [1, 0] : vector<4x256xf32> -> vector<256x4xf32>
    %cst_110 = arith.constant dense<0.000000e+00> : vector<2x4xf32>
    %215 = tpu.matmul %213, %214, %cst_110 {dimension_numbers = #tpu.dot_dimension_numbers<[1], [0], [0], [1], [0, 0, 1, 1], [], []>} : vector<2x256xf32>, vector<256x4xf32>, vector<2x4xf32> -> vector<2x4xf32>
    %cst_111 = arith.constant 1.22070313E-4 : f32
    %216 = vector.broadcast %cst_111 : f32 to vector<2x4xf32>
    %217 = arith.mulf %215, %216 : vector<2x4xf32>
    %218 = vector.extract_strided_slice %217 {offsets = [0, 0], sizes = [1, 4], strides = [1, 1]} : vector<2x4xf32> to vector<1x4xf32>
    %219 = vector.extract_strided_slice %217 {offsets = [1, 0], sizes = [1, 4], strides = [1, 1]} : vector<2x4xf32> to vector<1x4xf32>
    %220 = arith.mulf %218, %218 : vector<1x4xf32>
    %221 = arith.subf %219, %220 : vector<1x4xf32>
    %cst_112 = arith.constant 0.000000e+00 : f32
    %222 = vector.broadcast %cst_112 : f32 to vector<1x4xf32>
    %223 = arith.maximumf %221, %222 : vector<1x4xf32>
    %cst_113 = arith.constant 9.99999974E-6 : f32
    %224 = vector.broadcast %cst_113 : f32 to vector<1x4xf32>
    %225 = arith.addf %223, %224 : vector<1x4xf32>
    %226 = math.rsqrt %225 : vector<1x4xf32>
    %c4 = arith.constant 4 : index
    %c0_114 = arith.constant 0 : index
    %c0_115 = arith.constant 0 : index
    %227 = vector.load %arg11[%c4, %c0_114, %c0_115] : memref<5x2x64xf32, #tpu.memory_space<vmem>>, vector<1x2x64xf32>
    %228 = vector.shape_cast %227 : vector<1x2x64xf32> to vector<2x64xf32>
    %229 = vector.extract_strided_slice %228 {offsets = [0, 0], sizes = [1, 4], strides = [1, 1]} : vector<2x64xf32> to vector<1x4xf32>
    %230 = arith.mulf %229, %226 : vector<1x4xf32>
    %231 = vector.extract_strided_slice %228 {offsets = [1, 0], sizes = [1, 4], strides = [1, 1]} : vector<2x64xf32> to vector<1x4xf32>
    %232 = arith.mulf %218, %230 : vector<1x4xf32>
    %233 = arith.subf %231, %232 : vector<1x4xf32>
    %234 = tpu.concatenate %230, %233 in 0 : vector<1x4xf32>, vector<1x4xf32> -> vector<2x4xf32>
    %cst_116 = arith.constant dense<0.000000e+00> : vector<2x256xf32>
    %235 = tpu.matmul %234, %207, %cst_116 {dimension_numbers = #tpu.dot_dimension_numbers<[1], [0], [0], [1], [0, 0, 1, 1], [], []>} : vector<2x4xf32>, vector<4x256xf32>, vector<2x256xf32> -> vector<2x256xf32>
    %236 = vector.extract_strided_slice %235 {offsets = [0, 0], sizes = [1, 256], strides = [1, 1]} : vector<2x256xf32> to vector<1x256xf32>
    %237 = vector.broadcast %236 : vector<1x256xf32> to vector<128x256xf32>
    %238 = arith.mulf %206, %237 : vector<128x256xf32>
    %239 = vector.extract_strided_slice %235 {offsets = [1, 0], sizes = [1, 256], strides = [1, 1]} : vector<2x256xf32> to vector<1x256xf32>
    %240 = vector.broadcast %239 : vector<1x256xf32> to vector<128x256xf32>
    %241 = arith.addf %238, %240 : vector<128x256xf32>
    %cst_117 = arith.constant 0.000000e+00 : f32
    %242 = vector.broadcast %cst_117 : f32 to vector<128x256xf32>
    %243 = arith.maximumf %241, %242 : vector<128x256xf32>
    %244 = arith.truncf %243 : vector<128x256xf32> to vector<128x256xbf16>
    %c0_118 = arith.constant 0 : index
    %c0_119 = arith.constant 0 : index
    %c0_120 = arith.constant 0 : index
    %245 = vector.load %arg7[%c0_118, %c0_119, %c0_120] : memref<3x256x128xbf16, #tpu.memory_space<vmem>>, vector<1x256x128xbf16>
    %246 = vector.shape_cast %245 : vector<1x256x128xbf16> to vector<256x128xbf16>
    %cst_121 = arith.constant dense<0.000000e+00> : vector<256x256xf32>
    %247 = tpu.matmul %246, %244, %cst_121 {dimension_numbers = #tpu.dot_dimension_numbers<[1], [0], [0], [1], [0, 0, 1, 1], [], []>} : vector<256x128xbf16>, vector<128x256xbf16>, vector<256x256xf32> -> vector<256x256xf32>
    %c1_122 = arith.constant 1 : index
    %c0_123 = arith.constant 0 : index
    %c0_124 = arith.constant 0 : index
    %248 = vector.load %arg7[%c1_122, %c0_123, %c0_124] : memref<3x256x128xbf16, #tpu.memory_space<vmem>>, vector<1x256x128xbf16>
    %249 = vector.shape_cast %248 : vector<1x256x128xbf16> to vector<256x128xbf16>
    %cst_125 = arith.constant dense<0.000000e+00> : vector<256x256xf32>
    %250 = tpu.matmul %249, %244, %cst_125 {dimension_numbers = #tpu.dot_dimension_numbers<[1], [0], [0], [1], [0, 0, 1, 1], [], []>} : vector<256x128xbf16>, vector<128x256xbf16>, vector<256x256xf32> -> vector<256x256xf32>
    %c2_126 = arith.constant 2 : index
    %c0_127 = arith.constant 0 : index
    %c0_128 = arith.constant 0 : index
    %251 = vector.load %arg7[%c2_126, %c0_127, %c0_128] : memref<3x256x128xbf16, #tpu.memory_space<vmem>>, vector<1x256x128xbf16>
    %252 = vector.shape_cast %251 : vector<1x256x128xbf16> to vector<256x128xbf16>
    %cst_129 = arith.constant dense<0.000000e+00> : vector<256x256xf32>
    %253 = tpu.matmul %252, %244, %cst_129 {dimension_numbers = #tpu.dot_dimension_numbers<[1], [0], [0], [1], [0, 0, 1, 1], [], []>} : vector<256x128xbf16>, vector<128x256xbf16>, vector<256x256xf32> -> vector<256x256xf32>
    %254 = tpu.concatenate %247, %250, %253 in 1 : vector<256x256xf32>, vector<256x256xf32>, vector<256x256xf32> -> vector<256x768xf32>
    %255 = arith.truncf %254 : vector<256x768xf32> to vector<256x768xbf16>
    %c0_130 = arith.constant 0 : index
    %c256_131 = arith.constant 256 : index
    %256 = vector.load %arg13[%c0_130, %c256_131] : memref<768x640xbf16, #tpu.memory_space<vmem>>, vector<768x384xbf16>
    %cst_132 = arith.constant dense<0.000000e+00> : vector<256x384xf32>
    %257 = tpu.matmul %255, %256, %cst_132 {dimension_numbers = #tpu.dot_dimension_numbers<[1], [0], [0], [1], [0, 0, 1, 1], [], []>} : vector<256x768xbf16>, vector<768x384xbf16>, vector<256x384xf32> -> vector<256x384xf32>
    %258 = math.tanh %257 : vector<256x384xf32>
    %259 = vector.extract_strided_slice %258 {offsets = [0, 0], sizes = [128, 128], strides = [1, 1]} : vector<256x384xf32> to vector<128x128xf32>
    %c0_133 = arith.constant 0 : index
    %c0_134 = arith.constant 0 : index
    %c0_135 = arith.constant 0 : index
    %c0_136 = arith.constant 0 : index
    %260 = vector.load %arg12[%c0_133, %c0_134, %c0_135, %c0_136] : memref<2x3x128x128xf32, #tpu.memory_space<vmem>>, vector<1x1x128x128xf32>
    %261 = vector.shape_cast %260 : vector<1x1x128x128xf32> to vector<128x128xf32>
    %262 = vector.shape_cast %259 : vector<128x128xf32> to vector<1x1x128x128xf32>
    tpu.vector_store %arg12[%c0_133, %c0_134, %c0_135, %c0_136], %262 {strides = array<i32>} : memref<2x3x128x128xf32, #tpu.memory_space<vmem>>, vector<1x1x128x128xf32>,
    %263 = vector.extract_strided_slice %258 {offsets = [0, 128], sizes = [128, 128], strides = [1, 1]} : vector<256x384xf32> to vector<128x128xf32>
    %c0_137 = arith.constant 0 : index
    %c1_138 = arith.constant 1 : index
    %c0_139 = arith.constant 0 : index
    %c0_140 = arith.constant 0 : index
    %264 = vector.load %arg12[%c0_137, %c1_138, %c0_139, %c0_140] : memref<2x3x128x128xf32, #tpu.memory_space<vmem>>, vector<1x1x128x128xf32>
    %265 = vector.shape_cast %264 : vector<1x1x128x128xf32> to vector<128x128xf32>
    %266 = vector.shape_cast %263 : vector<128x128xf32> to vector<1x1x128x128xf32>
    tpu.vector_store %arg12[%c0_137, %c1_138, %c0_139, %c0_140], %266 {strides = array<i32>} : memref<2x3x128x128xf32, #tpu.memory_space<vmem>>, vector<1x1x128x128xf32>,
    %267 = vector.extract_strided_slice %258 {offsets = [0, 256], sizes = [128, 128], strides = [1, 1]} : vector<256x384xf32> to vector<128x128xf32>
    %c0_141 = arith.constant 0 : index
    %c2_142 = arith.constant 2 : index
    %c0_143 = arith.constant 0 : index
    %c0_144 = arith.constant 0 : index
    %268 = vector.load %arg12[%c0_141, %c2_142, %c0_143, %c0_144] : memref<2x3x128x128xf32, #tpu.memory_space<vmem>>, vector<1x1x128x128xf32>
    %269 = vector.shape_cast %268 : vector<1x1x128x128xf32> to vector<128x128xf32>
    %270 = vector.shape_cast %267 : vector<128x128xf32> to vector<1x1x128x128xf32>
    tpu.vector_store %arg12[%c0_141, %c2_142, %c0_143, %c0_144], %270 {strides = array<i32>} : memref<2x3x128x128xf32, #tpu.memory_space<vmem>>, vector<1x1x128x128xf32>,
    %271 = vector.extract_strided_slice %258 {offsets = [128, 0], sizes = [128, 128], strides = [1, 1]} : vector<256x384xf32> to vector<128x128xf32>
    %c1_145 = arith.constant 1 : index
    %c0_146 = arith.constant 0 : index
    %c0_147 = arith.constant 0 : index
    %c0_148 = arith.constant 0 : index
    %272 = vector.load %arg12[%c1_145, %c0_146, %c0_147, %c0_148] : memref<2x3x128x128xf32, #tpu.memory_space<vmem>>, vector<1x1x128x128xf32>
    %273 = vector.shape_cast %272 : vector<1x1x128x128xf32> to vector<128x128xf32>
    %274 = vector.shape_cast %271 : vector<128x128xf32> to vector<1x1x128x128xf32>
    tpu.vector_store %arg12[%c1_145, %c0_146, %c0_147, %c0_148], %274 {strides = array<i32>} : memref<2x3x128x128xf32, #tpu.memory_space<vmem>>, vector<1x1x128x128xf32>,
    %275 = vector.extract_strided_slice %258 {offsets = [128, 128], sizes = [128, 128], strides = [1, 1]} : vector<256x384xf32> to vector<128x128xf32>
    %c1_149 = arith.constant 1 : index
    %c1_150 = arith.constant 1 : index
    %c0_151 = arith.constant 0 : index
    %c0_152 = arith.constant 0 : index
    %276 = vector.load %arg12[%c1_149, %c1_150, %c0_151, %c0_152] : memref<2x3x128x128xf32, #tpu.memory_space<vmem>>, vector<1x1x128x128xf32>
    %277 = vector.shape_cast %276 : vector<1x1x128x128xf32> to vector<128x128xf32>
    %278 = vector.shape_cast %275 : vector<128x128xf32> to vector<1x1x128x128xf32>
    tpu.vector_store %arg12[%c1_149, %c1_150, %c0_151, %c0_152], %278 {strides = array<i32>} : memref<2x3x128x128xf32, #tpu.memory_space<vmem>>, vector<1x1x128x128xf32>,
    %279 = vector.extract_strided_slice %258 {offsets = [128, 256], sizes = [128, 128], strides = [1, 1]} : vector<256x384xf32> to vector<128x128xf32>
    %c1_153 = arith.constant 1 : index
    %c2_154 = arith.constant 2 : index
    %c0_155 = arith.constant 0 : index
    %c0_156 = arith.constant 0 : index
    %280 = vector.load %arg12[%c1_153, %c2_154, %c0_155, %c0_156] : memref<2x3x128x128xf32, #tpu.memory_space<vmem>>, vector<1x1x128x128xf32>
    %281 = vector.shape_cast %280 : vector<1x1x128x128xf32> to vector<128x128xf32>
    %282 = vector.shape_cast %279 : vector<128x128xf32> to vector<1x1x128x128xf32>
    tpu.vector_store %arg12[%c1_153, %c2_154, %c0_155, %c0_156], %282 {strides = array<i32>} : memref<2x3x128x128xf32, #tpu.memory_space<vmem>>, vector<1x1x128x128xf32>,
    return
  }
  func.func @transform_0(%arg0: i32) -> (i32, i32) {
    %c0_i32 = arith.constant 0 : i32
    %c0_i32_0 = arith.constant 0 : i32
    %c0_i32_1 = arith.constant 0 : i32
    return %c0_i32, %c0_i32_0 : i32, i32
  }
  func.func @transform_1(%arg0: i32) -> (i32, i32) {
    %c0_i32 = arith.constant 0 : i32
    %c0_i32_0 = arith.constant 0 : i32
    %c0_i32_1 = arith.constant 0 : i32
    return %c0_i32, %c0_i32_0 : i32, i32
  }
  func.func @transform_2(%arg0: i32) -> (i32, i32, i32) {
    %c0_i32 = arith.constant 0 : i32
    %c0_i32_0 = arith.constant 0 : i32
    %c0_i32_1 = arith.constant 0 : i32
    %c0_i32_2 = arith.constant 0 : i32
    return %c0_i32, %c0_i32_0, %c0_i32_1 : i32, i32, i32
  }
  func.func @transform_3(%arg0: i32) -> (i32, i32, i32) {
    %c0_i32 = arith.constant 0 : i32
    %c0_i32_0 = arith.constant 0 : i32
    %c0_i32_1 = arith.constant 0 : i32
    %c0_i32_2 = arith.constant 0 : i32
    return %c0_i32, %c0_i32_0, %c0_i32_1 : i32, i32, i32
  }
  func.func @transform_4(%arg0: i32) -> (i32, i32, i32) {
    %c0_i32 = arith.constant 0 : i32
    %c0_i32_0 = arith.constant 0 : i32
    %c0_i32_1 = arith.constant 0 : i32
    %c0_i32_2 = arith.constant 0 : i32
    return %c0_i32, %c0_i32_0, %c0_i32_1 : i32, i32, i32
  }
  func.func @transform_5(%arg0: i32) -> (i32, i32, i32) {
    %c0_i32 = arith.constant 0 : i32
    %c0_i32_0 = arith.constant 0 : i32
    %c0_i32_1 = arith.constant 0 : i32
    %c0_i32_2 = arith.constant 0 : i32
    return %c0_i32, %c0_i32_0, %c0_i32_1 : i32, i32, i32
  }
  func.func @transform_6(%arg0: i32) -> (i32, i32, i32) {
    %c0_i32 = arith.constant 0 : i32
    %c0_i32_0 = arith.constant 0 : i32
    %c0_i32_1 = arith.constant 0 : i32
    %c0_i32_2 = arith.constant 0 : i32
    return %c0_i32, %c0_i32_0, %c0_i32_1 : i32, i32, i32
  }
  func.func @transform_7(%arg0: i32) -> (i32, i32) {
    %c0_i32 = arith.constant 0 : i32
    %c0_i32_0 = arith.constant 0 : i32
    %c0_i32_1 = arith.constant 0 : i32
    return %c0_i32, %c0_i32_0 : i32, i32
  }
  func.func @transform_9(%arg0: i32) -> (i32, i32) {
    %c0_i32 = arith.constant 0 : i32
    %c0_i32_0 = arith.constant 0 : i32
    %c0_i32_1 = arith.constant 0 : i32
    return %c0_i32, %c0_i32_0 : i32, i32
  }
  func.func @transform_10(%arg0: i32) -> (i32, i32, i32) {
    %c0_i32 = arith.constant 0 : i32
    %c0_i32_0 = arith.constant 0 : i32
    %c0_i32_1 = arith.constant 0 : i32
    %c0_i32_2 = arith.constant 0 : i32
    return %c0_i32, %c0_i32_0, %c0_i32_1 : i32, i32, i32
  }
  func.func @transform_11(%arg0: i32) -> (i32, i32, i32, i32) {
    %c0_i32 = arith.constant 0 : i32
    %c0_i32_0 = arith.constant 0 : i32
    %c0_i32_1 = arith.constant 0 : i32
    %c0_i32_2 = arith.constant 0 : i32
    %c0_i32_3 = arith.constant 0 : i32
    return %c0_i32, %c0_i32_0, %c0_i32_1, %c0_i32_2 : i32, i32, i32, i32
  }
}

</mosaic_0001>

<llo_original>
// kernel: generator_forward.1
$region0: #{generator_forward.1}
  #allocation0 [shape = 'u32[]', space=smem, size = 0x4, offset = 0x4, fixed_abs, tag = 'smem constant byte address 0x4 - core index']
  #allocation1 [shape = 'u32[72,128]{1,0:T(1,128)}', space=vmem, size = 0x9000, scoped, tag = 'internal scratch']
  #allocation2 [shape = 'bf16[768,640]{1,0:T(8,128)(2,1)}', space=vmem, size = 0xf0000, scoped, tag = 'scratch operand']
  #allocation3 [shape = 's32[1]{0}', space=sflag, size = 0x4, scoped, tag = 'scratch operand']
  #allocation20 [shape = 's32[]', space=sflag, size = 0x4, offset = 0, fixed_abs, tag = 'sflag constant byte address 0x0 - dummy sync flag']
  #allocation21 [shape = 's32[]', space=sflag, size = 0x4, offset = 0, fixed_abs, tag = 'sflag constant byte address 0x0 - dummy sync flag']
  #allocation22 [shape = 'u32[]', space=smem, size = 0x4, offset = 0x44, fixed_abs, tag = 'smem constant byte address 0x44 - assertion arg 0']
  #allocation23 [shape = 'u32[]', space=smem, size = 0x4, offset = 0x48, fixed_abs, tag = 'smem constant byte address 0x48 - assertion arg 1']
  %s0 = inlined_call_operand.vmem [shape: f32[8,32], index: 0, kind: input, shape index: {}]
  %s1 = inlined_call_operand.hbm [shape: f32[32,256], index: 1, kind: input, shape index: {}]
  %s2 = inlined_call_operand.hbm [shape: bf16[3,16,8], index: 2, kind: input, shape index: {}]
  %s3 = inlined_call_operand.hbm [shape: bf16[3,32,16], index: 3, kind: input, shape index: {}]
  %s4 = inlined_call_operand.hbm [shape: bf16[3,64,32], index: 4, kind: input, shape index: {}]
  %s5 = inlined_call_operand.hbm [shape: bf16[3,128,64], index: 5, kind: input, shape index: {}]
  %s6 = inlined_call_operand.hbm [shape: bf16[3,256,128], index: 6, kind: input, shape index: {}]
  %s7 = inlined_call_operand.hbm [shape: bf16[768,768], index: 7, kind: input, shape index: {}]
  %s8 = inlined_call_operand.hbm [shape: bf16[768,640], index: 8, kind: input, shape index: {}]
  %s9 = inlined_call_operand.hbm [shape: f32[124,256], index: 9, kind: input, shape index: {}]
  %s10 = inlined_call_operand.hbm [shape: f32[5,2,64], index: 10, kind: input, shape index: {}]
  %s11 = inlined_call_operand.hbm [shape: f32[2,3,128,128], index: 11, kind: output, shape index: {}]
  %s12 = sld [smem:[#allocation0]]
  $region90: #{generator_forward.1} parent=0
    _
  %s14 = ssub.s32 1, %s12
  %s15 = scalar_select 0, %s14, %s12
  $region1: #{generator_forward.1} parent=0
    #allocation4 [shape = 'u8[32768]{0}', space=vmem, size = 0x8000, scoped, tag = 'input window, operand 1, single buffered']
    #allocation5 [shape = 's32[1]{0}', space=sflag, size = 0x4, scoped, tag = 'scoped memory for generator_forward.1']
    #allocation6 [shape = 's32[1]{0}', space=sflag, size = 0x4, scoped, tag = 'scoped memory for generator_forward.1']
    #allocation7 [shape = 'u8[12288]{0}', space=vmem, size = 0x3000, scoped, tag = 'input window, operand 2, single buffered']
    #allocation8 [shape = 's32[1]{0}', space=sflag, size = 0x4, scoped, tag = 'scoped memory for generator_forward.1']
    #allocation9 [shape = 'u8[24576]{0}', space=vmem, size = 0x6000, scoped, tag = 'input window, operand 3, single buffered']
    #allocation10 [shape = 'u8[49152]{0}', space=vmem, size = 0xc000, scoped, tag = 'input window, operand 4, single buffered']
    #allocation11 [shape = 's32[1]{0}', space=sflag, size = 0x4, scoped, tag = 'scoped memory for generator_forward.1']
    #allocation12 [shape = 'u8[98304]{0}', space=vmem, size = 0x18000, scoped, tag = 'input window, operand 5, single buffered']
    #allocation13 [shape = 'u8[196608]{0}', space=vmem, size = 0x30000, scoped, tag = 'input window, operand 6, single buffered']
    #allocation14 [shape = 's32[1]{0}', space=sflag, size = 0x4, scoped, tag = 'scoped memory for generator_forward.1']
    #allocation15 [shape = 'u8[1179648]{0}', space=vmem, size = 0x120000, scoped, tag = 'input window, operand 7, single buffered']
    #allocation16 [shape = 'u8[131072]{0}', space=vmem, size = 0x20000, scoped, tag = 'input window, operand 9, single buffered']
    #allocation17 [shape = 's32[1]{0}', space=sflag, size = 0x4, scoped, tag = 'scoped memory for generator_forward.1']
    #allocation18 [shape = 'u8[5120]{0}', space=vmem, size = 0x1400, scoped, tag = 'input window, operand 10, single buffered']
    #allocation19 [shape = 'u8[393216]{0}', space=vmem, size = 0x60000, scoped, tag = 'output window, operand 0, single buffered']
    %16 = vsyncpa [#allocation5], 0
    %17 = vsyncpa [#allocation8], 0
    %18 = vsyncpa [#allocation11], 0
    %19 = vsyncpa [#allocation14], 0
    %20 = vsyncpa [#allocation17], 0
    %21 = vsyncpa [#allocation6], 0
    // Predicated region
    $region2: #{generator_forward.1} parent=1 // pred_check
      _
    $region3: #{generator_forward.1} parent=1 // pred_check_branch
      %23 = sbr.rel (0) target = $region5
    $region4: #{generator_forward.1} parent=1 // pred_region
      _
    $region5: #{generator_forward.1} parent=1 // pred_fallthru
      _
    // Predicated region
    $region6: #{generator_forward.1} parent=1 // pred_check
      _
    $region7: #{generator_forward.1} parent=1 // pred_check_branch
      %25 = sbr.rel (0) target = $region9
    $region8: #{generator_forward.1} parent=1 // pred_region
      %27 = vsyncadd [#allocation5], 0
      %s28 = sshll.u32 %s1, 4
      %s29 = int_to_ptr.hbm [resolvable:$true] %s28
      %s30 = sshll.u32 [#allocation4], 4
      %s31 = int_to_ptr.vmem [resolvable:$true] %s30
      %36 = dma.hbm_to_vmem [thread:$0]  %s29, 1024, %s31, [#allocation5], 256, 256, 16
    $region9: #{generator_forward.1} parent=1 // pred_fallthru
      _
    // Predicated region
    $region10: #{generator_forward.1} parent=1 // pred_check
      _
    $region11: #{generator_forward.1} parent=1 // pred_check_branch
      %38 = sbr.rel (0) target = $region13
    $region12: #{generator_forward.1} parent=1 // pred_region
      %40 = vsyncadd [#allocation8], 0
      %s41 = sshll.u32 %s2, 4
      %s42 = int_to_ptr.hbm [resolvable:$true] %s41
      %s43 = sshll.u32 [#allocation7], 4
      %s44 = int_to_ptr.vmem [resolvable:$true] %s43
      %49 = dma.hbm_to_vmem [thread:$0]  %s42, 384, %s44, [#allocation8], 64, 64, 4
    $region13: #{generator_forward.1} parent=1 // pred_fallthru
      _
    // Predicated region
    $region14: #{generator_forward.1} parent=1 // pred_check
      _
    $region15: #{generator_forward.1} parent=1 // pred_check_branch
      %51 = sbr.rel (0) target = $region17
    $region16: #{generator_forward.1} parent=1 // pred_region
      %53 = vsyncadd [#allocation8], 0
      %s54 = sshll.u32 %s3, 4
      %s55 = int_to_ptr.hbm [resolvable:$true] %s54
      %s56 = sshll.u32 [#allocation9], 4
      %s57 = int_to_ptr.vmem [resolvable:$true] %s56
      %62 = dma.hbm_to_vmem [thread:$0]  %s55, 768, %s57, [#allocation8], 64, 64, 4
    $region17: #{generator_forward.1} parent=1 // pred_fallthru
      _
    // Predicated region
    $region18: #{generator_forward.1} parent=1 // pred_check
      _
    $region19: #{generator_forward.1} parent=1 // pred_check_branch
      %64 = sbr.rel (0) target = $region21
    $region20: #{generator_forward.1} parent=1 // pred_region
      %66 = vsyncadd [#allocation11], 0
      %s67 = sshll.u32 %s4, 4
      %s68 = int_to_ptr.hbm [resolvable:$true] %s67
      %s69 = sshll.u32 [#allocation10], 4
      %s70 = int_to_ptr.vmem [resolvable:$true] %s69
      %75 = dma.hbm_to_vmem [thread:$0]  %s68, 1536, %s70, [#allocation11], 64, 64, 4
    $region21: #{generator_forward.1} parent=1 // pred_fallthru
      _
    // Predicated region
    $region22: #{generator_forward.1} parent=1 // pred_check
      _
    $region23: #{generator_forward.1} parent=1 // pred_check_branch
      %77 = sbr.rel (0) target = $region25
    $region24: #{generator_forward.1} parent=1 // pred_region
      %79 = vsyncadd [#allocation11], 0
      %s80 = sshll.u32 %s5, 4
      %s81 = int_to_ptr.hbm [resolvable:$true] %s80
      %s82 = sshll.u32 [#allocation12], 4
      %s83 = int_to_ptr.vmem [resolvable:$true] %s82
      %88 = dma.hbm_to_vmem [thread:$0]  %s81, 3072, %s83, [#allocation11], 64, 64, 4
    $region25: #{generator_forward.1} parent=1 // pred_fallthru
      _
    // Predicated region
    $region26: #{generator_forward.1} parent=1 // pred_check
      _
    $region27: #{generator_forward.1} parent=1 // pred_check_branch
      %90 = sbr.rel (0) target = $region29
    $region28: #{generator_forward.1} parent=1 // pred_region
      %92 = vsyncadd [#allocation14], 0
      %s93 = sshll.u32 %s6, 4
      %s94 = int_to_ptr.hbm [resolvable:$true] %s93
      %s95 = sshll.u32 [#allocation13], 4
      %s96 = int_to_ptr.vmem [resolvable:$true] %s95
      %101 = dma.hbm_to_vmem [thread:$0]  %s94, 6144, %s96, [#allocation14], 64, 64, 4
    $region29: #{generator_forward.1} parent=1 // pred_fallthru
      _
    // Predicated region
    $region30: #{generator_forward.1} parent=1 // pred_check
      _
    $region31: #{generator_forward.1} parent=1 // pred_check_branch
      %103 = sbr.rel (0) target = $region33
    $region32: #{generator_forward.1} parent=1 // pred_region
      %105 = vsyncadd [#allocation14], 0
      %s106 = sshll.u32 %s7, 4
      %s107 = int_to_ptr.hbm [resolvable:$true] %s106
      %s108 = sshll.u32 [#allocation15], 4
      %s109 = int_to_ptr.vmem [resolvable:$true] %s108
      %114 = dma.hbm_to_vmem [thread:$0]  %s107, 36864, %s109, [#allocation14], 384, 384, 24
    $region33: #{generator_forward.1} parent=1 // pred_fallthru
      _
    // Predicated region
    $region34: #{generator_forward.1} parent=1 // pred_check
      _
    $region35: #{generator_forward.1} parent=1 // pred_check_branch
      %116 = sbr.rel (0) target = $region37
    $region36: #{generator_forward.1} parent=1 // pred_region
      %118 = vsyncadd [#allocation17], 0
      %s119 = sshll.u32 %s9, 4
      %s120 = int_to_ptr.hbm [resolvable:$true] %s119
      %s121 = sshll.u32 [#allocation16], 4
      %s122 = int_to_ptr.vmem [resolvable:$true] %s121
      %127 = dma.hbm_to_vmem [thread:$0]  %s120, 4096, %s122, [#allocation17], 256, 256, 16
    $region37: #{generator_forward.1} parent=1 // pred_fallthru
      _
    // Predicated region
    $region38: #{generator_forward.1} parent=1 // pred_check
      _
    $region39: #{generator_forward.1} parent=1 // pred_check_branch
      %129 = sbr.rel (0) target = $region41
    $region40: #{generator_forward.1} parent=1 // pred_region
      %131 = vsyncadd [#allocation17], 0
      %s132 = sshll.u32 %s10, 4
      %s133 = int_to_ptr.hbm [resolvable:$true] %s132
      %s134 = sshll.u32 [#allocation18], 4
      %s135 = int_to_ptr.vmem [resolvable:$true] %s134
      %140 = dma.hbm_to_vmem [thread:$0]  %s133, 160, %s135, [#allocation17], 32, 32, 2
    $region41: #{generator_forward.1} parent=1 // pred_fallthru
      _
    // Predicated region
    $region42: #{generator_forward.1} parent=1 // pred_check
      _
    $region43: #{generator_forward.1} parent=1 // pred_check_branch
      %142 = sbr.rel (0) target = $region45
    $region44: #{generator_forward.1} parent=1 // pred_region
      %144 = dma.done [#allocation5], 1024
    $region45: #{generator_forward.1} parent=1 // pred_fallthru
      _
    // Predicated region
    $region46: #{generator_forward.1} parent=1 // pred_check
      _
    $region47: #{generator_forward.1} parent=1 // pred_check_branch
      %146 = sbr.rel (0) target = $region49
    $region48: #{generator_forward.1} parent=1 // pred_region
      %148 = dma.done [#allocation8], 384
    $region49: #{generator_forward.1} parent=1 // pred_fallthru
      _
    // Predicated region
    $region50: #{generator_forward.1} parent=1 // pred_check
      _
    $region51: #{generator_forward.1} parent=1 // pred_check_branch
      %150 = sbr.rel (0) target = $region53
    $region52: #{generator_forward.1} parent=1 // pred_region
      %152 = dma.done [#allocation8], 768
    $region53: #{generator_forward.1} parent=1 // pred_fallthru
      _
    // Predicated region
    $region54: #{generator_forward.1} parent=1 // pred_check
      _
    $region55: #{generator_forward.1} parent=1 // pred_check_branch
      %154 = sbr.rel (0) target = $region57
    $region56: #{generator_forward.1} parent=1 // pred_region
      %156 = dma.done [#allocation11], 1536
    $region57: #{generator_forward.1} parent=1 // pred_fallthru
      _
    // Predicated region
    $region58: #{generator_forward.1} parent=1 // pred_check
      _
    $region59: #{generator_forward.1} parent=1 // pred_check_branch
      %158 = sbr.rel (0) target = $region61
    $region60: #{generator_forward.1} parent=1 // pred_region
      %160 = dma.done [#allocation11], 3072
    $region61: #{generator_forward.1} parent=1 // pred_fallthru
      _
    // Predicated region
    $region62: #{generator_forward.1} parent=1 // pred_check
      _
    $region63: #{generator_forward.1} parent=1 // pred_check_branch
      %162 = sbr.rel (0) target = $region65
    $region64: #{generator_forward.1} parent=1 // pred_region
      %164 = dma.done [#allocation14], 6144
    $region65: #{generator_forward.1} parent=1 // pred_fallthru
      _
    // Predicated region
    $region66: #{generator_forward.1} parent=1 // pred_check
      _
    $region67: #{generator_forward.1} parent=1 // pred_check_branch
      %166 = sbr.rel (0) target = $region69
    $region68: #{generator_forward.1} parent=1 // pred_region
      %168 = dma.done [#allocation14], 36864
    $region69: #{generator_forward.1} parent=1 // pred_fallthru
      _
    // Predicated region
    $region70: #{generator_forward.1} parent=1 // pred_check
      _
    $region71: #{generator_forward.1} parent=1 // pred_check_branch
      %170 = sbr.rel (0) target = $region73
    $region72: #{generator_forward.1} parent=1 // pred_region
      %172 = dma.done [#allocation17], 4096
    $region73: #{generator_forward.1} parent=1 // pred_fallthru
      _
    // Predicated region
    $region74: #{generator_forward.1} parent=1 // pred_check
      _
    $region75: #{generator_forward.1} parent=1 // pred_check_branch
      %174 = sbr.rel (0) target = $region77
    $region76: #{generator_forward.1} parent=1 // pred_region
      %176 = dma.done [#allocation17], 160
    $region77: #{generator_forward.1} parent=1 // pred_fallthru
      _
    // Predicated region
    $region78: #{generator_forward.1} parent=1 // pred_check
      _
    $region79: #{generator_forward.1} parent=1 // pred_check_branch
      %179 = sbr.rel target = $region81
    $region80: #{generator_forward.1} parent=1 // pred_region
      %180 = sst [smem:[#allocation22]] [#allocation21]
      %181 = sst [smem:[#allocation23]] [#allocation20]
    $region81: #{generator_forward.1} parent=1 // pred_fallthru
      _
    %183 = shalt.err (0)
    %s185 = sshll.u32 %s8, 4
    %s186 = int_to_ptr.hbm [resolvable:$true] %s185
    %s187 = sshll.u32 [#allocation2], 4
    %s188 = int_to_ptr.vmem [resolvable:$true] %s187
    %190 = dma.hbm_to_vmem [thread:$0]  %s186, 30720, %s188, [#allocation3]
    %v191 = vld [vmem:[%s0] sm:$0xff]
    %v192 = vld [vmem:[#allocation4] sm:$0xff]
    %v193 = vld [vmem:[#allocation4 + $0x8] sm:$0xff]
    %v194 = vld [vmem:[#allocation4 + $0x10] sm:$0xff]
    %v195 = vld [vmem:[#allocation4 + $0x18] sm:$0xff]
    %v196 = vld [vmem:[#allocation4 + $0x20] sm:$0xff]
    %v197 = vld [vmem:[#allocation4 + $0x28] sm:$0xff]
    %v198 = vld [vmem:[#allocation4 + $0x30] sm:$0xff]
    %v199 = vld [vmem:[#allocation4 + $0x38] sm:$0xff]
    %vm200 = vcmask 261120
    %v202 = vsel %vm200, %v191, 0
    %204 = vmatpush.msra.mxu0 0.0
    %205 = vmatpush.msra.mxu0 0.0
    %206 = vmatpush.msra.mxu0 0.0
    %207 = vmatpush.msra.mxu0 0.0
    %208 = vmatpush.msra.mxu0 0.0
    %209 = vmatpush.msra.mxu0 0.0
    %210 = vmatpush.msra.mxu0 0.0
    %211 = vmatpush.msra.mxu0 0.0
    %212 = vmatpush.msra.mxu0 0.0
    %213 = vmatpush.msra.mxu0 0.0
    %214 = vmatpush.msra.mxu0 0.0
    %215 = vmatpush.msra.mxu0 0.0
    %216 = vmatpush.msra.mxu0 %v198
    %217 = vmatpush.msra.mxu0 %v196
    %218 = vmatpush.msra.mxu0 %v194
    %219 = vmatpush.msra.mxu0 %v192
    %220 = vmatmul.f32.gmra.mxu0 %v202
    %v221 = vpop.f32.mrf.mxu0
    %v222 = vadd.f32 0.0, %v221
    %223 = vdwg.mxu0
    %224 = vmatpush.msra.mxu0 0.0
    %225 = vmatpush.msra.mxu0 0.0
    %226 = vmatpush.msra.mxu0 0.0
    %227 = vmatpush.msra.mxu0 0.0
    %228 = vmatpush.msra.mxu0 0.0
    %229 = vmatpush.msra.mxu0 0.0
    %230 = vmatpush.msra.mxu0 0.0
    %231 = vmatpush.msra.mxu0 0.0
    %232 = vmatpush.msra.mxu0 0.0
    %233 = vmatpush.msra.mxu0 0.0
    %234 = vmatpush.msra.mxu0 0.0
    %235 = vmatpush.msra.mxu0 0.0
    %236 = vmatpush.msra.mxu0 %v199
    %237 = vmatpush.msra.mxu0 %v197
    %238 = vmatpush.msra.mxu0 %v195
    %239 = vmatpush.msra.mxu0 %v193
    %240 = vmatmul.f32.gmra.mxu0 %v202
    %v241 = vpop.f32.mrf.mxu0
    %v242 = vadd.f32 0.0, %v241
    %243 = vdwg.mxu0
    %v244 = vld [vmem:[#allocation16] sm:$0xff]
    %v245 = vld [vmem:[#allocation16 + $0x8] sm:$0xff]
    %v246 = vld [vmem:[#allocation16 + $0x10] sm:$0xff]
    %v247 = vld [vmem:[#allocation16 + $0x18] sm:$0xff]
    %v248 = vld [vmem:[#allocation16 + $0x20] sm:$0xff]
    %v249 = vld [vmem:[#allocation16 + $0x28] sm:$0xff]
    %v250 = vld [vmem:[#allocation16 + $0x30] sm:$0xff]
    %v251 = vld [vmem:[#allocation16 + $0x38] sm:$0xff]
    %v252 = vld [vmem:[#allocation16 + $0x40] sm:$0xff]
    %v253 = vld [vmem:[#allocation16 + $0x48] sm:$0xff]
    %v254 = vld [vmem:[#allocation16 + $0x50] sm:$0xff]
    %v255 = vld [vmem:[#allocation16 + $0x58] sm:$0xff]
    %v256 = vld [vmem:[#allocation16 + $0x60] sm:$0xff]
    %v257 = vld [vmem:[#allocation16 + $0x68] sm:$0xff]
    %v258 = vld [vmem:[#allocation16 + $0x70] sm:$0xff]
    %v259 = vld [vmem:[#allocation16 + $0x78] sm:$0xff]
    %v260 = vrot.slane %v222, 4
    %v261 = vadd.f32 %v222, %v260
    %v262 = vrot.slane %v261, 2
    %v263 = vadd.f32 %v261, %v262
    %v264 = vrot.slane %v263, 1
    %v265 = vadd.f32 %v263, %v264
    %v266 = vrot.slane %v242, 4
    %v267 = vadd.f32 %v242, %v266
    %v268 = vrot.slane %v267, 2
    %v269 = vadd.f32 %v267, %v268
    %v270 = vrot.slane %v269, 1
    %v271 = vadd.f32 %v269, %v270
    %v272 = vmul.f32 %v222, %v222
    %v273 = vmul.f32 %v242, %v242
    %v274 = vrot.slane %v272, 4
    %v275 = vadd.f32 %v272, %v274
    %v276 = vrot.slane %v275, 2
    %v277 = vadd.f32 %v275, %v276
    %v278 = vrot.slane %v277, 1
    %v279 = vadd.f32 %v277, %v278
    %v280 = vrot.slane %v273, 4
    %v281 = vadd.f32 %v273, %v280
    %v282 = vrot.slane %v281, 2
    %v283 = vadd.f32 %v281, %v282
    %v284 = vrot.slane %v283, 1
    %v285 = vadd.f32 %v283, %v284
    %vm286 = vcmask 1040384
    %v287 = vsel %vm286, %v265, %v279
    %v288 = vsel %vm286, %v271, %v285
    %289 = vmatpush.xpose.msra.mxu0 0.0
    %290 = vmatpush.xpose.msra.mxu0 0.0
    %291 = vmatpush.xpose.msra.mxu0 0.0
    %292 = vmatpush.xpose.msra.mxu0 0.0
    %293 = vmatpush.xpose.msra.mxu0 0.0
    %294 = vmatpush.xpose.msra.mxu0 0.0
    %295 = vmatpush.xpose.msra.mxu0 0.0
    %296 = vmatpush.xpose.msra.mxu0 0.0
    %297 = vmatpush.xpose.msra.mxu0 %v258
    %298 = vmatpush.xpose.msra.mxu0 %v256
    %299 = vmatpush.xpose.msra.mxu0 %v254
    %300 = vmatpush.xpose.msra.mxu0 %v252
    %301 = vmatpush.xpose.msra.mxu0 %v250
    %302 = vmatpush.xpose.msra.mxu0 %v248
    %303 = vmatpush.xpose.msra.mxu0 %v246
    %304 = vmatpush.xpose.msra.mxu0 %v244
    %305 = vmatmul.f32.gmra.mxu0 %v287
    %v306 = vpop.f32.mrf.mxu0
    %v307 = vadd.f32 0.0, %v306
    %308 = vdwg.mxu0
    %309 = vmatpush.xpose.msra.mxu0 0.0
    %310 = vmatpush.xpose.msra.mxu0 0.0
    %311 = vmatpush.xpose.msra.mxu0 0.0
    %312 = vmatpush.xpose.msra.mxu0 0.0
    %313 = vmatpush.xpose.msra.mxu0 0.0
    %314 = vmatpush.xpose.msra.mxu0 0.0
    %315 = vmatpush.xpose.msra.mxu0 0.0
    %316 = vmatpush.xpose.msra.mxu0 0.0
    %317 = vmatpush.xpose.msra.mxu0 %v259
    %318 = vmatpush.xpose.msra.mxu0 %v257
    %319 = vmatpush.xpose.msra.mxu0 %v255
    %320 = vmatpush.xpose.msra.mxu0 %v253
    %321 = vmatpush.xpose.msra.mxu0 %v251
    %322 = vmatpush.xpose.msra.mxu0 %v249
    %323 = vmatpush.xpose.msra.mxu0 %v247
    %324 = vmatpush.xpose.msra.mxu0 %v245
    %325 = vmatmul.f32.gmra.mxu0 %v288
    %v326 = vpop.f32.mrf.mxu0
    %v327 = vadd.f32 %v307, %v326
    %328 = vdwg.mxu0
    %v329 = vmul.f32 %v327, 0.03125
    %v330 = vmul.f32 %v329, %v329
    %v332 = vrot.slane %v330, 7
    %v334 = vsub.f32 %v329, %v332
    %v335 = vmax.f32 %v334, 0.0
    %v336 = vadd.f32 %v335, 1e-05
    %v337 = vrsqrt.pop %v336
    %v338 = vmul.f32 %v337, %v336
    %v339 = vmul.f32 %v338, %v337
    %v340 = vmul.f32 0.5, %v339
    %v341 = vsub.f32 1.5, %v340
    %v342 = vmul.f32 %v337, %v341
    %vm343 = vweird.f32 %v336
    %vm344 = vweird.f32 %v337
    %vm345 = vmor %vm343, %vm344
    %v346 = vsel %vm345, %v337, %v342
    %v347 = vld [vmem:[#allocation18] sm:$0x3]
    %v349 = vrot.slane %v346, 1
    %v351 = vmul.f32 %v347, %v349
    %v352 = vmul.f32 %v329, %v351
    %v354 = vrot.slane %v352, 7
    %v356 = vsub.f32 %v347, %v354
    %v357 = vsel %vm286, %v351, %v356
    %vm358 = vcmask 523264
    %v360 = vsel %vm358, %v357, 0
    %362 = vmatpush.msra.mxu0 0.0
    %363 = vmatpush.msra.mxu0 0.0
    %364 = vmatpush.msra.mxu0 0.0
    %365 = vmatpush.msra.mxu0 0.0
    %366 = vmatpush.msra.mxu0 0.0
    %367 = vmatpush.msra.mxu0 0.0
    %368 = vmatpush.msra.mxu0 0.0
    %369 = vmatpush.msra.mxu0 0.0
    %370 = vmatpush.msra.mxu0 %v258
    %371 = vmatpush.msra.mxu0 %v256
    %372 = vmatpush.msra.mxu0 %v254
    %373 = vmatpush.msra.mxu0 %v252
    %374 = vmatpush.msra.mxu0 %v250
    %375 = vmatpush.msra.mxu0 %v248
    %376 = vmatpush.msra.mxu0 %v246
    %377 = vmatpush.msra.mxu0 %v244
    %378 = vmatmul.f32.gmra.mxu0 %v360
    %v379 = vpop.f32.mrf.mxu0
    %v380 = vadd.f32 0.0, %v379
    %381 = vdwg.mxu0
    %382 = vmatpush.msra.mxu0 0.0
    %383 = vmatpush.msra.mxu0 0.0
    %384 = vmatpush.msra.mxu0 0.0
    %385 = vmatpush.msra.mxu0 0.0
    %386 = vmatpush.msra.mxu0 0.0
    %387 = vmatpush.msra.mxu0 0.0
    %388 = vmatpush.msra.mxu0 0.0
    %389 = vmatpush.msra.mxu0 0.0
    %390 = vmatpush.msra.mxu0 %v259
    %391 = vmatpush.msra.mxu0 %v257
    %392 = vmatpush.msra.mxu0 %v255
    %393 = vmatpush.msra.mxu0 %v253
    %394 = vmatpush.msra.mxu0 %v251
    %395 = vmatpush.msra.mxu0 %v249
    %396 = vmatpush.msra.mxu0 %v247
    %397 = vmatpush.msra.mxu0 %v245
    %398 = vmatmul.f32.gmra.mxu0 %v360
    %v399 = vpop.f32.mrf.mxu0
    %v400 = vadd.f32 0.0, %v399
    %401 = vdwg.mxu0
    %v402 = vperm.slane %v380, 0
    %v403 = vperm.slane %v400, 0
    %v404 = vmul.f32 %v222, %v402
    %v405 = vmul.f32 %v242, %v403
    %v406 = vperm.slane %v380, 1
    %v407 = vperm.slane %v400, 1
    %v408 = vadd.f32 %v404, %v406
    %v409 = vadd.f32 %v405, %v407
    %v410 = vmax.f32 %v408, 0.0
    %v411 = vmax.f32 %v409, 0.0
    %v412 = vpack.c.bf16 %v410, %v410
    %v413 = vpack.c.bf16 %v411, %v411
    %v414 = vld [vmem:[#allocation7] sm:$0xf]
    %v415 = vld [vmem:[#allocation7 + $0x4] sm:$0xf]
    %v418 = vunpack.c.l.b16 %v414
    %v419 = vunpack.c.l.b16 %v415
    %v420 = vpack.c.b16 %v419, %v418
    %vm421 = vcmask 64512
    %v423 = vsel %vm421, %v420, 0
    %vm425 = vcmask 1043456
    %v427 = vsel %vm425, %v412, 0
    %v430 = vsel %vm425, %v413, 0
    %432 = vmatpush.bf16.msra.mxu0 0
    %433 = vmatpush.bf16.msra.mxu0 0
    %434 = vmatpush.bf16.msra.mxu0 0
    %435 = vmatpush.bf16.msra.mxu0 0
    %436 = vmatpush.bf16.msra.mxu0 0
    %437 = vmatpush.bf16.msra.mxu0 0
    %438 = vmatpush.bf16.msra.mxu0 0
    %439 = vmatpush.bf16.msra.mxu0 %v427
    %440 = vmatmul.bf16.gmra.mxu0 %v423
    %v441 = vpop.f32.mrf.mxu0
    %v442 = vadd.f32 0.0, %v441
    %v443 = vpop.f32.mrf.mxu0
    %v444 = vadd.f32 0.0, %v443
    %445 = vdwg.mxu0
    %446 = vmatpush.bf16.msra.mxu0 0
    %447 = vmatpush.bf16.msra.mxu0 0
    %448 = vmatpush.bf16.msra.mxu0 0
    %449 = vmatpush.bf16.msra.mxu0 0
    %450 = vmatpush.bf16.msra.mxu0 0
    %451 = vmatpush.bf16.msra.mxu0 0
    %452 = vmatpush.bf16.msra.mxu0 0
    %453 = vmatpush.bf16.msra.mxu0 %v430
    %454 = vmatmul.bf16.gmra.mxu0 %v423
    %v455 = vpop.f32.mrf.mxu0
    %v456 = vadd.f32 0.0, %v455
    %v457 = vpop.f32.mrf.mxu0
    %v458 = vadd.f32 0.0, %v457
    %459 = vdwg.mxu0
    %s460 = scalar_lea.vmem [#allocation7], 8
    %v461 = vld [vmem:[%s460] sm:$0xf]
    %v462 = vld [vmem:[%s460 + $0x4] sm:$0xf]
    %v465 = vunpack.c.l.b16 %v461
    %v466 = vunpack.c.l.b16 %v462
    %v467 = vpack.c.b16 %v466, %v465
    %v469 = vsel %vm421, %v467, 0
    %471 = vmatpush.bf16.msra.mxu0 0
    %472 = vmatpush.bf16.msra.mxu0 0
    %473 = vmatpush.bf16.msra.mxu0 0
    %474 = vmatpush.bf16.msra.mxu0 0
    %475 = vmatpush.bf16.msra.mxu0 0
    %476 = vmatpush.bf16.msra.mxu0 0
    %477 = vmatpush.bf16.msra.mxu0 0
    %478 = vmatpush.bf16.msra.mxu0 %v427
    %479 = vmatmul.bf16.gmra.mxu0 %v469
    %v480 = vpop.f32.mrf.mxu0
    %v481 = vadd.f32 0.0, %v480
    %v482 = vpop.f32.mrf.mxu0
    %v483 = vadd.f32 0.0, %v482
    %484 = vdwg.mxu0
    %485 = vmatpush.bf16.msra.mxu0 0
    %486 = vmatpush.bf16.msra.mxu0 0
    %487 = vmatpush.bf16.msra.mxu0 0
    %488 = vmatpush.bf16.msra.mxu0 0
    %489 = vmatpush.bf16.msra.mxu0 0
    %490 = vmatpush.bf16.msra.mxu0 0
    %491 = vmatpush.bf16.msra.mxu0 0
    %492 = vmatpush.bf16.msra.mxu0 %v430
    %493 = vmatmul.bf16.gmra.mxu0 %v469
    %v494 = vpop.f32.mrf.mxu0
    %v495 = vadd.f32 0.0, %v494
    %v496 = vpop.f32.mrf.mxu0
    %v497 = vadd.f32 0.0, %v496
    %498 = vdwg.mxu0
    %s499 = scalar_lea.vmem [#allocation7], 16
    %v500 = vld [vmem:[%s499] sm:$0xf]
    %v501 = vld [vmem:[%s499 + $0x4] sm:$0xf]
    %v504 = vunpack.c.l.b16 %v500
    %v505 = vunpack.c.l.b16 %v501
    %v506 = vpack.c.b16 %v505, %v504
    %v508 = vsel %vm421, %v506, 0
    %510 = vmatpush.bf16.msra.mxu0 0
    %511 = vmatpush.bf16.msra.mxu0 0
    %512 = vmatpush.bf16.msra.mxu0 0
    %513 = vmatpush.bf16.msra.mxu0 0
    %514 = vmatpush.bf16.msra.mxu0 0
    %515 = vmatpush.bf16.msra.mxu0 0
    %516 = vmatpush.bf16.msra.mxu0 0
    %517 = vmatpush.bf16.msra.mxu0 %v427
    %518 = vmatmul.bf16.gmra.mxu0 %v508
    %v519 = vpop.f32.mrf.mxu0
    %v520 = vadd.f32 0.0, %v519
    %v521 = vpop.f32.mrf.mxu0
    %v522 = vadd.f32 0.0, %v521
    %523 = vdwg.mxu0
    %524 = vmatpush.bf16.msra.mxu0 0
    %525 = vmatpush.bf16.msra.mxu0 0
    %526 = vmatpush.bf16.msra.mxu0 0
    %527 = vmatpush.bf16.msra.mxu0 0
    %528 = vmatpush.bf16.msra.mxu0 0
    %529 = vmatpush.bf16.msra.mxu0 0
    %530 = vmatpush.bf16.msra.mxu0 0
    %531 = vmatpush.bf16.msra.mxu0 %v430
    %532 = vmatmul.bf16.gmra.mxu0 %v508
    %v533 = vpop.f32.mrf.mxu0
    %v534 = vadd.f32 0.0, %v533
    %v535 = vpop.f32.mrf.mxu0
    %v536 = vadd.f32 0.0, %v535
    %537 = vdwg.mxu0
    %v538 = vpack.c.bf16 %v444, %v442
    %v539 = vpack.c.bf16 %v458, %v456
    %v540 = vpack.c.bf16 %v483, %v481
    %v541 = vpack.c.bf16 %v497, %v495
    %v542 = vpack.c.bf16 %v522, %v520
    %v543 = vpack.c.bf16 %v536, %v534
    %v544 = vld [vmem:[#allocation15] sm:$0xff]
    %v545 = vld [vmem:[#allocation15 + $0x18] sm:$0xff]
    %v546 = vld [vmem:[#allocation15 + $0x30] sm:$0xff]
    %v547 = vld [vmem:[#allocation15 + $0x48] sm:$0xff]
    %v548 = vld [vmem:[#allocation15 + $0x60] sm:$0xff]
    %v549 = vld [vmem:[#allocation15 + $0x78] sm:$0xff]
    %v550 = vld [vmem:[#allocation15 + $0x90] sm:$0xff]
    %v551 = vld [vmem:[#allocation15 + $0xa8] sm:$0xff]
    %v552 = vld [vmem:[#allocation15 + $0xc0] sm:$0xff]
    %v553 = vld [vmem:[#allocation15 + $0xd8] sm:$0xff]
    %v554 = vld [vmem:[#allocation15 + $0xf0] sm:$0xff]
    %v555 = vld [vmem:[#allocation15 + $0x108] sm:$0xff]
    %v556 = vld [vmem:[#allocation15 + $0x120] sm:$0xff]
    %v557 = vld [vmem:[#allocation15 + $0x138] sm:$0xff]
    %v558 = vld [vmem:[#allocation15 + $0x150] sm:$0xff]
    %v559 = vld [vmem:[#allocation15 + $0x168] sm:$0xff]
    %v560 = vld [vmem:[#allocation15 + $0x180] sm:$0xff]
    %v561 = vld [vmem:[#allocation15 + $0x198] sm:$0xff]
    %v562 = vld [vmem:[#allocation15 + $0x1b0] sm:$0xff]
    %v563 = vld [vmem:[#allocation15 + $0x1c8] sm:$0xff]
    %v564 = vld [vmem:[#allocation15 + $0x1e0] sm:$0xff]
    %v565 = vld [vmem:[#allocation15 + $0x1f8] sm:$0xff]
    %v566 = vld [vmem:[#allocation15 + $0x210] sm:$0xff]
    %v567 = vld [vmem:[#allocation15 + $0x228] sm:$0xff]
    %v568 = vld [vmem:[#allocation15 + $0x240] sm:$0xff]
    %v569 = vld [vmem:[#allocation15 + $0x258] sm:$0xff]
    %v570 = vld [vmem:[#allocation15 + $0x270] sm:$0xff]
    %v571 = vld [vmem:[#allocation15 + $0x288] sm:$0xff]
    %v572 = vld [vmem:[#allocation15 + $0x2a0] sm:$0xff]
    %v573 = vld [vmem:[#allocation15 + $0x2b8] sm:$0xff]
    %v574 = vld [vmem:[#allocation15 + $0x2d0] sm:$0xff]
    %v575 = vld [vmem:[#allocation15 + $0x2e8] sm:$0xff]
    %v576 = vld [vmem:[#allocation15 + $0x300] sm:$0xff]
    %v577 = vld [vmem:[#allocation15 + $0x318] sm:$0xff]
    %v578 = vld [vmem:[#allocation15 + $0x330] sm:$0xff]
    %v579 = vld [vmem:[#allocation15 + $0x348] sm:$0xff]
    %v580 = vld [vmem:[#allocation15 + $0x360] sm:$0xff]
    %v581 = vld [vmem:[#allocation15 + $0x378] sm:$0xff]
    %v582 = vld [vmem:[#allocation15 + $0x390] sm:$0xff]
    %v583 = vld [vmem:[#allocation15 + $0x3a8] sm:$0xff]
    %v584 = vld [vmem:[#allocation15 + $0x3c0] sm:$0xff]
    %v585 = vld [vmem:[#allocation15 + $0x3d8] sm:$0xff]
    %v586 = vld [vmem:[#allocation15 + $0x3f0] sm:$0xff]
    %v587 = vld [vmem:[#allocation15 + $0x408] sm:$0xff]
    %v588 = vld [vmem:[#allocation15 + $0x420] sm:$0xff]
    %v589 = vld [vmem:[#allocation15 + $0x438] sm:$0xff]
    %v590 = vld [vmem:[#allocation15 + $0x450] sm:$0xff]
    %v591 = vld [vmem:[#allocation15 + $0x468] sm:$0xff]
    %v592 = vld [vmem:[#allocation15 + $0x480] sm:$0xff]
    %v593 = vld [vmem:[#allocation15 + $0x498] sm:$0xff]
    %v594 = vld [vmem:[#allocation15 + $0x4b0] sm:$0xff]
    %v595 = vld [vmem:[#allocation15 + $0x4c8] sm:$0xff]
    %v596 = vld [vmem:[#allocation15 + $0x4e0] sm:$0xff]
    %v597 = vld [vmem:[#allocation15 + $0x4f8] sm:$0xff]
    %v598 = vld [vmem:[#allocation15 + $0x510] sm:$0xff]
    %v599 = vld [vmem:[#allocation15 + $0x528] sm:$0xff]
    %v600 = vld [vmem:[#allocation15 + $0x540] sm:$0xff]
    %v601 = vld [vmem:[#allocation15 + $0x558] sm:$0xff]
    %v602 = vld [vmem:[#allocation15 + $0x570] sm:$0xff]
    %v603 = vld [vmem:[#allocation15 + $0x588] sm:$0xff]
    %v604 = vld [vmem:[#allocation15 + $0x5a0] sm:$0xff]
    %v605 = vld [vmem:[#allocation15 + $0x5b8] sm:$0xff]
    %v606 = vld [vmem:[#allocation15 + $0x5d0] sm:$0xff]
    %v607 = vld [vmem:[#allocation15 + $0x5e8] sm:$0xff]
    %v608 = vld [vmem:[#allocation15 + $0x600] sm:$0xff]
    %v609 = vld [vmem:[#allocation15 + $0x618] sm:$0xff]
    %v610 = vld [vmem:[#allocation15 + $0x630] sm:$0xff]
    %v611 = vld [vmem:[#allocation15 + $0x648] sm:$0xff]
    %v612 = vld [vmem:[#allocation15 + $0x660] sm:$0xff]
    %v613 = vld [vmem:[#allocation15 + $0x678] sm:$0xff]
    %v614 = vld [vmem:[#allocation15 + $0x690] sm:$0xff]
    %v615 = vld [vmem:[#allocation15 + $0x6a8] sm:$0xff]
    %v616 = vld [vmem:[#allocation15 + $0x6c0] sm:$0xff]
    %v617 = vld [vmem:[#allocation15 + $0x6d8] sm:$0xff]
    %v618 = vld [vmem:[#allocation15 + $0x6f0] sm:$0xff]
    %v619 = vld [vmem:[#allocation15 + $0x708] sm:$0xff]
    %v620 = vld [vmem:[#allocation15 + $0x720] sm:$0xff]
    %v621 = vld [vmem:[#allocation15 + $0x738] sm:$0xff]
    %v622 = vld [vmem:[#allocation15 + $0x750] sm:$0xff]
    %v623 = vld [vmem:[#allocation15 + $0x768] sm:$0xff]
    %v624 = vld [vmem:[#allocation15 + $0x780] sm:$0xff]
    %v625 = vld [vmem:[#allocation15 + $0x798] sm:$0xff]
    %v626 = vld [vmem:[#allocation15 + $0x7b0] sm:$0xff]
    %v627 = vld [vmem:[#allocation15 + $0x7c8] sm:$0xff]
    %v628 = vld [vmem:[#allocation15 + $0x7e0] sm:$0xff]
    %v629 = vld [vmem:[#allocation15 + $0x7f8] sm:$0xff]
    %v630 = vld [vmem:[#allocation15 + $0x810] sm:$0xff]
    %v631 = vld [vmem:[#allocation15 + $0x828] sm:$0xff]
    %v632 = vld [vmem:[#allocation15 + $0x840] sm:$0xff]
    %v633 = vld [vmem:[#allocation15 + $0x858] sm:$0xff]
    %v634 = vld [vmem:[#allocation15 + $0x870] sm:$0xff]
    %v635 = vld [vmem:[#allocation15 + $0x888] sm:$0xff]
    %v636 = vld [vmem:[#allocation15 + $0x8a0] sm:$0xff]
    %v637 = vld [vmem:[#allocation15 + $0x8b8] sm:$0xff]
    %v638 = vld [vmem:[#allocation15 + $0x8d0] sm:$0xff]
    %v639 = vld [vmem:[#allocation15 + $0x8e8] sm:$0xff]
    %v736 = vunpack.c.l.b16 %v544
    %v737 = vunpack.c.h.b16 %v544
    %v738 = vunpack.c.l.b16 %v545
    %v739 = vunpack.c.h.b16 %v545
    %v740 = vunpack.c.l.b16 %v546
    %v741 = vunpack.c.h.b16 %v546
    %v742 = vunpack.c.l.b16 %v547
    %v743 = vunpack.c.h.b16 %v547
    %v744 = vunpack.c.l.b16 %v548
    %v745 = vunpack.c.h.b16 %v548
    %v746 = vunpack.c.l.b16 %v549
    %v747 = vunpack.c.h.b16 %v549
    %v748 = vunpack.c.l.b16 %v550
    %v749 = vunpack.c.h.b16 %v550
    %v750 = vunpack.c.l.b16 %v551
    %v751 = vunpack.c.h.b16 %v551
    %v752 = vunpack.c.l.b16 %v552
    %v753 = vunpack.c.h.b16 %v552
    %v754 = vunpack.c.l.b16 %v553
    %v755 = vunpack.c.h.b16 %v553
    %v756 = vunpack.c.l.b16 %v554
    %v757 = vunpack.c.h.b16 %v554
    %v758 = vunpack.c.l.b16 %v555
    %v759 = vunpack.c.h.b16 %v555
    %v760 = vunpack.c.l.b16 %v556
    %v761 = vunpack.c.h.b16 %v556
    %v762 = vunpack.c.l.b16 %v557
    %v763 = vunpack.c.h.b16 %v557
    %v764 = vunpack.c.l.b16 %v558
    %v765 = vunpack.c.h.b16 %v558
    %v766 = vunpack.c.l.b16 %v559
    %v767 = vunpack.c.h.b16 %v559
    %v768 = vunpack.c.l.b16 %v560
    %v769 = vunpack.c.h.b16 %v560
    %v770 = vunpack.c.l.b16 %v561
    %v771 = vunpack.c.h.b16 %v561
    %v772 = vunpack.c.l.b16 %v562
    %v773 = vunpack.c.h.b16 %v562
    %v774 = vunpack.c.l.b16 %v563
    %v775 = vunpack.c.h.b16 %v563
    %v776 = vunpack.c.l.b16 %v564
    %v777 = vunpack.c.h.b16 %v564
    %v778 = vunpack.c.l.b16 %v565
    %v779 = vunpack.c.h.b16 %v565
    %v780 = vunpack.c.l.b16 %v566
    %v781 = vunpack.c.h.b16 %v566
    %v782 = vunpack.c.l.b16 %v567
    %v783 = vunpack.c.h.b16 %v567
    %v784 = vunpack.c.l.b16 %v568
    %v785 = vunpack.c.h.b16 %v568
    %v786 = vunpack.c.l.b16 %v569
    %v787 = vunpack.c.h.b16 %v569
    %v788 = vunpack.c.l.b16 %v570
    %v789 = vunpack.c.h.b16 %v570
    %v790 = vunpack.c.l.b16 %v571
    %v791 = vunpack.c.h.b16 %v571
    %v792 = vunpack.c.l.b16 %v572
    %v793 = vunpack.c.h.b16 %v572
    %v794 = vunpack.c.l.b16 %v573
    %v795 = vunpack.c.h.b16 %v573
    %v796 = vunpack.c.l.b16 %v574
    %v797 = vunpack.c.h.b16 %v574
    %v798 = vunpack.c.l.b16 %v575
    %v799 = vunpack.c.h.b16 %v575
    %v800 = vunpack.c.l.b16 %v576
    %v801 = vunpack.c.h.b16 %v576
    %v802 = vunpack.c.l.b16 %v577
    %v803 = vunpack.c.h.b16 %v577
    %v804 = vunpack.c.l.b16 %v578
    %v805 = vunpack.c.h.b16 %v578
    %v806 = vunpack.c.l.b16 %v579
    %v807 = vunpack.c.h.b16 %v579
    %v808 = vunpack.c.l.b16 %v580
    %v809 = vunpack.c.h.b16 %v580
    %v810 = vunpack.c.l.b16 %v581
    %v811 = vunpack.c.h.b16 %v581
    %v812 = vunpack.c.l.b16 %v582
    %v813 = vunpack.c.h.b16 %v582
    %v814 = vunpack.c.l.b16 %v583
    %v815 = vunpack.c.h.b16 %v583
    %v816 = vunpack.c.l.b16 %v584
    %v817 = vunpack.c.h.b16 %v584
    %v818 = vunpack.c.l.b16 %v585
    %v819 = vunpack.c.h.b16 %v585
    %v820 = vunpack.c.l.b16 %v586
    %v821 = vunpack.c.h.b16 %v586
    %v822 = vunpack.c.l.b16 %v587
    %v823 = vunpack.c.h.b16 %v587
    %v824 = vunpack.c.l.b16 %v588
    %v825 = vunpack.c.h.b16 %v588
    %v826 = vunpack.c.l.b16 %v589
    %v827 = vunpack.c.h.b16 %v589
    %v828 = vunpack.c.l.b16 %v590
    %v829 = vunpack.c.h.b16 %v590
    %v830 = vunpack.c.l.b16 %v591
    %v831 = vunpack.c.h.b16 %v591
    %v832 = vunpack.c.l.b16 %v592
    %v833 = vunpack.c.h.b16 %v592
    %v834 = vunpack.c.l.b16 %v593
    %v835 = vunpack.c.h.b16 %v593
    %v836 = vunpack.c.l.b16 %v594
    %v837 = vunpack.c.h.b16 %v594
    %v838 = vunpack.c.l.b16 %v595
    %v839 = vunpack.c.h.b16 %v595
    %v840 = vunpack.c.l.b16 %v596
    %v841 = vunpack.c.h.b16 %v596
    %v842 = vunpack.c.l.b16 %v597
    %v843 = vunpack.c.h.b16 %v597
    %v844 = vunpack.c.l.b16 %v598
    %v845 = vunpack.c.h.b16 %v598
    %v846 = vunpack.c.l.b16 %v599
    %v847 = vunpack.c.h.b16 %v599
    %v848 = vunpack.c.l.b16 %v600
    %v849 = vunpack.c.h.b16 %v600
    %v850 = vunpack.c.l.b16 %v601
    %v851 = vunpack.c.h.b16 %v601
    %v852 = vunpack.c.l.b16 %v602
    %v853 = vunpack.c.h.b16 %v602
    %v854 = vunpack.c.l.b16 %v603
    %v855 = vunpack.c.h.b16 %v603
    %v856 = vunpack.c.l.b16 %v604
    %v857 = vunpack.c.h.b16 %v604
    %v858 = vunpack.c.l.b16 %v605
    %v859 = vunpack.c.h.b16 %v605
    %v860 = vunpack.c.l.b16 %v606
    %v861 = vunpack.c.h.b16 %v606
    %v862 = vunpack.c.l.b16 %v607
    %v863 = vunpack.c.h.b16 %v607
    %v864 = vunpack.c.l.b16 %v608
    %v865 = vunpack.c.h.b16 %v608
    %v866 = vunpack.c.l.b16 %v609
    %v867 = vunpack.c.h.b16 %v609
    %v868 = vunpack.c.l.b16 %v610
    %v869 = vunpack.c.h.b16 %v610
    %v870 = vunpack.c.l.b16 %v611
    %v871 = vunpack.c.h.b16 %v611
    %v872 = vunpack.c.l.b16 %v612
    %v873 = vunpack.c.h.b16 %v612
    %v874 = vunpack.c.l.b16 %v613
    %v875 = vunpack.c.h.b16 %v613
    %v876 = vunpack.c.l.b16 %v614
    %v877 = vunpack.c.h.b16 %v614
    %v878 = vunpack.c.l.b16 %v615
    %v879 = vunpack.c.h.b16 %v615
    %v880 = vunpack.c.l.b16 %v616
    %v881 = vunpack.c.h.b16 %v616
    %v882 = vunpack.c.l.b16 %v617
    %v883 = vunpack.c.h.b16 %v617
    %v884 = vunpack.c.l.b16 %v618
    %v885 = vunpack.c.h.b16 %v618
    %v886 = vunpack.c.l.b16 %v619
    %v887 = vunpack.c.h.b16 %v619
    %v888 = vunpack.c.l.b16 %v620
    %v889 = vunpack.c.h.b16 %v620
    %v890 = vunpack.c.l.b16 %v621
    %v891 = vunpack.c.h.b16 %v621
    %v892 = vunpack.c.l.b16 %v622
    %v893 = vunpack.c.h.b16 %v622
    %v894 = vunpack.c.l.b16 %v623
    %v895 = vunpack.c.h.b16 %v623
    %v896 = vunpack.c.l.b16 %v624
    %v897 = vunpack.c.h.b16 %v624
    %v898 = vunpack.c.l.b16 %v625
    %v899 = vunpack.c.h.b16 %v625
    %v900 = vunpack.c.l.b16 %v626
    %v901 = vunpack.c.h.b16 %v626
    %v902 = vunpack.c.l.b16 %v627
    %v903 = vunpack.c.h.b16 %v627
    %v904 = vunpack.c.l.b16 %v628
    %v905 = vunpack.c.h.b16 %v628
    %v906 = vunpack.c.l.b16 %v629
    %v907 = vunpack.c.h.b16 %v629
    %v908 = vunpack.c.l.b16 %v630
    %v909 = vunpack.c.h.b16 %v630
    %v910 = vunpack.c.l.b16 %v631
    %v911 = vunpack.c.h.b16 %v631
    %v912 = vunpack.c.l.b16 %v632
    %v913 = vunpack.c.h.b16 %v632
    %v914 = vunpack.c.l.b16 %v633
    %v915 = vunpack.c.h.b16 %v633
    %v916 = vunpack.c.l.b16 %v634
    %v917 = vunpack.c.h.b16 %v634
    %v918 = vunpack.c.l.b16 %v635
    %v919 = vunpack.c.h.b16 %v635
    %v920 = vunpack.c.l.b16 %v636
    %v921 = vunpack.c.h.b16 %v636
    %v922 = vunpack.c.l.b16 %v637
    %v923 = vunpack.c.h.b16 %v637
    %v924 = vunpack.c.l.b16 %v638
    %v925 = vunpack.c.h.b16 %v638
    %v926 = vunpack.c.l.b16 %v639
    %v927 = vunpack.c.h.b16 %v639
    %v928 = vpack.c.b16 %v738, %v736
    %v929 = vpack.c.b16 %v739, %v737
    %v930 = vpack.c.b16 %v742, %v740
    %v931 = vpack.c.b16 %v743, %v741
    %v932 = vpack.c.b16 %v746, %v744
    %v933 = vpack.c.b16 %v747, %v745
    %v934 = vpack.c.b16 %v750, %v748
    %v935 = vpack.c.b16 %v751, %v749
    %v936 = vpack.c.b16 %v754, %v752
    %v937 = vpack.c.b16 %v755, %v753
    %v938 = vpack.c.b16 %v758, %v756
    %v939 = vpack.c.b16 %v759, %v757
    %v940 = vpack.c.b16 %v762, %v760
    %v941 = vpack.c.b16 %v763, %v761
    %v942 = vpack.c.b16 %v766, %v764
    %v943 = vpack.c.b16 %v767, %v765
    %v944 = vpack.c.b16 %v770, %v768
    %v945 = vpack.c.b16 %v771, %v769
    %v946 = vpack.c.b16 %v774, %v772
    %v947 = vpack.c.b16 %v775, %v773
    %v948 = vpack.c.b16 %v778, %v776
    %v949 = vpack.c.b16 %v779, %v777
    %v950 = vpack.c.b16 %v782, %v780
    %v951 = vpack.c.b16 %v783, %v781
    %v952 = vpack.c.b16 %v786, %v784
    %v953 = vpack.c.b16 %v787, %v785
    %v954 = vpack.c.b16 %v790, %v788
    %v955 = vpack.c.b16 %v791, %v789
    %v956 = vpack.c.b16 %v794, %v792
    %v957 = vpack.c.b16 %v795, %v793
    %v958 = vpack.c.b16 %v798, %v796
    %v959 = vpack.c.b16 %v799, %v797
    %v960 = vpack.c.b16 %v802, %v800
    %v961 = vpack.c.b16 %v803, %v801
    %v962 = vpack.c.b16 %v806, %v804
    %v963 = vpack.c.b16 %v807, %v805
    %v964 = vpack.c.b16 %v810, %v808
    %v965 = vpack.c.b16 %v811, %v809
    %v966 = vpack.c.b16 %v814, %v812
    %v967 = vpack.c.b16 %v815, %v813
    %v968 = vpack.c.b16 %v818, %v816
    %v969 = vpack.c.b16 %v819, %v817
    %v970 = vpack.c.b16 %v822, %v820
    %v971 = vpack.c.b16 %v823, %v821
    %v972 = vpack.c.b16 %v826, %v824
    %v973 = vpack.c.b16 %v827, %v825
    %v974 = vpack.c.b16 %v830, %v828
    %v975 = vpack.c.b16 %v831, %v829
    %v976 = vpack.c.b16 %v834, %v832
    %v977 = vpack.c.b16 %v835, %v833
    %v978 = vpack.c.b16 %v838, %v836
    %v979 = vpack.c.b16 %v839, %v837
    %v980 = vpack.c.b16 %v842, %v840
    %v981 = vpack.c.b16 %v843, %v841
    %v982 = vpack.c.b16 %v846, %v844
    %v983 = vpack.c.b16 %v847, %v845
    %v984 = vpack.c.b16 %v850, %v848
    %v985 = vpack.c.b16 %v851, %v849
    %v986 = vpack.c.b16 %v854, %v852
    %v987 = vpack.c.b16 %v855, %v853
    %v988 = vpack.c.b16 %v858, %v856
    %v989 = vpack.c.b16 %v859, %v857
    %v990 = vpack.c.b16 %v862, %v860
    %v991 = vpack.c.b16 %v863, %v861
    %v992 = vpack.c.b16 %v866, %v864
    %v993 = vpack.c.b16 %v867, %v865
    %v994 = vpack.c.b16 %v870, %v868
    %v995 = vpack.c.b16 %v871, %v869
    %v996 = vpack.c.b16 %v874, %v872
    %v997 = vpack.c.b16 %v875, %v873
    %v998 = vpack.c.b16 %v878, %v876
    %v999 = vpack.c.b16 %v879, %v877
    %v1000 = vpack.c.b16 %v882, %v880
    %v1001 = vpack.c.b16 %v883, %v881
    %v1002 = vpack.c.b16 %v886, %v884
    %v1003 = vpack.c.b16 %v887, %v885
    %v1004 = vpack.c.b16 %v890, %v888
    %v1005 = vpack.c.b16 %v891, %v889
    %v1006 = vpack.c.b16 %v894, %v892
    %v1007 = vpack.c.b16 %v895, %v893
    %v1008 = vpack.c.b16 %v898, %v896
    %v1009 = vpack.c.b16 %v899, %v897
    %v1010 = vpack.c.b16 %v902, %v900
    %v1011 = vpack.c.b16 %v903, %v901
    %v1012 = vpack.c.b16 %v906, %v904
    %v1013 = vpack.c.b16 %v907, %v905
    %v1014 = vpack.c.b16 %v910, %v908
    %v1015 = vpack.c.b16 %v911, %v909
    %v1016 = vpack.c.b16 %v914, %v912
    %v1017 = vpack.c.b16 %v915, %v913
    %v1018 = vpack.c.b16 %v918, %v916
    %v1019 = vpack.c.b16 %v919, %v917
    %v1020 = vpack.c.b16 %v922, %v920
    %v1021 = vpack.c.b16 %v923, %v921
    %v1022 = vpack.c.b16 %v926, %v924
    %v1023 = vpack.c.b16 %v927, %v925
    %1120 = vmatpush.bf16.msra.mxu0 %v942
    %1121 = vmatpush.bf16.msra.mxu0 %v940
    %1122 = vmatpush.bf16.msra.mxu0 %v938
    %1123 = vmatpush.bf16.msra.mxu0 %v936
    %1124 = vmatpush.bf16.msra.mxu0 %v934
    %1125 = vmatpush.bf16.msra.mxu0 %v932
    %1126 = vmatpush.bf16.msra.mxu0 %v930
    %1127 = vmatpush.bf16.msra.mxu0 %v928
    %1128 = vmatmul.bf16.gmra.mxu0 %v538
    %v1129 = vpop.f32.mrf.mxu0
    %v1130 = vadd.f32 0.0, %v1129
    %v1131 = vpop.f32.mrf.mxu0
    %v1132 = vadd.f32 0.0, %v1131
    %1133 = vdwg.mxu0
    %1134 = vmatpush.bf16.msra.mxu0 %v958
    %1135 = vmatpush.bf16.msra.mxu0 %v956
    %1136 = vmatpush.bf16.msra.mxu0 %v954
    %1137 = vmatpush.bf16.msra.mxu0 %v952
    %1138 = vmatpush.bf16.msra.mxu0 %v950
    %1139 = vmatpush.bf16.msra.mxu0 %v948
    %1140 = vmatpush.bf16.msra.mxu0 %v946
    %1141 = vmatpush.bf16.msra.mxu0 %v944
    %1142 = vmatmul.bf16.gmra.mxu0 %v539
    %v1143 = vpop.f32.mrf.mxu0
    %v1144 = vadd.f32 %v1130, %v1143
    %v1145 = vpop.f32.mrf.mxu0
    %v1146 = vadd.f32 %v1132, %v1145
    %1147 = vdwg.mxu0
    %1148 = vmatpush.bf16.msra.mxu0 %v974
    %1149 = vmatpush.bf16.msra.mxu0 %v972
    %1150 = vmatpush.bf16.msra.mxu0 %v970
    %1151 = vmatpush.bf16.msra.mxu0 %v968
    %1152 = vmatpush.bf16.msra.mxu0 %v966
    %1153 = vmatpush.bf16.msra.mxu0 %v964
    %1154 = vmatpush.bf16.msra.mxu0 %v962
    %1155 = vmatpush.bf16.msra.mxu0 %v960
    %1156 = vmatmul.bf16.gmra.mxu0 %v540
    %v1157 = vpop.f32.mrf.mxu0
    %v1158 = vadd.f32 %v1144, %v1157
    %v1159 = vpop.f32.mrf.mxu0
    %v1160 = vadd.f32 %v1146, %v1159
    %1161 = vdwg.mxu0
    %1162 = vmatpush.bf16.msra.mxu0 %v990
    %1163 = vmatpush.bf16.msra.mxu0 %v988
    %1164 = vmatpush.bf16.msra.mxu0 %v986
    %1165 = vmatpush.bf16.msra.mxu0 %v984
    %1166 = vmatpush.bf16.msra.mxu0 %v982
    %1167 = vmatpush.bf16.msra.mxu0 %v980
    %1168 = vmatpush.bf16.msra.mxu0 %v978
    %1169 = vmatpush.bf16.msra.mxu0 %v976
    %1170 = vmatmul.bf16.gmra.mxu0 %v541
    %v1171 = vpop.f32.mrf.mxu0
    %v1172 = vadd.f32 %v1158, %v1171
    %v1173 = vpop.f32.mrf.mxu0
    %v1174 = vadd.f32 %v1160, %v1173
    %1175 = vdwg.mxu0
    %1176 = vmatpush.bf16.msra.mxu0 %v1006
    %1177 = vmatpush.bf16.msra.mxu0 %v1004
    %1178 = vmatpush.bf16.msra.mxu0 %v1002
    %1179 = vmatpush.bf16.msra.mxu0 %v1000
    %1180 = vmatpush.bf16.msra.mxu0 %v998
    %1181 = vmatpush.bf16.msra.mxu0 %v996
    %1182 = vmatpush.bf16.msra.mxu0 %v994
    %1183 = vmatpush.bf16.msra.mxu0 %v992
    %1184 = vmatmul.bf16.gmra.mxu0 %v542
    %v1185 = vpop.f32.mrf.mxu0
    %v1186 = vadd.f32 %v1172, %v1185
    %v1187 = vpop.f32.mrf.mxu0
    %v1188 = vadd.f32 %v1174, %v1187
    %1189 = vdwg.mxu0
    %1190 = vmatpush.bf16.msra.mxu0 %v1022
    %1191 = vmatpush.bf16.msra.mxu0 %v1020
    %1192 = vmatpush.bf16.msra.mxu0 %v1018
    %1193 = vmatpush.bf16.msra.mxu0 %v1016
    %1194 = vmatpush.bf16.msra.mxu0 %v1014
    %1195 = vmatpush.bf16.msra.mxu0 %v1012
    %1196 = vmatpush.bf16.msra.mxu0 %v1010
    %1197 = vmatpush.bf16.msra.mxu0 %v1008
    %1198 = vmatmul.bf16.gmra.mxu0 %v543
    %v1199 = vpop.f32.mrf.mxu0
    %v1200 = vadd.f32 %v1186, %v1199
    %v1201 = vpop.f32.mrf.mxu0
    %v1202 = vadd.f32 %v1188, %v1201
    %1203 = vdwg.mxu0
    %1204 = vmatpush.bf16.msra.mxu0 %v943
    %1205 = vmatpush.bf16.msra.mxu0 %v941
    %1206 = vmatpush.bf16.msra.mxu0 %v939
    %1207 = vmatpush.bf16.msra.mxu0 %v937
    %1208 = vmatpush.bf16.msra.mxu0 %v935
    %1209 = vmatpush.bf16.msra.mxu0 %v933
    %1210 = vmatpush.bf16.msra.mxu0 %v931
    %1211 = vmatpush.bf16.msra.mxu0 %v929
    %1212 = vmatmul.bf16.gmra.mxu0 %v538
    %v1213 = vpop.f32.mrf.mxu0
    %v1214 = vadd.f32 0.0, %v1213
    %v1215 = vpop.f32.mrf.mxu0
    %v1216 = vadd.f32 0.0, %v1215
    %1217 = vdwg.mxu0
    %1218 = vmatpush.bf16.msra.mxu0 %v959
    %1219 = vmatpush.bf16.msra.mxu0 %v957
    %1220 = vmatpush.bf16.msra.mxu0 %v955
    %1221 = vmatpush.bf16.msra.mxu0 %v953
    %1222 = vmatpush.bf16.msra.mxu0 %v951
    %1223 = vmatpush.bf16.msra.mxu0 %v949
    %1224 = vmatpush.bf16.msra.mxu0 %v947
    %1225 = vmatpush.bf16.msra.mxu0 %v945
    %1226 = vmatmul.bf16.gmra.mxu0 %v539
    %v1227 = vpop.f32.mrf.mxu0
    %v1228 = vadd.f32 %v1214, %v1227
    %v1229 = vpop.f32.mrf.mxu0
    %v1230 = vadd.f32 %v1216, %v1229
    %1231 = vdwg.mxu0
    %1232 = vmatpush.bf16.msra.mxu0 %v975
    %1233 = vmatpush.bf16.msra.mxu0 %v973
    %1234 = vmatpush.bf16.msra.mxu0 %v971
    %1235 = vmatpush.bf16.msra.mxu0 %v969
    %1236 = vmatpush.bf16.msra.mxu0 %v967
    %1237 = vmatpush.bf16.msra.mxu0 %v965
    %1238 = vmatpush.bf16.msra.mxu0 %v963
    %1239 = vmatpush.bf16.msra.mxu0 %v961
    %1240 = vmatmul.bf16.gmra.mxu0 %v540
    %v1241 = vpop.f32.mrf.mxu0
    %v1242 = vadd.f32 %v1228, %v1241
    %v1243 = vpop.f32.mrf.mxu0
    %v1244 = vadd.f32 %v1230, %v1243
    %1245 = vdwg.mxu0
    %1246 = vmatpush.bf16.msra.mxu0 %v991
    %1247 = vmatpush.bf16.msra.mxu0 %v989
    %1248 = vmatpush.bf16.msra.mxu0 %v987
    %1249 = vmatpush.bf16.msra.mxu0 %v985
    %1250 = vmatpush.bf16.msra.mxu0 %v983
    %1251 = vmatpush.bf16.msra.mxu0 %v981
    %1252 = vmatpush.bf16.msra.mxu0 %v979
    %1253 = vmatpush.bf16.msra.mxu0 %v977
    %1254 = vmatmul.bf16.gmra.mxu0 %v541
    %v1255 = vpop.f32.mrf.mxu0
    %v1256 = vadd.f32 %v1242, %v1255
    %v1257 = vpop.f32.mrf.mxu0
    %v1258 = vadd.f32 %v1244, %v1257
    %1259 = vdwg.mxu0
    %1260 = vmatpush.bf16.msra.mxu0 %v1007
    %1261 = vmatpush.bf16.msra.mxu0 %v1005
    %1262 = vmatpush.bf16.msra.mxu0 %v1003
    %1263 = vmatpush.bf16.msra.mxu0 %v1001
    %1264 = vmatpush.bf16.msra.mxu0 %v999
    %1265 = vmatpush.bf16.msra.mxu0 %v997
    %1266 = vmatpush.bf16.msra.mxu0 %v995
    %1267 = vmatpush.bf16.msra.mxu0 %v993
    %1268 = vmatmul.bf16.gmra.mxu0 %v542
    %v1269 = vpop.f32.mrf.mxu0
    %v1270 = vadd.f32 %v1256, %v1269
    %v1271 = vpop.f32.mrf.mxu0
    %v1272 = vadd.f32 %v1258, %v1271
    %1273 = vdwg.mxu0
    %1274 = vmatpush.bf16.msra.mxu0 %v1023
    %1275 = vmatpush.bf16.msra.mxu0 %v1021
    %1276 = vmatpush.bf16.msra.mxu0 %v1019
    %1277 = vmatpush.bf16.msra.mxu0 %v1017
    %1278 = vmatpush.bf16.msra.mxu0 %v1015
    %1279 = vmatpush.bf16.msra.mxu0 %v1013
    %1280 = vmatpush.bf16.msra.mxu0 %v1011
    %1281 = vmatpush.bf16.msra.mxu0 %v1009
    %1282 = vmatmul.bf16.gmra.mxu0 %v543
    %v1283 = vpop.f32.mrf.mxu0
    %v1284 = vadd.f32 %v1270, %v1283
    %v1285 = vpop.f32.mrf.mxu0
    %v1286 = vadd.f32 %v1272, %v1285
    %1287 = vdwg.mxu0
    %v1288 = vld [vmem:[#allocation16 + $0x80] sm:$0xff]
    %v1289 = vld [vmem:[#allocation16 + $0x88] sm:$0xff]
    %v1290 = vld [vmem:[#allocation16 + $0x90] sm:$0xff]
    %v1291 = vld [vmem:[#allocation16 + $0x98] sm:$0xff]
    %v1292 = vld [vmem:[#allocation16 + $0xa0] sm:$0xff]
    %v1293 = vld [vmem:[#allocation16 + $0xa8] sm:$0xff]
    %v1294 = vld [vmem:[#allocation16 + $0xb0] sm:$0xff]
    %v1295 = vld [vmem:[#allocation16 + $0xb8] sm:$0xff]
    %v1296 = vadd.f32 %v1200, %v1202
    %v1297 = vrot.slane %v1296, 4
    %v1298 = vadd.f32 %v1296, %v1297
    %v1299 = vrot.slane %v1298, 2
    %v1300 = vadd.f32 %v1298, %v1299
    %v1301 = vrot.slane %v1300, 1
    %v1302 = vadd.f32 %v1300, %v1301
    %v1303 = vadd.f32 %v1284, %v1286
    %v1304 = vrot.slane %v1303, 4
    %v1305 = vadd.f32 %v1303, %v1304
    %v1306 = vrot.slane %v1305, 2
    %v1307 = vadd.f32 %v1305, %v1306
    %v1308 = vrot.slane %v1307, 1
    %v1309 = vadd.f32 %v1307, %v1308
    %v1310 = vmul.f32 %v1200, %v1200
    %v1311 = vmul.f32 %v1284, %v1284
    %v1312 = vmul.f32 %v1202, %v1202
    %v1313 = vmul.f32 %v1286, %v1286
    %v1314 = vadd.f32 %v1310, %v1312
    %v1315 = vrot.slane %v1314, 4
    %v1316 = vadd.f32 %v1314, %v1315
    %v1317 = vrot.slane %v1316, 2
    %v1318 = vadd.f32 %v1316, %v1317
    %v1319 = vrot.slane %v1318, 1
    %v1320 = vadd.f32 %v1318, %v1319
    %v1321 = vadd.f32 %v1311, %v1313
    %v1322 = vrot.slane %v1321, 4
    %v1323 = vadd.f32 %v1321, %v1322
    %v1324 = vrot.slane %v1323, 2
    %v1325 = vadd.f32 %v1323, %v1324
    %v1326 = vrot.slane %v1325, 1
    %v1327 = vadd.f32 %v1325, %v1326
    %v1328 = vsel %vm286, %v1302, %v1320
    %v1329 = vsel %vm286, %v1309, %v1327
    %1330 = vmatpush.xpose.msra.mxu0 0.0
    %1331 = vmatpush.xpose.msra.mxu0 0.0
    %1332 = vmatpush.xpose.msra.mxu0 0.0
    %1333 = vmatpush.xpose.msra.mxu0 0.0
    %1334 = vmatpush.xpose.msra.mxu0 0.0
    %1335 = vmatpush.xpose.msra.mxu0 0.0
    %1336 = vmatpush.xpose.msra.mxu0 0.0
    %1337 = vmatpush.xpose.msra.mxu0 0.0
    %1338 = vmatpush.xpose.msra.mxu0 0.0
    %1339 = vmatpush.xpose.msra.mxu0 0.0
    %1340 = vmatpush.xpose.msra.mxu0 0.0
    %1341 = vmatpush.xpose.msra.mxu0 0.0
    %1342 = vmatpush.xpose.msra.mxu0 %v1294
    %1343 = vmatpush.xpose.msra.mxu0 %v1292
    %1344 = vmatpush.xpose.msra.mxu0 %v1290
    %1345 = vmatpush.xpose.msra.mxu0 %v1288
    %1346 = vmatmul.f32.gmra.mxu0 %v1328
    %v1347 = vpop.f32.mrf.mxu0
    %v1348 = vadd.f32 0.0, %v1347
    %1349 = vdwg.mxu0
    %1350 = vmatpush.xpose.msra.mxu0 0.0
    %1351 = vmatpush.xpose.msra.mxu0 0.0
    %1352 = vmatpush.xpose.msra.mxu0 0.0
    %1353 = vmatpush.xpose.msra.mxu0 0.0
    %1354 = vmatpush.xpose.msra.mxu0 0.0
    %1355 = vmatpush.xpose.msra.mxu0 0.0
    %1356 = vmatpush.xpose.msra.mxu0 0.0
    %1357 = vmatpush.xpose.msra.mxu0 0.0
    %1358 = vmatpush.xpose.msra.mxu0 0.0
    %1359 = vmatpush.xpose.msra.mxu0 0.0
    %1360 = vmatpush.xpose.msra.mxu0 0.0
    %1361 = vmatpush.xpose.msra.mxu0 0.0
    %1362 = vmatpush.xpose.msra.mxu0 %v1295
    %1363 = vmatpush.xpose.msra.mxu0 %v1293
    %1364 = vmatpush.xpose.msra.mxu0 %v1291
    %1365 = vmatpush.xpose.msra.mxu0 %v1289
    %1366 = vmatmul.f32.gmra.mxu0 %v1329
    %v1367 = vpop.f32.mrf.mxu0
    %v1368 = vadd.f32 %v1348, %v1367
    %1369 = vdwg.mxu0
    %v1370 = vmul.f32 %v1368, 0.0078125
    %v1371 = vmul.f32 %v1370, %v1370
    %v1373 = vrot.slane %v1371, 7
    %v1375 = vsub.f32 %v1370, %v1373
    %v1376 = vmax.f32 %v1375, 0.0
    %v1377 = vadd.f32 %v1376, 1e-05
    %v1378 = vrsqrt.pop %v1377
    %v1379 = vmul.f32 %v1378, %v1377
    %v1380 = vmul.f32 %v1379, %v1378
    %v1381 = vmul.f32 0.5, %v1380
    %v1382 = vsub.f32 1.5, %v1381
    %v1383 = vmul.f32 %v1378, %v1382
    %vm1384 = vweird.f32 %v1377
    %vm1385 = vweird.f32 %v1378
    %vm1386 = vmor %vm1384, %vm1385
    %v1387 = vsel %vm1386, %v1378, %v1383
    %s1388 = scalar_lea.vmem [#allocation18], 2
    %v1389 = vld [vmem:[%s1388] sm:$0x3]
    %v1391 = vrot.slane %v1387, 1
    %v1393 = vmul.f32 %v1389, %v1391
    %v1394 = vmul.f32 %v1370, %v1393
    %v1396 = vrot.slane %v1394, 7
    %v1398 = vsub.f32 %v1389, %v1396
    %v1399 = vsel %vm286, %v1393, %v1398
    %v1401 = vsel %vm200, %v1399, 0
    %1403 = vmatpush.msra.mxu0 0.0
    %1404 = vmatpush.msra.mxu0 0.0
    %1405 = vmatpush.msra.mxu0 0.0
    %1406 = vmatpush.msra.mxu0 0.0
    %1407 = vmatpush.msra.mxu0 0.0
    %1408 = vmatpush.msra.mxu0 0.0
    %1409 = vmatpush.msra.mxu0 0.0
    %1410 = vmatpush.msra.mxu0 0.0
    %1411 = vmatpush.msra.mxu0 0.0
    %1412 = vmatpush.msra.mxu0 0.0
    %1413 = vmatpush.msra.mxu0 0.0
    %1414 = vmatpush.msra.mxu0 0.0
    %1415 = vmatpush.msra.mxu0 %v1294
    %1416 = vmatpush.msra.mxu0 %v1292
    %1417 = vmatpush.msra.mxu0 %v1290
    %1418 = vmatpush.msra.mxu0 %v1288
    %1419 = vmatmul.f32.gmra.mxu0 %v1401
    %v1420 = vpop.f32.mrf.mxu0
    %v1421 = vadd.f32 0.0, %v1420
    %1422 = vdwg.mxu0
    %1423 = vmatpush.msra.mxu0 0.0
    %1424 = vmatpush.msra.mxu0 0.0
    %1425 = vmatpush.msra.mxu0 0.0
    %1426 = vmatpush.msra.mxu0 0.0
    %1427 = vmatpush.msra.mxu0 0.0
    %1428 = vmatpush.msra.mxu0 0.0
    %1429 = vmatpush.msra.mxu0 0.0
    %1430 = vmatpush.msra.mxu0 0.0
    %1431 = vmatpush.msra.mxu0 0.0
    %1432 = vmatpush.msra.mxu0 0.0
    %1433 = vmatpush.msra.mxu0 0.0
    %1434 = vmatpush.msra.mxu0 0.0
    %1435 = vmatpush.msra.mxu0 %v1295
    %1436 = vmatpush.msra.mxu0 %v1293
    %1437 = vmatpush.msra.mxu0 %v1291
    %1438 = vmatpush.msra.mxu0 %v1289
    %1439 = vmatmul.f32.gmra.mxu0 %v1401
    %v1440 = vpop.f32.mrf.mxu0
    %v1441 = vadd.f32 0.0, %v1440
    %1442 = vdwg.mxu0
    %v1443 = vperm.slane %v1421, 0
    %v1444 = vperm.slane %v1441, 0
    %v1445 = vmul.f32 %v1200, %v1443
    %v1446 = vmul.f32 %v1284, %v1444
    %v1447 = vmul.f32 %v1202, %v1443
    %v1448 = vmul.f32 %v1286, %v1444
    %v1449 = vperm.slane %v1421, 1
    %v1450 = vperm.slane %v1441, 1
    %v1451 = vadd.f32 %v1445, %v1449
    %v1452 = vadd.f32 %v1446, %v1450
    %v1453 = vadd.f32 %v1447, %v1449
    %v1454 = vadd.f32 %v1448, %v1450
    %v1455 = vmax.f32 %v1451, 0.0
    %v1456 = vmax.f32 %v1452, 0.0
    %v1457 = vmax.f32 %v1453, 0.0
    %v1458 = vmax.f32 %v1454, 0.0
    %v1459 = vpack.c.bf16 %v1457, %v1455
    %v1460 = vpack.c.bf16 %v1458, %v1456
    %v1461 = vld [vmem:[#allocation9] sm:$0xf]
    %v1462 = vld [vmem:[#allocation9 + $0x4] sm:$0xf]
    %v1463 = vld [vmem:[#allocation9 + $0x8] sm:$0xf]
    %v1464 = vld [vmem:[#allocation9 + $0xc] sm:$0xf]
    %v1469 = vunpack.c.l.b16 %v1461
    %v1470 = vunpack.c.l.b16 %v1462
    %v1471 = vunpack.c.l.b16 %v1463
    %v1472 = vunpack.c.l.b16 %v1464
    %v1473 = vpack.c.b16 %v1470, %v1469
    %v1474 = vpack.c.b16 %v1472, %v1471
    %vm1475 = vcmask 130048
    %v1477 = vsel %vm1475, %v1473, 0
    %v1480 = vsel %vm1475, %v1474, 0
    %1482 = vmatpush.bf16.msra.mxu0 0
    %1483 = vmatpush.bf16.msra.mxu0 0
    %1484 = vmatpush.bf16.msra.mxu0 0
    %1485 = vmatpush.bf16.msra.mxu0 0
    %1486 = vmatpush.bf16.msra.mxu0 0
    %1487 = vmatpush.bf16.msra.mxu0 0
    %1488 = vmatpush.bf16.msra.mxu0 0
    %1489 = vmatpush.bf16.msra.mxu0 %v1459
    %1490 = vmatmul.bf16.gmra.mxu0 %v1477
    %v1491 = vpop.f32.mrf.mxu0
    %v1492 = vadd.f32 0.0, %v1491
    %v1493 = vpop.f32.mrf.mxu0
    %v1494 = vadd.f32 0.0, %v1493
    %1495 = vmatmul.bf16.gmra.mxu0 %v1480
    %v1496 = vpop.f32.mrf.mxu0
    %v1497 = vadd.f32 0.0, %v1496
    %v1498 = vpop.f32.mrf.mxu0
    %v1499 = vadd.f32 0.0, %v1498
    %1500 = vdwg.mxu0
    %1501 = vmatpush.bf16.msra.mxu0 0
    %1502 = vmatpush.bf16.msra.mxu0 0
    %1503 = vmatpush.bf16.msra.mxu0 0
    %1504 = vmatpush.bf16.msra.mxu0 0
    %1505 = vmatpush.bf16.msra.mxu0 0
    %1506 = vmatpush.bf16.msra.mxu0 0
    %1507 = vmatpush.bf16.msra.mxu0 0
    %1508 = vmatpush.bf16.msra.mxu0 %v1460
    %1509 = vmatmul.bf16.gmra.mxu0 %v1477
    %v1510 = vpop.f32.mrf.mxu0
    %v1511 = vadd.f32 0.0, %v1510
    %v1512 = vpop.f32.mrf.mxu0
    %v1513 = vadd.f32 0.0, %v1512
    %1514 = vmatmul.bf16.gmra.mxu0 %v1480
    %v1515 = vpop.f32.mrf.mxu0
    %v1516 = vadd.f32 0.0, %v1515
    %v1517 = vpop.f32.mrf.mxu0
    %v1518 = vadd.f32 0.0, %v1517
    %1519 = vdwg.mxu0
    %s1520 = scalar_lea.vmem [#allocation9], 16
    %v1521 = vld [vmem:[%s1520] sm:$0xf]
    %v1522 = vld [vmem:[%s1520 + $0x4] sm:$0xf]
    %v1523 = vld [vmem:[%s1520 + $0x8] sm:$0xf]
    %v1524 = vld [vmem:[%s1520 + $0xc] sm:$0xf]
    %v1529 = vunpack.c.l.b16 %v1521
    %v1530 = vunpack.c.l.b16 %v1522
    %v1531 = vunpack.c.l.b16 %v1523
    %v1532 = vunpack.c.l.b16 %v1524
    %v1533 = vpack.c.b16 %v1530, %v1529
    %v1534 = vpack.c.b16 %v1532, %v1531
    %v1536 = vsel %vm1475, %v1533, 0
    %v1539 = vsel %vm1475, %v1534, 0
    %1541 = vmatpush.bf16.msra.mxu0 0
    %1542 = vmatpush.bf16.msra.mxu0 0
    %1543 = vmatpush.bf16.msra.mxu0 0
    %1544 = vmatpush.bf16.msra.mxu0 0
    %1545 = vmatpush.bf16.msra.mxu0 0
    %1546 = vmatpush.bf16.msra.mxu0 0
    %1547 = vmatpush.bf16.msra.mxu0 0
    %1548 = vmatpush.bf16.msra.mxu0 %v1459
    %1549 = vmatmul.bf16.gmra.mxu0 %v1536
    %v1550 = vpop.f32.mrf.mxu0
    %v1551 = vadd.f32 0.0, %v1550
    %v1552 = vpop.f32.mrf.mxu0
    %v1553 = vadd.f32 0.0, %v1552
    %1554 = vmatmul.bf16.gmra.mxu0 %v1539
    %v1555 = vpop.f32.mrf.mxu0
    %v1556 = vadd.f32 0.0, %v1555
    %v1557 = vpop.f32.mrf.mxu0
    %v1558 = vadd.f32 0.0, %v1557
    %1559 = vdwg.mxu0
    %1560 = vmatpush.bf16.msra.mxu0 0
    %1561 = vmatpush.bf16.msra.mxu0 0
    %1562 = vmatpush.bf16.msra.mxu0 0
    %1563 = vmatpush.bf16.msra.mxu0 0
    %1564 = vmatpush.bf16.msra.mxu0 0
    %1565 = vmatpush.bf16.msra.mxu0 0
    %1566 = vmatpush.bf16.msra.mxu0 0
    %1567 = vmatpush.bf16.msra.mxu0 %v1460
    %1568 = vmatmul.bf16.gmra.mxu0 %v1536
    %v1569 = vpop.f32.mrf.mxu0
    %v1570 = vadd.f32 0.0, %v1569
    %v1571 = vpop.f32.mrf.mxu0
    %v1572 = vadd.f32 0.0, %v1571
    %1573 = vmatmul.bf16.gmra.mxu0 %v1539
    %v1574 = vpop.f32.mrf.mxu0
    %v1575 = vadd.f32 0.0, %v1574
    %v1576 = vpop.f32.mrf.mxu0
    %v1577 = vadd.f32 0.0, %v1576
    %1578 = vdwg.mxu0
    %s1579 = scalar_lea.vmem [#allocation9], 32
    %v1580 = vld [vmem:[%s1579] sm:$0xf]
    %v1581 = vld [vmem:[%s1579 + $0x4] sm:$0xf]
    %v1582 = vld [vmem:[%s1579 + $0x8] sm:$0xf]
    %v1583 = vld [vmem:[%s1579 + $0xc] sm:$0xf]
    %v1588 = vunpack.c.l.b16 %v1580
    %v1589 = vunpack.c.l.b16 %v1581
    %v1590 = vunpack.c.l.b16 %v1582
    %v1591 = vunpack.c.l.b16 %v1583
    %v1592 = vpack.c.b16 %v1589, %v1588
    %v1593 = vpack.c.b16 %v1591, %v1590
    %v1595 = vsel %vm1475, %v1592, 0
    %v1598 = vsel %vm1475, %v1593, 0
    %1600 = vmatpush.bf16.msra.mxu0 0
    %1601 = vmatpush.bf16.msra.mxu0 0
    %1602 = vmatpush.bf16.msra.mxu0 0
    %1603 = vmatpush.bf16.msra.mxu0 0
    %1604 = vmatpush.bf16.msra.mxu0 0
    %1605 = vmatpush.bf16.msra.mxu0 0
    %1606 = vmatpush.bf16.msra.mxu0 0
    %1607 = vmatpush.bf16.msra.mxu0 %v1459
    %1608 = vmatmul.bf16.gmra.mxu0 %v1595
    %v1609 = vpop.f32.mrf.mxu0
    %v1610 = vadd.f32 0.0, %v1609
    %v1611 = vpop.f32.mrf.mxu0
    %v1612 = vadd.f32 0.0, %v1611
    %1613 = vmatmul.bf16.gmra.mxu0 %v1598
    %v1614 = vpop.f32.mrf.mxu0
    %v1615 = vadd.f32 0.0, %v1614
    %v1616 = vpop.f32.mrf.mxu0
    %v1617 = vadd.f32 0.0, %v1616
    %1618 = vdwg.mxu0
    %1619 = vmatpush.bf16.msra.mxu0 0
    %1620 = vmatpush.bf16.msra.mxu0 0
    %1621 = vmatpush.bf16.msra.mxu0 0
    %1622 = vmatpush.bf16.msra.mxu0 0
    %1623 = vmatpush.bf16.msra.mxu0 0
    %1624 = vmatpush.bf16.msra.mxu0 0
    %1625 = vmatpush.bf16.msra.mxu0 0
    %1626 = vmatpush.bf16.msra.mxu0 %v1460
    %1627 = vmatmul.bf16.gmra.mxu0 %v1595
    %v1628 = vpop.f32.mrf.mxu0
    %v1629 = vadd.f32 0.0, %v1628
    %v1630 = vpop.f32.mrf.mxu0
    %v1631 = vadd.f32 0.0, %v1630
    %1632 = vmatmul.bf16.gmra.mxu0 %v1598
    %v1633 = vpop.f32.mrf.mxu0
    %v1634 = vadd.f32 0.0, %v1633
    %v1635 = vpop.f32.mrf.mxu0
    %v1636 = vadd.f32 0.0, %v1635
    %1637 = vdwg.mxu0
    %v1638 = vpack.c.bf16 %v1494, %v1492
    %v1639 = vpack.c.bf16 %v1513, %v1511
    %v1640 = vpack.c.bf16 %v1553, %v1551
    %v1641 = vpack.c.bf16 %v1572, %v1570
    %v1642 = vpack.c.bf16 %v1612, %v1610
    %v1643 = vpack.c.bf16 %v1631, %v1629
    %v1644 = vpack.c.bf16 %v1499, %v1497
    %v1645 = vpack.c.bf16 %v1518, %v1516
    %v1646 = vpack.c.bf16 %v1558, %v1556
    %v1647 = vpack.c.bf16 %v1577, %v1575
    %v1648 = vpack.c.bf16 %v1617, %v1615
    %v1649 = vpack.c.bf16 %v1636, %v1634
    %v1650 = vld [vmem:[#allocation15 + $0x8] sm:$0xff]
    %v1651 = vld [vmem:[#allocation15 + $0x20] sm:$0xff]
    %v1652 = vld [vmem:[#allocation15 + $0x38] sm:$0xff]
    %v1653 = vld [vmem:[#allocation15 + $0x50] sm:$0xff]
    %v1654 = vld [vmem:[#allocation15 + $0x68] sm:$0xff]
    %v1655 = vld [vmem:[#allocation15 + $0x80] sm:$0xff]
    %v1656 = vld [vmem:[#allocation15 + $0x98] sm:$0xff]
    %v1657 = vld [vmem:[#allocation15 + $0xb0] sm:$0xff]
    %v1658 = vld [vmem:[#allocation15 + $0xc8] sm:$0xff]
    %v1659 = vld [vmem:[#allocation15 + $0xe0] sm:$0xff]
    %v1660 = vld [vmem:[#allocation15 + $0xf8] sm:$0xff]
    %v1661 = vld [vmem:[#allocation15 + $0x110] sm:$0xff]
    %v1662 = vld [vmem:[#allocation15 + $0x128] sm:$0xff]
    %v1663 = vld [vmem:[#allocation15 + $0x140] sm:$0xff]
    %v1664 = vld [vmem:[#allocation15 + $0x158] sm:$0xff]
    %v1665 = vld [vmem:[#allocation15 + $0x170] sm:$0xff]
    %v1666 = vld [vmem:[#allocation15 + $0x188] sm:$0xff]
    %v1667 = vld [vmem:[#allocation15 + $0x1a0] sm:$0xff]
    %v1668 = vld [vmem:[#allocation15 + $0x1b8] sm:$0xff]
    %v1669 = vld [vmem:[#allocation15 + $0x1d0] sm:$0xff]
    %v1670 = vld [vmem:[#allocation15 + $0x1e8] sm:$0xff]
    %v1671 = vld [vmem:[#allocation15 + $0x200] sm:$0xff]
    %v1672 = vld [vmem:[#allocation15 + $0x218] sm:$0xff]
    %v1673 = vld [vmem:[#allocation15 + $0x230] sm:$0xff]
    %v1674 = vld [vmem:[#allocation15 + $0x248] sm:$0xff]
    %v1675 = vld [vmem:[#allocation15 + $0x260] sm:$0xff]
    %v1676 = vld [vmem:[#allocation15 + $0x278] sm:$0xff]
    %v1677 = vld [vmem:[#allocation15 + $0x290] sm:$0xff]
    %v1678 = vld [vmem:[#allocation15 + $0x2a8] sm:$0xff]
    %v1679 = vld [vmem:[#allocation15 + $0x2c0] sm:$0xff]
    %v1680 = vld [vmem:[#allocation15 + $0x2d8] sm:$0xff]
    %v1681 = vld [vmem:[#allocation15 + $0x2f0] sm:$0xff]
    %v1682 = vld [vmem:[#allocation15 + $0x308] sm:$0xff]
    %v1683 = vld [vmem:[#allocation15 + $0x320] sm:$0xff]
    %v1684 = vld [vmem:[#allocation15 + $0x338] sm:$0xff]
    %v1685 = vld [vmem:[#allocation15 + $0x350] sm:$0xff]
    %v1686 = vld [vmem:[#allocation15 + $0x368] sm:$0xff]
    %v1687 = vld [vmem:[#allocation15 + $0x380] sm:$0xff]
    %v1688 = vld [vmem:[#allocation15 + $0x398] sm:$0xff]
    %v1689 = vld [vmem:[#allocation15 + $0x3b0] sm:$0xff]
    %v1690 = vld [vmem:[#allocation15 + $0x3c8] sm:$0xff]
    %v1691 = vld [vmem:[#allocation15 + $0x3e0] sm:$0xff]
    %v1692 = vld [vmem:[#allocation15 + $0x3f8] sm:$0xff]
    %v1693 = vld [vmem:[#allocation15 + $0x410] sm:$0xff]
    %v1694 = vld [vmem:[#allocation15 + $0x428] sm:$0xff]
    %v1695 = vld [vmem:[#allocation15 + $0x440] sm:$0xff]
    %v1696 = vld [vmem:[#allocation15 + $0x458] sm:$0xff]
    %v1697 = vld [vmem:[#allocation15 + $0x470] sm:$0xff]
    %v1698 = vld [vmem:[#allocation15 + $0x488] sm:$0xff]
    %v1699 = vld [vmem:[#allocation15 + $0x4a0] sm:$0xff]
    %v1700 = vld [vmem:[#allocation15 + $0x4b8] sm:$0xff]
    %v1701 = vld [vmem:[#allocation15 + $0x4d0] sm:$0xff]
    %v1702 = vld [vmem:[#allocation15 + $0x4e8] sm:$0xff]
    %v1703 = vld [vmem:[#allocation15 + $0x500] sm:$0xff]
    %v1704 = vld [vmem:[#allocation15 + $0x518] sm:$0xff]
    %v1705 = vld [vmem:[#allocation15 + $0x530] sm:$0xff]
    %v1706 = vld [vmem:[#allocation15 + $0x548] sm:$0xff]
    %v1707 = vld [vmem:[#allocation15 + $0x560] sm:$0xff]
    %v1708 = vld [vmem:[#allocation15 + $0x578] sm:$0xff]
    %v1709 = vld [vmem:[#allocation15 + $0x590] sm:$0xff]
    %v1710 = vld [vmem:[#allocation15 + $0x5a8] sm:$0xff]
    %v1711 = vld [vmem:[#allocation15 + $0x5c0] sm:$0xff]
    %v1712 = vld [vmem:[#allocation15 + $0x5d8] sm:$0xff]
    %v1713 = vld [vmem:[#allocation15 + $0x5f0] sm:$0xff]
    %v1714 = vld [vmem:[#allocation15 + $0x608] sm:$0xff]
    %v1715 = vld [vmem:[#allocation15 + $0x620] sm:$0xff]
    %v1716 = vld [vmem:[#allocation15 + $0x638] sm:$0xff]
    %v1717 = vld [vmem:[#allocation15 + $0x650] sm:$0xff]
    %v1718 = vld [vmem:[#allocation15 + $0x668] sm:$0xff]
    %v1719 = vld [vmem:[#allocation15 + $0x680] sm:$0xff]
    %v1720 = vld [vmem:[#allocation15 + $0x698] sm:$0xff]
    %v1721 = vld [vmem:[#allocation15 + $0x6b0] sm:$0xff]
    %v1722 = vld [vmem:[#allocation15 + $0x6c8] sm:$0xff]
    %v1723 = vld [vmem:[#allocation15 + $0x6e0] sm:$0xff]
    %v1724 = vld [vmem:[#allocation15 + $0x6f8] sm:$0xff]
    %v1725 = vld [vmem:[#allocation15 + $0x710] sm:$0xff]
    %v1726 = vld [vmem:[#allocation15 + $0x728] sm:$0xff]
    %v1727 = vld [vmem:[#allocation15 + $0x740] sm:$0xff]
    %v1728 = vld [vmem:[#allocation15 + $0x758] sm:$0xff]
    %v1729 = vld [vmem:[#allocation15 + $0x770] sm:$0xff]
    %v1730 = vld [vmem:[#allocation15 + $0x788] sm:$0xff]
    %v1731 = vld [vmem:[#allocation15 + $0x7a0] sm:$0xff]
    %v1732 = vld [vmem:[#allocation15 + $0x7b8] sm:$0xff]
    %v1733 = vld [vmem:[#allocation15 + $0x7d0] sm:$0xff]
    %v1734 = vld [vmem:[#allocation15 + $0x7e8] sm:$0xff]
    %v1735 = vld [vmem:[#allocation15 + $0x800] sm:$0xff]
    %v1736 = vld [vmem:[#allocation15 + $0x818] sm:$0xff]
    %v1737 = vld [vmem:[#allocation15 + $0x830] sm:$0xff]
    %v1738 = vld [vmem:[#allocation15 + $0x848] sm:$0xff]
    %v1739 = vld [vmem:[#allocation15 + $0x860] sm:$0xff]
    %v1740 = vld [vmem:[#allocation15 + $0x878] sm:$0xff]
    %v1741 = vld [vmem:[#allocation15 + $0x890] sm:$0xff]
    %v1742 = vld [vmem:[#allocation15 + $0x8a8] sm:$0xff]
    %v1743 = vld [vmem:[#allocation15 + $0x8c0] sm:$0xff]
    %v1744 = vld [vmem:[#allocation15 + $0x8d8] sm:$0xff]
    %v1745 = vld [vmem:[#allocation15 + $0x8f0] sm:$0xff]
    %v1842 = vunpack.c.l.b16 %v1650
    %v1843 = vunpack.c.h.b16 %v1650
    %v1844 = vunpack.c.l.b16 %v1651
    %v1845 = vunpack.c.h.b16 %v1651
    %v1846 = vunpack.c.l.b16 %v1652
    %v1847 = vunpack.c.h.b16 %v1652
    %v1848 = vunpack.c.l.b16 %v1653
    %v1849 = vunpack.c.h.b16 %v1653
    %v1850 = vunpack.c.l.b16 %v1654
    %v1851 = vunpack.c.h.b16 %v1654
    %v1852 = vunpack.c.l.b16 %v1655
    %v1853 = vunpack.c.h.b16 %v1655
    %v1854 = vunpack.c.l.b16 %v1656
    %v1855 = vunpack.c.h.b16 %v1656
    %v1856 = vunpack.c.l.b16 %v1657
    %v1857 = vunpack.c.h.b16 %v1657
    %v1858 = vunpack.c.l.b16 %v1658
    %v1859 = vunpack.c.h.b16 %v1658
    %v1860 = vunpack.c.l.b16 %v1659
    %v1861 = vunpack.c.h.b16 %v1659
    %v1862 = vunpack.c.l.b16 %v1660
    %v1863 = vunpack.c.h.b16 %v1660
    %v1864 = vunpack.c.l.b16 %v1661
    %v1865 = vunpack.c.h.b16 %v1661
    %v1866 = vunpack.c.l.b16 %v1662
    %v1867 = vunpack.c.h.b16 %v1662
    %v1868 = vunpack.c.l.b16 %v1663
    %v1869 = vunpack.c.h.b16 %v1663
    %v1870 = vunpack.c.l.b16 %v1664
    %v1871 = vunpack.c.h.b16 %v1664
    %v1872 = vunpack.c.l.b16 %v1665
    %v1873 = vunpack.c.h.b16 %v1665
    %v1874 = vunpack.c.l.b16 %v1666
    %v1875 = vunpack.c.h.b16 %v1666
    %v1876 = vunpack.c.l.b16 %v1667
    %v1877 = vunpack.c.h.b16 %v1667
    %v1878 = vunpack.c.l.b16 %v1668
    %v1879 = vunpack.c.h.b16 %v1668
    %v1880 = vunpack.c.l.b16 %v1669
    %v1881 = vunpack.c.h.b16 %v1669
    %v1882 = vunpack.c.l.b16 %v1670
    %v1883 = vunpack.c.h.b16 %v1670
    %v1884 = vunpack.c.l.b16 %v1671
    %v1885 = vunpack.c.h.b16 %v1671
    %v1886 = vunpack.c.l.b16 %v1672
    %v1887 = vunpack.c.h.b16 %v1672
    %v1888 = vunpack.c.l.b16 %v1673
    %v1889 = vunpack.c.h.b16 %v1673
    %v1890 = vunpack.c.l.b16 %v1674
    %v1891 = vunpack.c.h.b16 %v1674
    %v1892 = vunpack.c.l.b16 %v1675
    %v1893 = vunpack.c.h.b16 %v1675
    %v1894 = vunpack.c.l.b16 %v1676
    %v1895 = vunpack.c.h.b16 %v1676
    %v1896 = vunpack.c.l.b16 %v1677
    %v1897 = vunpack.c.h.b16 %v1677
    %v1898 = vunpack.c.l.b16 %v1678
    %v1899 = vunpack.c.h.b16 %v1678
    %v1900 = vunpack.c.l.b16 %v1679
    %v1901 = vunpack.c.h.b16 %v1679
    %v1902 = vunpack.c.l.b16 %v1680
    %v1903 = vunpack.c.h.b16 %v1680
    %v1904 = vunpack.c.l.b16 %v1681
    %v1905 = vunpack.c.h.b16 %v1681
    %v1906 = vunpack.c.l.b16 %v1682
    %v1907 = vunpack.c.h.b16 %v1682
    %v1908 = vunpack.c.l.b16 %v1683
    %v1909 = vunpack.c.h.b16 %v1683
    %v1910 = vunpack.c.l.b16 %v1684
    %v1911 = vunpack.c.h.b16 %v1684
    %v1912 = vunpack.c.l.b16 %v1685
    %v1913 = vunpack.c.h.b16 %v1685
    %v1914 = vunpack.c.l.b16 %v1686
    %v1915 = vunpack.c.h.b16 %v1686
    %v1916 = vunpack.c.l.b16 %v1687
    %v1917 = vunpack.c.h.b16 %v1687
    %v1918 = vunpack.c.l.b16 %v1688
    %v1919 = vunpack.c.h.b16 %v1688
    %v1920 = vunpack.c.l.b16 %v1689
    %v1921 = vunpack.c.h.b16 %v1689
    %v1922 = vunpack.c.l.b16 %v1690
    %v1923 = vunpack.c.h.b16 %v1690
    %v1924 = vunpack.c.l.b16 %v1691
    %v1925 = vunpack.c.h.b16 %v1691
    %v1926 = vunpack.c.l.b16 %v1692
    %v1927 = vunpack.c.h.b16 %v1692
    %v1928 = vunpack.c.l.b16 %v1693
    %v1929 = vunpack.c.h.b16 %v1693
    %v1930 = vunpack.c.l.b16 %v1694
    %v1931 = vunpack.c.h.b16 %v1694
    %v1932 = vunpack.c.l.b16 %v1695
    %v1933 = vunpack.c.h.b16 %v1695
    %v1934 = vunpack.c.l.b16 %v1696
    %v1935 = vunpack.c.h.b16 %v1696
    %v1936 = vunpack.c.l.b16 %v1697
    %v1937 = vunpack.c.h.b16 %v1697
    %v1938 = vunpack.c.l.b16 %v1698
    %v1939 = vunpack.c.h.b16 %v1698
    %v1940 = vunpack.c.l.b16 %v1699
    %v1941 = vunpack.c.h.b16 %v1699
    %v1942 = vunpack.c.l.b16 %v1700
    %v1943 = vunpack.c.h.b16 %v1700
    %v1944 = vunpack.c.l.b16 %v1701
    %v1945 = vunpack.c.h.b16 %v1701
    %v1946 = vunpack.c.l.b16 %v1702
    %v1947 = vunpack.c.h.b16 %v1702
    %v1948 = vunpack.c.l.b16 %v1703
    %v1949 = vunpack.c.h.b16 %v1703
    %v1950 = vunpack.c.l.b16 %v1704
    %v1951 = vunpack.c.h.b16 %v1704
    %v1952 = vunpack.c.l.b16 %v1705
    %v1953 = vunpack.c.h.b16 %v1705
    %v1954 = vunpack.c.l.b16 %v1706
    %v1955 = vunpack.c.h.b16 %v1706
    %v1956 = vunpack.c.l.b16 %v1707
    %v1957 = vunpack.c.h.b16 %v1707
    %v1958 = vunpack.c.l.b16 %v1708
    %v1959 = vunpack.c.h.b16 %v1708
    %v1960 = vunpack.c.l.b16 %v1709
    %v1961 = vunpack.c.h.b16 %v1709
    %v1962 = vunpack.c.l.b16 %v1710
    %v1963 = vunpack.c.h.b16 %v1710
    %v1964 = vunpack.c.l.b16 %v1711
    %v1965 = vunpack.c.h.b16 %v1711
    %v1966 = vunpack.c.l.b16 %v1712
    %v1967 = vunpack.c.h.b16 %v1712
    %v1968 = vunpack.c.l.b16 %v1713
    %v1969 = vunpack.c.h.b16 %v1713
    %v1970 = vunpack.c.l.b16 %v1714
    %v1971 = vunpack.c.h.b16 %v1714
    %v1972 = vunpack.c.l.b16 %v1715
    %v1973 = vunpack.c.h.b16 %v1715
    %v1974 = vunpack.c.l.b16 %v1716
    %v1975 = vunpack.c.h.b16 %v1716
    %v1976 = vunpack.c.l.b16 %v1717
    %v1977 = vunpack.c.h.b16 %v1717
    %v1978 = vunpack.c.l.b16 %v1718
    %v1979 = vunpack.c.h.b16 %v1718
    %v1980 = vunpack.c.l.b16 %v1719
    %v1981 = vunpack.c.h.b16 %v1719
    %v1982 = vunpack.c.l.b16 %v1720
    %v1983 = vunpack.c.h.b16 %v1720
    %v1984 = vunpack.c.l.b16 %v1721
    %v1985 = vunpack.c.h.b16 %v1721
    %v1986 = vunpack.c.l.b16 %v1722
    %v1987 = vunpack.c.h.b16 %v1722
    %v1988 = vunpack.c.l.b16 %v1723
    %v1989 = vunpack.c.h.b16 %v1723
    %v1990 = vunpack.c.l.b16 %v1724
    %v1991 = vunpack.c.h.b16 %v1724
    %v1992 = vunpack.c.l.b16 %v1725
    %v1993 = vunpack.c.h.b16 %v1725
    %v1994 = vunpack.c.l.b16 %v1726
    %v1995 = vunpack.c.h.b16 %v1726
    %v1996 = vunpack.c.l.b16 %v1727
    %v1997 = vunpack.c.h.b16 %v1727
    %v1998 = vunpack.c.l.b16 %v1728
    %v1999 = vunpack.c.h.b16 %v1728
    %v2000 = vunpack.c.l.b16 %v1729
    %v2001 = vunpack.c.h.b16 %v1729
    %v2002 = vunpack.c.l.b16 %v1730
    %v2003 = vunpack.c.h.b16 %v1730
    %v2004 = vunpack.c.l.b16 %v1731
    %v2005 = vunpack.c.h.b16 %v1731
    %v2006 = vunpack.c.l.b16 %v1732
    %v2007 = vunpack.c.h.b16 %v1732
    %v2008 = vunpack.c.l.b16 %v1733
    %v2009 = vunpack.c.h.b16 %v1733
    %v2010 = vunpack.c.l.b16 %v1734
    %v2011 = vunpack.c.h.b16 %v1734
    %v2012 = vunpack.c.l.b16 %v1735
    %v2013 = vunpack.c.h.b16 %v1735
    %v2014 = vunpack.c.l.b16 %v1736
    %v2015 = vunpack.c.h.b16 %v1736
    %v2016 = vunpack.c.l.b16 %v1737
    %v2017 = vunpack.c.h.b16 %v1737
    %v2018 = vunpack.c.l.b16 %v1738
    %v2019 = vunpack.c.h.b16 %v1738
    %v2020 = vunpack.c.l.b16 %v1739
    %v2021 = vunpack.c.h.b16 %v1739
    %v2022 = vunpack.c.l.b16 %v1740
    %v2023 = vunpack.c.h.b16 %v1740
    %v2024 = vunpack.c.l.b16 %v1741
    %v2025 = vunpack.c.h.b16 %v1741
    %v2026 = vunpack.c.l.b16 %v1742
    %v2027 = vunpack.c.h.b16 %v1742
    %v2028 = vunpack.c.l.b16 %v1743
    %v2029 = vunpack.c.h.b16 %v1743
    %v2030 = vunpack.c.l.b16 %v1744
    %v2031 = vunpack.c.h.b16 %v1744
    %v2032 = vunpack.c.l.b16 %v1745
    %v2033 = vunpack.c.h.b16 %v1745
    %v2034 = vpack.c.b16 %v1844, %v1842
    %v2035 = vpack.c.b16 %v1845, %v1843
    %v2036 = vpack.c.b16 %v1848, %v1846
    %v2037 = vpack.c.b16 %v1849, %v1847
    %v2038 = vpack.c.b16 %v1852, %v1850
    %v2039 = vpack.c.b16 %v1853, %v1851
    %v2040 = vpack.c.b16 %v1856, %v1854
    %v2041 = vpack.c.b16 %v1857, %v1855
    %v2042 = vpack.c.b16 %v1860, %v1858
    %v2043 = vpack.c.b16 %v1861, %v1859
    %v2044 = vpack.c.b16 %v1864, %v1862
    %v2045 = vpack.c.b16 %v1865, %v1863
    %v2046 = vpack.c.b16 %v1868, %v1866
    %v2047 = vpack.c.b16 %v1869, %v1867
    %v2048 = vpack.c.b16 %v1872, %v1870
    %v2049 = vpack.c.b16 %v1873, %v1871
    %v2050 = vpack.c.b16 %v1876, %v1874
    %v2051 = vpack.c.b16 %v1877, %v1875
    %v2052 = vpack.c.b16 %v1880, %v1878
    %v2053 = vpack.c.b16 %v1881, %v1879
    %v2054 = vpack.c.b16 %v1884, %v1882
    %v2055 = vpack.c.b16 %v1885, %v1883
    %v2056 = vpack.c.b16 %v1888, %v1886
    %v2057 = vpack.c.b16 %v1889, %v1887
    %v2058 = vpack.c.b16 %v1892, %v1890
    %v2059 = vpack.c.b16 %v1893, %v1891
    %v2060 = vpack.c.b16 %v1896, %v1894
    %v2061 = vpack.c.b16 %v1897, %v1895
    %v2062 = vpack.c.b16 %v1900, %v1898
    %v2063 = vpack.c.b16 %v1901, %v1899
    %v2064 = vpack.c.b16 %v1904, %v1902
    %v2065 = vpack.c.b16 %v1905, %v1903
    %v2066 = vpack.c.b16 %v1908, %v1906
    %v2067 = vpack.c.b16 %v1909, %v1907
    %v2068 = vpack.c.b16 %v1912, %v1910
    %v2069 = vpack.c.b16 %v1913, %v1911
    %v2070 = vpack.c.b16 %v1916, %v1914
    %v2071 = vpack.c.b16 %v1917, %v1915
    %v2072 = vpack.c.b16 %v1920, %v1918
    %v2073 = vpack.c.b16 %v1921, %v1919
    %v2074 = vpack.c.b16 %v1924, %v1922
    %v2075 = vpack.c.b16 %v1925, %v1923
    %v2076 = vpack.c.b16 %v1928, %v1926
    %v2077 = vpack.c.b16 %v1929, %v1927
    %v2078 = vpack.c.b16 %v1932, %v1930
    %v2079 = vpack.c.b16 %v1933, %v1931
    %v2080 = vpack.c.b16 %v1936, %v1934
    %v2081 = vpack.c.b16 %v1937, %v1935
    %v2082 = vpack.c.b16 %v1940, %v1938
    %v2083 = vpack.c.b16 %v1941, %v1939
    %v2084 = vpack.c.b16 %v1944, %v1942
    %v2085 = vpack.c.b16 %v1945, %v1943
    %v2086 = vpack.c.b16 %v1948, %v1946
    %v2087 = vpack.c.b16 %v1949, %v1947
    %v2088 = vpack.c.b16 %v1952, %v1950
    %v2089 = vpack.c.b16 %v1953, %v1951
    %v2090 = vpack.c.b16 %v1956, %v1954
    %v2091 = vpack.c.b16 %v1957, %v1955
    %v2092 = vpack.c.b16 %v1960, %v1958
    %v2093 = vpack.c.b16 %v1961, %v1959
    %v2094 = vpack.c.b16 %v1964, %v1962
    %v2095 = vpack.c.b16 %v1965, %v1963
    %v2096 = vpack.c.b16 %v1968, %v1966
    %v2097 = vpack.c.b16 %v1969, %v1967
    %v2098 = vpack.c.b16 %v1972, %v1970
    %v2099 = vpack.c.b16 %v1973, %v1971
    %v2100 = vpack.c.b16 %v1976, %v1974
    %v2101 = vpack.c.b16 %v1977, %v1975
    %v2102 = vpack.c.b16 %v1980, %v1978
    %v2103 = vpack.c.b16 %v1981, %v1979
    %v2104 = vpack.c.b16 %v1984, %v1982
    %v2105 = vpack.c.b16 %v1985, %v1983
    %v2106 = vpack.c.b16 %v1988, %v1986
    %v2107 = vpack.c.b16 %v1989, %v1987
    %v2108 = vpack.c.b16 %v1992, %v1990
    %v2109 = vpack.c.b16 %v1993, %v1991
    %v2110 = vpack.c.b16 %v1996, %v1994
    %v2111 = vpack.c.b16 %v1997, %v1995
    %v2112 = vpack.c.b16 %v2000, %v1998
    %v2113 = vpack.c.b16 %v2001, %v1999
    %v2114 = vpack.c.b16 %v2004, %v2002
    %v2115 = vpack.c.b16 %v2005, %v2003
    %v2116 = vpack.c.b16 %v2008, %v2006
    %v2117 = vpack.c.b16 %v2009, %v2007
    %v2118 = vpack.c.b16 %v2012, %v2010
    %v2119 = vpack.c.b16 %v2013, %v2011
    %v2120 = vpack.c.b16 %v2016, %v2014
    %v2121 = vpack.c.b16 %v2017, %v2015
    %v2122 = vpack.c.b16 %v2020, %v2018
    %v2123 = vpack.c.b16 %v2021, %v2019
    %v2124 = vpack.c.b16 %v2024, %v2022
    %v2125 = vpack.c.b16 %v2025, %v2023
    %v2126 = vpack.c.b16 %v2028, %v2026
    %v2127 = vpack.c.b16 %v2029, %v2027
    %v2128 = vpack.c.b16 %v2032, %v2030
    %v2129 = vpack.c.b16 %v2033, %v2031
    %2226 = vmatpush.bf16.msra.mxu0 %v2048
    %2227 = vmatpush.bf16.msra.mxu0 %v2046
    %2228 = vmatpush.bf16.msra.mxu0 %v2044
    %2229 = vmatpush.bf16.msra.mxu0 %v2042
    %2230 = vmatpush.bf16.msra.mxu0 %v2040
    %2231 = vmatpush.bf16.msra.mxu0 %v2038
    %2232 = vmatpush.bf16.msra.mxu0 %v2036
    %2233 = vmatpush.bf16.msra.mxu0 %v2034
    %2234 = vmatmul.bf16.gmra.mxu0 %v1638
    %v2235 = vpop.f32.mrf.mxu0
    %v2236 = vadd.f32 0.0, %v2235
    %v2237 = vpop.f32.mrf.mxu0
    %v2238 = vadd.f32 0.0, %v2237
    %2239 = vmatmul.bf16.gmra.mxu0 %v1644
    %v2240 = vpop.f32.mrf.mxu0
    %v2241 = vadd.f32 0.0, %v2240
    %v2242 = vpop.f32.mrf.mxu0
    %v2243 = vadd.f32 0.0, %v2242
    %2244 = vdwg.mxu0
    %2245 = vmatpush.bf16.msra.mxu0 %v2064
    %2246 = vmatpush.bf16.msra.mxu0 %v2062
    %2247 = vmatpush.bf16.msra.mxu0 %v2060
    %2248 = vmatpush.bf16.msra.mxu0 %v2058
    %2249 = vmatpush.bf16.msra.mxu0 %v2056
    %2250 = vmatpush.bf16.msra.mxu0 %v2054
    %2251 = vmatpush.bf16.msra.mxu0 %v2052
    %2252 = vmatpush.bf16.msra.mxu0 %v2050
    %2253 = vmatmul.bf16.gmra.mxu0 %v1639
    %v2254 = vpop.f32.mrf.mxu0
    %v2255 = vadd.f32 %v2236, %v2254
    %v2256 = vpop.f32.mrf.mxu0
    %v2257 = vadd.f32 %v2238, %v2256
    %2258 = vmatmul.bf16.gmra.mxu0 %v1645
    %v2259 = vpop.f32.mrf.mxu0
    %v2260 = vadd.f32 %v2241, %v2259
    %v2261 = vpop.f32.mrf.mxu0
    %v2262 = vadd.f32 %v2243, %v2261
    %2263 = vdwg.mxu0
    %2264 = vmatpush.bf16.msra.mxu0 %v2080
    %2265 = vmatpush.bf16.msra.mxu0 %v2078
    %2266 = vmatpush.bf16.msra.mxu0 %v2076
    %2267 = vmatpush.bf16.msra.mxu0 %v2074
    %2268 = vmatpush.bf16.msra.mxu0 %v2072
    %2269 = vmatpush.bf16.msra.mxu0 %v2070
    %2270 = vmatpush.bf16.msra.mxu0 %v2068
    %2271 = vmatpush.bf16.msra.mxu0 %v2066
    %2272 = vmatmul.bf16.gmra.mxu0 %v1640
    %v2273 = vpop.f32.mrf.mxu0
    %v2274 = vadd.f32 %v2255, %v2273
    %v2275 = vpop.f32.mrf.mxu0
    %v2276 = vadd.f32 %v2257, %v2275
    %2277 = vmatmul.bf16.gmra.mxu0 %v1646
    %v2278 = vpop.f32.mrf.mxu0
    %v2279 = vadd.f32 %v2260, %v2278
    %v2280 = vpop.f32.mrf.mxu0
    %v2281 = vadd.f32 %v2262, %v2280
    %2282 = vdwg.mxu0
    %2283 = vmatpush.bf16.msra.mxu0 %v2096
    %2284 = vmatpush.bf16.msra.mxu0 %v2094
    %2285 = vmatpush.bf16.msra.mxu0 %v2092
    %2286 = vmatpush.bf16.msra.mxu0 %v2090
    %2287 = vmatpush.bf16.msra.mxu0 %v2088
    %2288 = vmatpush.bf16.msra.mxu0 %v2086
    %2289 = vmatpush.bf16.msra.mxu0 %v2084
    %2290 = vmatpush.bf16.msra.mxu0 %v2082
    %2291 = vmatmul.bf16.gmra.mxu0 %v1641
    %v2292 = vpop.f32.mrf.mxu0
    %v2293 = vadd.f32 %v2274, %v2292
    %v2294 = vpop.f32.mrf.mxu0
    %v2295 = vadd.f32 %v2276, %v2294
    %2296 = vmatmul.bf16.gmra.mxu0 %v1647
    %v2297 = vpop.f32.mrf.mxu0
    %v2298 = vadd.f32 %v2279, %v2297
    %v2299 = vpop.f32.mrf.mxu0
    %v2300 = vadd.f32 %v2281, %v2299
    %2301 = vdwg.mxu0
    %2302 = vmatpush.bf16.msra.mxu0 %v2112
    %2303 = vmatpush.bf16.msra.mxu0 %v2110
    %2304 = vmatpush.bf16.msra.mxu0 %v2108
    %2305 = vmatpush.bf16.msra.mxu0 %v2106
    %2306 = vmatpush.bf16.msra.mxu0 %v2104
    %2307 = vmatpush.bf16.msra.mxu0 %v2102
    %2308 = vmatpush.bf16.msra.mxu0 %v2100
    %2309 = vmatpush.bf16.msra.mxu0 %v2098
    %2310 = vmatmul.bf16.gmra.mxu0 %v1642
    %v2311 = vpop.f32.mrf.mxu0
    %v2312 = vadd.f32 %v2293, %v2311
    %v2313 = vpop.f32.mrf.mxu0
    %v2314 = vadd.f32 %v2295, %v2313
    %2315 = vmatmul.bf16.gmra.mxu0 %v1648
    %v2316 = vpop.f32.mrf.mxu0
    %v2317 = vadd.f32 %v2298, %v2316
    %v2318 = vpop.f32.mrf.mxu0
    %v2319 = vadd.f32 %v2300, %v2318
    %2320 = vdwg.mxu0
    %2321 = vmatpush.bf16.msra.mxu0 %v2128
    %2322 = vmatpush.bf16.msra.mxu0 %v2126
    %2323 = vmatpush.bf16.msra.mxu0 %v2124
    %2324 = vmatpush.bf16.msra.mxu0 %v2122
    %2325 = vmatpush.bf16.msra.mxu0 %v2120
    %2326 = vmatpush.bf16.msra.mxu0 %v2118
    %2327 = vmatpush.bf16.msra.mxu0 %v2116
    %2328 = vmatpush.bf16.msra.mxu0 %v2114
    %2329 = vmatmul.bf16.gmra.mxu0 %v1643
    %v2330 = vpop.f32.mrf.mxu0
    %v2331 = vadd.f32 %v2312, %v2330
    %v2332 = vpop.f32.mrf.mxu0
    %v2333 = vadd.f32 %v2314, %v2332
    %2334 = vmatmul.bf16.gmra.mxu0 %v1649
    %v2335 = vpop.f32.mrf.mxu0
    %v2336 = vadd.f32 %v2317, %v2335
    %v2337 = vpop.f32.mrf.mxu0
    %v2338 = vadd.f32 %v2319, %v2337
    %2339 = vdwg.mxu0
    %2340 = vmatpush.bf16.msra.mxu0 %v2049
    %2341 = vmatpush.bf16.msra.mxu0 %v2047
    %2342 = vmatpush.bf16.msra.mxu0 %v2045
    %2343 = vmatpush.bf16.msra.mxu0 %v2043
    %2344 = vmatpush.bf16.msra.mxu0 %v2041
    %2345 = vmatpush.bf16.msra.mxu0 %v2039
    %2346 = vmatpush.bf16.msra.mxu0 %v2037
    %2347 = vmatpush.bf16.msra.mxu0 %v2035
    %2348 = vmatmul.bf16.gmra.mxu0 %v1638
    %v2349 = vpop.f32.mrf.mxu0
    %v2350 = vadd.f32 0.0, %v2349
    %v2351 = vpop.f32.mrf.mxu0
    %v2352 = vadd.f32 0.0, %v2351
    %2353 = vmatmul.bf16.gmra.mxu0 %v1644
    %v2354 = vpop.f32.mrf.mxu0
    %v2355 = vadd.f32 0.0, %v2354
    %v2356 = vpop.f32.mrf.mxu0
    %v2357 = vadd.f32 0.0, %v2356
    %2358 = vdwg.mxu0
    %2359 = vmatpush.bf16.msra.mxu0 %v2065
    %2360 = vmatpush.bf16.msra.mxu0 %v2063
    %2361 = vmatpush.bf16.msra.mxu0 %v2061
    %2362 = vmatpush.bf16.msra.mxu0 %v2059
    %2363 = vmatpush.bf16.msra.mxu0 %v2057
    %2364 = vmatpush.bf16.msra.mxu0 %v2055
    %2365 = vmatpush.bf16.msra.mxu0 %v2053
    %2366 = vmatpush.bf16.msra.mxu0 %v2051
    %2367 = vmatmul.bf16.gmra.mxu0 %v1639
    %v2368 = vpop.f32.mrf.mxu0
    %v2369 = vadd.f32 %v2350, %v2368
    %v2370 = vpop.f32.mrf.mxu0
    %v2371 = vadd.f32 %v2352, %v2370
    %2372 = vmatmul.bf16.gmra.mxu0 %v1645
    %v2373 = vpop.f32.mrf.mxu0
    %v2374 = vadd.f32 %v2355, %v2373
    %v2375 = vpop.f32.mrf.mxu0
    %v2376 = vadd.f32 %v2357, %v2375
    %2377 = vdwg.mxu0
    %2378 = vmatpush.bf16.msra.mxu0 %v2081
    %2379 = vmatpush.bf16.msra.mxu0 %v2079
    %2380 = vmatpush.bf16.msra.mxu0 %v2077
    %2381 = vmatpush.bf16.msra.mxu0 %v2075
    %2382 = vmatpush.bf16.msra.mxu0 %v2073
    %2383 = vmatpush.bf16.msra.mxu0 %v2071
    %2384 = vmatpush.bf16.msra.mxu0 %v2069
    %2385 = vmatpush.bf16.msra.mxu0 %v2067
    %2386 = vmatmul.bf16.gmra.mxu0 %v1640
    %v2387 = vpop.f32.mrf.mxu0
    %v2388 = vadd.f32 %v2369, %v2387
    %v2389 = vpop.f32.mrf.mxu0
    %v2390 = vadd.f32 %v2371, %v2389
    %2391 = vmatmul.bf16.gmra.mxu0 %v1646
    %v2392 = vpop.f32.mrf.mxu0
    %v2393 = vadd.f32 %v2374, %v2392
    %v2394 = vpop.f32.mrf.mxu0
    %v2395 = vadd.f32 %v2376, %v2394
    %2396 = vdwg.mxu0
    %2397 = vmatpush.bf16.msra.mxu0 %v2097
    %2398 = vmatpush.bf16.msra.mxu0 %v2095
    %2399 = vmatpush.bf16.msra.mxu0 %v2093
    %2400 = vmatpush.bf16.msra.mxu0 %v2091
    %2401 = vmatpush.bf16.msra.mxu0 %v2089
    %2402 = vmatpush.bf16.msra.mxu0 %v2087
    %2403 = vmatpush.bf16.msra.mxu0 %v2085
    %2404 = vmatpush.bf16.msra.mxu0 %v2083
    %2405 = vmatmul.bf16.gmra.mxu0 %v1641
    %v2406 = vpop.f32.mrf.mxu0
    %v2407 = vadd.f32 %v2388, %v2406
    %v2408 = vpop.f32.mrf.mxu0
    %v2409 = vadd.f32 %v2390, %v2408
    %2410 = vmatmul.bf16.gmra.mxu0 %v1647
    %v2411 = vpop.f32.mrf.mxu0
    %v2412 = vadd.f32 %v2393, %v2411
    %v2413 = vpop.f32.mrf.mxu0
    %v2414 = vadd.f32 %v2395, %v2413
    %2415 = vdwg.mxu0
    %2416 = vmatpush.bf16.msra.mxu0 %v2113
    %2417 = vmatpush.bf16.msra.mxu0 %v2111
    %2418 = vmatpush.bf16.msra.mxu0 %v2109
    %2419 = vmatpush.bf16.msra.mxu0 %v2107
    %2420 = vmatpush.bf16.msra.mxu0 %v2105
    %2421 = vmatpush.bf16.msra.mxu0 %v2103
    %2422 = vmatpush.bf16.msra.mxu0 %v2101
    %2423 = vmatpush.bf16.msra.mxu0 %v2099
    %2424 = vmatmul.bf16.gmra.mxu0 %v1642
    %v2425 = vpop.f32.mrf.mxu0
    %v2426 = vadd.f32 %v2407, %v2425
    %v2427 = vpop.f32.mrf.mxu0
    %v2428 = vadd.f32 %v2409, %v2427
    %2429 = vmatmul.bf16.gmra.mxu0 %v1648
    %v2430 = vpop.f32.mrf.mxu0
    %v2431 = vadd.f32 %v2412, %v2430
    %v2432 = vpop.f32.mrf.mxu0
    %v2433 = vadd.f32 %v2414, %v2432
    %2434 = vdwg.mxu0
    %2435 = vmatpush.bf16.msra.mxu0 %v2129
    %2436 = vmatpush.bf16.msra.mxu0 %v2127
    %2437 = vmatpush.bf16.msra.mxu0 %v2125
    %2438 = vmatpush.bf16.msra.mxu0 %v2123
    %2439 = vmatpush.bf16.msra.mxu0 %v2121
    %2440 = vmatpush.bf16.msra.mxu0 %v2119
    %2441 = vmatpush.bf16.msra.mxu0 %v2117
    %2442 = vmatpush.bf16.msra.mxu0 %v2115
    %2443 = vmatmul.bf16.gmra.mxu0 %v1643
    %v2444 = vpop.f32.mrf.mxu0
    %v2445 = vadd.f32 %v2426, %v2444
    %v2446 = vpop.f32.mrf.mxu0
    %v2447 = vadd.f32 %v2428, %v2446
    %2448 = vmatmul.bf16.gmra.mxu0 %v1649
    %v2449 = vpop.f32.mrf.mxu0
    %v2450 = vadd.f32 %v2431, %v2449
    %v2451 = vpop.f32.mrf.mxu0
    %v2452 = vadd.f32 %v2433, %v2451
    %2453 = vdwg.mxu0
    %v2454 = vld [vmem:[#allocation16 + $0xc0] sm:$0xff]
    %v2455 = vld [vmem:[#allocation16 + $0xc8] sm:$0xff]
    %v2456 = vld [vmem:[#allocation16 + $0xd0] sm:$0xff]
    %v2457 = vld [vmem:[#allocation16 + $0xd8] sm:$0xff]
    %v2458 = vadd.f32 %v2331, %v2333
    %v2459 = vadd.f32 %v2458, %v2336
    %v2460 = vadd.f32 %v2459, %v2338
    %v2461 = vrot.slane %v2460, 4
    %v2462 = vadd.f32 %v2460, %v2461
    %v2463 = vrot.slane %v2462, 2
    %v2464 = vadd.f32 %v2462, %v2463
    %v2465 = vrot.slane %v2464, 1
    %v2466 = vadd.f32 %v2464, %v2465
    %v2467 = vadd.f32 %v2445, %v2447
    %v2468 = vadd.f32 %v2467, %v2450
    %v2469 = vadd.f32 %v2468, %v2452
    %v2470 = vrot.slane %v2469, 4
    %v2471 = vadd.f32 %v2469, %v2470
    %v2472 = vrot.slane %v2471, 2
    %v2473 = vadd.f32 %v2471, %v2472
    %v2474 = vrot.slane %v2473, 1
    %v2475 = vadd.f32 %v2473, %v2474
    %v2476 = vmul.f32 %v2331, %v2331
    %v2477 = vmul.f32 %v2445, %v2445
    %v2478 = vmul.f32 %v2333, %v2333
    %v2479 = vmul.f32 %v2447, %v2447
    %v2480 = vmul.f32 %v2336, %v2336
    %v2481 = vmul.f32 %v2450, %v2450
    %v2482 = vmul.f32 %v2338, %v2338
    %v2483 = vmul.f32 %v2452, %v2452
    %v2484 = vadd.f32 %v2476, %v2478
    %v2485 = vadd.f32 %v2484, %v2480
    %v2486 = vadd.f32 %v2485, %v2482
    %v2487 = vrot.slane %v2486, 4
    %v2488 = vadd.f32 %v2486, %v2487
    %v2489 = vrot.slane %v2488, 2
    %v2490 = vadd.f32 %v2488, %v2489
    %v2491 = vrot.slane %v2490, 1
    %v2492 = vadd.f32 %v2490, %v2491
    %v2493 = vadd.f32 %v2477, %v2479
    %v2494 = vadd.f32 %v2493, %v2481
    %v2495 = vadd.f32 %v2494, %v2483
    %v2496 = vrot.slane %v2495, 4
    %v2497 = vadd.f32 %v2495, %v2496
    %v2498 = vrot.slane %v2497, 2
    %v2499 = vadd.f32 %v2497, %v2498
    %v2500 = vrot.slane %v2499, 1
    %v2501 = vadd.f32 %v2499, %v2500
    %v2502 = vsel %vm286, %v2466, %v2492
    %v2503 = vsel %vm286, %v2475, %v2501
    %2504 = vmatpush.xpose.msra.mxu0 0.0
    %2505 = vmatpush.xpose.msra.mxu0 0.0
    %2506 = vmatpush.xpose.msra.mxu0 0.0
    %2507 = vmatpush.xpose.msra.mxu0 0.0
    %2508 = vmatpush.xpose.msra.mxu0 0.0
    %2509 = vmatpush.xpose.msra.mxu0 0.0
    %2510 = vmatpush.xpose.msra.mxu0 0.0
    %2511 = vmatpush.xpose.msra.mxu0 0.0
    %2512 = vmatpush.xpose.msra.mxu0 0.0
    %2513 = vmatpush.xpose.msra.mxu0 0.0
    %2514 = vmatpush.xpose.msra.mxu0 0.0
    %2515 = vmatpush.xpose.msra.mxu0 0.0
    %2516 = vmatpush.xpose.msra.mxu0 0.0
    %2517 = vmatpush.xpose.msra.mxu0 0.0
    %2518 = vmatpush.xpose.msra.mxu0 %v2456
    %2519 = vmatpush.xpose.msra.mxu0 %v2454
    %2520 = vmatmul.f32.gmra.mxu0 %v2502
    %v2521 = vpop.f32.mrf.mxu0
    %v2522 = vadd.f32 0.0, %v2521
    %2523 = vdwg.mxu0
    %2524 = vmatpush.xpose.msra.mxu0 0.0
    %2525 = vmatpush.xpose.msra.mxu0 0.0
    %2526 = vmatpush.xpose.msra.mxu0 0.0
    %2527 = vmatpush.xpose.msra.mxu0 0.0
    %2528 = vmatpush.xpose.msra.mxu0 0.0
    %2529 = vmatpush.xpose.msra.mxu0 0.0
    %2530 = vmatpush.xpose.msra.mxu0 0.0
    %2531 = vmatpush.xpose.msra.mxu0 0.0
    %2532 = vmatpush.xpose.msra.mxu0 0.0
    %2533 = vmatpush.xpose.msra.mxu0 0.0
    %2534 = vmatpush.xpose.msra.mxu0 0.0
    %2535 = vmatpush.xpose.msra.mxu0 0.0
    %2536 = vmatpush.xpose.msra.mxu0 0.0
    %2537 = vmatpush.xpose.msra.mxu0 0.0
    %2538 = vmatpush.xpose.msra.mxu0 %v2457
    %2539 = vmatpush.xpose.msra.mxu0 %v2455
    %2540 = vmatmul.f32.gmra.mxu0 %v2503
    %v2541 = vpop.f32.mrf.mxu0
    %v2542 = vadd.f32 %v2522, %v2541
    %2543 = vdwg.mxu0
    %v2544 = vmul.f32 %v2542, 0.001953125
    %v2545 = vmul.f32 %v2544, %v2544
    %v2547 = vrot.slane %v2545, 7
    %v2549 = vsub.f32 %v2544, %v2547
    %v2550 = vmax.f32 %v2549, 0.0
    %v2551 = vadd.f32 %v2550, 1e-05
    %v2552 = vrsqrt.pop %v2551
    %v2553 = vmul.f32 %v2552, %v2551
    %v2554 = vmul.f32 %v2553, %v2552
    %v2555 = vmul.f32 0.5, %v2554
    %v2556 = vsub.f32 1.5, %v2555
    %v2557 = vmul.f32 %v2552, %v2556
    %vm2558 = vweird.f32 %v2551
    %vm2559 = vweird.f32 %v2552
    %vm2560 = vmor %vm2558, %vm2559
    %v2561 = vsel %vm2560, %v2552, %v2557
    %s2562 = scalar_lea.vmem [#allocation18], 4
    %v2563 = vld [vmem:[%s2562] sm:$0x3]
    %v2565 = vrot.slane %v2561, 1
    %v2567 = vmul.f32 %v2563, %v2565
    %v2568 = vmul.f32 %v2544, %v2567
    %v2570 = vrot.slane %v2568, 7
    %v2572 = vsub.f32 %v2563, %v2570
    %v2573 = vsel %vm286, %v2567, %v2572
    %v2575 = vsel %vm1475, %v2573, 0
    %2577 = vmatpush.msra.mxu0 0.0
    %2578 = vmatpush.msra.mxu0 0.0
    %2579 = vmatpush.msra.mxu0 0.0
    %2580 = vmatpush.msra.mxu0 0.0
    %2581 = vmatpush.msra.mxu0 0.0
    %2582 = vmatpush.msra.mxu0 0.0
    %2583 = vmatpush.msra.mxu0 0.0
    %2584 = vmatpush.msra.mxu0 0.0
    %2585 = vmatpush.msra.mxu0 0.0
    %2586 = vmatpush.msra.mxu0 0.0
    %2587 = vmatpush.msra.mxu0 0.0
    %2588 = vmatpush.msra.mxu0 0.0
    %2589 = vmatpush.msra.mxu0 0.0
    %2590 = vmatpush.msra.mxu0 0.0
    %2591 = vmatpush.msra.mxu0 %v2456
    %2592 = vmatpush.msra.mxu0 %v2454
    %2593 = vmatmul.f32.gmra.mxu0 %v2575
    %v2594 = vpop.f32.mrf.mxu0
    %v2595 = vadd.f32 0.0, %v2594
    %2596 = vdwg.mxu0
    %2597 = vmatpush.msra.mxu0 0.0
    %2598 = vmatpush.msra.mxu0 0.0
    %2599 = vmatpush.msra.mxu0 0.0
    %2600 = vmatpush.msra.mxu0 0.0
    %2601 = vmatpush.msra.mxu0 0.0
    %2602 = vmatpush.msra.mxu0 0.0
    %2603 = vmatpush.msra.mxu0 0.0
    %2604 = vmatpush.msra.mxu0 0.0
    %2605 = vmatpush.msra.mxu0 0.0
    %2606 = vmatpush.msra.mxu0 0.0
    %2607 = vmatpush.msra.mxu0 0.0
    %2608 = vmatpush.msra.mxu0 0.0
    %2609 = vmatpush.msra.mxu0 0.0
    %2610 = vmatpush.msra.mxu0 0.0
    %2611 = vmatpush.msra.mxu0 %v2457
    %2612 = vmatpush.msra.mxu0 %v2455
    %2613 = vmatmul.f32.gmra.mxu0 %v2575
    %v2614 = vpop.f32.mrf.mxu0
    %v2615 = vadd.f32 0.0, %v2614
    %2616 = vdwg.mxu0
    %v2617 = vperm.slane %v2595, 0
    %v2618 = vperm.slane %v2615, 0
    %v2619 = vmul.f32 %v2331, %v2617
    %v2620 = vmul.f32 %v2445, %v2618
    %v2621 = vmul.f32 %v2333, %v2617
    %v2622 = vmul.f32 %v2447, %v2618
    %v2623 = vmul.f32 %v2336, %v2617
    %v2624 = vmul.f32 %v2450, %v2618
    %v2625 = vmul.f32 %v2338, %v2617
    %v2626 = vmul.f32 %v2452, %v2618
    %v2627 = vperm.slane %v2595, 1
    %v2628 = vperm.slane %v2615, 1
    %v2629 = vadd.f32 %v2619, %v2627
    %v2630 = vadd.f32 %v2620, %v2628
    %v2631 = vadd.f32 %v2621, %v2627
    %v2632 = vadd.f32 %v2622, %v2628
    %v2633 = vadd.f32 %v2623, %v2627
    %v2634 = vadd.f32 %v2624, %v2628
    %v2635 = vadd.f32 %v2625, %v2627
    %v2636 = vadd.f32 %v2626, %v2628
    %v2637 = vmax.f32 %v2629, 0.0
    %v2638 = vmax.f32 %v2630, 0.0
    %v2639 = vmax.f32 %v2631, 0.0
    %v2640 = vmax.f32 %v2632, 0.0
    %v2641 = vmax.f32 %v2633, 0.0
    %v2642 = vmax.f32 %v2634, 0.0
    %v2643 = vmax.f32 %v2635, 0.0
    %v2644 = vmax.f32 %v2636, 0.0
    %v2645 = vpack.c.bf16 %v2639, %v2637
    %v2646 = vpack.c.bf16 %v2640, %v2638
    %v2647 = vpack.c.bf16 %v2643, %v2641
    %v2648 = vpack.c.bf16 %v2644, %v2642
    %v2649 = vld [vmem:[#allocation10] sm:$0xf]
    %v2650 = vld [vmem:[#allocation10 + $0x4] sm:$0xf]
    %v2651 = vld [vmem:[#allocation10 + $0x8] sm:$0xf]
    %v2652 = vld [vmem:[#allocation10 + $0xc] sm:$0xf]
    %v2653 = vld [vmem:[#allocation10 + $0x10] sm:$0xf]
    %v2654 = vld [vmem:[#allocation10 + $0x14] sm:$0xf]
    %v2655 = vld [vmem:[#allocation10 + $0x18] sm:$0xf]
    %v2656 = vld [vmem:[#allocation10 + $0x1c] sm:$0xf]
    %v2665 = vunpack.c.l.b16 %v2649
    %v2666 = vunpack.c.l.b16 %v2650
    %v2667 = vunpack.c.l.b16 %v2651
    %v2668 = vunpack.c.l.b16 %v2652
    %v2669 = vunpack.c.l.b16 %v2653
    %v2670 = vunpack.c.l.b16 %v2654
    %v2671 = vunpack.c.l.b16 %v2655
    %v2672 = vunpack.c.l.b16 %v2656
    %v2673 = vpack.c.b16 %v2666, %v2665
    %v2674 = vpack.c.b16 %v2668, %v2667
    %v2675 = vpack.c.b16 %v2670, %v2669
    %v2676 = vpack.c.b16 %v2672, %v2671
    %v2678 = vsel %vm200, %v2673, 0
    %v2681 = vsel %vm200, %v2674, 0
    %v2684 = vsel %vm200, %v2675, 0
    %v2687 = vsel %vm200, %v2676, 0
    %2689 = vmatpush.bf16.msra.mxu0 0
    %2690 = vmatpush.bf16.msra.mxu0 0
    %2691 = vmatpush.bf16.msra.mxu0 0
    %2692 = vmatpush.bf16.msra.mxu0 0
    %2693 = vmatpush.bf16.msra.mxu0 0
    %2694 = vmatpush.bf16.msra.mxu0 0
    %2695 = vmatpush.bf16.msra.mxu0 %v2647
    %2696 = vmatpush.bf16.msra.mxu0 %v2645
    %2697 = vmatmul.bf16.gmra.mxu0 %v2678
    %v2698 = vpop.f32.mrf.mxu0
    %v2699 = vadd.f32 0.0, %v2698
    %v2700 = vpop.f32.mrf.mxu0
    %v2701 = vadd.f32 0.0, %v2700
    %2702 = vmatmul.bf16.gmra.mxu0 %v2681
    %v2703 = vpop.f32.mrf.mxu0
    %v2704 = vadd.f32 0.0, %v2703
    %v2705 = vpop.f32.mrf.mxu0
    %v2706 = vadd.f32 0.0, %v2705
    %2707 = vmatmul.bf16.gmra.mxu0 %v2684
    %v2708 = vpop.f32.mrf.mxu0
    %v2709 = vadd.f32 0.0, %v2708
    %v2710 = vpop.f32.mrf.mxu0
    %v2711 = vadd.f32 0.0, %v2710
    %2712 = vmatmul.bf16.gmra.mxu0 %v2687
    %v2713 = vpop.f32.mrf.mxu0
    %v2714 = vadd.f32 0.0, %v2713
    %v2715 = vpop.f32.mrf.mxu0
    %v2716 = vadd.f32 0.0, %v2715
    %2717 = vdwg.mxu0
    %2718 = vmatpush.bf16.msra.mxu0 0
    %2719 = vmatpush.bf16.msra.mxu0 0
    %2720 = vmatpush.bf16.msra.mxu0 0
    %2721 = vmatpush.bf16.msra.mxu0 0
    %2722 = vmatpush.bf16.msra.mxu0 0
    %2723 = vmatpush.bf16.msra.mxu0 0
    %2724 = vmatpush.bf16.msra.mxu0 %v2648
    %2725 = vmatpush.bf16.msra.mxu0 %v2646
    %2726 = vmatmul.bf16.gmra.mxu0 %v2678
    %v2727 = vpop.f32.mrf.mxu0
    %v2728 = vadd.f32 0.0, %v2727
    %v2729 = vpop.f32.mrf.mxu0
    %v2730 = vadd.f32 0.0, %v2729
    %2731 = vmatmul.bf16.gmra.mxu0 %v2681
    %v2732 = vpop.f32.mrf.mxu0
    %v2733 = vadd.f32 0.0, %v2732
    %v2734 = vpop.f32.mrf.mxu0
    %v2735 = vadd.f32 0.0, %v2734
    %2736 = vmatmul.bf16.gmra.mxu0 %v2684
    %v2737 = vpop.f32.mrf.mxu0
    %v2738 = vadd.f32 0.0, %v2737
    %v2739 = vpop.f32.mrf.mxu0
    %v2740 = vadd.f32 0.0, %v2739
    %2741 = vmatmul.bf16.gmra.mxu0 %v2687
    %v2742 = vpop.f32.mrf.mxu0
    %v2743 = vadd.f32 0.0, %v2742
    %v2744 = vpop.f32.mrf.mxu0
    %v2745 = vadd.f32 0.0, %v2744
    %2746 = vdwg.mxu0
    %s2747 = scalar_lea.vmem [#allocation10], 32
    %v2748 = vld [vmem:[%s2747] sm:$0xf]
    %v2749 = vld [vmem:[%s2747 + $0x4] sm:$0xf]
    %v2750 = vld [vmem:[%s2747 + $0x8] sm:$0xf]
    %v2751 = vld [vmem:[%s2747 + $0xc] sm:$0xf]
    %v2752 = vld [vmem:[%s2747 + $0x10] sm:$0xf]
    %v2753 = vld [vmem:[%s2747 + $0x14] sm:$0xf]
    %v2754 = vld [vmem:[%s2747 + $0x18] sm:$0xf]
    %v2755 = vld [vmem:[%s2747 + $0x1c] sm:$0xf]
    %v2764 = vunpack.c.l.b16 %v2748
    %v2765 = vunpack.c.l.b16 %v2749
    %v2766 = vunpack.c.l.b16 %v2750
    %v2767 = vunpack.c.l.b16 %v2751
    %v2768 = vunpack.c.l.b16 %v2752
    %v2769 = vunpack.c.l.b16 %v2753
    %v2770 = vunpack.c.l.b16 %v2754
    %v2771 = vunpack.c.l.b16 %v2755
    %v2772 = vpack.c.b16 %v2765, %v2764
    %v2773 = vpack.c.b16 %v2767, %v2766
    %v2774 = vpack.c.b16 %v2769, %v2768
    %v2775 = vpack.c.b16 %v2771, %v2770
    %v2777 = vsel %vm200, %v2772, 0
    %v2780 = vsel %vm200, %v2773, 0
    %v2783 = vsel %vm200, %v2774, 0
    %v2786 = vsel %vm200, %v2775, 0
    %2788 = vmatpush.bf16.msra.mxu0 0
    %2789 = vmatpush.bf16.msra.mxu0 0
    %2790 = vmatpush.bf16.msra.mxu0 0
    %2791 = vmatpush.bf16.msra.mxu0 0
    %2792 = vmatpush.bf16.msra.mxu0 0
    %2793 = vmatpush.bf16.msra.mxu0 0
    %2794 = vmatpush.bf16.msra.mxu0 %v2647
    %2795 = vmatpush.bf16.msra.mxu0 %v2645
    %2796 = vmatmul.bf16.gmra.mxu0 %v2777
    %v2797 = vpop.f32.mrf.mxu0
    %v2798 = vadd.f32 0.0, %v2797
    %v2799 = vpop.f32.mrf.mxu0
    %v2800 = vadd.f32 0.0, %v2799
    %2801 = vmatmul.bf16.gmra.mxu0 %v2780
    %v2802 = vpop.f32.mrf.mxu0
    %v2803 = vadd.f32 0.0, %v2802
    %v2804 = vpop.f32.mrf.mxu0
    %v2805 = vadd.f32 0.0, %v2804
    %2806 = vmatmul.bf16.gmra.mxu0 %v2783
    %v2807 = vpop.f32.mrf.mxu0
    %v2808 = vadd.f32 0.0, %v2807
    %v2809 = vpop.f32.mrf.mxu0
    %v2810 = vadd.f32 0.0, %v2809
    %2811 = vmatmul.bf16.gmra.mxu0 %v2786
    %v2812 = vpop.f32.mrf.mxu0
    %v2813 = vadd.f32 0.0, %v2812
    %v2814 = vpop.f32.mrf.mxu0
    %v2815 = vadd.f32 0.0, %v2814
    %2816 = vdwg.mxu0
    %2817 = vmatpush.bf16.msra.mxu0 0
    %2818 = vmatpush.bf16.msra.mxu0 0
    %2819 = vmatpush.bf16.msra.mxu0 0
    %2820 = vmatpush.bf16.msra.mxu0 0
    %2821 = vmatpush.bf16.msra.mxu0 0
    %2822 = vmatpush.bf16.msra.mxu0 0
    %2823 = vmatpush.bf16.msra.mxu0 %v2648
    %2824 = vmatpush.bf16.msra.mxu0 %v2646
    %2825 = vmatmul.bf16.gmra.mxu0 %v2777
    %v2826 = vpop.f32.mrf.mxu0
    %v2827 = vadd.f32 0.0, %v2826
    %v2828 = vpop.f32.mrf.mxu0
    %v2829 = vadd.f32 0.0, %v2828
    %2830 = vmatmul.bf16.gmra.mxu0 %v2780
    %v2831 = vpop.f32.mrf.mxu0
    %v2832 = vadd.f32 0.0, %v2831
    %v2833 = vpop.f32.mrf.mxu0
    %v2834 = vadd.f32 0.0, %v2833
    %2835 = vmatmul.bf16.gmra.mxu0 %v2783
    %v2836 = vpop.f32.mrf.mxu0
    %v2837 = vadd.f32 0.0, %v2836
    %v2838 = vpop.f32.mrf.mxu0
    %v2839 = vadd.f32 0.0, %v2838
    %2840 = vmatmul.bf16.gmra.mxu0 %v2786
    %v2841 = vpop.f32.mrf.mxu0
    %v2842 = vadd.f32 0.0, %v2841
    %v2843 = vpop.f32.mrf.mxu0
    %v2844 = vadd.f32 0.0, %v2843
    %2845 = vdwg.mxu0
    %s2846 = scalar_lea.vmem [#allocation10], 64
    %v2847 = vld [vmem:[%s2846] sm:$0xf]
    %v2848 = vld [vmem:[%s2846 + $0x4] sm:$0xf]
    %v2849 = vld [vmem:[%s2846 + $0x8] sm:$0xf]
    %v2850 = vld [vmem:[%s2846 + $0xc] sm:$0xf]
    %v2851 = vld [vmem:[%s2846 + $0x10] sm:$0xf]
    %v2852 = vld [vmem:[%s2846 + $0x14] sm:$0xf]
    %v2853 = vld [vmem:[%s2846 + $0x18] sm:$0xf]
    %v2854 = vld [vmem:[%s2846 + $0x1c] sm:$0xf]
    %v2863 = vunpack.c.l.b16 %v2847
    %v2864 = vunpack.c.l.b16 %v2848
    %v2865 = vunpack.c.l.b16 %v2849
    %v2866 = vunpack.c.l.b16 %v2850
    %v2867 = vunpack.c.l.b16 %v2851
    %v2868 = vunpack.c.l.b16 %v2852
    %v2869 = vunpack.c.l.b16 %v2853
    %v2870 = vunpack.c.l.b16 %v2854
    %v2871 = vpack.c.b16 %v2864, %v2863
    %v2872 = vpack.c.b16 %v2866, %v2865
    %v2873 = vpack.c.b16 %v2868, %v2867
    %v2874 = vpack.c.b16 %v2870, %v2869
    %v2876 = vsel %vm200, %v2871, 0
    %v2879 = vsel %vm200, %v2872, 0
    %v2882 = vsel %vm200, %v2873, 0
    %v2885 = vsel %vm200, %v2874, 0
    %2887 = vmatpush.bf16.msra.mxu0 0
    %2888 = vmatpush.bf16.msra.mxu0 0
    %2889 = vmatpush.bf16.msra.mxu0 0
    %2890 = vmatpush.bf16.msra.mxu0 0
    %2891 = vmatpush.bf16.msra.mxu0 0
    %2892 = vmatpush.bf16.msra.mxu0 0
    %2893 = vmatpush.bf16.msra.mxu0 %v2647
    %2894 = vmatpush.bf16.msra.mxu0 %v2645
    %2895 = vmatmul.bf16.gmra.mxu0 %v2876
    %v2896 = vpop.f32.mrf.mxu0
    %v2897 = vadd.f32 0.0, %v2896
    %v2898 = vpop.f32.mrf.mxu0
    %v2899 = vadd.f32 0.0, %v2898
    %2900 = vmatmul.bf16.gmra.mxu0 %v2879
    %v2901 = vpop.f32.mrf.mxu0
    %v2902 = vadd.f32 0.0, %v2901
    %v2903 = vpop.f32.mrf.mxu0
    %v2904 = vadd.f32 0.0, %v2903
    %2905 = vmatmul.bf16.gmra.mxu0 %v2882
    %v2906 = vpop.f32.mrf.mxu0
    %v2907 = vadd.f32 0.0, %v2906
    %v2908 = vpop.f32.mrf.mxu0
    %v2909 = vadd.f32 0.0, %v2908
    %2910 = vmatmul.bf16.gmra.mxu0 %v2885
    %v2911 = vpop.f32.mrf.mxu0
    %v2912 = vadd.f32 0.0, %v2911
    %v2913 = vpop.f32.mrf.mxu0
    %v2914 = vadd.f32 0.0, %v2913
    %2915 = vdwg.mxu0
    %2916 = vmatpush.bf16.msra.mxu0 0
    %2917 = vmatpush.bf16.msra.mxu0 0
    %2918 = vmatpush.bf16.msra.mxu0 0
    %2919 = vmatpush.bf16.msra.mxu0 0
    %2920 = vmatpush.bf16.msra.mxu0 0
    %2921 = vmatpush.bf16.msra.mxu0 0
    %2922 = vmatpush.bf16.msra.mxu0 %v2648
    %2923 = vmatpush.bf16.msra.mxu0 %v2646
    %2924 = vmatmul.bf16.gmra.mxu0 %v2876
    %v2925 = vpop.f32.mrf.mxu0
    %v2926 = vadd.f32 0.0, %v2925
    %v2927 = vpop.f32.mrf.mxu0
    %v2928 = vadd.f32 0.0, %v2927
    %2929 = vmatmul.bf16.gmra.mxu0 %v2879
    %v2930 = vpop.f32.mrf.mxu0
    %v2931 = vadd.f32 0.0, %v2930
    %v2932 = vpop.f32.mrf.mxu0
    %v2933 = vadd.f32 0.0, %v2932
    %2934 = vmatmul.bf16.gmra.mxu0 %v2882
    %v2935 = vpop.f32.mrf.mxu0
    %v2936 = vadd.f32 0.0, %v2935
    %v2937 = vpop.f32.mrf.mxu0
    %v2938 = vadd.f32 0.0, %v2937
    %2939 = vmatmul.bf16.gmra.mxu0 %v2885
    %v2940 = vpop.f32.mrf.mxu0
    %v2941 = vadd.f32 0.0, %v2940
    %v2942 = vpop.f32.mrf.mxu0
    %v2943 = vadd.f32 0.0, %v2942
    %2944 = vdwg.mxu0
    %v2945 = vpack.c.bf16 %v2701, %v2699
    %v2946 = vpack.c.bf16 %v2730, %v2728
    %v2947 = vpack.c.bf16 %v2800, %v2798
    %v2948 = vpack.c.bf16 %v2829, %v2827
    %v2949 = vpack.c.bf16 %v2899, %v2897
    %v2950 = vpack.c.bf16 %v2928, %v2926
    %v2951 = vpack.c.bf16 %v2706, %v2704
    %v2952 = vpack.c.bf16 %v2735, %v2733
    %v2953 = vpack.c.bf16 %v2805, %v2803
    %v2954 = vpack.c.bf16 %v2834, %v2832
    %v2955 = vpack.c.bf16 %v2904, %v2902
    %v2956 = vpack.c.bf16 %v2933, %v2931
    %v2957 = vpack.c.bf16 %v2711, %v2709
    %v2958 = vpack.c.bf16 %v2740, %v2738
    %v2959 = vpack.c.bf16 %v2810, %v2808
    %v2960 = vpack.c.bf16 %v2839, %v2837
    %v2961 = vpack.c.bf16 %v2909, %v2907
    %v2962 = vpack.c.bf16 %v2938, %v2936
    %v2963 = vpack.c.bf16 %v2716, %v2714
    %v2964 = vpack.c.bf16 %v2745, %v2743
    %v2965 = vpack.c.bf16 %v2815, %v2813
    %v2966 = vpack.c.bf16 %v2844, %v2842
    %v2967 = vpack.c.bf16 %v2914, %v2912
    %v2968 = vpack.c.bf16 %v2943, %v2941
    %v2969 = vld [vmem:[#allocation15 + $0x10] sm:$0xff]
    %v2970 = vld [vmem:[#allocation15 + $0x28] sm:$0xff]
    %v2971 = vld [vmem:[#allocation15 + $0x40] sm:$0xff]
    %v2972 = vld [vmem:[#allocation15 + $0x58] sm:$0xff]
    %v2973 = vld [vmem:[#allocation15 + $0x70] sm:$0xff]
    %v2974 = vld [vmem:[#allocation15 + $0x88] sm:$0xff]
    %v2975 = vld [vmem:[#allocation15 + $0xa0] sm:$0xff]
    %v2976 = vld [vmem:[#allocation15 + $0xb8] sm:$0xff]
    %v2977 = vld [vmem:[#allocation15 + $0xd0] sm:$0xff]
    %v2978 = vld [vmem:[#allocation15 + $0xe8] sm:$0xff]
    %v2979 = vld [vmem:[#allocation15 + $0x100] sm:$0xff]
    %v2980 = vld [vmem:[#allocation15 + $0x118] sm:$0xff]
    %v2981 = vld [vmem:[#allocation15 + $0x130] sm:$0xff]
    %v2982 = vld [vmem:[#allocation15 + $0x148] sm:$0xff]
    %v2983 = vld [vmem:[#allocation15 + $0x160] sm:$0xff]
    %v2984 = vld [vmem:[#allocation15 + $0x178] sm:$0xff]
    %v2985 = vld [vmem:[#allocation15 + $0x190] sm:$0xff]
    %v2986 = vld [vmem:[#allocation15 + $0x1a8] sm:$0xff]
    %v2987 = vld [vmem:[#allocation15 + $0x1c0] sm:$0xff]
    %v2988 = vld [vmem:[#allocation15 + $0x1d8] sm:$0xff]
    %v2989 = vld [vmem:[#allocation15 + $0x1f0] sm:$0xff]
    %v2990 = vld [vmem:[#allocation15 + $0x208] sm:$0xff]
    %v2991 = vld [vmem:[#allocation15 + $0x220] sm:$0xff]
    %v2992 = vld [vmem:[#allocation15 + $0x238] sm:$0xff]
    %v2993 = vld [vmem:[#allocation15 + $0x250] sm:$0xff]
    %v2994 = vld [vmem:[#allocation15 + $0x268] sm:$0xff]
    %v2995 = vld [vmem:[#allocation15 + $0x280] sm:$0xff]
    %v2996 = vld [vmem:[#allocation15 + $0x298] sm:$0xff]
    %v2997 = vld [vmem:[#allocation15 + $0x2b0] sm:$0xff]
    %v2998 = vld [vmem:[#allocation15 + $0x2c8] sm:$0xff]
    %v2999 = vld [vmem:[#allocation15 + $0x2e0] sm:$0xff]
    %v3000 = vld [vmem:[#allocation15 + $0x2f8] sm:$0xff]
    %v3001 = vld [vmem:[#allocation15 + $0x310] sm:$0xff]
    %v3002 = vld [vmem:[#allocation15 + $0x328] sm:$0xff]
    %v3003 = vld [vmem:[#allocation15 + $0x340] sm:$0xff]
    %v3004 = vld [vmem:[#allocation15 + $0x358] sm:$0xff]
    %v3005 = vld [vmem:[#allocation15 + $0x370] sm:$0xff]
    %v3006 = vld [vmem:[#allocation15 + $0x388] sm:$0xff]
    %v3007 = vld [vmem:[#allocation15 + $0x3a0] sm:$0xff]
    %v3008 = vld [vmem:[#allocation15 + $0x3b8] sm:$0xff]
    %v3009 = vld [vmem:[#allocation15 + $0x3d0] sm:$0xff]
    %v3010 = vld [vmem:[#allocation15 + $0x3e8] sm:$0xff]
    %v3011 = vld [vmem:[#allocation15 + $0x400] sm:$0xff]
    %v3012 = vld [vmem:[#allocation15 + $0x418] sm:$0xff]
    %v3013 = vld [vmem:[#allocation15 + $0x430] sm:$0xff]
    %v3014 = vld [vmem:[#allocation15 + $0x448] sm:$0xff]
    %v3015 = vld [vmem:[#allocation15 + $0x460] sm:$0xff]
    %v3016 = vld [vmem:[#allocation15 + $0x478] sm:$0xff]
    %v3017 = vld [vmem:[#allocation15 + $0x490] sm:$0xff]
    %v3018 = vld [vmem:[#allocation15 + $0x4a8] sm:$0xff]
    %v3019 = vld [vmem:[#allocation15 + $0x4c0] sm:$0xff]
    %v3020 = vld [vmem:[#allocation15 + $0x4d8] sm:$0xff]
    %v3021 = vld [vmem:[#allocation15 + $0x4f0] sm:$0xff]
    %v3022 = vld [vmem:[#allocation15 + $0x508] sm:$0xff]
    %v3023 = vld [vmem:[#allocation15 + $0x520] sm:$0xff]
    %v3024 = vld [vmem:[#allocation15 + $0x538] sm:$0xff]
    %v3025 = vld [vmem:[#allocation15 + $0x550] sm:$0xff]
    %v3026 = vld [vmem:[#allocation15 + $0x568] sm:$0xff]
    %v3027 = vld [vmem:[#allocation15 + $0x580] sm:$0xff]
    %v3028 = vld [vmem:[#allocation15 + $0x598] sm:$0xff]
    %v3029 = vld [vmem:[#allocation15 + $0x5b0] sm:$0xff]
    %v3030 = vld [vmem:[#allocation15 + $0x5c8] sm:$0xff]
    %v3031 = vld [vmem:[#allocation15 + $0x5e0] sm:$0xff]
    %v3032 = vld [vmem:[#allocation15 + $0x5f8] sm:$0xff]
    %v3033 = vld [vmem:[#allocation15 + $0x610] sm:$0xff]
    %v3034 = vld [vmem:[#allocation15 + $0x628] sm:$0xff]
    %v3035 = vld [vmem:[#allocation15 + $0x640] sm:$0xff]
    %v3036 = vld [vmem:[#allocation15 + $0x658] sm:$0xff]
    %v3037 = vld [vmem:[#allocation15 + $0x670] sm:$0xff]
    %v3038 = vld [vmem:[#allocation15 + $0x688] sm:$0xff]
    %v3039 = vld [vmem:[#allocation15 + $0x6a0] sm:$0xff]
    %v3040 = vld [vmem:[#allocation15 + $0x6b8] sm:$0xff]
    %v3041 = vld [vmem:[#allocation15 + $0x6d0] sm:$0xff]
    %v3042 = vld [vmem:[#allocation15 + $0x6e8] sm:$0xff]
    %v3043 = vld [vmem:[#allocation15 + $0x700] sm:$0xff]
    %v3044 = vld [vmem:[#allocation15 + $0x718] sm:$0xff]
    %v3045 = vld [vmem:[#allocation15 + $0x730] sm:$0xff]
    %v3046 = vld [vmem:[#allocation15 + $0x748] sm:$0xff]
    %v3047 = vld [vmem:[#allocation15 + $0x760] sm:$0xff]
    %v3048 = vld [vmem:[#allocation15 + $0x778] sm:$0xff]
    %v3049 = vld [vmem:[#allocation15 + $0x790] sm:$0xff]
    %v3050 = vld [vmem:[#allocation15 + $0x7a8] sm:$0xff]
    %v3051 = vld [vmem:[#allocation15 + $0x7c0] sm:$0xff]
    %v3052 = vld [vmem:[#allocation15 + $0x7d8] sm:$0xff]
    %v3053 = vld [vmem:[#allocation15 + $0x7f0] sm:$0xff]
    %v3054 = vld [vmem:[#allocation15 + $0x808] sm:$0xff]
    %v3055 = vld [vmem:[#allocation15 + $0x820] sm:$0xff]
    %v3056 = vld [vmem:[#allocation15 + $0x838] sm:$0xff]
    %v3057 = vld [vmem:[#allocation15 + $0x850] sm:$0xff]
    %v3058 = vld [vmem:[#allocation15 + $0x868] sm:$0xff]
    %v3059 = vld [vmem:[#allocation15 + $0x880] sm:$0xff]
    %v3060 = vld [vmem:[#allocation15 + $0x898] sm:$0xff]
    %v3061 = vld [vmem:[#allocation15 + $0x8b0] sm:$0xff]
    %v3062 = vld [vmem:[#allocation15 + $0x8c8] sm:$0xff]
    %v3063 = vld [vmem:[#allocation15 + $0x8e0] sm:$0xff]
    %v3064 = vld [vmem:[#allocation15 + $0x8f8] sm:$0xff]
    %v3161 = vunpack.c.l.b16 %v2969
    %v3162 = vunpack.c.h.b16 %v2969
    %v3163 = vunpack.c.l.b16 %v2970
    %v3164 = vunpack.c.h.b16 %v2970
    %v3165 = vunpack.c.l.b16 %v2971
    %v3166 = vunpack.c.h.b16 %v2971
    %v3167 = vunpack.c.l.b16 %v2972
    %v3168 = vunpack.c.h.b16 %v2972
    %v3169 = vunpack.c.l.b16 %v2973
    %v3170 = vunpack.c.h.b16 %v2973
    %v3171 = vunpack.c.l.b16 %v2974
    %v3172 = vunpack.c.h.b16 %v2974
    %v3173 = vunpack.c.l.b16 %v2975
    %v3174 = vunpack.c.h.b16 %v2975
    %v3175 = vunpack.c.l.b16 %v2976
    %v3176 = vunpack.c.h.b16 %v2976
    %v3177 = vunpack.c.l.b16 %v2977
    %v3178 = vunpack.c.h.b16 %v2977
    %v3179 = vunpack.c.l.b16 %v2978
    %v3180 = vunpack.c.h.b16 %v2978
    %v3181 = vunpack.c.l.b16 %v2979
    %v3182 = vunpack.c.h.b16 %v2979
    %v3183 = vunpack.c.l.b16 %v2980
    %v3184 = vunpack.c.h.b16 %v2980
    %v3185 = vunpack.c.l.b16 %v2981
    %v3186 = vunpack.c.h.b16 %v2981
    %v3187 = vunpack.c.l.b16 %v2982
    %v3188 = vunpack.c.h.b16 %v2982
    %v3189 = vunpack.c.l.b16 %v2983
    %v3190 = vunpack.c.h.b16 %v2983
    %v3191 = vunpack.c.l.b16 %v2984
    %v3192 = vunpack.c.h.b16 %v2984
    %v3193 = vunpack.c.l.b16 %v2985
    %v3194 = vunpack.c.h.b16 %v2985
    %v3195 = vunpack.c.l.b16 %v2986
    %v3196 = vunpack.c.h.b16 %v2986
    %v3197 = vunpack.c.l.b16 %v2987
    %v3198 = vunpack.c.h.b16 %v2987
    %v3199 = vunpack.c.l.b16 %v2988
    %v3200 = vunpack.c.h.b16 %v2988
    %v3201 = vunpack.c.l.b16 %v2989
    %v3202 = vunpack.c.h.b16 %v2989
    %v3203 = vunpack.c.l.b16 %v2990
    %v3204 = vunpack.c.h.b16 %v2990
    %v3205 = vunpack.c.l.b16 %v2991
    %v3206 = vunpack.c.h.b16 %v2991
    %v3207 = vunpack.c.l.b16 %v2992
    %v3208 = vunpack.c.h.b16 %v2992
    %v3209 = vunpack.c.l.b16 %v2993
    %v3210 = vunpack.c.h.b16 %v2993
    %v3211 = vunpack.c.l.b16 %v2994
    %v3212 = vunpack.c.h.b16 %v2994
    %v3213 = vunpack.c.l.b16 %v2995
    %v3214 = vunpack.c.h.b16 %v2995
    %v3215 = vunpack.c.l.b16 %v2996
    %v3216 = vunpack.c.h.b16 %v2996
    %v3217 = vunpack.c.l.b16 %v2997
    %v3218 = vunpack.c.h.b16 %v2997
    %v3219 = vunpack.c.l.b16 %v2998
    %v3220 = vunpack.c.h.b16 %v2998
    %v3221 = vunpack.c.l.b16 %v2999
    %v3222 = vunpack.c.h.b16 %v2999
    %v3223 = vunpack.c.l.b16 %v3000
    %v3224 = vunpack.c.h.b16 %v3000
    %v3225 = vunpack.c.l.b16 %v3001
    %v3226 = vunpack.c.h.b16 %v3001
    %v3227 = vunpack.c.l.b16 %v3002
    %v3228 = vunpack.c.h.b16 %v3002
    %v3229 = vunpack.c.l.b16 %v3003
    %v3230 = vunpack.c.h.b16 %v3003
    %v3231 = vunpack.c.l.b16 %v3004
    %v3232 = vunpack.c.h.b16 %v3004
    %v3233 = vunpack.c.l.b16 %v3005
    %v3234 = vunpack.c.h.b16 %v3005
    %v3235 = vunpack.c.l.b16 %v3006
    %v3236 = vunpack.c.h.b16 %v3006
    %v3237 = vunpack.c.l.b16 %v3007
    %v3238 = vunpack.c.h.b16 %v3007
    %v3239 = vunpack.c.l.b16 %v3008
    %v3240 = vunpack.c.h.b16 %v3008
    %v3241 = vunpack.c.l.b16 %v3009
    %v3242 = vunpack.c.h.b16 %v3009
    %v3243 = vunpack.c.l.b16 %v3010
    %v3244 = vunpack.c.h.b16 %v3010
    %v3245 = vunpack.c.l.b16 %v3011
    %v3246 = vunpack.c.h.b16 %v3011
    %v3247 = vunpack.c.l.b16 %v3012
    %v3248 = vunpack.c.h.b16 %v3012
    %v3249 = vunpack.c.l.b16 %v3013
    %v3250 = vunpack.c.h.b16 %v3013
    %v3251 = vunpack.c.l.b16 %v3014
    %v3252 = vunpack.c.h.b16 %v3014
    %v3253 = vunpack.c.l.b16 %v3015
    %v3254 = vunpack.c.h.b16 %v3015
    %v3255 = vunpack.c.l.b16 %v3016
    %v3256 = vunpack.c.h.b16 %v3016
    %v3257 = vunpack.c.l.b16 %v3017
    %v3258 = vunpack.c.h.b16 %v3017
    %v3259 = vunpack.c.l.b16 %v3018
    %v3260 = vunpack.c.h.b16 %v3018
    %v3261 = vunpack.c.l.b16 %v3019
    %v3262 = vunpack.c.h.b16 %v3019
    %v3263 = vunpack.c.l.b16 %v3020
    %v3264 = vunpack.c.h.b16 %v3020
    %v3265 = vunpack.c.l.b16 %v3021
    %v3266 = vunpack.c.h.b16 %v3021
    %v3267 = vunpack.c.l.b16 %v3022
    %v3268 = vunpack.c.h.b16 %v3022
    %v3269 = vunpack.c.l.b16 %v3023
    %v3270 = vunpack.c.h.b16 %v3023
    %v3271 = vunpack.c.l.b16 %v3024
    %v3272 = vunpack.c.h.b16 %v3024
    %v3273 = vunpack.c.l.b16 %v3025
    %v3274 = vunpack.c.h.b16 %v3025
    %v3275 = vunpack.c.l.b16 %v3026
    %v3276 = vunpack.c.h.b16 %v3026
    %v3277 = vunpack.c.l.b16 %v3027
    %v3278 = vunpack.c.h.b16 %v3027
    %v3279 = vunpack.c.l.b16 %v3028
    %v3280 = vunpack.c.h.b16 %v3028
    %v3281 = vunpack.c.l.b16 %v3029
    %v3282 = vunpack.c.h.b16 %v3029
    %v3283 = vunpack.c.l.b16 %v3030
    %v3284 = vunpack.c.h.b16 %v3030
    %v3285 = vunpack.c.l.b16 %v3031
    %v3286 = vunpack.c.h.b16 %v3031
    %v3287 = vunpack.c.l.b16 %v3032
    %v3288 = vunpack.c.h.b16 %v3032
    %v3289 = vunpack.c.l.b16 %v3033
    %v3290 = vunpack.c.h.b16 %v3033
    %v3291 = vunpack.c.l.b16 %v3034
    %v3292 = vunpack.c.h.b16 %v3034
    %v3293 = vunpack.c.l.b16 %v3035
    %v3294 = vunpack.c.h.b16 %v3035
    %v3295 = vunpack.c.l.b16 %v3036
    %v3296 = vunpack.c.h.b16 %v3036
    %v3297 = vunpack.c.l.b16 %v3037
    %v3298 = vunpack.c.h.b16 %v3037
    %v3299 = vunpack.c.l.b16 %v3038
    %v3300 = vunpack.c.h.b16 %v3038
    %v3301 = vunpack.c.l.b16 %v3039
    %v3302 = vunpack.c.h.b16 %v3039
    %v3303 = vunpack.c.l.b16 %v3040
    %v3304 = vunpack.c.h.b16 %v3040
    %v3305 = vunpack.c.l.b16 %v3041
    %v3306 = vunpack.c.h.b16 %v3041
    %v3307 = vunpack.c.l.b16 %v3042
    %v3308 = vunpack.c.h.b16 %v3042
    %v3309 = vunpack.c.l.b16 %v3043
    %v3310 = vunpack.c.h.b16 %v3043
    %v3311 = vunpack.c.l.b16 %v3044
    %v3312 = vunpack.c.h.b16 %v3044
    %v3313 = vunpack.c.l.b16 %v3045
    %v3314 = vunpack.c.h.b16 %v3045
    %v3315 = vunpack.c.l.b16 %v3046
    %v3316 = vunpack.c.h.b16 %v3046
    %v3317 = vunpack.c.l.b16 %v3047
    %v3318 = vunpack.c.h.b16 %v3047
    %v3319 = vunpack.c.l.b16 %v3048
    %v3320 = vunpack.c.h.b16 %v3048
    %v3321 = vunpack.c.l.b16 %v3049
    %v3322 = vunpack.c.h.b16 %v3049
    %v3323 = vunpack.c.l.b16 %v3050
    %v3324 = vunpack.c.h.b16 %v3050
    %v3325 = vunpack.c.l.b16 %v3051
    %v3326 = vunpack.c.h.b16 %v3051
    %v3327 = vunpack.c.l.b16 %v3052
    %v3328 = vunpack.c.h.b16 %v3052
    %v3329 = vunpack.c.l.b16 %v3053
    %v3330 = vunpack.c.h.b16 %v3053
    %v3331 = vunpack.c.l.b16 %v3054
    %v3332 = vunpack.c.h.b16 %v3054
    %v3333 = vunpack.c.l.b16 %v3055
    %v3334 = vunpack.c.h.b16 %v3055
    %v3335 = vunpack.c.l.b16 %v3056
    %v3336 = vunpack.c.h.b16 %v3056
    %v3337 = vunpack.c.l.b16 %v3057
    %v3338 = vunpack.c.h.b16 %v3057
    %v3339 = vunpack.c.l.b16 %v3058
    %v3340 = vunpack.c.h.b16 %v3058
    %v3341 = vunpack.c.l.b16 %v3059
    %v3342 = vunpack.c.h.b16 %v3059
    %v3343 = vunpack.c.l.b16 %v3060
    %v3344 = vunpack.c.h.b16 %v3060
    %v3345 = vunpack.c.l.b16 %v3061
    %v3346 = vunpack.c.h.b16 %v3061
    %v3347 = vunpack.c.l.b16 %v3062
    %v3348 = vunpack.c.h.b16 %v3062
    %v3349 = vunpack.c.l.b16 %v3063
    %v3350 = vunpack.c.h.b16 %v3063
    %v3351 = vunpack.c.l.b16 %v3064
    %v3352 = vunpack.c.h.b16 %v3064
    %v3353 = vpack.c.b16 %v3163, %v3161
    %v3354 = vpack.c.b16 %v3164, %v3162
    %v3355 = vpack.c.b16 %v3167, %v3165
    %v3356 = vpack.c.b16 %v3168, %v3166
    %v3357 = vpack.c.b16 %v3171, %v3169
    %v3358 = vpack.c.b16 %v3172, %v3170
    %v3359 = vpack.c.b16 %v3175, %v3173
    %v3360 = vpack.c.b16 %v3176, %v3174
    %v3361 = vpack.c.b16 %v3179, %v3177
    %v3362 = vpack.c.b16 %v3180, %v3178
    %v3363 = vpack.c.b16 %v3183, %v3181
    %v3364 = vpack.c.b16 %v3184, %v3182
    %v3365 = vpack.c.b16 %v3187, %v3185
    %v3366 = vpack.c.b16 %v3188, %v3186
    %v3367 = vpack.c.b16 %v3191, %v3189
    %v3368 = vpack.c.b16 %v3192, %v3190
    %v3369 = vpack.c.b16 %v3195, %v3193
    %v3370 = vpack.c.b16 %v3196, %v3194
    %v3371 = vpack.c.b16 %v3199, %v3197
    %v3372 = vpack.c.b16 %v3200, %v3198
    %v3373 = vpack.c.b16 %v3203, %v3201
    %v3374 = vpack.c.b16 %v3204, %v3202
    %v3375 = vpack.c.b16 %v3207, %v3205
    %v3376 = vpack.c.b16 %v3208, %v3206
    %v3377 = vpack.c.b16 %v3211, %v3209
    %v3378 = vpack.c.b16 %v3212, %v3210
    %v3379 = vpack.c.b16 %v3215, %v3213
    %v3380 = vpack.c.b16 %v3216, %v3214
    %v3381 = vpack.c.b16 %v3219, %v3217
    %v3382 = vpack.c.b16 %v3220, %v3218
    %v3383 = vpack.c.b16 %v3223, %v3221
    %v3384 = vpack.c.b16 %v3224, %v3222
    %v3385 = vpack.c.b16 %v3227, %v3225
    %v3386 = vpack.c.b16 %v3228, %v3226
    %v3387 = vpack.c.b16 %v3231, %v3229
    %v3388 = vpack.c.b16 %v3232, %v3230
    %v3389 = vpack.c.b16 %v3235, %v3233
    %v3390 = vpack.c.b16 %v3236, %v3234
    %v3391 = vpack.c.b16 %v3239, %v3237
    %v3392 = vpack.c.b16 %v3240, %v3238
    %v3393 = vpack.c.b16 %v3243, %v3241
    %v3394 = vpack.c.b16 %v3244, %v3242
    %v3395 = vpack.c.b16 %v3247, %v3245
    %v3396 = vpack.c.b16 %v3248, %v3246
    %v3397 = vpack.c.b16 %v3251, %v3249
    %v3398 = vpack.c.b16 %v3252, %v3250
    %v3399 = vpack.c.b16 %v3255, %v3253
    %v3400 = vpack.c.b16 %v3256, %v3254
    %v3401 = vpack.c.b16 %v3259, %v3257
    %v3402 = vpack.c.b16 %v3260, %v3258
    %v3403 = vpack.c.b16 %v3263, %v3261
    %v3404 = vpack.c.b16 %v3264, %v3262
    %v3405 = vpack.c.b16 %v3267, %v3265
    %v3406 = vpack.c.b16 %v3268, %v3266
    %v3407 = vpack.c.b16 %v3271, %v3269
    %v3408 = vpack.c.b16 %v3272, %v3270
    %v3409 = vpack.c.b16 %v3275, %v3273
    %v3410 = vpack.c.b16 %v3276, %v3274
    %v3411 = vpack.c.b16 %v3279, %v3277
    %v3412 = vpack.c.b16 %v3280, %v3278
    %v3413 = vpack.c.b16 %v3283, %v3281
    %v3414 = vpack.c.b16 %v3284, %v3282
    %v3415 = vpack.c.b16 %v3287, %v3285
    %v3416 = vpack.c.b16 %v3288, %v3286
    %v3417 = vpack.c.b16 %v3291, %v3289
    %v3418 = vpack.c.b16 %v3292, %v3290
    %v3419 = vpack.c.b16 %v3295, %v3293
    %v3420 = vpack.c.b16 %v3296, %v3294
    %v3421 = vpack.c.b16 %v3299, %v3297
    %v3422 = vpack.c.b16 %v3300, %v3298
    %v3423 = vpack.c.b16 %v3303, %v3301
    %v3424 = vpack.c.b16 %v3304, %v3302
    %v3425 = vpack.c.b16 %v3307, %v3305
    %v3426 = vpack.c.b16 %v3308, %v3306
    %v3427 = vpack.c.b16 %v3311, %v3309
    %v3428 = vpack.c.b16 %v3312, %v3310
    %v3429 = vpack.c.b16 %v3315, %v3313
    %v3430 = vpack.c.b16 %v3316, %v3314
    %v3431 = vpack.c.b16 %v3319, %v3317
    %v3432 = vpack.c.b16 %v3320, %v3318
    %v3433 = vpack.c.b16 %v3323, %v3321
    %v3434 = vpack.c.b16 %v3324, %v3322
    %v3435 = vpack.c.b16 %v3327, %v3325
    %v3436 = vpack.c.b16 %v3328, %v3326
    %v3437 = vpack.c.b16 %v3331, %v3329
    %v3438 = vpack.c.b16 %v3332, %v3330
    %v3439 = vpack.c.b16 %v3335, %v3333
    %v3440 = vpack.c.b16 %v3336, %v3334
    %v3441 = vpack.c.b16 %v3339, %v3337
    %v3442 = vpack.c.b16 %v3340, %v3338
    %v3443 = vpack.c.b16 %v3343, %v3341
    %v3444 = vpack.c.b16 %v3344, %v3342
    %v3445 = vpack.c.b16 %v3347, %v3345
    %v3446 = vpack.c.b16 %v3348, %v3346
    %v3447 = vpack.c.b16 %v3351, %v3349
    %v3448 = vpack.c.b16 %v3352, %v3350
    %3545 = vmatpush.bf16.msra.mxu0 %v3367
    %3546 = vmatpush.bf16.msra.mxu0 %v3365
    %3547 = vmatpush.bf16.msra.mxu0 %v3363
    %3548 = vmatpush.bf16.msra.mxu0 %v3361
    %3549 = vmatpush.bf16.msra.mxu0 %v3359
    %3550 = vmatpush.bf16.msra.mxu0 %v3357
    %3551 = vmatpush.bf16.msra.mxu0 %v3355
    %3552 = vmatpush.bf16.msra.mxu0 %v3353
    %3553 = vmatmul.bf16.gmra.mxu0 %v2945
    %v3554 = vpop.f32.mrf.mxu0
    %v3555 = vadd.f32 0.0, %v3554
    %v3556 = vpop.f32.mrf.mxu0
    %v3557 = vadd.f32 0.0, %v3556
    %3558 = vmatmul.bf16.gmra.mxu0 %v2951
    %v3559 = vpop.f32.mrf.mxu0
    %v3560 = vadd.f32 0.0, %v3559
    %v3561 = vpop.f32.mrf.mxu0
    %v3562 = vadd.f32 0.0, %v3561
    %3563 = vmatmul.bf16.gmra.mxu0 %v2957
    %v3564 = vpop.f32.mrf.mxu0
    %v3565 = vadd.f32 0.0, %v3564
    %v3566 = vpop.f32.mrf.mxu0
    %v3567 = vadd.f32 0.0, %v3566
    %3568 = vmatmul.bf16.gmra.mxu0 %v2963
    %v3569 = vpop.f32.mrf.mxu0
    %v3570 = vadd.f32 0.0, %v3569
    %v3571 = vpop.f32.mrf.mxu0
    %v3572 = vadd.f32 0.0, %v3571
    %3573 = vdwg.mxu0
    %3574 = vmatpush.bf16.msra.mxu0 %v3383
    %3575 = vmatpush.bf16.msra.mxu0 %v3381
    %3576 = vmatpush.bf16.msra.mxu0 %v3379
    %3577 = vmatpush.bf16.msra.mxu0 %v3377
    %3578 = vmatpush.bf16.msra.mxu0 %v3375
    %3579 = vmatpush.bf16.msra.mxu0 %v3373
    %3580 = vmatpush.bf16.msra.mxu0 %v3371
    %3581 = vmatpush.bf16.msra.mxu0 %v3369
    %3582 = vmatmul.bf16.gmra.mxu0 %v2946
    %v3583 = vpop.f32.mrf.mxu0
    %v3584 = vadd.f32 %v3555, %v3583
    %v3585 = vpop.f32.mrf.mxu0
    %v3586 = vadd.f32 %v3557, %v3585
    %3587 = vmatmul.bf16.gmra.mxu0 %v2952
    %v3588 = vpop.f32.mrf.mxu0
    %v3589 = vadd.f32 %v3560, %v3588
    %v3590 = vpop.f32.mrf.mxu0
    %v3591 = vadd.f32 %v3562, %v3590
    %3592 = vmatmul.bf16.gmra.mxu0 %v2958
    %v3593 = vpop.f32.mrf.mxu0
    %v3594 = vadd.f32 %v3565, %v3593
    %v3595 = vpop.f32.mrf.mxu0
    %v3596 = vadd.f32 %v3567, %v3595
    %3597 = vmatmul.bf16.gmra.mxu0 %v2964
    %v3598 = vpop.f32.mrf.mxu0
    %v3599 = vadd.f32 %v3570, %v3598
    %v3600 = vpop.f32.mrf.mxu0
    %v3601 = vadd.f32 %v3572, %v3600
    %3602 = vdwg.mxu0
    %3603 = vmatpush.bf16.msra.mxu0 %v3399
    %3604 = vmatpush.bf16.msra.mxu0 %v3397
    %3605 = vmatpush.bf16.msra.mxu0 %v3395
    %3606 = vmatpush.bf16.msra.mxu0 %v3393
    %3607 = vmatpush.bf16.msra.mxu0 %v3391
    %3608 = vmatpush.bf16.msra.mxu0 %v3389
    %3609 = vmatpush.bf16.msra.mxu0 %v3387
    %3610 = vmatpush.bf16.msra.mxu0 %v3385
    %3611 = vmatmul.bf16.gmra.mxu0 %v2947
    %v3612 = vpop.f32.mrf.mxu0
    %v3613 = vadd.f32 %v3584, %v3612
    %v3614 = vpop.f32.mrf.mxu0
    %v3615 = vadd.f32 %v3586, %v3614
    %3616 = vmatmul.bf16.gmra.mxu0 %v2953
    %v3617 = vpop.f32.mrf.mxu0
    %v3618 = vadd.f32 %v3589, %v3617
    %v3619 = vpop.f32.mrf.mxu0
    %v3620 = vadd.f32 %v3591, %v3619
    %3621 = vmatmul.bf16.gmra.mxu0 %v2959
    %v3622 = vpop.f32.mrf.mxu0
    %v3623 = vadd.f32 %v3594, %v3622
    %v3624 = vpop.f32.mrf.mxu0
    %v3625 = vadd.f32 %v3596, %v3624
    %3626 = vmatmul.bf16.gmra.mxu0 %v2965
    %v3627 = vpop.f32.mrf.mxu0
    %v3628 = vadd.f32 %v3599, %v3627
    %v3629 = vpop.f32.mrf.mxu0
    %v3630 = vadd.f32 %v3601, %v3629
    %3631 = vdwg.mxu0
    %3632 = vmatpush.bf16.msra.mxu0 %v3415
    %3633 = vmatpush.bf16.msra.mxu0 %v3413
    %3634 = vmatpush.bf16.msra.mxu0 %v3411
    %3635 = vmatpush.bf16.msra.mxu0 %v3409
    %3636 = vmatpush.bf16.msra.mxu0 %v3407
    %3637 = vmatpush.bf16.msra.mxu0 %v3405
    %3638 = vmatpush.bf16.msra.mxu0 %v3403
    %3639 = vmatpush.bf16.msra.mxu0 %v3401
    %3640 = vmatmul.bf16.gmra.mxu0 %v2948
    %v3641 = vpop.f32.mrf.mxu0
    %v3642 = vadd.f32 %v3613, %v3641
    %v3643 = vpop.f32.mrf.mxu0
    %v3644 = vadd.f32 %v3615, %v3643
    %3645 = vmatmul.bf16.gmra.mxu0 %v2954
    %v3646 = vpop.f32.mrf.mxu0
    %v3647 = vadd.f32 %v3618, %v3646
    %v3648 = vpop.f32.mrf.mxu0
    %v3649 = vadd.f32 %v3620, %v3648
    %3650 = vmatmul.bf16.gmra.mxu0 %v2960
    %v3651 = vpop.f32.mrf.mxu0
    %v3652 = vadd.f32 %v3623, %v3651
    %v3653 = vpop.f32.mrf.mxu0
    %v3654 = vadd.f32 %v3625, %v3653
    %3655 = vmatmul.bf16.gmra.mxu0 %v2966
    %v3656 = vpop.f32.mrf.mxu0
    %v3657 = vadd.f32 %v3628, %v3656
    %v3658 = vpop.f32.mrf.mxu0
    %v3659 = vadd.f32 %v3630, %v3658
    %3660 = vdwg.mxu0
    %3661 = vmatpush.bf16.msra.mxu0 %v3431
    %3662 = vmatpush.bf16.msra.mxu0 %v3429
    %3663 = vmatpush.bf16.msra.mxu0 %v3427
    %3664 = vmatpush.bf16.msra.mxu0 %v3425
    %3665 = vmatpush.bf16.msra.mxu0 %v3423
    %3666 = vmatpush.bf16.msra.mxu0 %v3421
    %3667 = vmatpush.bf16.msra.mxu0 %v3419
    %3668 = vmatpush.bf16.msra.mxu0 %v3417
    %3669 = vmatmul.bf16.gmra.mxu0 %v2949
    %v3670 = vpop.f32.mrf.mxu0
    %v3671 = vadd.f32 %v3642, %v3670
    %v3672 = vpop.f32.mrf.mxu0
    %v3673 = vadd.f32 %v3644, %v3672
    %3674 = vmatmul.bf16.gmra.mxu0 %v2955
    %v3675 = vpop.f32.mrf.mxu0
    %v3676 = vadd.f32 %v3647, %v3675
    %v3677 = vpop.f32.mrf.mxu0
    %v3678 = vadd.f32 %v3649, %v3677
    %3679 = vmatmul.bf16.gmra.mxu0 %v2961
    %v3680 = vpop.f32.mrf.mxu0
    %v3681 = vadd.f32 %v3652, %v3680
    %v3682 = vpop.f32.mrf.mxu0
    %v3683 = vadd.f32 %v3654, %v3682
    %3684 = vmatmul.bf16.gmra.mxu0 %v2967
    %v3685 = vpop.f32.mrf.mxu0
    %v3686 = vadd.f32 %v3657, %v3685
    %v3687 = vpop.f32.mrf.mxu0
    %v3688 = vadd.f32 %v3659, %v3687
    %3689 = vdwg.mxu0
    %3690 = vmatpush.bf16.msra.mxu0 %v3447
    %3691 = vmatpush.bf16.msra.mxu0 %v3445
    %3692 = vmatpush.bf16.msra.mxu0 %v3443
    %3693 = vmatpush.bf16.msra.mxu0 %v3441
    %3694 = vmatpush.bf16.msra.mxu0 %v3439
    %3695 = vmatpush.bf16.msra.mxu0 %v3437
    %3696 = vmatpush.bf16.msra.mxu0 %v3435
    %3697 = vmatpush.bf16.msra.mxu0 %v3433
    %3698 = vmatmul.bf16.gmra.mxu0 %v2950
    %v3699 = vpop.f32.mrf.mxu0
    %v3700 = vadd.f32 %v3671, %v3699
    %v3701 = vpop.f32.mrf.mxu0
    %v3702 = vadd.f32 %v3673, %v3701
    %3703 = vmatmul.bf16.gmra.mxu0 %v2956
    %v3704 = vpop.f32.mrf.mxu0
    %v3705 = vadd.f32 %v3676, %v3704
    %v3706 = vpop.f32.mrf.mxu0
    %v3707 = vadd.f32 %v3678, %v3706
    %3708 = vmatmul.bf16.gmra.mxu0 %v2962
    %v3709 = vpop.f32.mrf.mxu0
    %v3710 = vadd.f32 %v3681, %v3709
    %v3711 = vpop.f32.mrf.mxu0
    %v3712 = vadd.f32 %v3683, %v3711
    %3713 = vmatmul.bf16.gmra.mxu0 %v2968
    %v3714 = vpop.f32.mrf.mxu0
    %v3715 = vadd.f32 %v3686, %v3714
    %v3716 = vpop.f32.mrf.mxu0
    %v3717 = vadd.f32 %v3688, %v3716
    %3718 = vdwg.mxu0
    %3719 = vmatpush.bf16.msra.mxu0 %v3368
    %3720 = vmatpush.bf16.msra.mxu0 %v3366
    %3721 = vmatpush.bf16.msra.mxu0 %v3364
    %3722 = vmatpush.bf16.msra.mxu0 %v3362
    %3723 = vmatpush.bf16.msra.mxu0 %v3360
    %3724 = vmatpush.bf16.msra.mxu0 %v3358
    %3725 = vmatpush.bf16.msra.mxu0 %v3356
    %3726 = vmatpush.bf16.msra.mxu0 %v3354
    %3727 = vmatmul.bf16.gmra.mxu0 %v2945
    %v3728 = vpop.f32.mrf.mxu0
    %v3729 = vadd.f32 0.0, %v3728
    %v3730 = vpop.f32.mrf.mxu0
    %v3731 = vadd.f32 0.0, %v3730
    %3732 = vmatmul.bf16.gmra.mxu0 %v2951
    %v3733 = vpop.f32.mrf.mxu0
    %v3734 = vadd.f32 0.0, %v3733
    %v3735 = vpop.f32.mrf.mxu0
    %v3736 = vadd.f32 0.0, %v3735
    %3737 = vmatmul.bf16.gmra.mxu0 %v2957
    %v3738 = vpop.f32.mrf.mxu0
    %v3739 = vadd.f32 0.0, %v3738
    %v3740 = vpop.f32.mrf.mxu0
    %v3741 = vadd.f32 0.0, %v3740
    %3742 = vmatmul.bf16.gmra.mxu0 %v2963
    %v3743 = vpop.f32.mrf.mxu0
    %v3744 = vadd.f32 0.0, %v3743
    %v3745 = vpop.f32.mrf.mxu0
    %v3746 = vadd.f32 0.0, %v3745
    %3747 = vdwg.mxu0
    %3748 = vmatpush.bf16.msra.mxu0 %v3384
    %3749 = vmatpush.bf16.msra.mxu0 %v3382
    %3750 = vmatpush.bf16.msra.mxu0 %v3380
    %3751 = vmatpush.bf16.msra.mxu0 %v3378
    %3752 = vmatpush.bf16.msra.mxu0 %v3376
    %3753 = vmatpush.bf16.msra.mxu0 %v3374
    %3754 = vmatpush.bf16.msra.mxu0 %v3372
    %3755 = vmatpush.bf16.msra.mxu0 %v3370
    %3756 = vmatmul.bf16.gmra.mxu0 %v2946
    %v3757 = vpop.f32.mrf.mxu0
    %v3758 = vadd.f32 %v3729, %v3757
    %v3759 = vpop.f32.mrf.mxu0
    %v3760 = vadd.f32 %v3731, %v3759
    %3761 = vmatmul.bf16.gmra.mxu0 %v2952
    %v3762 = vpop.f32.mrf.mxu0
    %v3763 = vadd.f32 %v3734, %v3762
    %v3764 = vpop.f32.mrf.mxu0
    %v3765 = vadd.f32 %v3736, %v3764
    %3766 = vmatmul.bf16.gmra.mxu0 %v2958
    %v3767 = vpop.f32.mrf.mxu0
    %v3768 = vadd.f32 %v3739, %v3767
    %v3769 = vpop.f32.mrf.mxu0
    %v3770 = vadd.f32 %v3741, %v3769
    %3771 = vmatmul.bf16.gmra.mxu0 %v2964
    %v3772 = vpop.f32.mrf.mxu0
    %v3773 = vadd.f32 %v3744, %v3772
    %v3774 = vpop.f32.mrf.mxu0
    %v3775 = vadd.f32 %v3746, %v3774
    %3776 = vdwg.mxu0
    %3777 = vmatpush.bf16.msra.mxu0 %v3400
    %3778 = vmatpush.bf16.msra.mxu0 %v3398
    %3779 = vmatpush.bf16.msra.mxu0 %v3396
    %3780 = vmatpush.bf16.msra.mxu0 %v3394
    %3781 = vmatpush.bf16.msra.mxu0 %v3392
    %3782 = vmatpush.bf16.msra.mxu0 %v3390
    %3783 = vmatpush.bf16.msra.mxu0 %v3388
    %3784 = vmatpush.bf16.msra.mxu0 %v3386
    %3785 = vmatmul.bf16.gmra.mxu0 %v2947
    %v3786 = vpop.f32.mrf.mxu0
    %v3787 = vadd.f32 %v3758, %v3786
    %v3788 = vpop.f32.mrf.mxu0
    %v3789 = vadd.f32 %v3760, %v3788
    %3790 = vmatmul.bf16.gmra.mxu0 %v2953
    %v3791 = vpop.f32.mrf.mxu0
    %v3792 = vadd.f32 %v3763, %v3791
    %v3793 = vpop.f32.mrf.mxu0
    %v3794 = vadd.f32 %v3765, %v3793
    %3795 = vmatmul.bf16.gmra.mxu0 %v2959
    %v3796 = vpop.f32.mrf.mxu0
    %v3797 = vadd.f32 %v3768, %v3796
    %v3798 = vpop.f32.mrf.mxu0
    %v3799 = vadd.f32 %v3770, %v3798
    %3800 = vmatmul.bf16.gmra.mxu0 %v2965
    %v3801 = vpop.f32.mrf.mxu0
    %v3802 = vadd.f32 %v3773, %v3801
    %v3803 = vpop.f32.mrf.mxu0
    %v3804 = vadd.f32 %v3775, %v3803
    %3805 = vdwg.mxu0
    %3806 = vmatpush.bf16.msra.mxu0 %v3416
    %3807 = vmatpush.bf16.msra.mxu0 %v3414
    %3808 = vmatpush.bf16.msra.mxu0 %v3412
    %3809 = vmatpush.bf16.msra.mxu0 %v3410
    %3810 = vmatpush.bf16.msra.mxu0 %v3408
    %3811 = vmatpush.bf16.msra.mxu0 %v3406
    %3812 = vmatpush.bf16.msra.mxu0 %v3404
    %3813 = vmatpush.bf16.msra.mxu0 %v3402
    %3814 = vmatmul.bf16.gmra.mxu0 %v2948
    %v3815 = vpop.f32.mrf.mxu0
    %v3816 = vadd.f32 %v3787, %v3815
    %v3817 = vpop.f32.mrf.mxu0
    %v3818 = vadd.f32 %v3789, %v3817
    %3819 = vmatmul.bf16.gmra.mxu0 %v2954
    %v3820 = vpop.f32.mrf.mxu0
    %v3821 = vadd.f32 %v3792, %v3820
    %v3822 = vpop.f32.mrf.mxu0
    %v3823 = vadd.f32 %v3794, %v3822
    %3824 = vmatmul.bf16.gmra.mxu0 %v2960
    %v3825 = vpop.f32.mrf.mxu0
    %v3826 = vadd.f32 %v3797, %v3825
    %v3827 = vpop.f32.mrf.mxu0
    %v3828 = vadd.f32 %v3799, %v3827
    %3829 = vmatmul.bf16.gmra.mxu0 %v2966
    %v3830 = vpop.f32.mrf.mxu0
    %v3831 = vadd.f32 %v3802, %v3830
    %v3832 = vpop.f32.mrf.mxu0
    %v3833 = vadd.f32 %v3804, %v3832
    %3834 = vdwg.mxu0
    %3835 = vmatpush.bf16.msra.mxu0 %v3432
    %3836 = vmatpush.bf16.msra.mxu0 %v3430
    %3837 = vmatpush.bf16.msra.mxu0 %v3428
    %3838 = vmatpush.bf16.msra.mxu0 %v3426
    %3839 = vmatpush.bf16.msra.mxu0 %v3424
    %3840 = vmatpush.bf16.msra.mxu0 %v3422
    %3841 = vmatpush.bf16.msra.mxu0 %v3420
    %3842 = vmatpush.bf16.msra.mxu0 %v3418
    %3843 = vmatmul.bf16.gmra.mxu0 %v2949
    %v3844 = vpop.f32.mrf.mxu0
    %v3845 = vadd.f32 %v3816, %v3844
    %v3846 = vpop.f32.mrf.mxu0
    %v3847 = vadd.f32 %v3818, %v3846
    %3848 = vmatmul.bf16.gmra.mxu0 %v2955
    %v3849 = vpop.f32.mrf.mxu0
    %v3850 = vadd.f32 %v3821, %v3849
    %v3851 = vpop.f32.mrf.mxu0
    %v3852 = vadd.f32 %v3823, %v3851
    %3853 = vmatmul.bf16.gmra.mxu0 %v2961
    %v3854 = vpop.f32.mrf.mxu0
    %v3855 = vadd.f32 %v3826, %v3854
    %v3856 = vpop.f32.mrf.mxu0
    %v3857 = vadd.f32 %v3828, %v3856
    %3858 = vmatmul.bf16.gmra.mxu0 %v2967
    %v3859 = vpop.f32.mrf.mxu0
    %v3860 = vadd.f32 %v3831, %v3859
    %v3861 = vpop.f32.mrf.mxu0
    %v3862 = vadd.f32 %v3833, %v3861
    %3863 = vdwg.mxu0
    %3864 = vmatpush.bf16.msra.mxu0 %v3448
    %3865 = vmatpush.bf16.msra.mxu0 %v3446
    %3866 = vmatpush.bf16.msra.mxu0 %v3444
    %3867 = vmatpush.bf16.msra.mxu0 %v3442
    %3868 = vmatpush.bf16.msra.mxu0 %v3440
    %3869 = vmatpush.bf16.msra.mxu0 %v3438
    %3870 = vmatpush.bf16.msra.mxu0 %v3436
    %3871 = vmatpush.bf16.msra.mxu0 %v3434
    %3872 = vmatmul.bf16.gmra.mxu0 %v2950
    %v3873 = vpop.f32.mrf.mxu0
    %v3874 = vadd.f32 %v3845, %v3873
    %v3875 = vpop.f32.mrf.mxu0
    %v3876 = vadd.f32 %v3847, %v3875
    %3877 = vmatmul.bf16.gmra.mxu0 %v2956
    %v3878 = vpop.f32.mrf.mxu0
    %v3879 = vadd.f32 %v3850, %v3878
    %v3880 = vpop.f32.mrf.mxu0
    %v3881 = vadd.f32 %v3852, %v3880
    %3882 = vmatmul.bf16.gmra.mxu0 %v2962
    %v3883 = vpop.f32.mrf.mxu0
    %v3884 = vadd.f32 %v3855, %v3883
    %v3885 = vpop.f32.mrf.mxu0
    %v3886 = vadd.f32 %v3857, %v3885
    %3887 = vmatmul.bf16.gmra.mxu0 %v2968
    %v3888 = vpop.f32.mrf.mxu0
    %v3889 = vadd.f32 %v3860, %v3888
    %v3890 = vpop.f32.mrf.mxu0
    %v3891 = vadd.f32 %v3862, %v3890
    %3892 = vdwg.mxu0
    %v3893 = vld [vmem:[#allocation16 + $0xe0] sm:$0xff]
    %v3894 = vld [vmem:[#allocation16 + $0xe8] sm:$0xff]
    %v3895 = vadd.f32 %v3700, %v3702
    %v3896 = vadd.f32 %v3895, %v3705
    %v3897 = vadd.f32 %v3896, %v3707
    %v3898 = vadd.f32 %v3897, %v3710
    %v3899 = vadd.f32 %v3898, %v3712
    %v3900 = vadd.f32 %v3899, %v3715
    %v3901 = vadd.f32 %v3900, %v3717
    %v3902 = vrot.slane %v3901, 4
    %v3903 = vadd.f32 %v3901, %v3902
    %v3904 = vrot.slane %v3903, 2
    %v3905 = vadd.f32 %v3903, %v3904
    %v3906 = vrot.slane %v3905, 1
    %v3907 = vadd.f32 %v3905, %v3906
    %v3908 = vadd.f32 %v3874, %v3876
    %v3909 = vadd.f32 %v3908, %v3879
    %v3910 = vadd.f32 %v3909, %v3881
    %v3911 = vadd.f32 %v3910, %v3884
    %v3912 = vadd.f32 %v3911, %v3886
    %v3913 = vadd.f32 %v3912, %v3889
    %v3914 = vadd.f32 %v3913, %v3891
    %v3915 = vrot.slane %v3914, 4
    %v3916 = vadd.f32 %v3914, %v3915
    %v3917 = vrot.slane %v3916, 2
    %v3918 = vadd.f32 %v3916, %v3917
    %v3919 = vrot.slane %v3918, 1
    %v3920 = vadd.f32 %v3918, %v3919
    %v3921 = vmul.f32 %v3700, %v3700
    %v3922 = vmul.f32 %v3874, %v3874
    %v3923 = vmul.f32 %v3702, %v3702
    %v3924 = vmul.f32 %v3876, %v3876
    %v3925 = vmul.f32 %v3705, %v3705
    %v3926 = vmul.f32 %v3879, %v3879
    %v3927 = vmul.f32 %v3707, %v3707
    %v3928 = vmul.f32 %v3881, %v3881
    %v3929 = vmul.f32 %v3710, %v3710
    %v3930 = vmul.f32 %v3884, %v3884
    %v3931 = vmul.f32 %v3712, %v3712
    %v3932 = vmul.f32 %v3886, %v3886
    %v3933 = vmul.f32 %v3715, %v3715
    %v3934 = vmul.f32 %v3889, %v3889
    %v3935 = vmul.f32 %v3717, %v3717
    %v3936 = vmul.f32 %v3891, %v3891
    %v3937 = vadd.f32 %v3921, %v3923
    %v3938 = vadd.f32 %v3937, %v3925
    %v3939 = vadd.f32 %v3938, %v3927
    %v3940 = vadd.f32 %v3939, %v3929
    %v3941 = vadd.f32 %v3940, %v3931
    %v3942 = vadd.f32 %v3941, %v3933
    %v3943 = vadd.f32 %v3942, %v3935
    %v3944 = vrot.slane %v3943, 4
    %v3945 = vadd.f32 %v3943, %v3944
    %v3946 = vrot.slane %v3945, 2
    %v3947 = vadd.f32 %v3945, %v3946
    %v3948 = vrot.slane %v3947, 1
    %v3949 = vadd.f32 %v3947, %v3948
    %v3950 = vadd.f32 %v3922, %v3924
    %v3951 = vadd.f32 %v3950, %v3926
    %v3952 = vadd.f32 %v3951, %v3928
    %v3953 = vadd.f32 %v3952, %v3930
    %v3954 = vadd.f32 %v3953, %v3932
    %v3955 = vadd.f32 %v3954, %v3934
    %v3956 = vadd.f32 %v3955, %v3936
    %v3957 = vrot.slane %v3956, 4
    %v3958 = vadd.f32 %v3956, %v3957
    %v3959 = vrot.slane %v3958, 2
    %v3960 = vadd.f32 %v3958, %v3959
    %v3961 = vrot.slane %v3960, 1
    %v3962 = vadd.f32 %v3960, %v3961
    %v3963 = vsel %vm286, %v3907, %v3949
    %v3964 = vsel %vm286, %v3920, %v3962
    %3965 = vmatpush.xpose.msra.mxu0 0.0
    %3966 = vmatpush.xpose.msra.mxu0 0.0
    %3967 = vmatpush.xpose.msra.mxu0 0.0
    %3968 = vmatpush.xpose.msra.mxu0 0.0
    %3969 = vmatpush.xpose.msra.mxu0 0.0
    %3970 = vmatpush.xpose.msra.mxu0 0.0
    %3971 = vmatpush.xpose.msra.mxu0 0.0
    %3972 = vmatpush.xpose.msra.mxu0 0.0
    %3973 = vmatpush.xpose.msra.mxu0 0.0
    %3974 = vmatpush.xpose.msra.mxu0 0.0
    %3975 = vmatpush.xpose.msra.mxu0 0.0
    %3976 = vmatpush.xpose.msra.mxu0 0.0
    %3977 = vmatpush.xpose.msra.mxu0 0.0
    %3978 = vmatpush.xpose.msra.mxu0 0.0
    %3979 = vmatpush.xpose.msra.mxu0 0.0
    %3980 = vmatpush.xpose.msra.mxu0 %v3893
    %3981 = vmatmul.f32.gmra.mxu0 %v3963
    %v3982 = vpop.f32.mrf.mxu0
    %v3983 = vadd.f32 0.0, %v3982
    %3984 = vdwg.mxu0
    %3985 = vmatpush.xpose.msra.mxu0 0.0
    %3986 = vmatpush.xpose.msra.mxu0 0.0
    %3987 = vmatpush.xpose.msra.mxu0 0.0
    %3988 = vmatpush.xpose.msra.mxu0 0.0
    %3989 = vmatpush.xpose.msra.mxu0 0.0
    %3990 = vmatpush.xpose.msra.mxu0 0.0
    %3991 = vmatpush.xpose.msra.mxu0 0.0
    %3992 = vmatpush.xpose.msra.mxu0 0.0
    %3993 = vmatpush.xpose.msra.mxu0 0.0
    %3994 = vmatpush.xpose.msra.mxu0 0.0
    %3995 = vmatpush.xpose.msra.mxu0 0.0
    %3996 = vmatpush.xpose.msra.mxu0 0.0
    %3997 = vmatpush.xpose.msra.mxu0 0.0
    %3998 = vmatpush.xpose.msra.mxu0 0.0
    %3999 = vmatpush.xpose.msra.mxu0 0.0
    %4000 = vmatpush.xpose.msra.mxu0 %v3894
    %4001 = vmatmul.f32.gmra.mxu0 %v3964
    %v4002 = vpop.f32.mrf.mxu0
    %v4003 = vadd.f32 %v3983, %v4002
    %4004 = vdwg.mxu0
    %v4005 = vmul.f32 %v4003, 0.00048828125
    %v4006 = vmul.f32 %v4005, %v4005
    %v4008 = vrot.slane %v4006, 7
    %v4010 = vsub.f32 %v4005, %v4008
    %v4011 = vmax.f32 %v4010, 0.0
    %v4012 = vadd.f32 %v4011, 1e-05
    %v4013 = vrsqrt.pop %v4012
    %v4014 = vmul.f32 %v4013, %v4012
    %v4015 = vmul.f32 %v4014, %v4013
    %v4016 = vmul.f32 0.5, %v4015
    %v4017 = vsub.f32 1.5, %v4016
    %v4018 = vmul.f32 %v4013, %v4017
    %vm4019 = vweird.f32 %v4012
    %vm4020 = vweird.f32 %v4013
    %vm4021 = vmor %vm4019, %vm4020
    %v4022 = vsel %vm4021, %v4013, %v4018
    %s4023 = scalar_lea.vmem [#allocation18], 6
    %v4024 = vld [vmem:[%s4023] sm:$0x3]
    %v4026 = vrot.slane %v4022, 1
    %v4028 = vmul.f32 %v4024, %v4026
    %v4029 = vmul.f32 %v4005, %v4028
    %v4031 = vrot.slane %v4029, 7
    %v4033 = vsub.f32 %v4024, %v4031
    %v4034 = vsel %vm286, %v4028, %v4033
    %v4036 = vsel %vm421, %v4034, 0
    %4038 = vmatpush.msra.mxu0 0.0
    %4039 = vmatpush.msra.mxu0 0.0
    %4040 = vmatpush.msra.mxu0 0.0
    %4041 = vmatpush.msra.mxu0 0.0
    %4042 = vmatpush.msra.mxu0 0.0
    %4043 = vmatpush.msra.mxu0 0.0
    %4044 = vmatpush.msra.mxu0 0.0
    %4045 = vmatpush.msra.mxu0 0.0
    %4046 = vmatpush.msra.mxu0 0.0
    %4047 = vmatpush.msra.mxu0 0.0
    %4048 = vmatpush.msra.mxu0 0.0
    %4049 = vmatpush.msra.mxu0 0.0
    %4050 = vmatpush.msra.mxu0 0.0
    %4051 = vmatpush.msra.mxu0 0.0
    %4052 = vmatpush.msra.mxu0 0.0
    %4053 = vmatpush.msra.mxu0 %v3893
    %4054 = vmatmul.f32.gmra.mxu0 %v4036
    %v4055 = vpop.f32.mrf.mxu0
    %v4056 = vadd.f32 0.0, %v4055
    %4057 = vdwg.mxu0
    %4058 = vmatpush.msra.mxu0 0.0
    %4059 = vmatpush.msra.mxu0 0.0
    %4060 = vmatpush.msra.mxu0 0.0
    %4061 = vmatpush.msra.mxu0 0.0
    %4062 = vmatpush.msra.mxu0 0.0
    %4063 = vmatpush.msra.mxu0 0.0
    %4064 = vmatpush.msra.mxu0 0.0
    %4065 = vmatpush.msra.mxu0 0.0
    %4066 = vmatpush.msra.mxu0 0.0
    %4067 = vmatpush.msra.mxu0 0.0
    %4068 = vmatpush.msra.mxu0 0.0
    %4069 = vmatpush.msra.mxu0 0.0
    %4070 = vmatpush.msra.mxu0 0.0
    %4071 = vmatpush.msra.mxu0 0.0
    %4072 = vmatpush.msra.mxu0 0.0
    %4073 = vmatpush.msra.mxu0 %v3894
    %4074 = vmatmul.f32.gmra.mxu0 %v4036
    %v4075 = vpop.f32.mrf.mxu0
    %v4076 = vadd.f32 0.0, %v4075
    %4077 = vdwg.mxu0
    %v4078 = vperm.slane %v4056, 0
    %v4079 = vperm.slane %v4076, 0
    %v4080 = vmul.f32 %v3700, %v4078
    %v4081 = vmul.f32 %v3874, %v4079
    %v4082 = vmul.f32 %v3702, %v4078
    %v4083 = vmul.f32 %v3876, %v4079
    %v4084 = vmul.f32 %v3705, %v4078
    %v4085 = vmul.f32 %v3879, %v4079
    %v4086 = vmul.f32 %v3707, %v4078
    %v4087 = vmul.f32 %v3881, %v4079
    %v4088 = vmul.f32 %v3710, %v4078
    %v4089 = vmul.f32 %v3884, %v4079
    %v4090 = vmul.f32 %v3712, %v4078
    %v4091 = vmul.f32 %v3886, %v4079
    %v4092 = vmul.f32 %v3715, %v4078
    %v4093 = vmul.f32 %v3889, %v4079
    %v4094 = vmul.f32 %v3717, %v4078
    %v4095 = vmul.f32 %v3891, %v4079
    %v4096 = vperm.slane %v4056, 1
    %v4097 = vperm.slane %v4076, 1
    %v4098 = vadd.f32 %v4080, %v4096
    %v4099 = vadd.f32 %v4081, %v4097
    %v4100 = vadd.f32 %v4082, %v4096
    %v4101 = vadd.f32 %v4083, %v4097
    %v4102 = vadd.f32 %v4084, %v4096
    %v4103 = vadd.f32 %v4085, %v4097
    %v4104 = vadd.f32 %v4086, %v4096
    %v4105 = vadd.f32 %v4087, %v4097
    %v4106 = vadd.f32 %v4088, %v4096
    %v4107 = vadd.f32 %v4089, %v4097
    %v4108 = vadd.f32 %v4090, %v4096
    %v4109 = vadd.f32 %v4091, %v4097
    %v4110 = vadd.f32 %v4092, %v4096
    %v4111 = vadd.f32 %v4093, %v4097
    %v4112 = vadd.f32 %v4094, %v4096
    %v4113 = vadd.f32 %v4095, %v4097
    %v4114 = vmax.f32 %v4098, 0.0
    %v4115 = vmax.f32 %v4099, 0.0
    %v4116 = vmax.f32 %v4100, 0.0
    %v4117 = vmax.f32 %v4101, 0.0
    %v4118 = vmax.f32 %v4102, 0.0
    %v4119 = vmax.f32 %v4103, 0.0
    %v4120 = vmax.f32 %v4104, 0.0
    %v4121 = vmax.f32 %v4105, 0.0
    %v4122 = vmax.f32 %v4106, 0.0
    %v4123 = vmax.f32 %v4107, 0.0
    %v4124 = vmax.f32 %v4108, 0.0
    %v4125 = vmax.f32 %v4109, 0.0
    %v4126 = vmax.f32 %v4110, 0.0
    %v4127 = vmax.f32 %v4111, 0.0
    %v4128 = vmax.f32 %v4112, 0.0
    %v4129 = vmax.f32 %v4113, 0.0
    %v4130 = vpack.c.bf16 %v4116, %v4114
    %v4131 = vpack.c.bf16 %v4117, %v4115
    %v4132 = vpack.c.bf16 %v4120, %v4118
    %v4133 = vpack.c.bf16 %v4121, %v4119
    %v4134 = vpack.c.bf16 %v4124, %v4122
    %v4135 = vpack.c.bf16 %v4125, %v4123
    %v4136 = vpack.c.bf16 %v4128, %v4126
    %v4137 = vpack.c.bf16 %v4129, %v4127
    %v4138 = vld [vmem:[#allocation12] sm:$0xf]
    %v4139 = vld [vmem:[#allocation12 + $0x4] sm:$0xf]
    %v4140 = vld [vmem:[#allocation12 + $0x8] sm:$0xf]
    %v4141 = vld [vmem:[#allocation12 + $0xc] sm:$0xf]
    %v4142 = vld [vmem:[#allocation12 + $0x10] sm:$0xf]
    %v4143 = vld [vmem:[#allocation12 + $0x14] sm:$0xf]
    %v4144 = vld [vmem:[#allocation12 + $0x18] sm:$0xf]
    %v4145 = vld [vmem:[#allocation12 + $0x1c] sm:$0xf]
    %v4146 = vld [vmem:[#allocation12 + $0x20] sm:$0xf]
    %v4147 = vld [vmem:[#allocation12 + $0x24] sm:$0xf]
    %v4148 = vld [vmem:[#allocation12 + $0x28] sm:$0xf]
    %v4149 = vld [vmem:[#allocation12 + $0x2c] sm:$0xf]
    %v4150 = vld [vmem:[#allocation12 + $0x30] sm:$0xf]
    %v4151 = vld [vmem:[#allocation12 + $0x34] sm:$0xf]
    %v4152 = vld [vmem:[#allocation12 + $0x38] sm:$0xf]
    %v4153 = vld [vmem:[#allocation12 + $0x3c] sm:$0xf]
    %v4170 = vunpack.c.l.b16 %v4138
    %v4171 = vunpack.c.l.b16 %v4139
    %v4172 = vunpack.c.l.b16 %v4140
    %v4173 = vunpack.c.l.b16 %v4141
    %v4174 = vunpack.c.l.b16 %v4142
    %v4175 = vunpack.c.l.b16 %v4143
    %v4176 = vunpack.c.l.b16 %v4144
    %v4177 = vunpack.c.l.b16 %v4145
    %v4178 = vunpack.c.l.b16 %v4146
    %v4179 = vunpack.c.l.b16 %v4147
    %v4180 = vunpack.c.l.b16 %v4148
    %v4181 = vunpack.c.l.b16 %v4149
    %v4182 = vunpack.c.l.b16 %v4150
    %v4183 = vunpack.c.l.b16 %v4151
    %v4184 = vunpack.c.l.b16 %v4152
    %v4185 = vunpack.c.l.b16 %v4153
    %v4186 = vpack.c.b16 %v4171, %v4170
    %v4187 = vpack.c.b16 %v4173, %v4172
    %v4188 = vpack.c.b16 %v4175, %v4174
    %v4189 = vpack.c.b16 %v4177, %v4176
    %v4190 = vpack.c.b16 %v4179, %v4178
    %v4191 = vpack.c.b16 %v4181, %v4180
    %v4192 = vpack.c.b16 %v4183, %v4182
    %v4193 = vpack.c.b16 %v4185, %v4184
    %v4195 = vsel %vm358, %v4186, 0
    %v4198 = vsel %vm358, %v4187, 0
    %v4201 = vsel %vm358, %v4188, 0
    %v4204 = vsel %vm358, %v4189, 0
    %v4207 = vsel %vm358, %v4190, 0
    %v4210 = vsel %vm358, %v4191, 0
    %v4213 = vsel %vm358, %v4192, 0
    %v4216 = vsel %vm358, %v4193, 0
    %4218 = vmatpush.bf16.msra.mxu0 0
    %4219 = vmatpush.bf16.msra.mxu0 0
    %4220 = vmatpush.bf16.msra.mxu0 0
    %4221 = vmatpush.bf16.msra.mxu0 0
    %4222 = vmatpush.bf16.msra.mxu0 %v4136
    %4223 = vmatpush.bf16.msra.mxu0 %v4134
    %4224 = vmatpush.bf16.msra.mxu0 %v4132
    %4225 = vmatpush.bf16.msra.mxu0 %v4130
    %4226 = vmatmul.bf16.gmra.mxu0 %v4195
    %v4227 = vpop.f32.mrf.mxu0
    %v4228 = vadd.f32 0.0, %v4227
    %v4229 = vpop.f32.mrf.mxu0
    %v4230 = vadd.f32 0.0, %v4229
    %4231 = vmatmul.bf16.gmra.mxu0 %v4198
    %v4232 = vpop.f32.mrf.mxu0
    %v4233 = vadd.f32 0.0, %v4232
    %v4234 = vpop.f32.mrf.mxu0
    %v4235 = vadd.f32 0.0, %v4234
    %4236 = vmatmul.bf16.gmra.mxu0 %v4201
    %v4237 = vpop.f32.mrf.mxu0
    %v4238 = vadd.f32 0.0, %v4237
    %v4239 = vpop.f32.mrf.mxu0
    %v4240 = vadd.f32 0.0, %v4239
    %4241 = vmatmul.bf16.gmra.mxu0 %v4204
    %v4242 = vpop.f32.mrf.mxu0
    %v4243 = vadd.f32 0.0, %v4242
    %v4244 = vpop.f32.mrf.mxu0
    %v4245 = vadd.f32 0.0, %v4244
    %4246 = vmatmul.bf16.gmra.mxu0 %v4207
    %v4247 = vpop.f32.mrf.mxu0
    %v4248 = vadd.f32 0.0, %v4247
    %v4249 = vpop.f32.mrf.mxu0
    %v4250 = vadd.f32 0.0, %v4249
    %4251 = vmatmul.bf16.gmra.mxu0 %v4210
    %v4252 = vpop.f32.mrf.mxu0
    %v4253 = vadd.f32 0.0, %v4252
    %v4254 = vpop.f32.mrf.mxu0
    %v4255 = vadd.f32 0.0, %v4254
    %4256 = vmatmul.bf16.gmra.mxu0 %v4213
    %v4257 = vpop.f32.mrf.mxu0
    %v4258 = vadd.f32 0.0, %v4257
    %v4259 = vpop.f32.mrf.mxu0
    %v4260 = vadd.f32 0.0, %v4259
    %4261 = vmatmul.bf16.gmra.mxu0 %v4216
    %v4262 = vpop.f32.mrf.mxu0
    %v4263 = vadd.f32 0.0, %v4262
    %v4264 = vpop.f32.mrf.mxu0
    %v4265 = vadd.f32 0.0, %v4264
    %4266 = vdwg.mxu0
    %4267 = vmatpush.bf16.msra.mxu0 0
    %4268 = vmatpush.bf16.msra.mxu0 0
    %4269 = vmatpush.bf16.msra.mxu0 0
    %4270 = vmatpush.bf16.msra.mxu0 0
    %4271 = vmatpush.bf16.msra.mxu0 %v4137
    %4272 = vmatpush.bf16.msra.mxu0 %v4135
    %4273 = vmatpush.bf16.msra.mxu0 %v4133
    %4274 = vmatpush.bf16.msra.mxu0 %v4131
    %4275 = vmatmul.bf16.gmra.mxu0 %v4195
    %v4276 = vpop.f32.mrf.mxu0
    %v4277 = vadd.f32 0.0, %v4276
    %v4278 = vpop.f32.mrf.mxu0
    %v4279 = vadd.f32 0.0, %v4278
    %4280 = vmatmul.bf16.gmra.mxu0 %v4198
    %v4281 = vpop.f32.mrf.mxu0
    %v4282 = vadd.f32 0.0, %v4281
    %v4283 = vpop.f32.mrf.mxu0
    %v4284 = vadd.f32 0.0, %v4283
    %4285 = vmatmul.bf16.gmra.mxu0 %v4201
    %v4286 = vpop.f32.mrf.mxu0
    %v4287 = vadd.f32 0.0, %v4286
    %v4288 = vpop.f32.mrf.mxu0
    %v4289 = vadd.f32 0.0, %v4288
    %4290 = vmatmul.bf16.gmra.mxu0 %v4204
    %v4291 = vpop.f32.mrf.mxu0
    %v4292 = vadd.f32 0.0, %v4291
    %v4293 = vpop.f32.mrf.mxu0
    %v4294 = vadd.f32 0.0, %v4293
    %4295 = vmatmul.bf16.gmra.mxu0 %v4207
    %v4296 = vpop.f32.mrf.mxu0
    %v4297 = vadd.f32 0.0, %v4296
    %v4298 = vpop.f32.mrf.mxu0
    %v4299 = vadd.f32 0.0, %v4298
    %4300 = vmatmul.bf16.gmra.mxu0 %v4210
    %v4301 = vpop.f32.mrf.mxu0
    %v4302 = vadd.f32 0.0, %v4301
    %v4303 = vpop.f32.mrf.mxu0
    %v4304 = vadd.f32 0.0, %v4303
    %4305 = vmatmul.bf16.gmra.mxu0 %v4213
    %v4306 = vpop.f32.mrf.mxu0
    %v4307 = vadd.f32 0.0, %v4306
    %v4308 = vpop.f32.mrf.mxu0
    %v4309 = vadd.f32 0.0, %v4308
    %4310 = vmatmul.bf16.gmra.mxu0 %v4216
    %v4311 = vpop.f32.mrf.mxu0
    %v4312 = vadd.f32 0.0, %v4311
    %v4313 = vpop.f32.mrf.mxu0
    %v4314 = vadd.f32 0.0, %v4313
    %4315 = vdwg.mxu0
    %s4316 = scalar_lea.vmem [#allocation12], 64
    %v4317 = vld [vmem:[%s4316] sm:$0xf]
    %v4318 = vld [vmem:[%s4316 + $0x4] sm:$0xf]
    %v4319 = vld [vmem:[%s4316 + $0x8] sm:$0xf]
    %v4320 = vld [vmem:[%s4316 + $0xc] sm:$0xf]
    %v4321 = vld [vmem:[%s4316 + $0x10] sm:$0xf]
    %v4322 = vld [vmem:[%s4316 + $0x14] sm:$0xf]
    %v4323 = vld [vmem:[%s4316 + $0x18] sm:$0xf]
    %v4324 = vld [vmem:[%s4316 + $0x1c] sm:$0xf]
    %v4325 = vld [vmem:[%s4316 + $0x20] sm:$0xf]
    %v4326 = vld [vmem:[%s4316 + $0x24] sm:$0xf]
    %v4327 = vld [vmem:[%s4316 + $0x28] sm:$0xf]
    %v4328 = vld [vmem:[%s4316 + $0x2c] sm:$0xf]
    %v4329 = vld [vmem:[%s4316 + $0x30] sm:$0xf]
    %v4330 = vld [vmem:[%s4316 + $0x34] sm:$0xf]
    %v4331 = vld [vmem:[%s4316 + $0x38] sm:$0xf]
    %v4332 = vld [vmem:[%s4316 + $0x3c] sm:$0xf]
    %v4349 = vunpack.c.l.b16 %v4317
    %v4350 = vunpack.c.l.b16 %v4318
    %v4351 = vunpack.c.l.b16 %v4319
    %v4352 = vunpack.c.l.b16 %v4320
    %v4353 = vunpack.c.l.b16 %v4321
    %v4354 = vunpack.c.l.b16 %v4322
    %v4355 = vunpack.c.l.b16 %v4323
    %v4356 = vunpack.c.l.b16 %v4324
    %v4357 = vunpack.c.l.b16 %v4325
    %v4358 = vunpack.c.l.b16 %v4326
    %v4359 = vunpack.c.l.b16 %v4327
    %v4360 = vunpack.c.l.b16 %v4328
    %v4361 = vunpack.c.l.b16 %v4329
    %v4362 = vunpack.c.l.b16 %v4330
    %v4363 = vunpack.c.l.b16 %v4331
    %v4364 = vunpack.c.l.b16 %v4332
    %v4365 = vpack.c.b16 %v4350, %v4349
    %v4366 = vpack.c.b16 %v4352, %v4351
    %v4367 = vpack.c.b16 %v4354, %v4353
    %v4368 = vpack.c.b16 %v4356, %v4355
    %v4369 = vpack.c.b16 %v4358, %v4357
    %v4370 = vpack.c.b16 %v4360, %v4359
    %v4371 = vpack.c.b16 %v4362, %v4361
    %v4372 = vpack.c.b16 %v4364, %v4363
    %v4374 = vsel %vm358, %v4365, 0
    %v4377 = vsel %vm358, %v4366, 0
    %v4380 = vsel %vm358, %v4367, 0
    %v4383 = vsel %vm358, %v4368, 0
    %v4386 = vsel %vm358, %v4369, 0
    %v4389 = vsel %vm358, %v4370, 0
    %v4392 = vsel %vm358, %v4371, 0
    %v4395 = vsel %vm358, %v4372, 0
    %4397 = vmatpush.bf16.msra.mxu0 0
    %4398 = vmatpush.bf16.msra.mxu0 0
    %4399 = vmatpush.bf16.msra.mxu0 0
    %4400 = vmatpush.bf16.msra.mxu0 0
    %4401 = vmatpush.bf16.msra.mxu0 %v4136
    %4402 = vmatpush.bf16.msra.mxu0 %v4134
    %4403 = vmatpush.bf16.msra.mxu0 %v4132
    %4404 = vmatpush.bf16.msra.mxu0 %v4130
    %4405 = vmatmul.bf16.gmra.mxu0 %v4374
    %v4406 = vpop.f32.mrf.mxu0
    %v4407 = vadd.f32 0.0, %v4406
    %v4408 = vpop.f32.mrf.mxu0
    %v4409 = vadd.f32 0.0, %v4408
    %4410 = vmatmul.bf16.gmra.mxu0 %v4377
    %v4411 = vpop.f32.mrf.mxu0
    %v4412 = vadd.f32 0.0, %v4411
    %v4413 = vpop.f32.mrf.mxu0
    %v4414 = vadd.f32 0.0, %v4413
    %4415 = vmatmul.bf16.gmra.mxu0 %v4380
    %v4416 = vpop.f32.mrf.mxu0
    %v4417 = vadd.f32 0.0, %v4416
    %v4418 = vpop.f32.mrf.mxu0
    %v4419 = vadd.f32 0.0, %v4418
    %4420 = vmatmul.bf16.gmra.mxu0 %v4383
    %v4421 = vpop.f32.mrf.mxu0
    %v4422 = vadd.f32 0.0, %v4421
    %v4423 = vpop.f32.mrf.mxu0
    %v4424 = vadd.f32 0.0, %v4423
    %4425 = vmatmul.bf16.gmra.mxu0 %v4386
    %v4426 = vpop.f32.mrf.mxu0
    %v4427 = vadd.f32 0.0, %v4426
    %v4428 = vpop.f32.mrf.mxu0
    %v4429 = vadd.f32 0.0, %v4428
    %4430 = vmatmul.bf16.gmra.mxu0 %v4389
    %v4431 = vpop.f32.mrf.mxu0
    %v4432 = vadd.f32 0.0, %v4431
    %v4433 = vpop.f32.mrf.mxu0
    %v4434 = vadd.f32 0.0, %v4433
    %4435 = vmatmul.bf16.gmra.mxu0 %v4392
    %v4436 = vpop.f32.mrf.mxu0
    %v4437 = vadd.f32 0.0, %v4436
    %v4438 = vpop.f32.mrf.mxu0
    %v4439 = vadd.f32 0.0, %v4438
    %4440 = vmatmul.bf16.gmra.mxu0 %v4395
    %v4441 = vpop.f32.mrf.mxu0
    %v4442 = vadd.f32 0.0, %v4441
    %v4443 = vpop.f32.mrf.mxu0
    %v4444 = vadd.f32 0.0, %v4443
    %4445 = vdwg.mxu0
    %4446 = vmatpush.bf16.msra.mxu0 0
    %4447 = vmatpush.bf16.msra.mxu0 0
    %4448 = vmatpush.bf16.msra.mxu0 0
    %4449 = vmatpush.bf16.msra.mxu0 0
    %4450 = vmatpush.bf16.msra.mxu0 %v4137
    %4451 = vmatpush.bf16.msra.mxu0 %v4135
    %4452 = vmatpush.bf16.msra.mxu0 %v4133
    %4453 = vmatpush.bf16.msra.mxu0 %v4131
    %4454 = vmatmul.bf16.gmra.mxu0 %v4374
    %v4455 = vpop.f32.mrf.mxu0
    %v4456 = vadd.f32 0.0, %v4455
    %v4457 = vpop.f32.mrf.mxu0
    %v4458 = vadd.f32 0.0, %v4457
    %4459 = vmatmul.bf16.gmra.mxu0 %v4377
    %v4460 = vpop.f32.mrf.mxu0
    %v4461 = vadd.f32 0.0, %v4460
    %v4462 = vpop.f32.mrf.mxu0
    %v4463 = vadd.f32 0.0, %v4462
    %4464 = vmatmul.bf16.gmra.mxu0 %v4380
    %v4465 = vpop.f32.mrf.mxu0
    %v4466 = vadd.f32 0.0, %v4465
    %v4467 = vpop.f32.mrf.mxu0
    %v4468 = vadd.f32 0.0, %v4467
    %4469 = vmatmul.bf16.gmra.mxu0 %v4383
    %v4470 = vpop.f32.mrf.mxu0
    %v4471 = vadd.f32 0.0, %v4470
    %v4472 = vpop.f32.mrf.mxu0
    %v4473 = vadd.f32 0.0, %v4472
    %4474 = vmatmul.bf16.gmra.mxu0 %v4386
    %v4475 = vpop.f32.mrf.mxu0
    %v4476 = vadd.f32 0.0, %v4475
    %v4477 = vpop.f32.mrf.mxu0
    %v4478 = vadd.f32 0.0, %v4477
    %4479 = vmatmul.bf16.gmra.mxu0 %v4389
    %v4480 = vpop.f32.mrf.mxu0
    %v4481 = vadd.f32 0.0, %v4480
    %v4482 = vpop.f32.mrf.mxu0
    %v4483 = vadd.f32 0.0, %v4482
    %4484 = vmatmul.bf16.gmra.mxu0 %v4392
    %v4485 = vpop.f32.mrf.mxu0
    %v4486 = vadd.f32 0.0, %v4485
    %v4487 = vpop.f32.mrf.mxu0
    %v4488 = vadd.f32 0.0, %v4487
    %4489 = vmatmul.bf16.gmra.mxu0 %v4395
    %v4490 = vpop.f32.mrf.mxu0
    %v4491 = vadd.f32 0.0, %v4490
    %v4492 = vpop.f32.mrf.mxu0
    %v4493 = vadd.f32 0.0, %v4492
    %4494 = vdwg.mxu0
    %s4495 = scalar_lea.vmem [#allocation12], 128
    %v4496 = vld [vmem:[%s4495] sm:$0xf]
    %v4497 = vld [vmem:[%s4495 + $0x4] sm:$0xf]
    %v4498 = vld [vmem:[%s4495 + $0x8] sm:$0xf]
    %v4499 = vld [vmem:[%s4495 + $0xc] sm:$0xf]
    %v4500 = vld [vmem:[%s4495 + $0x10] sm:$0xf]
    %v4501 = vld [vmem:[%s4495 + $0x14] sm:$0xf]
    %v4502 = vld [vmem:[%s4495 + $0x18] sm:$0xf]
    %v4503 = vld [vmem:[%s4495 + $0x1c] sm:$0xf]
    %v4504 = vld [vmem:[%s4495 + $0x20] sm:$0xf]
    %v4505 = vld [vmem:[%s4495 + $0x24] sm:$0xf]
    %v4506 = vld [vmem:[%s4495 + $0x28] sm:$0xf]
    %v4507 = vld [vmem:[%s4495 + $0x2c] sm:$0xf]
    %v4508 = vld [vmem:[%s4495 + $0x30] sm:$0xf]
    %v4509 = vld [vmem:[%s4495 + $0x34] sm:$0xf]
    %v4510 = vld [vmem:[%s4495 + $0x38] sm:$0xf]
    %v4511 = vld [vmem:[%s4495 + $0x3c] sm:$0xf]
    %v4528 = vunpack.c.l.b16 %v4496
    %v4529 = vunpack.c.l.b16 %v4497
    %v4530 = vunpack.c.l.b16 %v4498
    %v4531 = vunpack.c.l.b16 %v4499
    %v4532 = vunpack.c.l.b16 %v4500
    %v4533 = vunpack.c.l.b16 %v4501
    %v4534 = vunpack.c.l.b16 %v4502
    %v4535 = vunpack.c.l.b16 %v4503
    %v4536 = vunpack.c.l.b16 %v4504
    %v4537 = vunpack.c.l.b16 %v4505
    %v4538 = vunpack.c.l.b16 %v4506
    %v4539 = vunpack.c.l.b16 %v4507
    %v4540 = vunpack.c.l.b16 %v4508
    %v4541 = vunpack.c.l.b16 %v4509
    %v4542 = vunpack.c.l.b16 %v4510
    %v4543 = vunpack.c.l.b16 %v4511
    %v4544 = vpack.c.b16 %v4529, %v4528
    %v4545 = vpack.c.b16 %v4531, %v4530
    %v4546 = vpack.c.b16 %v4533, %v4532
    %v4547 = vpack.c.b16 %v4535, %v4534
    %v4548 = vpack.c.b16 %v4537, %v4536
    %v4549 = vpack.c.b16 %v4539, %v4538
    %v4550 = vpack.c.b16 %v4541, %v4540
    %v4551 = vpack.c.b16 %v4543, %v4542
    %v4553 = vsel %vm358, %v4544, 0
    %v4556 = vsel %vm358, %v4545, 0
    %v4559 = vsel %vm358, %v4546, 0
    %v4562 = vsel %vm358, %v4547, 0
    %v4565 = vsel %vm358, %v4548, 0
    %v4568 = vsel %vm358, %v4549, 0
    %v4571 = vsel %vm358, %v4550, 0
    %v4574 = vsel %vm358, %v4551, 0
    %4576 = vmatpush.bf16.msra.mxu0 0
    %4577 = vmatpush.bf16.msra.mxu0 0
    %4578 = vmatpush.bf16.msra.mxu0 0
    %4579 = vmatpush.bf16.msra.mxu0 0
    %4580 = vmatpush.bf16.msra.mxu0 %v4136
    %4581 = vmatpush.bf16.msra.mxu0 %v4134
    %4582 = vmatpush.bf16.msra.mxu0 %v4132
    %4583 = vmatpush.bf16.msra.mxu0 %v4130
    %4584 = vmatmul.bf16.gmra.mxu0 %v4553
    %v4585 = vpop.f32.mrf.mxu0
    %v4586 = vadd.f32 0.0, %v4585
    %v4587 = vpop.f32.mrf.mxu0
    %v4588 = vadd.f32 0.0, %v4587
    %4589 = vmatmul.bf16.gmra.mxu0 %v4556
    %v4590 = vpop.f32.mrf.mxu0
    %v4591 = vadd.f32 0.0, %v4590
    %v4592 = vpop.f32.mrf.mxu0
    %v4593 = vadd.f32 0.0, %v4592
    %4594 = vmatmul.bf16.gmra.mxu0 %v4559
    %v4595 = vpop.f32.mrf.mxu0
    %v4596 = vadd.f32 0.0, %v4595
    %v4597 = vpop.f32.mrf.mxu0
    %v4598 = vadd.f32 0.0, %v4597
    %4599 = vmatmul.bf16.gmra.mxu0 %v4562
    %v4600 = vpop.f32.mrf.mxu0
    %v4601 = vadd.f32 0.0, %v4600
    %v4602 = vpop.f32.mrf.mxu0
    %v4603 = vadd.f32 0.0, %v4602
    %4604 = vmatmul.bf16.gmra.mxu0 %v4565
    %v4605 = vpop.f32.mrf.mxu0
    %v4606 = vadd.f32 0.0, %v4605
    %v4607 = vpop.f32.mrf.mxu0
    %v4608 = vadd.f32 0.0, %v4607
    %4609 = vmatmul.bf16.gmra.mxu0 %v4568
    %v4610 = vpop.f32.mrf.mxu0
    %v4611 = vadd.f32 0.0, %v4610
    %v4612 = vpop.f32.mrf.mxu0
    %v4613 = vadd.f32 0.0, %v4612
    %4614 = vmatmul.bf16.gmra.mxu0 %v4571
    %v4615 = vpop.f32.mrf.mxu0
    %v4616 = vadd.f32 0.0, %v4615
    %v4617 = vpop.f32.mrf.mxu0
    %v4618 = vadd.f32 0.0, %v4617
    %4619 = vmatmul.bf16.gmra.mxu0 %v4574
    %v4620 = vpop.f32.mrf.mxu0
    %v4621 = vadd.f32 0.0, %v4620
    %v4622 = vpop.f32.mrf.mxu0
    %v4623 = vadd.f32 0.0, %v4622
    %4624 = vdwg.mxu0
    %4625 = vmatpush.bf16.msra.mxu0 0
    %4626 = vmatpush.bf16.msra.mxu0 0
    %4627 = vmatpush.bf16.msra.mxu0 0
    %4628 = vmatpush.bf16.msra.mxu0 0
    %4629 = vmatpush.bf16.msra.mxu0 %v4137
    %4630 = vmatpush.bf16.msra.mxu0 %v4135
    %4631 = vmatpush.bf16.msra.mxu0 %v4133
    %4632 = vmatpush.bf16.msra.mxu0 %v4131
    %4633 = vmatmul.bf16.gmra.mxu0 %v4553
    %v4634 = vpop.f32.mrf.mxu0
    %v4635 = vadd.f32 0.0, %v4634
    %v4636 = vpop.f32.mrf.mxu0
    %v4637 = vadd.f32 0.0, %v4636
    %4638 = vmatmul.bf16.gmra.mxu0 %v4556
    %v4639 = vpop.f32.mrf.mxu0
    %v4640 = vadd.f32 0.0, %v4639
    %v4641 = vpop.f32.mrf.mxu0
    %v4642 = vadd.f32 0.0, %v4641
    %4643 = vmatmul.bf16.gmra.mxu0 %v4559
    %v4644 = vpop.f32.mrf.mxu0
    %v4645 = vadd.f32 0.0, %v4644
    %v4646 = vpop.f32.mrf.mxu0
    %v4647 = vadd.f32 0.0, %v4646
    %4648 = vmatmul.bf16.gmra.mxu0 %v4562
    %v4649 = vpop.f32.mrf.mxu0
    %v4650 = vadd.f32 0.0, %v4649
    %v4651 = vpop.f32.mrf.mxu0
    %v4652 = vadd.f32 0.0, %v4651
    %4653 = vmatmul.bf16.gmra.mxu0 %v4565
    %v4654 = vpop.f32.mrf.mxu0
    %v4655 = vadd.f32 0.0, %v4654
    %v4656 = vpop.f32.mrf.mxu0
    %v4657 = vadd.f32 0.0, %v4656
    %4658 = vmatmul.bf16.gmra.mxu0 %v4568
    %v4659 = vpop.f32.mrf.mxu0
    %v4660 = vadd.f32 0.0, %v4659
    %v4661 = vpop.f32.mrf.mxu0
    %v4662 = vadd.f32 0.0, %v4661
    %4663 = vmatmul.bf16.gmra.mxu0 %v4571
    %v4664 = vpop.f32.mrf.mxu0
    %v4665 = vadd.f32 0.0, %v4664
    %v4666 = vpop.f32.mrf.mxu0
    %v4667 = vadd.f32 0.0, %v4666
    %4668 = vmatmul.bf16.gmra.mxu0 %v4574
    %v4669 = vpop.f32.mrf.mxu0
    %v4670 = vadd.f32 0.0, %v4669
    %v4671 = vpop.f32.mrf.mxu0
    %v4672 = vadd.f32 0.0, %v4671
    %4673 = vdwg.mxu0
    %v4674 = vpack.c.bf16 %v4230, %v4228
    %v4675 = vpack.c.bf16 %v4279, %v4277
    %v4676 = vpack.c.bf16 %v4409, %v4407
    %v4677 = vpack.c.bf16 %v4458, %v4456
    %v4678 = vpack.c.bf16 %v4588, %v4586
    %v4679 = vpack.c.bf16 %v4637, %v4635
    %v4680 = vpack.c.bf16 %v4235, %v4233
    %v4681 = vpack.c.bf16 %v4284, %v4282
    %v4682 = vpack.c.bf16 %v4414, %v4412
    %v4683 = vpack.c.bf16 %v4463, %v4461
    %v4684 = vpack.c.bf16 %v4593, %v4591
    %v4685 = vpack.c.bf16 %v4642, %v4640
    %v4686 = vpack.c.bf16 %v4240, %v4238
    %v4687 = vpack.c.bf16 %v4289, %v4287
    %v4688 = vpack.c.bf16 %v4419, %v4417
    %v4689 = vpack.c.bf16 %v4468, %v4466
    %v4690 = vpack.c.bf16 %v4598, %v4596
    %v4691 = vpack.c.bf16 %v4647, %v4645
    %v4692 = vpack.c.bf16 %v4245, %v4243
    %v4693 = vpack.c.bf16 %v4294, %v4292
    %v4694 = vpack.c.bf16 %v4424, %v4422
    %v4695 = vpack.c.bf16 %v4473, %v4471
    %v4696 = vpack.c.bf16 %v4603, %v4601
    %v4697 = vpack.c.bf16 %v4652, %v4650
    %v4698 = vpack.c.bf16 %v4250, %v4248
    %v4699 = vpack.c.bf16 %v4299, %v4297
    %v4700 = vpack.c.bf16 %v4429, %v4427
    %v4701 = vpack.c.bf16 %v4478, %v4476
    %v4702 = vpack.c.bf16 %v4608, %v4606
    %v4703 = vpack.c.bf16 %v4657, %v4655
    %v4704 = vpack.c.bf16 %v4255, %v4253
    %v4705 = vpack.c.bf16 %v4304, %v4302
    %v4706 = vpack.c.bf16 %v4434, %v4432
    %v4707 = vpack.c.bf16 %v4483, %v4481
    %v4708 = vpack.c.bf16 %v4613, %v4611
    %v4709 = vpack.c.bf16 %v4662, %v4660
    %v4710 = vpack.c.bf16 %v4260, %v4258
    %v4711 = vpack.c.bf16 %v4309, %v4307
    %v4712 = vpack.c.bf16 %v4439, %v4437
    %v4713 = vpack.c.bf16 %v4488, %v4486
    %v4714 = vpack.c.bf16 %v4618, %v4616
    %v4715 = vpack.c.bf16 %v4667, %v4665
    %v4716 = vpack.c.bf16 %v4265, %v4263
    %v4717 = vpack.c.bf16 %v4314, %v4312
    %v4718 = vpack.c.bf16 %v4444, %v4442
    %v4719 = vpack.c.bf16 %v4493, %v4491
    %v4720 = vpack.c.bf16 %v4623, %v4621
    %v4721 = vpack.c.bf16 %v4672, %v4670
    %s4722 = smul.u32 4, 96
    %s4723 = smul.u32 %s4722, 5
    %s4724 = sshll.u32 %s4723, 4
    %4725 = dma.done [#allocation3], %s4724
    %v4726 = vld [vmem:[#allocation2] sm:$0xff]
    %v4727 = vld [vmem:[#allocation2 + $0x14] sm:$0xff]
    %v4728 = vld [vmem:[#allocation2 + $0x28] sm:$0xff]
    %v4729 = vld [vmem:[#allocation2 + $0x3c] sm:$0xff]
    %v4730 = vld [vmem:[#allocation2 + $0x50] sm:$0xff]
    %v4731 = vld [vmem:[#allocation2 + $0x64] sm:$0xff]
    %v4732 = vld [vmem:[#allocation2 + $0x78] sm:$0xff]
    %v4733 = vld [vmem:[#allocation2 + $0x8c] sm:$0xff]
    %v4734 = vld [vmem:[#allocation2 + $0xa0] sm:$0xff]
    %v4735 = vld [vmem:[#allocation2 + $0xb4] sm:$0xff]
    %v4736 = vld [vmem:[#allocation2 + $0xc8] sm:$0xff]
    %v4737 = vld [vmem:[#allocation2 + $0xdc] sm:$0xff]
    %v4738 = vld [vmem:[#allocation2 + $0xf0] sm:$0xff]
    %v4739 = vld [vmem:[#allocation2 + $0x104] sm:$0xff]
    %v4740 = vld [vmem:[#allocation2 + $0x118] sm:$0xff]
    %v4741 = vld [vmem:[#allocation2 + $0x12c] sm:$0xff]
    %v4742 = vld [vmem:[#allocation2 + $0x140] sm:$0xff]
    %v4743 = vld [vmem:[#allocation2 + $0x154] sm:$0xff]
    %v4744 = vld [vmem:[#allocation2 + $0x168] sm:$0xff]
    %v4745 = vld [vmem:[#allocation2 + $0x17c] sm:$0xff]
    %v4746 = vld [vmem:[#allocation2 + $0x190] sm:$0xff]
    %v4747 = vld [vmem:[#allocation2 + $0x1a4] sm:$0xff]
    %v4748 = vld [vmem:[#allocation2 + $0x1b8] sm:$0xff]
    %v4749 = vld [vmem:[#allocation2 + $0x1cc] sm:$0xff]
    %v4750 = vld [vmem:[#allocation2 + $0x1e0] sm:$0xff]
    %v4751 = vld [vmem:[#allocation2 + $0x1f4] sm:$0xff]
    %v4752 = vld [vmem:[#allocation2 + $0x208] sm:$0xff]
    %v4753 = vld [vmem:[#allocation2 + $0x21c] sm:$0xff]
    %v4754 = vld [vmem:[#allocation2 + $0x230] sm:$0xff]
    %v4755 = vld [vmem:[#allocation2 + $0x244] sm:$0xff]
    %v4756 = vld [vmem:[#allocation2 + $0x258] sm:$0xff]
    %v4757 = vld [vmem:[#allocation2 + $0x26c] sm:$0xff]
    %v4758 = vld [vmem:[#allocation2 + $0x280] sm:$0xff]
    %v4759 = vld [vmem:[#allocation2 + $0x294] sm:$0xff]
    %v4760 = vld [vmem:[#allocation2 + $0x2a8] sm:$0xff]
    %v4761 = vld [vmem:[#allocation2 + $0x2bc] sm:$0xff]
    %v4762 = vld [vmem:[#allocation2 + $0x2d0] sm:$0xff]
    %v4763 = vld [vmem:[#allocation2 + $0x2e4] sm:$0xff]
    %v4764 = vld [vmem:[#allocation2 + $0x2f8] sm:$0xff]
    %v4765 = vld [vmem:[#allocation2 + $0x30c] sm:$0xff]
    %v4766 = vld [vmem:[#allocation2 + $0x320] sm:$0xff]
    %v4767 = vld [vmem:[#allocation2 + $0x334] sm:$0xff]
    %v4768 = vld [vmem:[#allocation2 + $0x348] sm:$0xff]
    %v4769 = vld [vmem:[#allocation2 + $0x35c] sm:$0xff]
    %v4770 = vld [vmem:[#allocation2 + $0x370] sm:$0xff]
    %v4771 = vld [vmem:[#allocation2 + $0x384] sm:$0xff]
    %v4772 = vld [vmem:[#allocation2 + $0x398] sm:$0xff]
    %v4773 = vld [vmem:[#allocation2 + $0x3ac] sm:$0xff]
    %v4774 = vld [vmem:[#allocation2 + $0x3c0] sm:$0xff]
    %v4775 = vld [vmem:[#allocation2 + $0x3d4] sm:$0xff]
    %v4776 = vld [vmem:[#allocation2 + $0x3e8] sm:$0xff]
    %v4777 = vld [vmem:[#allocation2 + $0x3fc] sm:$0xff]
    %v4778 = vld [vmem:[#allocation2 + $0x410] sm:$0xff]
    %v4779 = vld [vmem:[#allocation2 + $0x424] sm:$0xff]
    %v4780 = vld [vmem:[#allocation2 + $0x438] sm:$0xff]
    %v4781 = vld [vmem:[#allocation2 + $0x44c] sm:$0xff]
    %v4782 = vld [vmem:[#allocation2 + $0x460] sm:$0xff]
    %v4783 = vld [vmem:[#allocation2 + $0x474] sm:$0xff]
    %v4784 = vld [vmem:[#allocation2 + $0x488] sm:$0xff]
    %v4785 = vld [vmem:[#allocation2 + $0x49c] sm:$0xff]
    %v4786 = vld [vmem:[#allocation2 + $0x4b0] sm:$0xff]
    %v4787 = vld [vmem:[#allocation2 + $0x4c4] sm:$0xff]
    %v4788 = vld [vmem:[#allocation2 + $0x4d8] sm:$0xff]
    %v4789 = vld [vmem:[#allocation2 + $0x4ec] sm:$0xff]
    %v4790 = vld [vmem:[#allocation2 + $0x500] sm:$0xff]
    %v4791 = vld [vmem:[#allocation2 + $0x514] sm:$0xff]
    %v4792 = vld [vmem:[#allocation2 + $0x528] sm:$0xff]
    %v4793 = vld [vmem:[#allocation2 + $0x53c] sm:$0xff]
    %v4794 = vld [vmem:[#allocation2 + $0x550] sm:$0xff]
    %v4795 = vld [vmem:[#allocation2 + $0x564] sm:$0xff]
    %v4796 = vld [vmem:[#allocation2 + $0x578] sm:$0xff]
    %v4797 = vld [vmem:[#allocation2 + $0x58c] sm:$0xff]
    %v4798 = vld [vmem:[#allocation2 + $0x5a0] sm:$0xff]
    %v4799 = vld [vmem:[#allocation2 + $0x5b4] sm:$0xff]
    %v4800 = vld [vmem:[#allocation2 + $0x5c8] sm:$0xff]
    %v4801 = vld [vmem:[#allocation2 + $0x5dc] sm:$0xff]
    %v4802 = vld [vmem:[#allocation2 + $0x5f0] sm:$0xff]
    %v4803 = vld [vmem:[#allocation2 + $0x604] sm:$0xff]
    %v4804 = vld [vmem:[#allocation2 + $0x618] sm:$0xff]
    %v4805 = vld [vmem:[#allocation2 + $0x62c] sm:$0xff]
    %v4806 = vld [vmem:[#allocation2 + $0x640] sm:$0xff]
    %v4807 = vld [vmem:[#allocation2 + $0x654] sm:$0xff]
    %v4808 = vld [vmem:[#allocation2 + $0x668] sm:$0xff]
    %v4809 = vld [vmem:[#allocation2 + $0x67c] sm:$0xff]
    %v4810 = vld [vmem:[#allocation2 + $0x690] sm:$0xff]
    %v4811 = vld [vmem:[#allocation2 + $0x6a4] sm:$0xff]
    %v4812 = vld [vmem:[#allocation2 + $0x6b8] sm:$0xff]
    %v4813 = vld [vmem:[#allocation2 + $0x6cc] sm:$0xff]
    %v4814 = vld [vmem:[#allocation2 + $0x6e0] sm:$0xff]
    %v4815 = vld [vmem:[#allocation2 + $0x6f4] sm:$0xff]
    %v4816 = vld [vmem:[#allocation2 + $0x708] sm:$0xff]
    %v4817 = vld [vmem:[#allocation2 + $0x71c] sm:$0xff]
    %v4818 = vld [vmem:[#allocation2 + $0x730] sm:$0xff]
    %v4819 = vld [vmem:[#allocation2 + $0x744] sm:$0xff]
    %v4820 = vld [vmem:[#allocation2 + $0x758] sm:$0xff]
    %v4821 = vld [vmem:[#allocation2 + $0x76c] sm:$0xff]
    %v4918 = vunpack.c.l.b16 %v4726
    %v4919 = vunpack.c.h.b16 %v4726
    %v4920 = vunpack.c.l.b16 %v4727
    %v4921 = vunpack.c.h.b16 %v4727
    %v4922 = vunpack.c.l.b16 %v4728
    %v4923 = vunpack.c.h.b16 %v4728
    %v4924 = vunpack.c.l.b16 %v4729
    %v4925 = vunpack.c.h.b16 %v4729
    %v4926 = vunpack.c.l.b16 %v4730
    %v4927 = vunpack.c.h.b16 %v4730
    %v4928 = vunpack.c.l.b16 %v4731
    %v4929 = vunpack.c.h.b16 %v4731
    %v4930 = vunpack.c.l.b16 %v4732
    %v4931 = vunpack.c.h.b16 %v4732
    %v4932 = vunpack.c.l.b16 %v4733
    %v4933 = vunpack.c.h.b16 %v4733
    %v4934 = vunpack.c.l.b16 %v4734
    %v4935 = vunpack.c.h.b16 %v4734
    %v4936 = vunpack.c.l.b16 %v4735
    %v4937 = vunpack.c.h.b16 %v4735
    %v4938 = vunpack.c.l.b16 %v4736
    %v4939 = vunpack.c.h.b16 %v4736
    %v4940 = vunpack.c.l.b16 %v4737
    %v4941 = vunpack.c.h.b16 %v4737
    %v4942 = vunpack.c.l.b16 %v4738
    %v4943 = vunpack.c.h.b16 %v4738
    %v4944 = vunpack.c.l.b16 %v4739
    %v4945 = vunpack.c.h.b16 %v4739
    %v4946 = vunpack.c.l.b16 %v4740
    %v4947 = vunpack.c.h.b16 %v4740
    %v4948 = vunpack.c.l.b16 %v4741
    %v4949 = vunpack.c.h.b16 %v4741
    %v4950 = vunpack.c.l.b16 %v4742
    %v4951 = vunpack.c.h.b16 %v4742
    %v4952 = vunpack.c.l.b16 %v4743
    %v4953 = vunpack.c.h.b16 %v4743
    %v4954 = vunpack.c.l.b16 %v4744
    %v4955 = vunpack.c.h.b16 %v4744
    %v4956 = vunpack.c.l.b16 %v4745
    %v4957 = vunpack.c.h.b16 %v4745
    %v4958 = vunpack.c.l.b16 %v4746
    %v4959 = vunpack.c.h.b16 %v4746
    %v4960 = vunpack.c.l.b16 %v4747
    %v4961 = vunpack.c.h.b16 %v4747
    %v4962 = vunpack.c.l.b16 %v4748
    %v4963 = vunpack.c.h.b16 %v4748
    %v4964 = vunpack.c.l.b16 %v4749
    %v4965 = vunpack.c.h.b16 %v4749
    %v4966 = vunpack.c.l.b16 %v4750
    %v4967 = vunpack.c.h.b16 %v4750
    %v4968 = vunpack.c.l.b16 %v4751
    %v4969 = vunpack.c.h.b16 %v4751
    %v4970 = vunpack.c.l.b16 %v4752
    %v4971 = vunpack.c.h.b16 %v4752
    %v4972 = vunpack.c.l.b16 %v4753
    %v4973 = vunpack.c.h.b16 %v4753
    %v4974 = vunpack.c.l.b16 %v4754
    %v4975 = vunpack.c.h.b16 %v4754
    %v4976 = vunpack.c.l.b16 %v4755
    %v4977 = vunpack.c.h.b16 %v4755
    %v4978 = vunpack.c.l.b16 %v4756
    %v4979 = vunpack.c.h.b16 %v4756
    %v4980 = vunpack.c.l.b16 %v4757
    %v4981 = vunpack.c.h.b16 %v4757
    %v4982 = vunpack.c.l.b16 %v4758
    %v4983 = vunpack.c.h.b16 %v4758
    %v4984 = vunpack.c.l.b16 %v4759
    %v4985 = vunpack.c.h.b16 %v4759
    %v4986 = vunpack.c.l.b16 %v4760
    %v4987 = vunpack.c.h.b16 %v4760
    %v4988 = vunpack.c.l.b16 %v4761
    %v4989 = vunpack.c.h.b16 %v4761
    %v4990 = vunpack.c.l.b16 %v4762
    %v4991 = vunpack.c.h.b16 %v4762
    %v4992 = vunpack.c.l.b16 %v4763
    %v4993 = vunpack.c.h.b16 %v4763
    %v4994 = vunpack.c.l.b16 %v4764
    %v4995 = vunpack.c.h.b16 %v4764
    %v4996 = vunpack.c.l.b16 %v4765
    %v4997 = vunpack.c.h.b16 %v4765
    %v4998 = vunpack.c.l.b16 %v4766
    %v4999 = vunpack.c.h.b16 %v4766
    %v5000 = vunpack.c.l.b16 %v4767
    %v5001 = vunpack.c.h.b16 %v4767
    %v5002 = vunpack.c.l.b16 %v4768
    %v5003 = vunpack.c.h.b16 %v4768
    %v5004 = vunpack.c.l.b16 %v4769
    %v5005 = vunpack.c.h.b16 %v4769
    %v5006 = vunpack.c.l.b16 %v4770
    %v5007 = vunpack.c.h.b16 %v4770
    %v5008 = vunpack.c.l.b16 %v4771
    %v5009 = vunpack.c.h.b16 %v4771
    %v5010 = vunpack.c.l.b16 %v4772
    %v5011 = vunpack.c.h.b16 %v4772
    %v5012 = vunpack.c.l.b16 %v4773
    %v5013 = vunpack.c.h.b16 %v4773
    %v5014 = vunpack.c.l.b16 %v4774
    %v5015 = vunpack.c.h.b16 %v4774
    %v5016 = vunpack.c.l.b16 %v4775
    %v5017 = vunpack.c.h.b16 %v4775
    %v5018 = vunpack.c.l.b16 %v4776
    %v5019 = vunpack.c.h.b16 %v4776
    %v5020 = vunpack.c.l.b16 %v4777
    %v5021 = vunpack.c.h.b16 %v4777
    %v5022 = vunpack.c.l.b16 %v4778
    %v5023 = vunpack.c.h.b16 %v4778
    %v5024 = vunpack.c.l.b16 %v4779
    %v5025 = vunpack.c.h.b16 %v4779
    %v5026 = vunpack.c.l.b16 %v4780
    %v5027 = vunpack.c.h.b16 %v4780
    %v5028 = vunpack.c.l.b16 %v4781
    %v5029 = vunpack.c.h.b16 %v4781
    %v5030 = vunpack.c.l.b16 %v4782
    %v5031 = vunpack.c.h.b16 %v4782
    %v5032 = vunpack.c.l.b16 %v4783
    %v5033 = vunpack.c.h.b16 %v4783
    %v5034 = vunpack.c.l.b16 %v4784
    %v5035 = vunpack.c.h.b16 %v4784
    %v5036 = vunpack.c.l.b16 %v4785
    %v5037 = vunpack.c.h.b16 %v4785
    %v5038 = vunpack.c.l.b16 %v4786
    %v5039 = vunpack.c.h.b16 %v4786
    %v5040 = vunpack.c.l.b16 %v4787
    %v5041 = vunpack.c.h.b16 %v4787
    %v5042 = vunpack.c.l.b16 %v4788
    %v5043 = vunpack.c.h.b16 %v4788
    %v5044 = vunpack.c.l.b16 %v4789
    %v5045 = vunpack.c.h.b16 %v4789
    %v5046 = vunpack.c.l.b16 %v4790
    %v5047 = vunpack.c.h.b16 %v4790
    %v5048 = vunpack.c.l.b16 %v4791
    %v5049 = vunpack.c.h.b16 %v4791
    %v5050 = vunpack.c.l.b16 %v4792
    %v5051 = vunpack.c.h.b16 %v4792
    %v5052 = vunpack.c.l.b16 %v4793
    %v5053 = vunpack.c.h.b16 %v4793
    %v5054 = vunpack.c.l.b16 %v4794
    %v5055 = vunpack.c.h.b16 %v4794
    %v5056 = vunpack.c.l.b16 %v4795
    %v5057 = vunpack.c.h.b16 %v4795
    %v5058 = vunpack.c.l.b16 %v4796
    %v5059 = vunpack.c.h.b16 %v4796
    %v5060 = vunpack.c.l.b16 %v4797
    %v5061 = vunpack.c.h.b16 %v4797
    %v5062 = vunpack.c.l.b16 %v4798
    %v5063 = vunpack.c.h.b16 %v4798
    %v5064 = vunpack.c.l.b16 %v4799
    %v5065 = vunpack.c.h.b16 %v4799
    %v5066 = vunpack.c.l.b16 %v4800
    %v5067 = vunpack.c.h.b16 %v4800
    %v5068 = vunpack.c.l.b16 %v4801
    %v5069 = vunpack.c.h.b16 %v4801
    %v5070 = vunpack.c.l.b16 %v4802
    %v5071 = vunpack.c.h.b16 %v4802
    %v5072 = vunpack.c.l.b16 %v4803
    %v5073 = vunpack.c.h.b16 %v4803
    %v5074 = vunpack.c.l.b16 %v4804
    %v5075 = vunpack.c.h.b16 %v4804
    %v5076 = vunpack.c.l.b16 %v4805
    %v5077 = vunpack.c.h.b16 %v4805
    %v5078 = vunpack.c.l.b16 %v4806
    %v5079 = vunpack.c.h.b16 %v4806
    %v5080 = vunpack.c.l.b16 %v4807
    %v5081 = vunpack.c.h.b16 %v4807
    %v5082 = vunpack.c.l.b16 %v4808
    %v5083 = vunpack.c.h.b16 %v4808
    %v5084 = vunpack.c.l.b16 %v4809
    %v5085 = vunpack.c.h.b16 %v4809
    %v5086 = vunpack.c.l.b16 %v4810
    %v5087 = vunpack.c.h.b16 %v4810
    %v5088 = vunpack.c.l.b16 %v4811
    %v5089 = vunpack.c.h.b16 %v4811
    %v5090 = vunpack.c.l.b16 %v4812
    %v5091 = vunpack.c.h.b16 %v4812
    %v5092 = vunpack.c.l.b16 %v4813
    %v5093 = vunpack.c.h.b16 %v4813
    %v5094 = vunpack.c.l.b16 %v4814
    %v5095 = vunpack.c.h.b16 %v4814
    %v5096 = vunpack.c.l.b16 %v4815
    %v5097 = vunpack.c.h.b16 %v4815
    %v5098 = vunpack.c.l.b16 %v4816
    %v5099 = vunpack.c.h.b16 %v4816
    %v5100 = vunpack.c.l.b16 %v4817
    %v5101 = vunpack.c.h.b16 %v4817
    %v5102 = vunpack.c.l.b16 %v4818
    %v5103 = vunpack.c.h.b16 %v4818
    %v5104 = vunpack.c.l.b16 %v4819
    %v5105 = vunpack.c.h.b16 %v4819
    %v5106 = vunpack.c.l.b16 %v4820
    %v5107 = vunpack.c.h.b16 %v4820
    %v5108 = vunpack.c.l.b16 %v4821
    %v5109 = vunpack.c.h.b16 %v4821
    %v5110 = vpack.c.b16 %v4920, %v4918
    %v5111 = vpack.c.b16 %v4921, %v4919
    %v5112 = vpack.c.b16 %v4924, %v4922
    %v5113 = vpack.c.b16 %v4925, %v4923
    %v5114 = vpack.c.b16 %v4928, %v4926
    %v5115 = vpack.c.b16 %v4929, %v4927
    %v5116 = vpack.c.b16 %v4932, %v4930
    %v5117 = vpack.c.b16 %v4933, %v4931
    %v5118 = vpack.c.b16 %v4936, %v4934
    %v5119 = vpack.c.b16 %v4937, %v4935
    %v5120 = vpack.c.b16 %v4940, %v4938
    %v5121 = vpack.c.b16 %v4941, %v4939
    %v5122 = vpack.c.b16 %v4944, %v4942
    %v5123 = vpack.c.b16 %v4945, %v4943
    %v5124 = vpack.c.b16 %v4948, %v4946
    %v5125 = vpack.c.b16 %v4949, %v4947
    %v5126 = vpack.c.b16 %v4952, %v4950
    %v5127 = vpack.c.b16 %v4953, %v4951
    %v5128 = vpack.c.b16 %v4956, %v4954
    %v5129 = vpack.c.b16 %v4957, %v4955
    %v5130 = vpack.c.b16 %v4960, %v4958
    %v5131 = vpack.c.b16 %v4961, %v4959
    %v5132 = vpack.c.b16 %v4964, %v4962
    %v5133 = vpack.c.b16 %v4965, %v4963
    %v5134 = vpack.c.b16 %v4968, %v4966
    %v5135 = vpack.c.b16 %v4969, %v4967
    %v5136 = vpack.c.b16 %v4972, %v4970
    %v5137 = vpack.c.b16 %v4973, %v4971
    %v5138 = vpack.c.b16 %v4976, %v4974
    %v5139 = vpack.c.b16 %v4977, %v4975
    %v5140 = vpack.c.b16 %v4980, %v4978
    %v5141 = vpack.c.b16 %v4981, %v4979
    %v5142 = vpack.c.b16 %v4984, %v4982
    %v5143 = vpack.c.b16 %v4985, %v4983
    %v5144 = vpack.c.b16 %v4988, %v4986
    %v5145 = vpack.c.b16 %v4989, %v4987
    %v5146 = vpack.c.b16 %v4992, %v4990
    %v5147 = vpack.c.b16 %v4993, %v4991
    %v5148 = vpack.c.b16 %v4996, %v4994
    %v5149 = vpack.c.b16 %v4997, %v4995
    %v5150 = vpack.c.b16 %v5000, %v4998
    %v5151 = vpack.c.b16 %v5001, %v4999
    %v5152 = vpack.c.b16 %v5004, %v5002
    %v5153 = vpack.c.b16 %v5005, %v5003
    %v5154 = vpack.c.b16 %v5008, %v5006
    %v5155 = vpack.c.b16 %v5009, %v5007
    %v5156 = vpack.c.b16 %v5012, %v5010
    %v5157 = vpack.c.b16 %v5013, %v5011
    %v5158 = vpack.c.b16 %v5016, %v5014
    %v5159 = vpack.c.b16 %v5017, %v5015
    %v5160 = vpack.c.b16 %v5020, %v5018
    %v5161 = vpack.c.b16 %v5021, %v5019
    %v5162 = vpack.c.b16 %v5024, %v5022
    %v5163 = vpack.c.b16 %v5025, %v5023
    %v5164 = vpack.c.b16 %v5028, %v5026
    %v5165 = vpack.c.b16 %v5029, %v5027
    %v5166 = vpack.c.b16 %v5032, %v5030
    %v5167 = vpack.c.b16 %v5033, %v5031
    %v5168 = vpack.c.b16 %v5036, %v5034
    %v5169 = vpack.c.b16 %v5037, %v5035
    %v5170 = vpack.c.b16 %v5040, %v5038
    %v5171 = vpack.c.b16 %v5041, %v5039
    %v5172 = vpack.c.b16 %v5044, %v5042
    %v5173 = vpack.c.b16 %v5045, %v5043
    %v5174 = vpack.c.b16 %v5048, %v5046
    %v5175 = vpack.c.b16 %v5049, %v5047
    %v5176 = vpack.c.b16 %v5052, %v5050
    %v5177 = vpack.c.b16 %v5053, %v5051
    %v5178 = vpack.c.b16 %v5056, %v5054
    %v5179 = vpack.c.b16 %v5057, %v5055
    %v5180 = vpack.c.b16 %v5060, %v5058
    %v5181 = vpack.c.b16 %v5061, %v5059
    %v5182 = vpack.c.b16 %v5064, %v5062
    %v5183 = vpack.c.b16 %v5065, %v5063
    %v5184 = vpack.c.b16 %v5068, %v5066
    %v5185 = vpack.c.b16 %v5069, %v5067
    %v5186 = vpack.c.b16 %v5072, %v5070
    %v5187 = vpack.c.b16 %v5073, %v5071
    %v5188 = vpack.c.b16 %v5076, %v5074
    %v5189 = vpack.c.b16 %v5077, %v5075
    %v5190 = vpack.c.b16 %v5080, %v5078
    %v5191 = vpack.c.b16 %v5081, %v5079
    %v5192 = vpack.c.b16 %v5084, %v5082
    %v5193 = vpack.c.b16 %v5085, %v5083
    %v5194 = vpack.c.b16 %v5088, %v5086
    %v5195 = vpack.c.b16 %v5089, %v5087
    %v5196 = vpack.c.b16 %v5092, %v5090
    %v5197 = vpack.c.b16 %v5093, %v5091
    %v5198 = vpack.c.b16 %v5096, %v5094
    %v5199 = vpack.c.b16 %v5097, %v5095
    %v5200 = vpack.c.b16 %v5100, %v5098
    %v5201 = vpack.c.b16 %v5101, %v5099
    %v5202 = vpack.c.b16 %v5104, %v5102
    %v5203 = vpack.c.b16 %v5105, %v5103
    %v5204 = vpack.c.b16 %v5108, %v5106
    %v5205 = vpack.c.b16 %v5109, %v5107
    %5302 = vmatpush.bf16.msra.mxu0 %v5124
    %5303 = vmatpush.bf16.msra.mxu0 %v5122
    %5304 = vmatpush.bf16.msra.mxu0 %v5120
    %5305 = vmatpush.bf16.msra.mxu0 %v5118
    %5306 = vmatpush.bf16.msra.mxu0 %v5116
    %5307 = vmatpush.bf16.msra.mxu0 %v5114
    %5308 = vmatpush.bf16.msra.mxu0 %v5112
    %5309 = vmatpush.bf16.msra.mxu0 %v5110
    %5310 = vmatmul.bf16.gmra.mxu0 %v4674
    %v5311 = vpop.f32.mrf.mxu0
    %v5312 = vadd.f32 0.0, %v5311
    %v5313 = vpop.f32.mrf.mxu0
    %v5314 = vadd.f32 0.0, %v5313
    %5315 = vmatmul.bf16.gmra.mxu0 %v4680
    %v5316 = vpop.f32.mrf.mxu0
    %v5317 = vadd.f32 0.0, %v5316
    %v5318 = vpop.f32.mrf.mxu0
    %v5319 = vadd.f32 0.0, %v5318
    %5320 = vmatmul.bf16.gmra.mxu0 %v4686
    %v5321 = vpop.f32.mrf.mxu0
    %v5322 = vadd.f32 0.0, %v5321
    %v5323 = vpop.f32.mrf.mxu0
    %v5324 = vadd.f32 0.0, %v5323
    %5325 = vmatmul.bf16.gmra.mxu0 %v4692
    %v5326 = vpop.f32.mrf.mxu0
    %v5327 = vadd.f32 0.0, %v5326
    %v5328 = vpop.f32.mrf.mxu0
    %v5329 = vadd.f32 0.0, %v5328
    %5330 = vmatmul.bf16.gmra.mxu0 %v4698
    %v5331 = vpop.f32.mrf.mxu0
    %v5332 = vadd.f32 0.0, %v5331
    %v5333 = vpop.f32.mrf.mxu0
    %v5334 = vadd.f32 0.0, %v5333
    %5335 = vmatmul.bf16.gmra.mxu0 %v4704
    %v5336 = vpop.f32.mrf.mxu0
    %v5337 = vadd.f32 0.0, %v5336
    %v5338 = vpop.f32.mrf.mxu0
    %v5339 = vadd.f32 0.0, %v5338
    %5340 = vmatmul.bf16.gmra.mxu0 %v4710
    %v5341 = vpop.f32.mrf.mxu0
    %v5342 = vadd.f32 0.0, %v5341
    %v5343 = vpop.f32.mrf.mxu0
    %v5344 = vadd.f32 0.0, %v5343
    %5345 = vmatmul.bf16.gmra.mxu0 %v4716
    %v5346 = vpop.f32.mrf.mxu0
    %v5347 = vadd.f32 0.0, %v5346
    %v5348 = vpop.f32.mrf.mxu0
    %v5349 = vadd.f32 0.0, %v5348
    %5350 = vdwg.mxu0
    %5351 = vmatpush.bf16.msra.mxu0 %v5140
    %5352 = vmatpush.bf16.msra.mxu0 %v5138
    %5353 = vmatpush.bf16.msra.mxu0 %v5136
    %5354 = vmatpush.bf16.msra.mxu0 %v5134
    %5355 = vmatpush.bf16.msra.mxu0 %v5132
    %5356 = vmatpush.bf16.msra.mxu0 %v5130
    %5357 = vmatpush.bf16.msra.mxu0 %v5128
    %5358 = vmatpush.bf16.msra.mxu0 %v5126
    %5359 = vmatmul.bf16.gmra.mxu0 %v4675
    %v5360 = vpop.f32.mrf.mxu0
    %v5361 = vadd.f32 %v5312, %v5360
    %v5362 = vpop.f32.mrf.mxu0
    %v5363 = vadd.f32 %v5314, %v5362
    %5364 = vmatmul.bf16.gmra.mxu0 %v4681
    %v5365 = vpop.f32.mrf.mxu0
    %v5366 = vadd.f32 %v5317, %v5365
    %v5367 = vpop.f32.mrf.mxu0
    %v5368 = vadd.f32 %v5319, %v5367
    %5369 = vmatmul.bf16.gmra.mxu0 %v4687
    %v5370 = vpop.f32.mrf.mxu0
    %v5371 = vadd.f32 %v5322, %v5370
    %v5372 = vpop.f32.mrf.mxu0
    %v5373 = vadd.f32 %v5324, %v5372
    %5374 = vmatmul.bf16.gmra.mxu0 %v4693
    %v5375 = vpop.f32.mrf.mxu0
    %v5376 = vadd.f32 %v5327, %v5375
    %v5377 = vpop.f32.mrf.mxu0
    %v5378 = vadd.f32 %v5329, %v5377
    %5379 = vmatmul.bf16.gmra.mxu0 %v4699
    %v5380 = vpop.f32.mrf.mxu0
    %v5381 = vadd.f32 %v5332, %v5380
    %v5382 = vpop.f32.mrf.mxu0
    %v5383 = vadd.f32 %v5334, %v5382
    %5384 = vmatmul.bf16.gmra.mxu0 %v4705
    %v5385 = vpop.f32.mrf.mxu0
    %v5386 = vadd.f32 %v5337, %v5385
    %v5387 = vpop.f32.mrf.mxu0
    %v5388 = vadd.f32 %v5339, %v5387
    %5389 = vmatmul.bf16.gmra.mxu0 %v4711
    %v5390 = vpop.f32.mrf.mxu0
    %v5391 = vadd.f32 %v5342, %v5390
    %v5392 = vpop.f32.mrf.mxu0
    %v5393 = vadd.f32 %v5344, %v5392
    %5394 = vmatmul.bf16.gmra.mxu0 %v4717
    %v5395 = vpop.f32.mrf.mxu0
    %v5396 = vadd.f32 %v5347, %v5395
    %v5397 = vpop.f32.mrf.mxu0
    %v5398 = vadd.f32 %v5349, %v5397
    %5399 = vdwg.mxu0
    %5400 = vmatpush.bf16.msra.mxu0 %v5156
    %5401 = vmatpush.bf16.msra.mxu0 %v5154
    %5402 = vmatpush.bf16.msra.mxu0 %v5152
    %5403 = vmatpush.bf16.msra.mxu0 %v5150
    %5404 = vmatpush.bf16.msra.mxu0 %v5148
    %5405 = vmatpush.bf16.msra.mxu0 %v5146
    %5406 = vmatpush.bf16.msra.mxu0 %v5144
    %5407 = vmatpush.bf16.msra.mxu0 %v5142
    %5408 = vmatmul.bf16.gmra.mxu0 %v4676
    %v5409 = vpop.f32.mrf.mxu0
    %v5410 = vadd.f32 %v5361, %v5409
    %v5411 = vpop.f32.mrf.mxu0
    %v5412 = vadd.f32 %v5363, %v5411
    %5413 = vmatmul.bf16.gmra.mxu0 %v4682
    %v5414 = vpop.f32.mrf.mxu0
    %v5415 = vadd.f32 %v5366, %v5414
    %v5416 = vpop.f32.mrf.mxu0
    %v5417 = vadd.f32 %v5368, %v5416
    %5418 = vmatmul.bf16.gmra.mxu0 %v4688
    %v5419 = vpop.f32.mrf.mxu0
    %v5420 = vadd.f32 %v5371, %v5419
    %v5421 = vpop.f32.mrf.mxu0
    %v5422 = vadd.f32 %v5373, %v5421
    %5423 = vmatmul.bf16.gmra.mxu0 %v4694
    %v5424 = vpop.f32.mrf.mxu0
    %v5425 = vadd.f32 %v5376, %v5424
    %v5426 = vpop.f32.mrf.mxu0
    %v5427 = vadd.f32 %v5378, %v5426
    %5428 = vmatmul.bf16.gmra.mxu0 %v4700
    %v5429 = vpop.f32.mrf.mxu0
    %v5430 = vadd.f32 %v5381, %v5429
    %v5431 = vpop.f32.mrf.mxu0
    %v5432 = vadd.f32 %v5383, %v5431
    %5433 = vmatmul.bf16.gmra.mxu0 %v4706
    %v5434 = vpop.f32.mrf.mxu0
    %v5435 = vadd.f32 %v5386, %v5434
    %v5436 = vpop.f32.mrf.mxu0
    %v5437 = vadd.f32 %v5388, %v5436
    %5438 = vmatmul.bf16.gmra.mxu0 %v4712
    %v5439 = vpop.f32.mrf.mxu0
    %v5440 = vadd.f32 %v5391, %v5439
    %v5441 = vpop.f32.mrf.mxu0
    %v5442 = vadd.f32 %v5393, %v5441
    %5443 = vmatmul.bf16.gmra.mxu0 %v4718
    %v5444 = vpop.f32.mrf.mxu0
    %v5445 = vadd.f32 %v5396, %v5444
    %v5446 = vpop.f32.mrf.mxu0
    %v5447 = vadd.f32 %v5398, %v5446
    %5448 = vdwg.mxu0
    %5449 = vmatpush.bf16.msra.mxu0 %v5172
    %5450 = vmatpush.bf16.msra.mxu0 %v5170
    %5451 = vmatpush.bf16.msra.mxu0 %v5168
    %5452 = vmatpush.bf16.msra.mxu0 %v5166
    %5453 = vmatpush.bf16.msra.mxu0 %v5164
    %5454 = vmatpush.bf16.msra.mxu0 %v5162
    %5455 = vmatpush.bf16.msra.mxu0 %v5160
    %5456 = vmatpush.bf16.msra.mxu0 %v5158
    %5457 = vmatmul.bf16.gmra.mxu0 %v4677
    %v5458 = vpop.f32.mrf.mxu0
    %v5459 = vadd.f32 %v5410, %v5458
    %v5460 = vpop.f32.mrf.mxu0
    %v5461 = vadd.f32 %v5412, %v5460
    %5462 = vmatmul.bf16.gmra.mxu0 %v4683
    %v5463 = vpop.f32.mrf.mxu0
    %v5464 = vadd.f32 %v5415, %v5463
    %v5465 = vpop.f32.mrf.mxu0
    %v5466 = vadd.f32 %v5417, %v5465
    %5467 = vmatmul.bf16.gmra.mxu0 %v4689
    %v5468 = vpop.f32.mrf.mxu0
    %v5469 = vadd.f32 %v5420, %v5468
    %v5470 = vpop.f32.mrf.mxu0
    %v5471 = vadd.f32 %v5422, %v5470
    %5472 = vmatmul.bf16.gmra.mxu0 %v4695
    %v5473 = vpop.f32.mrf.mxu0
    %v5474 = vadd.f32 %v5425, %v5473
    %v5475 = vpop.f32.mrf.mxu0
    %v5476 = vadd.f32 %v5427, %v5475
    %5477 = vmatmul.bf16.gmra.mxu0 %v4701
    %v5478 = vpop.f32.mrf.mxu0
    %v5479 = vadd.f32 %v5430, %v5478
    %v5480 = vpop.f32.mrf.mxu0
    %v5481 = vadd.f32 %v5432, %v5480
    %5482 = vmatmul.bf16.gmra.mxu0 %v4707
    %v5483 = vpop.f32.mrf.mxu0
    %v5484 = vadd.f32 %v5435, %v5483
    %v5485 = vpop.f32.mrf.mxu0
    %v5486 = vadd.f32 %v5437, %v5485
    %5487 = vmatmul.bf16.gmra.mxu0 %v4713
    %v5488 = vpop.f32.mrf.mxu0
    %v5489 = vadd.f32 %v5440, %v5488
    %v5490 = vpop.f32.mrf.mxu0
    %v5491 = vadd.f32 %v5442, %v5490
    %5492 = vmatmul.bf16.gmra.mxu0 %v4719
    %v5493 = vpop.f32.mrf.mxu0
    %v5494 = vadd.f32 %v5445, %v5493
    %v5495 = vpop.f32.mrf.mxu0
    %v5496 = vadd.f32 %v5447, %v5495
    %5497 = vdwg.mxu0
    %5498 = vmatpush.bf16.msra.mxu0 %v5188
    %5499 = vmatpush.bf16.msra.mxu0 %v5186
    %5500 = vmatpush.bf16.msra.mxu0 %v5184
    %5501 = vmatpush.bf16.msra.mxu0 %v5182
    %5502 = vmatpush.bf16.msra.mxu0 %v5180
    %5503 = vmatpush.bf16.msra.mxu0 %v5178
    %5504 = vmatpush.bf16.msra.mxu0 %v5176
    %5505 = vmatpush.bf16.msra.mxu0 %v5174
    %5506 = vmatmul.bf16.gmra.mxu0 %v4678
    %v5507 = vpop.f32.mrf.mxu0
    %v5508 = vadd.f32 %v5459, %v5507
    %v5509 = vpop.f32.mrf.mxu0
    %v5510 = vadd.f32 %v5461, %v5509
    %5511 = vmatmul.bf16.gmra.mxu0 %v4684
    %v5512 = vpop.f32.mrf.mxu0
    %v5513 = vadd.f32 %v5464, %v5512
    %v5514 = vpop.f32.mrf.mxu0
    %v5515 = vadd.f32 %v5466, %v5514
    %5516 = vmatmul.bf16.gmra.mxu0 %v4690
    %v5517 = vpop.f32.mrf.mxu0
    %v5518 = vadd.f32 %v5469, %v5517
    %v5519 = vpop.f32.mrf.mxu0
    %v5520 = vadd.f32 %v5471, %v5519
    %5521 = vmatmul.bf16.gmra.mxu0 %v4696
    %v5522 = vpop.f32.mrf.mxu0
    %v5523 = vadd.f32 %v5474, %v5522
    %v5524 = vpop.f32.mrf.mxu0
    %v5525 = vadd.f32 %v5476, %v5524
    %5526 = vmatmul.bf16.gmra.mxu0 %v4702
    %v5527 = vpop.f32.mrf.mxu0
    %v5528 = vadd.f32 %v5479, %v5527
    %v5529 = vpop.f32.mrf.mxu0
    %v5530 = vadd.f32 %v5481, %v5529
    %5531 = vmatmul.bf16.gmra.mxu0 %v4708
    %v5532 = vpop.f32.mrf.mxu0
    %v5533 = vadd.f32 %v5484, %v5532
    %v5534 = vpop.f32.mrf.mxu0
    %v5535 = vadd.f32 %v5486, %v5534
    %5536 = vmatmul.bf16.gmra.mxu0 %v4714
    %v5537 = vpop.f32.mrf.mxu0
    %v5538 = vadd.f32 %v5489, %v5537
    %v5539 = vpop.f32.mrf.mxu0
    %v5540 = vadd.f32 %v5491, %v5539
    %5541 = vmatmul.bf16.gmra.mxu0 %v4720
    %v5542 = vpop.f32.mrf.mxu0
    %v5543 = vadd.f32 %v5494, %v5542
    %v5544 = vpop.f32.mrf.mxu0
    %v5545 = vadd.f32 %v5496, %v5544
    %5546 = vdwg.mxu0
    %5547 = vmatpush.bf16.msra.mxu0 %v5204
    %5548 = vmatpush.bf16.msra.mxu0 %v5202
    %5549 = vmatpush.bf16.msra.mxu0 %v5200
    %5550 = vmatpush.bf16.msra.mxu0 %v5198
    %5551 = vmatpush.bf16.msra.mxu0 %v5196
    %5552 = vmatpush.bf16.msra.mxu0 %v5194
    %5553 = vmatpush.bf16.msra.mxu0 %v5192
    %5554 = vmatpush.bf16.msra.mxu0 %v5190
    %5555 = vmatmul.bf16.gmra.mxu0 %v4679
    %v5556 = vpop.f32.mrf.mxu0
    %v5557 = vadd.f32 %v5508, %v5556
    %v5558 = vpop.f32.mrf.mxu0
    %v5559 = vadd.f32 %v5510, %v5558
    %5560 = vmatmul.bf16.gmra.mxu0 %v4685
    %v5561 = vpop.f32.mrf.mxu0
    %v5562 = vadd.f32 %v5513, %v5561
    %v5563 = vpop.f32.mrf.mxu0
    %v5564 = vadd.f32 %v5515, %v5563
    %5565 = vmatmul.bf16.gmra.mxu0 %v4691
    %v5566 = vpop.f32.mrf.mxu0
    %v5567 = vadd.f32 %v5518, %v5566
    %v5568 = vpop.f32.mrf.mxu0
    %v5569 = vadd.f32 %v5520, %v5568
    %5570 = vmatmul.bf16.gmra.mxu0 %v4697
    %v5571 = vpop.f32.mrf.mxu0
    %v5572 = vadd.f32 %v5523, %v5571
    %v5573 = vpop.f32.mrf.mxu0
    %v5574 = vadd.f32 %v5525, %v5573
    %5575 = vmatmul.bf16.gmra.mxu0 %v4703
    %v5576 = vpop.f32.mrf.mxu0
    %v5577 = vadd.f32 %v5528, %v5576
    %v5578 = vpop.f32.mrf.mxu0
    %v5579 = vadd.f32 %v5530, %v5578
    %5580 = vmatmul.bf16.gmra.mxu0 %v4709
    %v5581 = vpop.f32.mrf.mxu0
    %v5582 = vadd.f32 %v5533, %v5581
    %v5583 = vpop.f32.mrf.mxu0
    %v5584 = vadd.f32 %v5535, %v5583
    %5585 = vmatmul.bf16.gmra.mxu0 %v4715
    %v5586 = vpop.f32.mrf.mxu0
    %v5587 = vadd.f32 %v5538, %v5586
    %v5588 = vpop.f32.mrf.mxu0
    %v5589 = vadd.f32 %v5540, %v5588
    %5590 = vmatmul.bf16.gmra.mxu0 %v4721
    %v5591 = vpop.f32.mrf.mxu0
    %v5592 = vadd.f32 %v5543, %v5591
    %v5593 = vpop.f32.mrf.mxu0
    %v5594 = vadd.f32 %v5545, %v5593
    %5595 = vdwg.mxu0
    %5596 = vmatpush.bf16.msra.mxu0 %v5125
    %5597 = vmatpush.bf16.msra.mxu0 %v5123
    %5598 = vmatpush.bf16.msra.mxu0 %v5121
    %5599 = vmatpush.bf16.msra.mxu0 %v5119
    %5600 = vmatpush.bf16.msra.mxu0 %v5117
    %5601 = vmatpush.bf16.msra.mxu0 %v5115
    %5602 = vmatpush.bf16.msra.mxu0 %v5113
    %5603 = vmatpush.bf16.msra.mxu0 %v5111
    %5604 = vmatmul.bf16.gmra.mxu0 %v4674
    %v5605 = vpop.f32.mrf.mxu0
    %v5606 = vadd.f32 0.0, %v5605
    %v5607 = vpop.f32.mrf.mxu0
    %v5608 = vadd.f32 0.0, %v5607
    %5609 = vmatmul.bf16.gmra.mxu0 %v4680
    %v5610 = vpop.f32.mrf.mxu0
    %v5611 = vadd.f32 0.0, %v5610
    %v5612 = vpop.f32.mrf.mxu0
    %v5613 = vadd.f32 0.0, %v5612
    %5614 = vmatmul.bf16.gmra.mxu0 %v4686
    %v5615 = vpop.f32.mrf.mxu0
    %v5616 = vadd.f32 0.0, %v5615
    %v5617 = vpop.f32.mrf.mxu0
    %v5618 = vadd.f32 0.0, %v5617
    %5619 = vmatmul.bf16.gmra.mxu0 %v4692
    %v5620 = vpop.f32.mrf.mxu0
    %v5621 = vadd.f32 0.0, %v5620
    %v5622 = vpop.f32.mrf.mxu0
    %v5623 = vadd.f32 0.0, %v5622
    %5624 = vmatmul.bf16.gmra.mxu0 %v4698
    %v5625 = vpop.f32.mrf.mxu0
    %v5626 = vadd.f32 0.0, %v5625
    %v5627 = vpop.f32.mrf.mxu0
    %v5628 = vadd.f32 0.0, %v5627
    %5629 = vmatmul.bf16.gmra.mxu0 %v4704
    %v5630 = vpop.f32.mrf.mxu0
    %v5631 = vadd.f32 0.0, %v5630
    %v5632 = vpop.f32.mrf.mxu0
    %v5633 = vadd.f32 0.0, %v5632
    %5634 = vmatmul.bf16.gmra.mxu0 %v4710
    %v5635 = vpop.f32.mrf.mxu0
    %v5636 = vadd.f32 0.0, %v5635
    %v5637 = vpop.f32.mrf.mxu0
    %v5638 = vadd.f32 0.0, %v5637
    %5639 = vmatmul.bf16.gmra.mxu0 %v4716
    %v5640 = vpop.f32.mrf.mxu0
    %v5641 = vadd.f32 0.0, %v5640
    %v5642 = vpop.f32.mrf.mxu0
    %v5643 = vadd.f32 0.0, %v5642
    %5644 = vdwg.mxu0
    %5645 = vmatpush.bf16.msra.mxu0 %v5141
    %5646 = vmatpush.bf16.msra.mxu0 %v5139
    %5647 = vmatpush.bf16.msra.mxu0 %v5137
    %5648 = vmatpush.bf16.msra.mxu0 %v5135
    %5649 = vmatpush.bf16.msra.mxu0 %v5133
    %5650 = vmatpush.bf16.msra.mxu0 %v5131
    %5651 = vmatpush.bf16.msra.mxu0 %v5129
    %5652 = vmatpush.bf16.msra.mxu0 %v5127
    %5653 = vmatmul.bf16.gmra.mxu0 %v4675
    %v5654 = vpop.f32.mrf.mxu0
    %v5655 = vadd.f32 %v5606, %v5654
    %v5656 = vpop.f32.mrf.mxu0
    %v5657 = vadd.f32 %v5608, %v5656
    %5658 = vmatmul.bf16.gmra.mxu0 %v4681
    %v5659 = vpop.f32.mrf.mxu0
    %v5660 = vadd.f32 %v5611, %v5659
    %v5661 = vpop.f32.mrf.mxu0
    %v5662 = vadd.f32 %v5613, %v5661
    %5663 = vmatmul.bf16.gmra.mxu0 %v4687
    %v5664 = vpop.f32.mrf.mxu0
    %v5665 = vadd.f32 %v5616, %v5664
    %v5666 = vpop.f32.mrf.mxu0
    %v5667 = vadd.f32 %v5618, %v5666
    %5668 = vmatmul.bf16.gmra.mxu0 %v4693
    %v5669 = vpop.f32.mrf.mxu0
    %v5670 = vadd.f32 %v5621, %v5669
    %v5671 = vpop.f32.mrf.mxu0
    %v5672 = vadd.f32 %v5623, %v5671
    %5673 = vmatmul.bf16.gmra.mxu0 %v4699
    %v5674 = vpop.f32.mrf.mxu0
    %v5675 = vadd.f32 %v5626, %v5674
    %v5676 = vpop.f32.mrf.mxu0
    %v5677 = vadd.f32 %v5628, %v5676
    %5678 = vmatmul.bf16.gmra.mxu0 %v4705
    %v5679 = vpop.f32.mrf.mxu0
    %v5680 = vadd.f32 %v5631, %v5679
    %v5681 = vpop.f32.mrf.mxu0
    %v5682 = vadd.f32 %v5633, %v5681
    %5683 = vmatmul.bf16.gmra.mxu0 %v4711
    %v5684 = vpop.f32.mrf.mxu0
    %v5685 = vadd.f32 %v5636, %v5684
    %v5686 = vpop.f32.mrf.mxu0
    %v5687 = vadd.f32 %v5638, %v5686
    %5688 = vmatmul.bf16.gmra.mxu0 %v4717
    %v5689 = vpop.f32.mrf.mxu0
    %v5690 = vadd.f32 %v5641, %v5689
    %v5691 = vpop.f32.mrf.mxu0
    %v5692 = vadd.f32 %v5643, %v5691
    %5693 = vdwg.mxu0
    %5694 = vmatpush.bf16.msra.mxu0 %v5157
    %5695 = vmatpush.bf16.msra.mxu0 %v5155
    %5696 = vmatpush.bf16.msra.mxu0 %v5153
    %5697 = vmatpush.bf16.msra.mxu0 %v5151
    %5698 = vmatpush.bf16.msra.mxu0 %v5149
    %5699 = vmatpush.bf16.msra.mxu0 %v5147
    %5700 = vmatpush.bf16.msra.mxu0 %v5145
    %5701 = vmatpush.bf16.msra.mxu0 %v5143
    %5702 = vmatmul.bf16.gmra.mxu0 %v4676
    %v5703 = vpop.f32.mrf.mxu0
    %v5704 = vadd.f32 %v5655, %v5703
    %v5705 = vpop.f32.mrf.mxu0
    %v5706 = vadd.f32 %v5657, %v5705
    %5707 = vmatmul.bf16.gmra.mxu0 %v4682
    %v5708 = vpop.f32.mrf.mxu0
    %v5709 = vadd.f32 %v5660, %v5708
    %v5710 = vpop.f32.mrf.mxu0
    %v5711 = vadd.f32 %v5662, %v5710
    %5712 = vmatmul.bf16.gmra.mxu0 %v4688
    %v5713 = vpop.f32.mrf.mxu0
    %v5714 = vadd.f32 %v5665, %v5713
    %v5715 = vpop.f32.mrf.mxu0
    %v5716 = vadd.f32 %v5667, %v5715
    %5717 = vmatmul.bf16.gmra.mxu0 %v4694
    %v5718 = vpop.f32.mrf.mxu0
    %v5719 = vadd.f32 %v5670, %v5718
    %v5720 = vpop.f32.mrf.mxu0
    %v5721 = vadd.f32 %v5672, %v5720
    %5722 = vmatmul.bf16.gmra.mxu0 %v4700
    %v5723 = vpop.f32.mrf.mxu0
    %v5724 = vadd.f32 %v5675, %v5723
    %v5725 = vpop.f32.mrf.mxu0
    %v5726 = vadd.f32 %v5677, %v5725
    %5727 = vmatmul.bf16.gmra.mxu0 %v4706
    %v5728 = vpop.f32.mrf.mxu0
    %v5729 = vadd.f32 %v5680, %v5728
    %v5730 = vpop.f32.mrf.mxu0
    %v5731 = vadd.f32 %v5682, %v5730
    %5732 = vmatmul.bf16.gmra.mxu0 %v4712
    %v5733 = vpop.f32.mrf.mxu0
    %v5734 = vadd.f32 %v5685, %v5733
    %v5735 = vpop.f32.mrf.mxu0
    %v5736 = vadd.f32 %v5687, %v5735
    %5737 = vmatmul.bf16.gmra.mxu0 %v4718
    %v5738 = vpop.f32.mrf.mxu0
    %v5739 = vadd.f32 %v5690, %v5738
    %v5740 = vpop.f32.mrf.mxu0
    %v5741 = vadd.f32 %v5692, %v5740
    %5742 = vdwg.mxu0
    %5743 = vmatpush.bf16.msra.mxu0 %v5173
    %5744 = vmatpush.bf16.msra.mxu0 %v5171
    %5745 = vmatpush.bf16.msra.mxu0 %v5169
    %5746 = vmatpush.bf16.msra.mxu0 %v5167
    %5747 = vmatpush.bf16.msra.mxu0 %v5165
    %5748 = vmatpush.bf16.msra.mxu0 %v5163
    %5749 = vmatpush.bf16.msra.mxu0 %v5161
    %5750 = vmatpush.bf16.msra.mxu0 %v5159
    %5751 = vmatmul.bf16.gmra.mxu0 %v4677
    %v5752 = vpop.f32.mrf.mxu0
    %v5753 = vadd.f32 %v5704, %v5752
    %v5754 = vpop.f32.mrf.mxu0
    %v5755 = vadd.f32 %v5706, %v5754
    %5756 = vmatmul.bf16.gmra.mxu0 %v4683
    %v5757 = vpop.f32.mrf.mxu0
    %v5758 = vadd.f32 %v5709, %v5757
    %v5759 = vpop.f32.mrf.mxu0
    %v5760 = vadd.f32 %v5711, %v5759
    %5761 = vmatmul.bf16.gmra.mxu0 %v4689
    %v5762 = vpop.f32.mrf.mxu0
    %v5763 = vadd.f32 %v5714, %v5762
    %v5764 = vpop.f32.mrf.mxu0
    %v5765 = vadd.f32 %v5716, %v5764
    %5766 = vmatmul.bf16.gmra.mxu0 %v4695
    %v5767 = vpop.f32.mrf.mxu0
    %v5768 = vadd.f32 %v5719, %v5767
    %v5769 = vpop.f32.mrf.mxu0
    %v5770 = vadd.f32 %v5721, %v5769
    %5771 = vmatmul.bf16.gmra.mxu0 %v4701
    %v5772 = vpop.f32.mrf.mxu0
    %v5773 = vadd.f32 %v5724, %v5772
    %v5774 = vpop.f32.mrf.mxu0
    %v5775 = vadd.f32 %v5726, %v5774
    %5776 = vmatmul.bf16.gmra.mxu0 %v4707
    %v5777 = vpop.f32.mrf.mxu0
    %v5778 = vadd.f32 %v5729, %v5777
    %v5779 = vpop.f32.mrf.mxu0
    %v5780 = vadd.f32 %v5731, %v5779
    %5781 = vmatmul.bf16.gmra.mxu0 %v4713
    %v5782 = vpop.f32.mrf.mxu0
    %v5783 = vadd.f32 %v5734, %v5782
    %v5784 = vpop.f32.mrf.mxu0
    %v5785 = vadd.f32 %v5736, %v5784
    %5786 = vmatmul.bf16.gmra.mxu0 %v4719
    %v5787 = vpop.f32.mrf.mxu0
    %v5788 = vadd.f32 %v5739, %v5787
    %v5789 = vpop.f32.mrf.mxu0
    %v5790 = vadd.f32 %v5741, %v5789
    %5791 = vdwg.mxu0
    %5792 = vmatpush.bf16.msra.mxu0 %v5189
    %5793 = vmatpush.bf16.msra.mxu0 %v5187
    %5794 = vmatpush.bf16.msra.mxu0 %v5185
    %5795 = vmatpush.bf16.msra.mxu0 %v5183
    %5796 = vmatpush.bf16.msra.mxu0 %v5181
    %5797 = vmatpush.bf16.msra.mxu0 %v5179
    %5798 = vmatpush.bf16.msra.mxu0 %v5177
    %5799 = vmatpush.bf16.msra.mxu0 %v5175
    %5800 = vmatmul.bf16.gmra.mxu0 %v4678
    %v5801 = vpop.f32.mrf.mxu0
    %v5802 = vadd.f32 %v5753, %v5801
    %v5803 = vpop.f32.mrf.mxu0
    %v5804 = vadd.f32 %v5755, %v5803
    %5805 = vmatmul.bf16.gmra.mxu0 %v4684
    %v5806 = vpop.f32.mrf.mxu0
    %v5807 = vadd.f32 %v5758, %v5806
    %v5808 = vpop.f32.mrf.mxu0
    %v5809 = vadd.f32 %v5760, %v5808
    %5810 = vmatmul.bf16.gmra.mxu0 %v4690
    %v5811 = vpop.f32.mrf.mxu0
    %v5812 = vadd.f32 %v5763, %v5811
    %v5813 = vpop.f32.mrf.mxu0
    %v5814 = vadd.f32 %v5765, %v5813
    %5815 = vmatmul.bf16.gmra.mxu0 %v4696
    %v5816 = vpop.f32.mrf.mxu0
    %v5817 = vadd.f32 %v5768, %v5816
    %v5818 = vpop.f32.mrf.mxu0
    %v5819 = vadd.f32 %v5770, %v5818
    %5820 = vmatmul.bf16.gmra.mxu0 %v4702
    %v5821 = vpop.f32.mrf.mxu0
    %v5822 = vadd.f32 %v5773, %v5821
    %v5823 = vpop.f32.mrf.mxu0
    %v5824 = vadd.f32 %v5775, %v5823
    %5825 = vmatmul.bf16.gmra.mxu0 %v4708
    %v5826 = vpop.f32.mrf.mxu0
    %v5827 = vadd.f32 %v5778, %v5826
    %v5828 = vpop.f32.mrf.mxu0
    %v5829 = vadd.f32 %v5780, %v5828
    %5830 = vmatmul.bf16.gmra.mxu0 %v4714
    %v5831 = vpop.f32.mrf.mxu0
    %v5832 = vadd.f32 %v5783, %v5831
    %v5833 = vpop.f32.mrf.mxu0
    %v5834 = vadd.f32 %v5785, %v5833
    %5835 = vmatmul.bf16.gmra.mxu0 %v4720
    %v5836 = vpop.f32.mrf.mxu0
    %v5837 = vadd.f32 %v5788, %v5836
    %v5838 = vpop.f32.mrf.mxu0
    %v5839 = vadd.f32 %v5790, %v5838
    %5840 = vdwg.mxu0
    %5841 = vmatpush.bf16.msra.mxu0 %v5205
    %5842 = vmatpush.bf16.msra.mxu0 %v5203
    %5843 = vmatpush.bf16.msra.mxu0 %v5201
    %5844 = vmatpush.bf16.msra.mxu0 %v5199
    %5845 = vmatpush.bf16.msra.mxu0 %v5197
    %5846 = vmatpush.bf16.msra.mxu0 %v5195
    %5847 = vmatpush.bf16.msra.mxu0 %v5193
    %5848 = vmatpush.bf16.msra.mxu0 %v5191
    %5849 = vmatmul.bf16.gmra.mxu0 %v4679
    %v5850 = vpop.f32.mrf.mxu0
    %v5851 = vadd.f32 %v5802, %v5850
    %v5852 = vpop.f32.mrf.mxu0
    %v5853 = vadd.f32 %v5804, %v5852
    %5854 = vmatmul.bf16.gmra.mxu0 %v4685
    %v5855 = vpop.f32.mrf.mxu0
    %v5856 = vadd.f32 %v5807, %v5855
    %v5857 = vpop.f32.mrf.mxu0
    %v5858 = vadd.f32 %v5809, %v5857
    %5859 = vmatmul.bf16.gmra.mxu0 %v4691
    %v5860 = vpop.f32.mrf.mxu0
    %v5861 = vadd.f32 %v5812, %v5860
    %v5862 = vpop.f32.mrf.mxu0
    %v5863 = vadd.f32 %v5814, %v5862
    %5864 = vmatmul.bf16.gmra.mxu0 %v4697
    %v5865 = vpop.f32.mrf.mxu0
    %v5866 = vadd.f32 %v5817, %v5865
    %v5867 = vpop.f32.mrf.mxu0
    %v5868 = vadd.f32 %v5819, %v5867
    %5869 = vmatmul.bf16.gmra.mxu0 %v4703
    %v5870 = vpop.f32.mrf.mxu0
    %v5871 = vadd.f32 %v5822, %v5870
    %v5872 = vpop.f32.mrf.mxu0
    %v5873 = vadd.f32 %v5824, %v5872
    %5874 = vmatmul.bf16.gmra.mxu0 %v4709
    %v5875 = vpop.f32.mrf.mxu0
    %v5876 = vadd.f32 %v5827, %v5875
    %v5877 = vpop.f32.mrf.mxu0
    %v5878 = vadd.f32 %v5829, %v5877
    %5879 = vmatmul.bf16.gmra.mxu0 %v4715
    %v5880 = vpop.f32.mrf.mxu0
    %v5881 = vadd.f32 %v5832, %v5880
    %v5882 = vpop.f32.mrf.mxu0
    %v5883 = vadd.f32 %v5834, %v5882
    %5884 = vmatmul.bf16.gmra.mxu0 %v4721
    %v5885 = vpop.f32.mrf.mxu0
    %v5886 = vadd.f32 %v5837, %v5885
    %v5887 = vpop.f32.mrf.mxu0
    %v5888 = vadd.f32 %v5839, %v5887
    %5889 = vdwg.mxu0
    %v5890 = vld [vmem:[#allocation16 + $0xf0] sm:$0xf]
    %v5891 = vld [vmem:[#allocation16 + $0xf8] sm:$0xf]
    %v5892 = vadd.f32 %v5557, %v5559
    %v5893 = vadd.f32 %v5892, %v5562
    %v5894 = vadd.f32 %v5893, %v5564
    %v5895 = vadd.f32 %v5894, %v5567
    %v5896 = vadd.f32 %v5895, %v5569
    %v5897 = vadd.f32 %v5896, %v5572
    %v5898 = vadd.f32 %v5897, %v5574
    %v5899 = vadd.f32 %v5898, %v5577
    %v5900 = vadd.f32 %v5899, %v5579
    %v5901 = vadd.f32 %v5900, %v5582
    %v5902 = vadd.f32 %v5901, %v5584
    %v5903 = vadd.f32 %v5902, %v5587
    %v5904 = vadd.f32 %v5903, %v5589
    %v5905 = vadd.f32 %v5904, %v5592
    %v5906 = vadd.f32 %v5905, %v5594
    %v5907 = vrot.slane %v5906, 4
    %v5908 = vadd.f32 %v5906, %v5907
    %v5909 = vrot.slane %v5908, 2
    %v5910 = vadd.f32 %v5908, %v5909
    %v5911 = vrot.slane %v5910, 1
    %v5912 = vadd.f32 %v5910, %v5911
    %v5913 = vadd.f32 %v5851, %v5853
    %v5914 = vadd.f32 %v5913, %v5856
    %v5915 = vadd.f32 %v5914, %v5858
    %v5916 = vadd.f32 %v5915, %v5861
    %v5917 = vadd.f32 %v5916, %v5863
    %v5918 = vadd.f32 %v5917, %v5866
    %v5919 = vadd.f32 %v5918, %v5868
    %v5920 = vadd.f32 %v5919, %v5871
    %v5921 = vadd.f32 %v5920, %v5873
    %v5922 = vadd.f32 %v5921, %v5876
    %v5923 = vadd.f32 %v5922, %v5878
    %v5924 = vadd.f32 %v5923, %v5881
    %v5925 = vadd.f32 %v5924, %v5883
    %v5926 = vadd.f32 %v5925, %v5886
    %v5927 = vadd.f32 %v5926, %v5888
    %v5928 = vrot.slane %v5927, 4
    %v5929 = vadd.f32 %v5927, %v5928
    %v5930 = vrot.slane %v5929, 2
    %v5931 = vadd.f32 %v5929, %v5930
    %v5932 = vrot.slane %v5931, 1
    %v5933 = vadd.f32 %v5931, %v5932
    %v5934 = vmul.f32 %v5557, %v5557
    %v5935 = vmul.f32 %v5851, %v5851
    %v5936 = vmul.f32 %v5559, %v5559
    %v5937 = vmul.f32 %v5853, %v5853
    %v5938 = vmul.f32 %v5562, %v5562
    %v5939 = vmul.f32 %v5856, %v5856
    %v5940 = vmul.f32 %v5564, %v5564
    %v5941 = vmul.f32 %v5858, %v5858
    %v5942 = vmul.f32 %v5567, %v5567
    %v5943 = vmul.f32 %v5861, %v5861
    %v5944 = vmul.f32 %v5569, %v5569
    %v5945 = vmul.f32 %v5863, %v5863
    %v5946 = vmul.f32 %v5572, %v5572
    %v5947 = vmul.f32 %v5866, %v5866
    %v5948 = vmul.f32 %v5574, %v5574
    %v5949 = vmul.f32 %v5868, %v5868
    %v5950 = vmul.f32 %v5577, %v5577
    %v5951 = vmul.f32 %v5871, %v5871
    %v5952 = vmul.f32 %v5579, %v5579
    %v5953 = vmul.f32 %v5873, %v5873
    %v5954 = vmul.f32 %v5582, %v5582
    %v5955 = vmul.f32 %v5876, %v5876
    %v5956 = vmul.f32 %v5584, %v5584
    %v5957 = vmul.f32 %v5878, %v5878
    %v5958 = vmul.f32 %v5587, %v5587
    %v5959 = vmul.f32 %v5881, %v5881
    %v5960 = vmul.f32 %v5589, %v5589
    %v5961 = vmul.f32 %v5883, %v5883
    %v5962 = vmul.f32 %v5592, %v5592
    %v5963 = vmul.f32 %v5886, %v5886
    %v5964 = vmul.f32 %v5594, %v5594
    %v5965 = vmul.f32 %v5888, %v5888
    %v5966 = vadd.f32 %v5934, %v5936
    %v5967 = vadd.f32 %v5966, %v5938
    %v5968 = vadd.f32 %v5967, %v5940
    %v5969 = vadd.f32 %v5968, %v5942
    %v5970 = vadd.f32 %v5969, %v5944
    %v5971 = vadd.f32 %v5970, %v5946
    %v5972 = vadd.f32 %v5971, %v5948
    %v5973 = vadd.f32 %v5972, %v5950
    %v5974 = vadd.f32 %v5973, %v5952
    %v5975 = vadd.f32 %v5974, %v5954
    %v5976 = vadd.f32 %v5975, %v5956
    %v5977 = vadd.f32 %v5976, %v5958
    %v5978 = vadd.f32 %v5977, %v5960
    %v5979 = vadd.f32 %v5978, %v5962
    %v5980 = vadd.f32 %v5979, %v5964
    %v5981 = vrot.slane %v5980, 4
    %v5982 = vadd.f32 %v5980, %v5981
    %v5983 = vrot.slane %v5982, 2
    %v5984 = vadd.f32 %v5982, %v5983
    %v5985 = vrot.slane %v5984, 1
    %v5986 = vadd.f32 %v5984, %v5985
    %v5987 = vadd.f32 %v5935, %v5937
    %v5988 = vadd.f32 %v5987, %v5939
    %v5989 = vadd.f32 %v5988, %v5941
    %v5990 = vadd.f32 %v5989, %v5943
    %v5991 = vadd.f32 %v5990, %v5945
    %v5992 = vadd.f32 %v5991, %v5947
    %v5993 = vadd.f32 %v5992, %v5949
    %v5994 = vadd.f32 %v5993, %v5951
    %v5995 = vadd.f32 %v5994, %v5953
    %v5996 = vadd.f32 %v5995, %v5955
    %v5997 = vadd.f32 %v5996, %v5957
    %v5998 = vadd.f32 %v5997, %v5959
    %v5999 = vadd.f32 %v5998, %v5961
    %v6000 = vadd.f32 %v5999, %v5963
    %v6001 = vadd.f32 %v6000, %v5965
    %v6002 = vrot.slane %v6001, 4
    %v6003 = vadd.f32 %v6001, %v6002
    %v6004 = vrot.slane %v6003, 2
    %v6005 = vadd.f32 %v6003, %v6004
    %v6006 = vrot.slane %v6005, 1
    %v6007 = vadd.f32 %v6005, %v6006
    %v6008 = vsel %vm286, %v5912, %v5986
    %v6009 = vsel %vm286, %v5933, %v6007
    %6010 = vmatpush.xpose.msra.mxu0 0.0
    %6011 = vmatpush.xpose.msra.mxu0 0.0
    %6012 = vmatpush.xpose.msra.mxu0 0.0
    %6013 = vmatpush.xpose.msra.mxu0 0.0
    %6014 = vmatpush.xpose.msra.mxu0 0.0
    %6015 = vmatpush.xpose.msra.mxu0 0.0
    %6016 = vmatpush.xpose.msra.mxu0 0.0
    %6017 = vmatpush.xpose.msra.mxu0 0.0
    %6018 = vmatpush.xpose.msra.mxu0 0.0
    %6019 = vmatpush.xpose.msra.mxu0 0.0
    %6020 = vmatpush.xpose.msra.mxu0 0.0
    %6021 = vmatpush.xpose.msra.mxu0 0.0
    %6022 = vmatpush.xpose.msra.mxu0 0.0
    %6023 = vmatpush.xpose.msra.mxu0 0.0
    %6024 = vmatpush.xpose.msra.mxu0 0.0
    %6025 = vmatpush.xpose.msra.mxu0 %v5890
    %6026 = vmatmul.f32.gmra.mxu0 %v6008
    %v6027 = vpop.f32.mrf.mxu0
    %v6028 = vadd.f32 0.0, %v6027
    %6029 = vdwg.mxu0
    %6030 = vmatpush.xpose.msra.mxu0 0.0
    %6031 = vmatpush.xpose.msra.mxu0 0.0
    %6032 = vmatpush.xpose.msra.mxu0 0.0
    %6033 = vmatpush.xpose.msra.mxu0 0.0
    %6034 = vmatpush.xpose.msra.mxu0 0.0
    %6035 = vmatpush.xpose.msra.mxu0 0.0
    %6036 = vmatpush.xpose.msra.mxu0 0.0
    %6037 = vmatpush.xpose.msra.mxu0 0.0
    %6038 = vmatpush.xpose.msra.mxu0 0.0
    %6039 = vmatpush.xpose.msra.mxu0 0.0
    %6040 = vmatpush.xpose.msra.mxu0 0.0
    %6041 = vmatpush.xpose.msra.mxu0 0.0
    %6042 = vmatpush.xpose.msra.mxu0 0.0
    %6043 = vmatpush.xpose.msra.mxu0 0.0
    %6044 = vmatpush.xpose.msra.mxu0 0.0
    %6045 = vmatpush.xpose.msra.mxu0 %v5891
    %6046 = vmatmul.f32.gmra.mxu0 %v6009
    %v6047 = vpop.f32.mrf.mxu0
    %v6048 = vadd.f32 %v6028, %v6047
    %6049 = vdwg.mxu0
    %v6050 = vmul.f32 %v6048, 0.00012207031
    %v6051 = vmul.f32 %v6050, %v6050
    %v6053 = vrot.slane %v6051, 7
    %v6055 = vsub.f32 %v6050, %v6053
    %v6056 = vmax.f32 %v6055, 0.0
    %v6057 = vadd.f32 %v6056, 1e-05
    %v6058 = vrsqrt.pop %v6057
    %v6059 = vmul.f32 %v6058, %v6057
    %v6060 = vmul.f32 %v6059, %v6058
    %v6061 = vmul.f32 0.5, %v6060
    %v6062 = vsub.f32 1.5, %v6061
    %v6063 = vmul.f32 %v6058, %v6062
    %vm6064 = vweird.f32 %v6057
    %vm6065 = vweird.f32 %v6058
    %vm6066 = vmor %vm6064, %vm6065
    %v6067 = vsel %vm6066, %v6058, %v6063
    %s6068 = scalar_lea.vmem [#allocation18], 8
    %v6069 = vld [vmem:[%s6068] sm:$0x3]
    %v6071 = vrot.slane %v6067, 1
    %v6073 = vmul.f32 %v6069, %v6071
    %v6074 = vmul.f32 %v6050, %v6073
    %v6076 = vrot.slane %v6074, 7
    %v6078 = vsub.f32 %v6069, %v6076
    %v6079 = vsel %vm286, %v6073, %v6078
    %vm6080 = vcmask 31744
    %v6082 = vsel %vm6080, %v6079, 0
    %v6085 = vsel %vm425, %v5890, 0
    %v6088 = vsel %vm425, %v5891, 0
    %6090 = vmatpush.msra.mxu0 0.0
    %6091 = vmatpush.msra.mxu0 0.0
    %6092 = vmatpush.msra.mxu0 0.0
    %6093 = vmatpush.msra.mxu0 0.0
    %6094 = vmatpush.msra.mxu0 0.0
    %6095 = vmatpush.msra.mxu0 0.0
    %6096 = vmatpush.msra.mxu0 0.0
    %6097 = vmatpush.msra.mxu0 0.0
    %6098 = vmatpush.msra.mxu0 0.0
    %6099 = vmatpush.msra.mxu0 0.0
    %6100 = vmatpush.msra.mxu0 0.0
    %6101 = vmatpush.msra.mxu0 0.0
    %6102 = vmatpush.msra.mxu0 0.0
    %6103 = vmatpush.msra.mxu0 0.0
    %6104 = vmatpush.msra.mxu0 0.0
    %6105 = vmatpush.msra.mxu0 %v6085
    %6106 = vmatmul.f32.gmra.mxu0 %v6082
    %v6107 = vpop.f32.mrf.mxu0
    %v6108 = vadd.f32 0.0, %v6107
    %6109 = vdwg.mxu0
    %6110 = vmatpush.msra.mxu0 0.0
    %6111 = vmatpush.msra.mxu0 0.0
    %6112 = vmatpush.msra.mxu0 0.0
    %6113 = vmatpush.msra.mxu0 0.0
    %6114 = vmatpush.msra.mxu0 0.0
    %6115 = vmatpush.msra.mxu0 0.0
    %6116 = vmatpush.msra.mxu0 0.0
    %6117 = vmatpush.msra.mxu0 0.0
    %6118 = vmatpush.msra.mxu0 0.0
    %6119 = vmatpush.msra.mxu0 0.0
    %6120 = vmatpush.msra.mxu0 0.0
    %6121 = vmatpush.msra.mxu0 0.0
    %6122 = vmatpush.msra.mxu0 0.0
    %6123 = vmatpush.msra.mxu0 0.0
    %6124 = vmatpush.msra.mxu0 0.0
    %6125 = vmatpush.msra.mxu0 %v6088
    %6126 = vmatmul.f32.gmra.mxu0 %v6082
    %v6127 = vpop.f32.mrf.mxu0
    %v6128 = vadd.f32 0.0, %v6127
    %6129 = vdwg.mxu0
    %v6130 = vperm.slane %v6108, 0
    %v6131 = vperm.slane %v6128, 0
    %v6132 = vmul.f32 %v5557, %v6130
    %v6133 = vmul.f32 %v5851, %v6131
    %v6134 = vmul.f32 %v5559, %v6130
    %v6135 = vmul.f32 %v5853, %v6131
    %v6136 = vmul.f32 %v5562, %v6130
    %v6137 = vmul.f32 %v5856, %v6131
    %v6138 = vmul.f32 %v5564, %v6130
    %v6139 = vmul.f32 %v5858, %v6131
    %v6140 = vmul.f32 %v5567, %v6130
    %v6141 = vmul.f32 %v5861, %v6131
    %v6142 = vmul.f32 %v5569, %v6130
    %v6143 = vmul.f32 %v5863, %v6131
    %v6144 = vmul.f32 %v5572, %v6130
    %v6145 = vmul.f32 %v5866, %v6131
    %v6146 = vmul.f32 %v5574, %v6130
    %v6147 = vmul.f32 %v5868, %v6131
    %v6148 = vmul.f32 %v5577, %v6130
    %v6149 = vmul.f32 %v5871, %v6131
    %v6150 = vmul.f32 %v5579, %v6130
    %v6151 = vmul.f32 %v5873, %v6131
    %v6152 = vmul.f32 %v5582, %v6130
    %v6153 = vmul.f32 %v5876, %v6131
    %v6154 = vmul.f32 %v5584, %v6130
    %v6155 = vmul.f32 %v5878, %v6131
    %v6156 = vmul.f32 %v5587, %v6130
    %v6157 = vmul.f32 %v5881, %v6131
    %v6158 = vmul.f32 %v5589, %v6130
    %v6159 = vmul.f32 %v5883, %v6131
    %v6160 = vmul.f32 %v5592, %v6130
    %v6161 = vmul.f32 %v5886, %v6131
    %v6162 = vmul.f32 %v5594, %v6130
    %v6163 = vmul.f32 %v5888, %v6131
    %v6164 = vperm.slane %v6108, 1
    %v6165 = vperm.slane %v6128, 1
    %v6166 = vadd.f32 %v6132, %v6164
    %v6167 = vadd.f32 %v6133, %v6165
    %v6168 = vadd.f32 %v6134, %v6164
    %v6169 = vadd.f32 %v6135, %v6165
    %v6170 = vadd.f32 %v6136, %v6164
    %v6171 = vadd.f32 %v6137, %v6165
    %v6172 = vadd.f32 %v6138, %v6164
    %v6173 = vadd.f32 %v6139, %v6165
    %v6174 = vadd.f32 %v6140, %v6164
    %v6175 = vadd.f32 %v6141, %v6165
    %v6176 = vadd.f32 %v6142, %v6164
    %v6177 = vadd.f32 %v6143, %v6165
    %v6178 = vadd.f32 %v6144, %v6164
    %v6179 = vadd.f32 %v6145, %v6165
    %v6180 = vadd.f32 %v6146, %v6164
    %v6181 = vadd.f32 %v6147, %v6165
    %v6182 = vadd.f32 %v6148, %v6164
    %v6183 = vadd.f32 %v6149, %v6165
    %v6184 = vadd.f32 %v6150, %v6164
    %v6185 = vadd.f32 %v6151, %v6165
    %v6186 = vadd.f32 %v6152, %v6164
    %v6187 = vadd.f32 %v6153, %v6165
    %v6188 = vadd.f32 %v6154, %v6164
    %v6189 = vadd.f32 %v6155, %v6165
    %v6190 = vadd.f32 %v6156, %v6164
    %v6191 = vadd.f32 %v6157, %v6165
    %v6192 = vadd.f32 %v6158, %v6164
    %v6193 = vadd.f32 %v6159, %v6165
    %v6194 = vadd.f32 %v6160, %v6164
    %v6195 = vadd.f32 %v6161, %v6165
    %v6196 = vadd.f32 %v6162, %v6164
    %v6197 = vadd.f32 %v6163, %v6165
    %v6198 = vmax.f32 %v6166, 0.0
    %v6199 = vmax.f32 %v6167, 0.0
    %v6200 = vmax.f32 %v6168, 0.0
    %v6201 = vmax.f32 %v6169, 0.0
    %v6202 = vmax.f32 %v6170, 0.0
    %v6203 = vmax.f32 %v6171, 0.0
    %v6204 = vmax.f32 %v6172, 0.0
    %v6205 = vmax.f32 %v6173, 0.0
    %v6206 = vmax.f32 %v6174, 0.0
    %v6207 = vmax.f32 %v6175, 0.0
    %v6208 = vmax.f32 %v6176, 0.0
    %v6209 = vmax.f32 %v6177, 0.0
    %v6210 = vmax.f32 %v6178, 0.0
    %v6211 = vmax.f32 %v6179, 0.0
    %v6212 = vmax.f32 %v6180, 0.0
    %v6213 = vmax.f32 %v6181, 0.0
    %v6214 = vmax.f32 %v6182, 0.0
    %v6215 = vmax.f32 %v6183, 0.0
    %v6216 = vmax.f32 %v6184, 0.0
    %v6217 = vmax.f32 %v6185, 0.0
    %v6218 = vmax.f32 %v6186, 0.0
    %v6219 = vmax.f32 %v6187, 0.0
    %v6220 = vmax.f32 %v6188, 0.0
    %v6221 = vmax.f32 %v6189, 0.0
    %v6222 = vmax.f32 %v6190, 0.0
    %v6223 = vmax.f32 %v6191, 0.0
    %v6224 = vmax.f32 %v6192, 0.0
    %v6225 = vmax.f32 %v6193, 0.0
    %v6226 = vmax.f32 %v6194, 0.0
    %v6227 = vmax.f32 %v6195, 0.0
    %v6228 = vmax.f32 %v6196, 0.0
    %v6229 = vmax.f32 %v6197, 0.0
    %v6230 = vpack.c.bf16 %v6200, %v6198
    %v6231 = vpack.c.bf16 %v6201, %v6199
    %v6232 = vpack.c.bf16 %v6204, %v6202
    %v6233 = vpack.c.bf16 %v6205, %v6203
    %v6234 = vpack.c.bf16 %v6208, %v6206
    %v6235 = vpack.c.bf16 %v6209, %v6207
    %v6236 = vpack.c.bf16 %v6212, %v6210
    %v6237 = vpack.c.bf16 %v6213, %v6211
    %v6238 = vpack.c.bf16 %v6216, %v6214
    %v6239 = vpack.c.bf16 %v6217, %v6215
    %v6240 = vpack.c.bf16 %v6220, %v6218
    %v6241 = vpack.c.bf16 %v6221, %v6219
    %v6242 = vpack.c.bf16 %v6224, %v6222
    %v6243 = vpack.c.bf16 %v6225, %v6223
    %v6244 = vpack.c.bf16 %v6228, %v6226
    %v6245 = vpack.c.bf16 %v6229, %v6227
    %v6246 = vld [vmem:[#allocation13] sm:$0xf]
    %v6247 = vld [vmem:[#allocation13 + $0x4] sm:$0xf]
    %v6248 = vld [vmem:[#allocation13 + $0x8] sm:$0xf]
    %v6249 = vld [vmem:[#allocation13 + $0xc] sm:$0xf]
    %v6250 = vld [vmem:[#allocation13 + $0x10] sm:$0xf]
    %v6251 = vld [vmem:[#allocation13 + $0x14] sm:$0xf]
    %v6252 = vld [vmem:[#allocation13 + $0x18] sm:$0xf]
    %v6253 = vld [vmem:[#allocation13 + $0x1c] sm:$0xf]
    %v6254 = vld [vmem:[#allocation13 + $0x20] sm:$0xf]
    %v6255 = vld [vmem:[#allocation13 + $0x24] sm:$0xf]
    %v6256 = vld [vmem:[#allocation13 + $0x28] sm:$0xf]
    %v6257 = vld [vmem:[#allocation13 + $0x2c] sm:$0xf]
    %v6258 = vld [vmem:[#allocation13 + $0x30] sm:$0xf]
    %v6259 = vld [vmem:[#allocation13 + $0x34] sm:$0xf]
    %v6260 = vld [vmem:[#allocation13 + $0x38] sm:$0xf]
    %v6261 = vld [vmem:[#allocation13 + $0x3c] sm:$0xf]
    %v6262 = vld [vmem:[#allocation13 + $0x40] sm:$0xf]
    %v6263 = vld [vmem:[#allocation13 + $0x44] sm:$0xf]
    %v6264 = vld [vmem:[#allocation13 + $0x48] sm:$0xf]
    %v6265 = vld [vmem:[#allocation13 + $0x4c] sm:$0xf]
    %v6266 = vld [vmem:[#allocation13 + $0x50] sm:$0xf]
    %v6267 = vld [vmem:[#allocation13 + $0x54] sm:$0xf]
    %v6268 = vld [vmem:[#allocation13 + $0x58] sm:$0xf]
    %v6269 = vld [vmem:[#allocation13 + $0x5c] sm:$0xf]
    %v6270 = vld [vmem:[#allocation13 + $0x60] sm:$0xf]
    %v6271 = vld [vmem:[#allocation13 + $0x64] sm:$0xf]
    %v6272 = vld [vmem:[#allocation13 + $0x68] sm:$0xf]
    %v6273 = vld [vmem:[#allocation13 + $0x6c] sm:$0xf]
    %v6274 = vld [vmem:[#allocation13 + $0x70] sm:$0xf]
    %v6275 = vld [vmem:[#allocation13 + $0x74] sm:$0xf]
    %v6276 = vld [vmem:[#allocation13 + $0x78] sm:$0xf]
    %v6277 = vld [vmem:[#allocation13 + $0x7c] sm:$0xf]
    %v6310 = vunpack.c.l.b16 %v6246
    %v6311 = vunpack.c.l.b16 %v6247
    %v6312 = vunpack.c.l.b16 %v6248
    %v6313 = vunpack.c.l.b16 %v6249
    %v6314 = vunpack.c.l.b16 %v6250
    %v6315 = vunpack.c.l.b16 %v6251
    %v6316 = vunpack.c.l.b16 %v6252
    %v6317 = vunpack.c.l.b16 %v6253
    %v6318 = vunpack.c.l.b16 %v6254
    %v6319 = vunpack.c.l.b16 %v6255
    %v6320 = vunpack.c.l.b16 %v6256
    %v6321 = vunpack.c.l.b16 %v6257
    %v6322 = vunpack.c.l.b16 %v6258
    %v6323 = vunpack.c.l.b16 %v6259
    %v6324 = vunpack.c.l.b16 %v6260
    %v6325 = vunpack.c.l.b16 %v6261
    %v6326 = vunpack.c.l.b16 %v6262
    %v6327 = vunpack.c.l.b16 %v6263
    %v6328 = vunpack.c.l.b16 %v6264
    %v6329 = vunpack.c.l.b16 %v6265
    %v6330 = vunpack.c.l.b16 %v6266
    %v6331 = vunpack.c.l.b16 %v6267
    %v6332 = vunpack.c.l.b16 %v6268
    %v6333 = vunpack.c.l.b16 %v6269
    %v6334 = vunpack.c.l.b16 %v6270
    %v6335 = vunpack.c.l.b16 %v6271
    %v6336 = vunpack.c.l.b16 %v6272
    %v6337 = vunpack.c.l.b16 %v6273
    %v6338 = vunpack.c.l.b16 %v6274
    %v6339 = vunpack.c.l.b16 %v6275
    %v6340 = vunpack.c.l.b16 %v6276
    %v6341 = vunpack.c.l.b16 %v6277
    %v6342 = vpack.c.b16 %v6311, %v6310
    %v6343 = vpack.c.b16 %v6313, %v6312
    %v6344 = vpack.c.b16 %v6315, %v6314
    %v6345 = vpack.c.b16 %v6317, %v6316
    %v6346 = vpack.c.b16 %v6319, %v6318
    %v6347 = vpack.c.b16 %v6321, %v6320
    %v6348 = vpack.c.b16 %v6323, %v6322
    %v6349 = vpack.c.b16 %v6325, %v6324
    %v6350 = vpack.c.b16 %v6327, %v6326
    %v6351 = vpack.c.b16 %v6329, %v6328
    %v6352 = vpack.c.b16 %v6331, %v6330
    %v6353 = vpack.c.b16 %v6333, %v6332
    %v6354 = vpack.c.b16 %v6335, %v6334
    %v6355 = vpack.c.b16 %v6337, %v6336
    %v6356 = vpack.c.b16 %v6339, %v6338
    %v6357 = vpack.c.b16 %v6341, %v6340
    %6374 = vmatpush.bf16.msra.mxu0 %v6244
    %6375 = vmatpush.bf16.msra.mxu0 %v6242
    %6376 = vmatpush.bf16.msra.mxu0 %v6240
    %6377 = vmatpush.bf16.msra.mxu0 %v6238
    %6378 = vmatpush.bf16.msra.mxu0 %v6236
    %6379 = vmatpush.bf16.msra.mxu0 %v6234
    %6380 = vmatpush.bf16.msra.mxu0 %v6232
    %6381 = vmatpush.bf16.msra.mxu0 %v6230
    %6382 = vmatmul.bf16.gmra.mxu0 %v6342
    %v6383 = vpop.f32.mrf.mxu0
    %v6384 = vadd.f32 0.0, %v6383
    %v6385 = vpop.f32.mrf.mxu0
    %v6386 = vadd.f32 0.0, %v6385
    %6387 = vmatmul.bf16.gmra.mxu0 %v6343
    %v6388 = vpop.f32.mrf.mxu0
    %v6389 = vadd.f32 0.0, %v6388
    %v6390 = vpop.f32.mrf.mxu0
    %v6391 = vadd.f32 0.0, %v6390
    %6392 = vmatmul.bf16.gmra.mxu0 %v6344
    %v6393 = vpop.f32.mrf.mxu0
    %v6394 = vadd.f32 0.0, %v6393
    %v6395 = vpop.f32.mrf.mxu0
    %v6396 = vadd.f32 0.0, %v6395
    %6397 = vmatmul.bf16.gmra.mxu0 %v6345
    %v6398 = vpop.f32.mrf.mxu0
    %v6399 = vadd.f32 0.0, %v6398
    %v6400 = vpop.f32.mrf.mxu0
    %v6401 = vadd.f32 0.0, %v6400
    %6402 = vmatmul.bf16.gmra.mxu0 %v6346
    %v6403 = vpop.f32.mrf.mxu0
    %v6404 = vadd.f32 0.0, %v6403
    %v6405 = vpop.f32.mrf.mxu0
    %v6406 = vadd.f32 0.0, %v6405
    %6407 = vmatmul.bf16.gmra.mxu0 %v6347
    %v6408 = vpop.f32.mrf.mxu0
    %v6409 = vadd.f32 0.0, %v6408
    %v6410 = vpop.f32.mrf.mxu0
    %v6411 = vadd.f32 0.0, %v6410
    %6412 = vmatmul.bf16.gmra.mxu0 %v6348
    %v6413 = vpop.f32.mrf.mxu0
    %v6414 = vadd.f32 0.0, %v6413
    %v6415 = vpop.f32.mrf.mxu0
    %v6416 = vadd.f32 0.0, %v6415
    %6417 = vmatmul.bf16.gmra.mxu0 %v6349
    %v6418 = vpop.f32.mrf.mxu0
    %v6419 = vadd.f32 0.0, %v6418
    %v6420 = vpop.f32.mrf.mxu0
    %v6421 = vadd.f32 0.0, %v6420
    %6422 = vmatmul.bf16.gmra.mxu0 %v6350
    %v6423 = vpop.f32.mrf.mxu0
    %v6424 = vadd.f32 0.0, %v6423
    %v6425 = vpop.f32.mrf.mxu0
    %v6426 = vadd.f32 0.0, %v6425
    %6427 = vmatmul.bf16.gmra.mxu0 %v6351
    %v6428 = vpop.f32.mrf.mxu0
    %v6429 = vadd.f32 0.0, %v6428
    %v6430 = vpop.f32.mrf.mxu0
    %v6431 = vadd.f32 0.0, %v6430
    %6432 = vmatmul.bf16.gmra.mxu0 %v6352
    %v6433 = vpop.f32.mrf.mxu0
    %v6434 = vadd.f32 0.0, %v6433
    %v6435 = vpop.f32.mrf.mxu0
    %v6436 = vadd.f32 0.0, %v6435
    %6437 = vmatmul.bf16.gmra.mxu0 %v6353
    %v6438 = vpop.f32.mrf.mxu0
    %v6439 = vadd.f32 0.0, %v6438
    %v6440 = vpop.f32.mrf.mxu0
    %v6441 = vadd.f32 0.0, %v6440
    %6442 = vmatmul.bf16.gmra.mxu0 %v6354
    %v6443 = vpop.f32.mrf.mxu0
    %v6444 = vadd.f32 0.0, %v6443
    %v6445 = vpop.f32.mrf.mxu0
    %v6446 = vadd.f32 0.0, %v6445
    %6447 = vmatmul.bf16.gmra.mxu0 %v6355
    %v6448 = vpop.f32.mrf.mxu0
    %v6449 = vadd.f32 0.0, %v6448
    %v6450 = vpop.f32.mrf.mxu0
    %v6451 = vadd.f32 0.0, %v6450
    %6452 = vmatmul.bf16.gmra.mxu0 %v6356
    %v6453 = vpop.f32.mrf.mxu0
    %v6454 = vadd.f32 0.0, %v6453
    %v6455 = vpop.f32.mrf.mxu0
    %v6456 = vadd.f32 0.0, %v6455
    %6457 = vmatmul.bf16.gmra.mxu0 %v6357
    %v6458 = vpop.f32.mrf.mxu0
    %v6459 = vadd.f32 0.0, %v6458
    %v6460 = vpop.f32.mrf.mxu0
    %v6461 = vadd.f32 0.0, %v6460
    %6462 = vdwg.mxu0
    %6463 = vmatpush.bf16.msra.mxu0 %v6245
    %6464 = vmatpush.bf16.msra.mxu0 %v6243
    %6465 = vmatpush.bf16.msra.mxu0 %v6241
    %6466 = vmatpush.bf16.msra.mxu0 %v6239
    %6467 = vmatpush.bf16.msra.mxu0 %v6237
    %6468 = vmatpush.bf16.msra.mxu0 %v6235
    %6469 = vmatpush.bf16.msra.mxu0 %v6233
    %6470 = vmatpush.bf16.msra.mxu0 %v6231
    %6471 = vmatmul.bf16.gmra.mxu0 %v6342
    %v6472 = vpop.f32.mrf.mxu0
    %v6473 = vadd.f32 0.0, %v6472
    %v6474 = vpop.f32.mrf.mxu0
    %v6475 = vadd.f32 0.0, %v6474
    %6476 = vmatmul.bf16.gmra.mxu0 %v6343
    %v6477 = vpop.f32.mrf.mxu0
    %v6478 = vadd.f32 0.0, %v6477
    %v6479 = vpop.f32.mrf.mxu0
    %v6480 = vadd.f32 0.0, %v6479
    %6481 = vmatmul.bf16.gmra.mxu0 %v6344
    %v6482 = vpop.f32.mrf.mxu0
    %v6483 = vadd.f32 0.0, %v6482
    %v6484 = vpop.f32.mrf.mxu0
    %v6485 = vadd.f32 0.0, %v6484
    %6486 = vmatmul.bf16.gmra.mxu0 %v6345
    %v6487 = vpop.f32.mrf.mxu0
    %v6488 = vadd.f32 0.0, %v6487
    %v6489 = vpop.f32.mrf.mxu0
    %v6490 = vadd.f32 0.0, %v6489
    %6491 = vmatmul.bf16.gmra.mxu0 %v6346
    %v6492 = vpop.f32.mrf.mxu0
    %v6493 = vadd.f32 0.0, %v6492
    %v6494 = vpop.f32.mrf.mxu0
    %v6495 = vadd.f32 0.0, %v6494
    %6496 = vmatmul.bf16.gmra.mxu0 %v6347
    %v6497 = vpop.f32.mrf.mxu0
    %v6498 = vadd.f32 0.0, %v6497
    %v6499 = vpop.f32.mrf.mxu0
    %v6500 = vadd.f32 0.0, %v6499
    %6501 = vmatmul.bf16.gmra.mxu0 %v6348
    %v6502 = vpop.f32.mrf.mxu0
    %v6503 = vadd.f32 0.0, %v6502
    %v6504 = vpop.f32.mrf.mxu0
    %v6505 = vadd.f32 0.0, %v6504
    %6506 = vmatmul.bf16.gmra.mxu0 %v6349
    %v6507 = vpop.f32.mrf.mxu0
    %v6508 = vadd.f32 0.0, %v6507
    %v6509 = vpop.f32.mrf.mxu0
    %v6510 = vadd.f32 0.0, %v6509
    %6511 = vmatmul.bf16.gmra.mxu0 %v6350
    %v6512 = vpop.f32.mrf.mxu0
    %v6513 = vadd.f32 0.0, %v6512
    %v6514 = vpop.f32.mrf.mxu0
    %v6515 = vadd.f32 0.0, %v6514
    %6516 = vmatmul.bf16.gmra.mxu0 %v6351
    %v6517 = vpop.f32.mrf.mxu0
    %v6518 = vadd.f32 0.0, %v6517
    %v6519 = vpop.f32.mrf.mxu0
    %v6520 = vadd.f32 0.0, %v6519
    %6521 = vmatmul.bf16.gmra.mxu0 %v6352
    %v6522 = vpop.f32.mrf.mxu0
    %v6523 = vadd.f32 0.0, %v6522
    %v6524 = vpop.f32.mrf.mxu0
    %v6525 = vadd.f32 0.0, %v6524
    %6526 = vmatmul.bf16.gmra.mxu0 %v6353
    %v6527 = vpop.f32.mrf.mxu0
    %v6528 = vadd.f32 0.0, %v6527
    %v6529 = vpop.f32.mrf.mxu0
    %v6530 = vadd.f32 0.0, %v6529
    %6531 = vmatmul.bf16.gmra.mxu0 %v6354
    %v6532 = vpop.f32.mrf.mxu0
    %v6533 = vadd.f32 0.0, %v6532
    %v6534 = vpop.f32.mrf.mxu0
    %v6535 = vadd.f32 0.0, %v6534
    %6536 = vmatmul.bf16.gmra.mxu0 %v6355
    %v6537 = vpop.f32.mrf.mxu0
    %v6538 = vadd.f32 0.0, %v6537
    %v6539 = vpop.f32.mrf.mxu0
    %v6540 = vadd.f32 0.0, %v6539
    %6541 = vmatmul.bf16.gmra.mxu0 %v6356
    %v6542 = vpop.f32.mrf.mxu0
    %v6543 = vadd.f32 0.0, %v6542
    %v6544 = vpop.f32.mrf.mxu0
    %v6545 = vadd.f32 0.0, %v6544
    %6546 = vmatmul.bf16.gmra.mxu0 %v6357
    %v6547 = vpop.f32.mrf.mxu0
    %v6548 = vadd.f32 0.0, %v6547
    %v6549 = vpop.f32.mrf.mxu0
    %v6550 = vadd.f32 0.0, %v6549
    %6551 = vdwg.mxu0
    %s6552 = scalar_lea.vmem [#allocation13], 128
    %v6553 = vld [vmem:[%s6552] sm:$0xf]
    %v6554 = vld [vmem:[%s6552 + $0x4] sm:$0xf]
    %v6555 = vld [vmem:[%s6552 + $0x8] sm:$0xf]
    %v6556 = vld [vmem:[%s6552 + $0xc] sm:$0xf]
    %v6557 = vld [vmem:[%s6552 + $0x10] sm:$0xf]
    %v6558 = vld [vmem:[%s6552 + $0x14] sm:$0xf]
    %v6559 = vld [vmem:[%s6552 + $0x18] sm:$0xf]
    %v6560 = vld [vmem:[%s6552 + $0x1c] sm:$0xf]
    %v6561 = vld [vmem:[%s6552 + $0x20] sm:$0xf]
    %v6562 = vld [vmem:[%s6552 + $0x24] sm:$0xf]
    %v6563 = vld [vmem:[%s6552 + $0x28] sm:$0xf]
    %v6564 = vld [vmem:[%s6552 + $0x2c] sm:$0xf]
    %v6565 = vld [vmem:[%s6552 + $0x30] sm:$0xf]
    %v6566 = vld [vmem:[%s6552 + $0x34] sm:$0xf]
    %v6567 = vld [vmem:[%s6552 + $0x38] sm:$0xf]
    %v6568 = vld [vmem:[%s6552 + $0x3c] sm:$0xf]
    %v6569 = vld [vmem:[%s6552 + $0x40] sm:$0xf]
    %v6570 = vld [vmem:[%s6552 + $0x44] sm:$0xf]
    %v6571 = vld [vmem:[%s6552 + $0x48] sm:$0xf]
    %v6572 = vld [vmem:[%s6552 + $0x4c] sm:$0xf]
    %v6573 = vld [vmem:[%s6552 + $0x50] sm:$0xf]
    %v6574 = vld [vmem:[%s6552 + $0x54] sm:$0xf]
    %v6575 = vld [vmem:[%s6552 + $0x58] sm:$0xf]
    %v6576 = vld [vmem:[%s6552 + $0x5c] sm:$0xf]
    %v6577 = vld [vmem:[%s6552 + $0x60] sm:$0xf]
    %v6578 = vld [vmem:[%s6552 + $0x64] sm:$0xf]
    %v6579 = vld [vmem:[%s6552 + $0x68] sm:$0xf]
    %v6580 = vld [vmem:[%s6552 + $0x6c] sm:$0xf]
    %v6581 = vld [vmem:[%s6552 + $0x70] sm:$0xf]
    %v6582 = vld [vmem:[%s6552 + $0x74] sm:$0xf]
    %v6583 = vld [vmem:[%s6552 + $0x78] sm:$0xf]
    %v6584 = vld [vmem:[%s6552 + $0x7c] sm:$0xf]
    %v6617 = vunpack.c.l.b16 %v6553
    %v6618 = vunpack.c.l.b16 %v6554
    %v6619 = vunpack.c.l.b16 %v6555
    %v6620 = vunpack.c.l.b16 %v6556
    %v6621 = vunpack.c.l.b16 %v6557
    %v6622 = vunpack.c.l.b16 %v6558
    %v6623 = vunpack.c.l.b16 %v6559
    %v6624 = vunpack.c.l.b16 %v6560
    %v6625 = vunpack.c.l.b16 %v6561
    %v6626 = vunpack.c.l.b16 %v6562
    %v6627 = vunpack.c.l.b16 %v6563
    %v6628 = vunpack.c.l.b16 %v6564
    %v6629 = vunpack.c.l.b16 %v6565
    %v6630 = vunpack.c.l.b16 %v6566
    %v6631 = vunpack.c.l.b16 %v6567
    %v6632 = vunpack.c.l.b16 %v6568
    %v6633 = vunpack.c.l.b16 %v6569
    %v6634 = vunpack.c.l.b16 %v6570
    %v6635 = vunpack.c.l.b16 %v6571
    %v6636 = vunpack.c.l.b16 %v6572
    %v6637 = vunpack.c.l.b16 %v6573
    %v6638 = vunpack.c.l.b16 %v6574
    %v6639 = vunpack.c.l.b16 %v6575
    %v6640 = vunpack.c.l.b16 %v6576
    %v6641 = vunpack.c.l.b16 %v6577
    %v6642 = vunpack.c.l.b16 %v6578
    %v6643 = vunpack.c.l.b16 %v6579
    %v6644 = vunpack.c.l.b16 %v6580
    %v6645 = vunpack.c.l.b16 %v6581
    %v6646 = vunpack.c.l.b16 %v6582
    %v6647 = vunpack.c.l.b16 %v6583
    %v6648 = vunpack.c.l.b16 %v6584
    %v6649 = vpack.c.b16 %v6618, %v6617
    %v6650 = vpack.c.b16 %v6620, %v6619
    %v6651 = vpack.c.b16 %v6622, %v6621
    %v6652 = vpack.c.b16 %v6624, %v6623
    %v6653 = vpack.c.b16 %v6626, %v6625
    %v6654 = vpack.c.b16 %v6628, %v6627
    %v6655 = vpack.c.b16 %v6630, %v6629
    %v6656 = vpack.c.b16 %v6632, %v6631
    %v6657 = vpack.c.b16 %v6634, %v6633
    %v6658 = vpack.c.b16 %v6636, %v6635
    %v6659 = vpack.c.b16 %v6638, %v6637
    %v6660 = vpack.c.b16 %v6640, %v6639
    %v6661 = vpack.c.b16 %v6642, %v6641
    %v6662 = vpack.c.b16 %v6644, %v6643
    %v6663 = vpack.c.b16 %v6646, %v6645
    %v6664 = vpack.c.b16 %v6648, %v6647
    %6681 = vmatpush.bf16.msra.mxu0 %v6244
    %6682 = vmatpush.bf16.msra.mxu0 %v6242
    %6683 = vmatpush.bf16.msra.mxu0 %v6240
    %6684 = vmatpush.bf16.msra.mxu0 %v6238
    %6685 = vmatpush.bf16.msra.mxu0 %v6236
    %6686 = vmatpush.bf16.msra.mxu0 %v6234
    %6687 = vmatpush.bf16.msra.mxu0 %v6232
    %6688 = vmatpush.bf16.msra.mxu0 %v6230
    %6689 = vmatmul.bf16.gmra.mxu0 %v6649
    %v6690 = vpop.f32.mrf.mxu0
    %v6691 = vadd.f32 0.0, %v6690
    %v6692 = vpop.f32.mrf.mxu0
    %v6693 = vadd.f32 0.0, %v6692
    %6694 = vmatmul.bf16.gmra.mxu0 %v6650
    %v6695 = vpop.f32.mrf.mxu0
    %v6696 = vadd.f32 0.0, %v6695
    %v6697 = vpop.f32.mrf.mxu0
    %v6698 = vadd.f32 0.0, %v6697
    %6699 = vmatmul.bf16.gmra.mxu0 %v6651
    %v6700 = vpop.f32.mrf.mxu0
    %v6701 = vadd.f32 0.0, %v6700
    %v6702 = vpop.f32.mrf.mxu0
    %v6703 = vadd.f32 0.0, %v6702
    %6704 = vmatmul.bf16.gmra.mxu0 %v6652
    %v6705 = vpop.f32.mrf.mxu0
    %v6706 = vadd.f32 0.0, %v6705
    %v6707 = vpop.f32.mrf.mxu0
    %v6708 = vadd.f32 0.0, %v6707
    %6709 = vmatmul.bf16.gmra.mxu0 %v6653
    %v6710 = vpop.f32.mrf.mxu0
    %v6711 = vadd.f32 0.0, %v6710
    %v6712 = vpop.f32.mrf.mxu0
    %v6713 = vadd.f32 0.0, %v6712
    %6714 = vmatmul.bf16.gmra.mxu0 %v6654
    %v6715 = vpop.f32.mrf.mxu0
    %v6716 = vadd.f32 0.0, %v6715
    %v6717 = vpop.f32.mrf.mxu0
    %v6718 = vadd.f32 0.0, %v6717
    %6719 = vmatmul.bf16.gmra.mxu0 %v6655
    %v6720 = vpop.f32.mrf.mxu0
    %v6721 = vadd.f32 0.0, %v6720
    %v6722 = vpop.f32.mrf.mxu0
    %v6723 = vadd.f32 0.0, %v6722
    %6724 = vmatmul.bf16.gmra.mxu0 %v6656
    %v6725 = vpop.f32.mrf.mxu0
    %v6726 = vadd.f32 0.0, %v6725
    %v6727 = vpop.f32.mrf.mxu0
    %v6728 = vadd.f32 0.0, %v6727
    %6729 = vmatmul.bf16.gmra.mxu0 %v6657
    %v6730 = vpop.f32.mrf.mxu0
    %v6731 = vadd.f32 0.0, %v6730
    %v6732 = vpop.f32.mrf.mxu0
    %v6733 = vadd.f32 0.0, %v6732
    %6734 = vmatmul.bf16.gmra.mxu0 %v6658
    %v6735 = vpop.f32.mrf.mxu0
    %v6736 = vadd.f32 0.0, %v6735
    %v6737 = vpop.f32.mrf.mxu0
    %v6738 = vadd.f32 0.0, %v6737
    %6739 = vmatmul.bf16.gmra.mxu0 %v6659
    %v6740 = vpop.f32.mrf.mxu0
    %v6741 = vadd.f32 0.0, %v6740
    %v6742 = vpop.f32.mrf.mxu0
    %v6743 = vadd.f32 0.0, %v6742
    %6744 = vmatmul.bf16.gmra.mxu0 %v6660
    %v6745 = vpop.f32.mrf.mxu0
    %v6746 = vadd.f32 0.0, %v6745
    %v6747 = vpop.f32.mrf.mxu0
    %v6748 = vadd.f32 0.0, %v6747
    %6749 = vmatmul.bf16.gmra.mxu0 %v6661
    %v6750 = vpop.f32.mrf.mxu0
    %v6751 = vadd.f32 0.0, %v6750
    %v6752 = vpop.f32.mrf.mxu0
    %v6753 = vadd.f32 0.0, %v6752
    %6754 = vmatmul.bf16.gmra.mxu0 %v6662
    %v6755 = vpop.f32.mrf.mxu0
    %v6756 = vadd.f32 0.0, %v6755
    %v6757 = vpop.f32.mrf.mxu0
    %v6758 = vadd.f32 0.0, %v6757
    %6759 = vmatmul.bf16.gmra.mxu0 %v6663
    %v6760 = vpop.f32.mrf.mxu0
    %v6761 = vadd.f32 0.0, %v6760
    %v6762 = vpop.f32.mrf.mxu0
    %v6763 = vadd.f32 0.0, %v6762
    %6764 = vmatmul.bf16.gmra.mxu0 %v6664
    %v6765 = vpop.f32.mrf.mxu0
    %v6766 = vadd.f32 0.0, %v6765
    %v6767 = vpop.f32.mrf.mxu0
    %v6768 = vadd.f32 0.0, %v6767
    %6769 = vdwg.mxu0
    %6770 = vmatpush.bf16.msra.mxu0 %v6245
    %6771 = vmatpush.bf16.msra.mxu0 %v6243
    %6772 = vmatpush.bf16.msra.mxu0 %v6241
    %6773 = vmatpush.bf16.msra.mxu0 %v6239
    %6774 = vmatpush.bf16.msra.mxu0 %v6237
    %6775 = vmatpush.bf16.msra.mxu0 %v6235
    %6776 = vmatpush.bf16.msra.mxu0 %v6233
    %6777 = vmatpush.bf16.msra.mxu0 %v6231
    %6778 = vmatmul.bf16.gmra.mxu0 %v6649
    %v6779 = vpop.f32.mrf.mxu0
    %v6780 = vadd.f32 0.0, %v6779
    %v6781 = vpop.f32.mrf.mxu0
    %v6782 = vadd.f32 0.0, %v6781
    %6783 = vmatmul.bf16.gmra.mxu0 %v6650
    %v6784 = vpop.f32.mrf.mxu0
    %v6785 = vadd.f32 0.0, %v6784
    %v6786 = vpop.f32.mrf.mxu0
    %v6787 = vadd.f32 0.0, %v6786
    %6788 = vmatmul.bf16.gmra.mxu0 %v6651
    %v6789 = vpop.f32.mrf.mxu0
    %v6790 = vadd.f32 0.0, %v6789
    %v6791 = vpop.f32.mrf.mxu0
    %v6792 = vadd.f32 0.0, %v6791
    %6793 = vmatmul.bf16.gmra.mxu0 %v6652
    %v6794 = vpop.f32.mrf.mxu0
    %v6795 = vadd.f32 0.0, %v6794
    %v6796 = vpop.f32.mrf.mxu0
    %v6797 = vadd.f32 0.0, %v6796
    %6798 = vmatmul.bf16.gmra.mxu0 %v6653
    %v6799 = vpop.f32.mrf.mxu0
    %v6800 = vadd.f32 0.0, %v6799
    %v6801 = vpop.f32.mrf.mxu0
    %v6802 = vadd.f32 0.0, %v6801
    %6803 = vmatmul.bf16.gmra.mxu0 %v6654
    %v6804 = vpop.f32.mrf.mxu0
    %v6805 = vadd.f32 0.0, %v6804
    %v6806 = vpop.f32.mrf.mxu0
    %v6807 = vadd.f32 0.0, %v6806
    %6808 = vmatmul.bf16.gmra.mxu0 %v6655
    %v6809 = vpop.f32.mrf.mxu0
    %v6810 = vadd.f32 0.0, %v6809
    %v6811 = vpop.f32.mrf.mxu0
    %v6812 = vadd.f32 0.0, %v6811
    %6813 = vmatmul.bf16.gmra.mxu0 %v6656
    %v6814 = vpop.f32.mrf.mxu0
    %v6815 = vadd.f32 0.0, %v6814
    %v6816 = vpop.f32.mrf.mxu0
    %v6817 = vadd.f32 0.0, %v6816
    %6818 = vmatmul.bf16.gmra.mxu0 %v6657
    %v6819 = vpop.f32.mrf.mxu0
    %v6820 = vadd.f32 0.0, %v6819
    %v6821 = vpop.f32.mrf.mxu0
    %v6822 = vadd.f32 0.0, %v6821
    %6823 = vmatmul.bf16.gmra.mxu0 %v6658
    %v6824 = vpop.f32.mrf.mxu0
    %v6825 = vadd.f32 0.0, %v6824
    %v6826 = vpop.f32.mrf.mxu0
    %v6827 = vadd.f32 0.0, %v6826
    %6828 = vmatmul.bf16.gmra.mxu0 %v6659
    %v6829 = vpop.f32.mrf.mxu0
    %v6830 = vadd.f32 0.0, %v6829
    %v6831 = vpop.f32.mrf.mxu0
    %v6832 = vadd.f32 0.0, %v6831
    %6833 = vmatmul.bf16.gmra.mxu0 %v6660
    %v6834 = vpop.f32.mrf.mxu0
    %v6835 = vadd.f32 0.0, %v6834
    %v6836 = vpop.f32.mrf.mxu0
    %v6837 = vadd.f32 0.0, %v6836
    %6838 = vmatmul.bf16.gmra.mxu0 %v6661
    %v6839 = vpop.f32.mrf.mxu0
    %v6840 = vadd.f32 0.0, %v6839
    %v6841 = vpop.f32.mrf.mxu0
    %v6842 = vadd.f32 0.0, %v6841
    %6843 = vmatmul.bf16.gmra.mxu0 %v6662
    %v6844 = vpop.f32.mrf.mxu0
    %v6845 = vadd.f32 0.0, %v6844
    %v6846 = vpop.f32.mrf.mxu0
    %v6847 = vadd.f32 0.0, %v6846
    %6848 = vmatmul.bf16.gmra.mxu0 %v6663
    %v6849 = vpop.f32.mrf.mxu0
    %v6850 = vadd.f32 0.0, %v6849
    %v6851 = vpop.f32.mrf.mxu0
    %v6852 = vadd.f32 0.0, %v6851
    %6853 = vmatmul.bf16.gmra.mxu0 %v6664
    %v6854 = vpop.f32.mrf.mxu0
    %v6855 = vadd.f32 0.0, %v6854
    %v6856 = vpop.f32.mrf.mxu0
    %v6857 = vadd.f32 0.0, %v6856
    %6858 = vdwg.mxu0
    %s6859 = scalar_lea.vmem [#allocation13], 256
    %v6860 = vld [vmem:[%s6859] sm:$0xf]
    %v6861 = vld [vmem:[%s6859 + $0x4] sm:$0xf]
    %v6862 = vld [vmem:[%s6859 + $0x8] sm:$0xf]
    %v6863 = vld [vmem:[%s6859 + $0xc] sm:$0xf]
    %v6864 = vld [vmem:[%s6859 + $0x10] sm:$0xf]
    %v6865 = vld [vmem:[%s6859 + $0x14] sm:$0xf]
    %v6866 = vld [vmem:[%s6859 + $0x18] sm:$0xf]
    %v6867 = vld [vmem:[%s6859 + $0x1c] sm:$0xf]
    %v6868 = vld [vmem:[%s6859 + $0x20] sm:$0xf]
    %v6869 = vld [vmem:[%s6859 + $0x24] sm:$0xf]
    %v6870 = vld [vmem:[%s6859 + $0x28] sm:$0xf]
    %v6871 = vld [vmem:[%s6859 + $0x2c] sm:$0xf]
    %v6872 = vld [vmem:[%s6859 + $0x30] sm:$0xf]
    %v6873 = vld [vmem:[%s6859 + $0x34] sm:$0xf]
    %v6874 = vld [vmem:[%s6859 + $0x38] sm:$0xf]
    %v6875 = vld [vmem:[%s6859 + $0x3c] sm:$0xf]
    %v6876 = vld [vmem:[%s6859 + $0x40] sm:$0xf]
    %v6877 = vld [vmem:[%s6859 + $0x44] sm:$0xf]
    %v6878 = vld [vmem:[%s6859 + $0x48] sm:$0xf]
    %v6879 = vld [vmem:[%s6859 + $0x4c] sm:$0xf]
    %v6880 = vld [vmem:[%s6859 + $0x50] sm:$0xf]
    %v6881 = vld [vmem:[%s6859 + $0x54] sm:$0xf]
    %v6882 = vld [vmem:[%s6859 + $0x58] sm:$0xf]
    %v6883 = vld [vmem:[%s6859 + $0x5c] sm:$0xf]
    %v6884 = vld [vmem:[%s6859 + $0x60] sm:$0xf]
    %v6885 = vld [vmem:[%s6859 + $0x64] sm:$0xf]
    %v6886 = vld [vmem:[%s6859 + $0x68] sm:$0xf]
    %v6887 = vld [vmem:[%s6859 + $0x6c] sm:$0xf]
    %v6888 = vld [vmem:[%s6859 + $0x70] sm:$0xf]
    %v6889 = vld [vmem:[%s6859 + $0x74] sm:$0xf]
    %v6890 = vld [vmem:[%s6859 + $0x78] sm:$0xf]
    %v6891 = vld [vmem:[%s6859 + $0x7c] sm:$0xf]
    %v6924 = vunpack.c.l.b16 %v6860
    %v6925 = vunpack.c.l.b16 %v6861
    %v6926 = vunpack.c.l.b16 %v6862
    %v6927 = vunpack.c.l.b16 %v6863
    %v6928 = vunpack.c.l.b16 %v6864
    %v6929 = vunpack.c.l.b16 %v6865
    %v6930 = vunpack.c.l.b16 %v6866
    %v6931 = vunpack.c.l.b16 %v6867
    %v6932 = vunpack.c.l.b16 %v6868
    %v6933 = vunpack.c.l.b16 %v6869
    %v6934 = vunpack.c.l.b16 %v6870
    %v6935 = vunpack.c.l.b16 %v6871
    %v6936 = vunpack.c.l.b16 %v6872
    %v6937 = vunpack.c.l.b16 %v6873
    %v6938 = vunpack.c.l.b16 %v6874
    %v6939 = vunpack.c.l.b16 %v6875
    %v6940 = vunpack.c.l.b16 %v6876
    %v6941 = vunpack.c.l.b16 %v6877
    %v6942 = vunpack.c.l.b16 %v6878
    %v6943 = vunpack.c.l.b16 %v6879
    %v6944 = vunpack.c.l.b16 %v6880
    %v6945 = vunpack.c.l.b16 %v6881
    %v6946 = vunpack.c.l.b16 %v6882
    %v6947 = vunpack.c.l.b16 %v6883
    %v6948 = vunpack.c.l.b16 %v6884
    %v6949 = vunpack.c.l.b16 %v6885
    %v6950 = vunpack.c.l.b16 %v6886
    %v6951 = vunpack.c.l.b16 %v6887
    %v6952 = vunpack.c.l.b16 %v6888
    %v6953 = vunpack.c.l.b16 %v6889
    %v6954 = vunpack.c.l.b16 %v6890
    %v6955 = vunpack.c.l.b16 %v6891
    %v6956 = vpack.c.b16 %v6925, %v6924
    %v6957 = vpack.c.b16 %v6927, %v6926
    %v6958 = vpack.c.b16 %v6929, %v6928
    %v6959 = vpack.c.b16 %v6931, %v6930
    %v6960 = vpack.c.b16 %v6933, %v6932
    %v6961 = vpack.c.b16 %v6935, %v6934
    %v6962 = vpack.c.b16 %v6937, %v6936
    %v6963 = vpack.c.b16 %v6939, %v6938
    %v6964 = vpack.c.b16 %v6941, %v6940
    %v6965 = vpack.c.b16 %v6943, %v6942
    %v6966 = vpack.c.b16 %v6945, %v6944
    %v6967 = vpack.c.b16 %v6947, %v6946
    %v6968 = vpack.c.b16 %v6949, %v6948
    %v6969 = vpack.c.b16 %v6951, %v6950
    %v6970 = vpack.c.b16 %v6953, %v6952
    %v6971 = vpack.c.b16 %v6955, %v6954
    %6988 = vmatpush.bf16.msra.mxu0 %v6244
    %6989 = vmatpush.bf16.msra.mxu0 %v6242
    %6990 = vmatpush.bf16.msra.mxu0 %v6240
    %6991 = vmatpush.bf16.msra.mxu0 %v6238
    %6992 = vmatpush.bf16.msra.mxu0 %v6236
    %6993 = vmatpush.bf16.msra.mxu0 %v6234
    %6994 = vmatpush.bf16.msra.mxu0 %v6232
    %6995 = vmatpush.bf16.msra.mxu0 %v6230
    %6996 = vmatmul.bf16.gmra.mxu0 %v6956
    %v6997 = vpop.f32.mrf.mxu0
    %v6998 = vadd.f32 0.0, %v6997
    %v6999 = vpop.f32.mrf.mxu0
    %v7000 = vadd.f32 0.0, %v6999
    %7001 = vmatmul.bf16.gmra.mxu0 %v6957
    %v7002 = vpop.f32.mrf.mxu0
    %v7003 = vadd.f32 0.0, %v7002
    %v7004 = vpop.f32.mrf.mxu0
    %v7005 = vadd.f32 0.0, %v7004
    %7006 = vmatmul.bf16.gmra.mxu0 %v6958
    %v7007 = vpop.f32.mrf.mxu0
    %v7008 = vadd.f32 0.0, %v7007
    %v7009 = vpop.f32.mrf.mxu0
    %v7010 = vadd.f32 0.0, %v7009
    %7011 = vmatmul.bf16.gmra.mxu0 %v6959
    %v7012 = vpop.f32.mrf.mxu0
    %v7013 = vadd.f32 0.0, %v7012
    %v7014 = vpop.f32.mrf.mxu0
    %v7015 = vadd.f32 0.0, %v7014
    %7016 = vmatmul.bf16.gmra.mxu0 %v6960
    %v7017 = vpop.f32.mrf.mxu0
    %v7018 = vadd.f32 0.0, %v7017
    %v7019 = vpop.f32.mrf.mxu0
    %v7020 = vadd.f32 0.0, %v7019
    %7021 = vmatmul.bf16.gmra.mxu0 %v6961
    %v7022 = vpop.f32.mrf.mxu0
    %v7023 = vadd.f32 0.0, %v7022
    %v7024 = vpop.f32.mrf.mxu0
    %v7025 = vadd.f32 0.0, %v7024
    %7026 = vmatmul.bf16.gmra.mxu0 %v6962
    %v7027 = vpop.f32.mrf.mxu0
    %v7028 = vadd.f32 0.0, %v7027
    %v7029 = vpop.f32.mrf.mxu0
    %v7030 = vadd.f32 0.0, %v7029
    %7031 = vmatmul.bf16.gmra.mxu0 %v6963
    %v7032 = vpop.f32.mrf.mxu0
    %v7033 = vadd.f32 0.0, %v7032
    %v7034 = vpop.f32.mrf.mxu0
    %v7035 = vadd.f32 0.0, %v7034
    %7036 = vmatmul.bf16.gmra.mxu0 %v6964
    %v7037 = vpop.f32.mrf.mxu0
    %v7038 = vadd.f32 0.0, %v7037
    %v7039 = vpop.f32.mrf.mxu0
    %v7040 = vadd.f32 0.0, %v7039
    %7041 = vmatmul.bf16.gmra.mxu0 %v6965
    %v7042 = vpop.f32.mrf.mxu0
    %v7043 = vadd.f32 0.0, %v7042
    %v7044 = vpop.f32.mrf.mxu0
    %v7045 = vadd.f32 0.0, %v7044
    %7046 = vmatmul.bf16.gmra.mxu0 %v6966
    %v7047 = vpop.f32.mrf.mxu0
    %v7048 = vadd.f32 0.0, %v7047
    %v7049 = vpop.f32.mrf.mxu0
    %v7050 = vadd.f32 0.0, %v7049
    %7051 = vmatmul.bf16.gmra.mxu0 %v6967
    %v7052 = vpop.f32.mrf.mxu0
    %v7053 = vadd.f32 0.0, %v7052
    %v7054 = vpop.f32.mrf.mxu0
    %v7055 = vadd.f32 0.0, %v7054
    %7056 = vmatmul.bf16.gmra.mxu0 %v6968
    %v7057 = vpop.f32.mrf.mxu0
    %v7058 = vadd.f32 0.0, %v7057
    %v7059 = vpop.f32.mrf.mxu0
    %v7060 = vadd.f32 0.0, %v7059
    %7061 = vmatmul.bf16.gmra.mxu0 %v6969
    %v7062 = vpop.f32.mrf.mxu0
    %v7063 = vadd.f32 0.0, %v7062
    %v7064 = vpop.f32.mrf.mxu0
    %v7065 = vadd.f32 0.0, %v7064
    %7066 = vmatmul.bf16.gmra.mxu0 %v6970
    %v7067 = vpop.f32.mrf.mxu0
    %v7068 = vadd.f32 0.0, %v7067
    %v7069 = vpop.f32.mrf.mxu0
    %v7070 = vadd.f32 0.0, %v7069
    %7071 = vmatmul.bf16.gmra.mxu0 %v6971
    %v7072 = vpop.f32.mrf.mxu0
    %v7073 = vadd.f32 0.0, %v7072
    %v7074 = vpop.f32.mrf.mxu0
    %v7075 = vadd.f32 0.0, %v7074
    %7076 = vdwg.mxu0
    %7077 = vmatpush.bf16.msra.mxu0 %v6245
    %7078 = vmatpush.bf16.msra.mxu0 %v6243
    %7079 = vmatpush.bf16.msra.mxu0 %v6241
    %7080 = vmatpush.bf16.msra.mxu0 %v6239
    %7081 = vmatpush.bf16.msra.mxu0 %v6237
    %7082 = vmatpush.bf16.msra.mxu0 %v6235
    %7083 = vmatpush.bf16.msra.mxu0 %v6233
    %7084 = vmatpush.bf16.msra.mxu0 %v6231
    %7085 = vmatmul.bf16.gmra.mxu0 %v6956
    %v7086 = vpop.f32.mrf.mxu0
    %v7087 = vadd.f32 0.0, %v7086
    %v7088 = vpop.f32.mrf.mxu0
    %v7089 = vadd.f32 0.0, %v7088
    %7090 = vmatmul.bf16.gmra.mxu0 %v6957
    %v7091 = vpop.f32.mrf.mxu0
    %v7092 = vadd.f32 0.0, %v7091
    %v7093 = vpop.f32.mrf.mxu0
    %v7094 = vadd.f32 0.0, %v7093
    %7095 = vmatmul.bf16.gmra.mxu0 %v6958
    %v7096 = vpop.f32.mrf.mxu0
    %v7097 = vadd.f32 0.0, %v7096
    %v7098 = vpop.f32.mrf.mxu0
    %v7099 = vadd.f32 0.0, %v7098
    %7100 = vmatmul.bf16.gmra.mxu0 %v6959
    %v7101 = vpop.f32.mrf.mxu0
    %v7102 = vadd.f32 0.0, %v7101
    %v7103 = vpop.f32.mrf.mxu0
    %v7104 = vadd.f32 0.0, %v7103
    %7105 = vmatmul.bf16.gmra.mxu0 %v6960
    %v7106 = vpop.f32.mrf.mxu0
    %v7107 = vadd.f32 0.0, %v7106
    %v7108 = vpop.f32.mrf.mxu0
    %v7109 = vadd.f32 0.0, %v7108
    %7110 = vmatmul.bf16.gmra.mxu0 %v6961
    %v7111 = vpop.f32.mrf.mxu0
    %v7112 = vadd.f32 0.0, %v7111
    %v7113 = vpop.f32.mrf.mxu0
    %v7114 = vadd.f32 0.0, %v7113
    %7115 = vmatmul.bf16.gmra.mxu0 %v6962
    %v7116 = vpop.f32.mrf.mxu0
    %v7117 = vadd.f32 0.0, %v7116
    %v7118 = vpop.f32.mrf.mxu0
    %v7119 = vadd.f32 0.0, %v7118
    %7120 = vmatmul.bf16.gmra.mxu0 %v6963
    %v7121 = vpop.f32.mrf.mxu0
    %v7122 = vadd.f32 0.0, %v7121
    %v7123 = vpop.f32.mrf.mxu0
    %v7124 = vadd.f32 0.0, %v7123
    %7125 = vmatmul.bf16.gmra.mxu0 %v6964
    %v7126 = vpop.f32.mrf.mxu0
    %v7127 = vadd.f32 0.0, %v7126
    %v7128 = vpop.f32.mrf.mxu0
    %v7129 = vadd.f32 0.0, %v7128
    %7130 = vmatmul.bf16.gmra.mxu0 %v6965
    %v7131 = vpop.f32.mrf.mxu0
    %v7132 = vadd.f32 0.0, %v7131
    %v7133 = vpop.f32.mrf.mxu0
    %v7134 = vadd.f32 0.0, %v7133
    %7135 = vmatmul.bf16.gmra.mxu0 %v6966
    %v7136 = vpop.f32.mrf.mxu0
    %v7137 = vadd.f32 0.0, %v7136
    %v7138 = vpop.f32.mrf.mxu0
    %v7139 = vadd.f32 0.0, %v7138
    %7140 = vmatmul.bf16.gmra.mxu0 %v6967
    %v7141 = vpop.f32.mrf.mxu0
    %v7142 = vadd.f32 0.0, %v7141
    %v7143 = vpop.f32.mrf.mxu0
    %v7144 = vadd.f32 0.0, %v7143
    %7145 = vmatmul.bf16.gmra.mxu0 %v6968
    %v7146 = vpop.f32.mrf.mxu0
    %v7147 = vadd.f32 0.0, %v7146
    %v7148 = vpop.f32.mrf.mxu0
    %v7149 = vadd.f32 0.0, %v7148
    %7150 = vmatmul.bf16.gmra.mxu0 %v6969
    %v7151 = vpop.f32.mrf.mxu0
    %v7152 = vadd.f32 0.0, %v7151
    %v7153 = vpop.f32.mrf.mxu0
    %v7154 = vadd.f32 0.0, %v7153
    %7155 = vmatmul.bf16.gmra.mxu0 %v6970
    %v7156 = vpop.f32.mrf.mxu0
    %v7157 = vadd.f32 0.0, %v7156
    %v7158 = vpop.f32.mrf.mxu0
    %v7159 = vadd.f32 0.0, %v7158
    %7160 = vmatmul.bf16.gmra.mxu0 %v6971
    %v7161 = vpop.f32.mrf.mxu0
    %v7162 = vadd.f32 0.0, %v7161
    %v7163 = vpop.f32.mrf.mxu0
    %v7164 = vadd.f32 0.0, %v7163
    %7165 = vdwg.mxu0
    %v7166 = vpack.c.bf16 %v6386, %v6384
    %v7167 = vpack.c.bf16 %v6475, %v6473
    %v7168 = vpack.c.bf16 %v6693, %v6691
    %v7169 = vpack.c.bf16 %v6782, %v6780
    %v7170 = vpack.c.bf16 %v7000, %v6998
    %v7171 = vpack.c.bf16 %v7089, %v7087
    %v7172 = vpack.c.bf16 %v6391, %v6389
    %v7173 = vpack.c.bf16 %v6480, %v6478
    %v7174 = vpack.c.bf16 %v6698, %v6696
    %v7175 = vpack.c.bf16 %v6787, %v6785
    %v7176 = vpack.c.bf16 %v7005, %v7003
    %v7177 = vpack.c.bf16 %v7094, %v7092
    %v7178 = vpack.c.bf16 %v6396, %v6394
    %v7179 = vpack.c.bf16 %v6485, %v6483
    %v7180 = vpack.c.bf16 %v6703, %v6701
    %v7181 = vpack.c.bf16 %v6792, %v6790
    %v7182 = vpack.c.bf16 %v7010, %v7008
    %v7183 = vpack.c.bf16 %v7099, %v7097
    %v7184 = vpack.c.bf16 %v6401, %v6399
    %v7185 = vpack.c.bf16 %v6490, %v6488
    %v7186 = vpack.c.bf16 %v6708, %v6706
    %v7187 = vpack.c.bf16 %v6797, %v6795
    %v7188 = vpack.c.bf16 %v7015, %v7013
    %v7189 = vpack.c.bf16 %v7104, %v7102
    %v7190 = vpack.c.bf16 %v6406, %v6404
    %v7191 = vpack.c.bf16 %v6495, %v6493
    %v7192 = vpack.c.bf16 %v6713, %v6711
    %v7193 = vpack.c.bf16 %v6802, %v6800
    %v7194 = vpack.c.bf16 %v7020, %v7018
    %v7195 = vpack.c.bf16 %v7109, %v7107
    %v7196 = vpack.c.bf16 %v6411, %v6409
    %v7197 = vpack.c.bf16 %v6500, %v6498
    %v7198 = vpack.c.bf16 %v6718, %v6716
    %v7199 = vpack.c.bf16 %v6807, %v6805
    %v7200 = vpack.c.bf16 %v7025, %v7023
    %v7201 = vpack.c.bf16 %v7114, %v7112
    %v7202 = vpack.c.bf16 %v6416, %v6414
    %v7203 = vpack.c.bf16 %v6505, %v6503
    %v7204 = vpack.c.bf16 %v6723, %v6721
    %v7205 = vpack.c.bf16 %v6812, %v6810
    %v7206 = vpack.c.bf16 %v7030, %v7028
    %v7207 = vpack.c.bf16 %v7119, %v7117
    %v7208 = vpack.c.bf16 %v6421, %v6419
    %v7209 = vpack.c.bf16 %v6510, %v6508
    %v7210 = vpack.c.bf16 %v6728, %v6726
    %v7211 = vpack.c.bf16 %v6817, %v6815
    %v7212 = vpack.c.bf16 %v7035, %v7033
    %v7213 = vpack.c.bf16 %v7124, %v7122
    %v7214 = vpack.c.bf16 %v6426, %v6424
    %v7215 = vpack.c.bf16 %v6515, %v6513
    %v7216 = vpack.c.bf16 %v6733, %v6731
    %v7217 = vpack.c.bf16 %v6822, %v6820
    %v7218 = vpack.c.bf16 %v7040, %v7038
    %v7219 = vpack.c.bf16 %v7129, %v7127
    %v7220 = vpack.c.bf16 %v6431, %v6429
    %v7221 = vpack.c.bf16 %v6520, %v6518
    %v7222 = vpack.c.bf16 %v6738, %v6736
    %v7223 = vpack.c.bf16 %v6827, %v6825
    %v7224 = vpack.c.bf16 %v7045, %v7043
    %v7225 = vpack.c.bf16 %v7134, %v7132
    %v7226 = vpack.c.bf16 %v6436, %v6434
    %v7227 = vpack.c.bf16 %v6525, %v6523
    %v7228 = vpack.c.bf16 %v6743, %v6741
    %v7229 = vpack.c.bf16 %v6832, %v6830
    %v7230 = vpack.c.bf16 %v7050, %v7048
    %v7231 = vpack.c.bf16 %v7139, %v7137
    %v7232 = vpack.c.bf16 %v6441, %v6439
    %v7233 = vpack.c.bf16 %v6530, %v6528
    %v7234 = vpack.c.bf16 %v6748, %v6746
    %v7235 = vpack.c.bf16 %v6837, %v6835
    %v7236 = vpack.c.bf16 %v7055, %v7053
    %v7237 = vpack.c.bf16 %v7144, %v7142
    %v7238 = vpack.c.bf16 %v6446, %v6444
    %v7239 = vpack.c.bf16 %v6535, %v6533
    %v7240 = vpack.c.bf16 %v6753, %v6751
    %v7241 = vpack.c.bf16 %v6842, %v6840
    %v7242 = vpack.c.bf16 %v7060, %v7058
    %v7243 = vpack.c.bf16 %v7149, %v7147
    %v7244 = vpack.c.bf16 %v6451, %v6449
    %v7245 = vpack.c.bf16 %v6540, %v6538
    %v7246 = vpack.c.bf16 %v6758, %v6756
    %v7247 = vpack.c.bf16 %v6847, %v6845
    %v7248 = vpack.c.bf16 %v7065, %v7063
    %v7249 = vpack.c.bf16 %v7154, %v7152
    %v7250 = vpack.c.bf16 %v6456, %v6454
    %v7251 = vpack.c.bf16 %v6545, %v6543
    %v7252 = vpack.c.bf16 %v6763, %v6761
    %v7253 = vpack.c.bf16 %v6852, %v6850
    %v7254 = vpack.c.bf16 %v7070, %v7068
    %v7255 = vpack.c.bf16 %v7159, %v7157
    %v7256 = vpack.c.bf16 %v6461, %v6459
    %v7257 = vpack.c.bf16 %v6550, %v6548
    %v7258 = vpack.c.bf16 %v6768, %v6766
    %v7259 = vpack.c.bf16 %v6857, %v6855
    %v7260 = vpack.c.bf16 %v7075, %v7073
    %v7261 = vpack.c.bf16 %v7164, %v7162
    %v7262 = vld [vmem:[#allocation2 + $0x8] sm:$0xff]
    %v7263 = vld [vmem:[#allocation2 + $0x10] sm:$0xf]
    %v7264 = vld [vmem:[#allocation2 + $0x1c] sm:$0xff]
    %v7265 = vld [vmem:[#allocation2 + $0x24] sm:$0xf]
    %v7266 = vld [vmem:[#allocation2 + $0x30] sm:$0xff]
    %v7267 = vld [vmem:[#allocation2 + $0x38] sm:$0xf]
    %v7268 = vld [vmem:[#allocation2 + $0x44] sm:$0xff]
    %v7269 = vld [vmem:[#allocation2 + $0x4c] sm:$0xf]
    %v7270 = vld [vmem:[#allocation2 + $0x58] sm:$0xff]
    %v7271 = vld [vmem:[#allocation2 + $0x60] sm:$0xf]
    %v7272 = vld [vmem:[#allocation2 + $0x6c] sm:$0xff]
    %v7273 = vld [vmem:[#allocation2 + $0x74] sm:$0xf]
    %v7274 = vld [vmem:[#allocation2 + $0x80] sm:$0xff]
    %v7275 = vld [vmem:[#allocation2 + $0x88] sm:$0xf]
    %v7276 = vld [vmem:[#allocation2 + $0x94] sm:$0xff]
    %v7277 = vld [vmem:[#allocation2 + $0x9c] sm:$0xf]
    %v7278 = vld [vmem:[#allocation2 + $0xa8] sm:$0xff]
    %v7279 = vld [vmem:[#allocation2 + $0xb0] sm:$0xf]
    %v7280 = vld [vmem:[#allocation2 + $0xbc] sm:$0xff]
    %v7281 = vld [vmem:[#allocation2 + $0xc4] sm:$0xf]
    %v7282 = vld [vmem:[#allocation2 + $0xd0] sm:$0xff]
    %v7283 = vld [vmem:[#allocation2 + $0xd8] sm:$0xf]
    %v7284 = vld [vmem:[#allocation2 + $0xe4] sm:$0xff]
    %v7285 = vld [vmem:[#allocation2 + $0xec] sm:$0xf]
    %v7286 = vld [vmem:[#allocation2 + $0xf8] sm:$0xff]
    %v7287 = vld [vmem:[#allocation2 + $0x100] sm:$0xf]
    %v7288 = vld [vmem:[#allocation2 + $0x10c] sm:$0xff]
    %v7289 = vld [vmem:[#allocation2 + $0x114] sm:$0xf]
    %v7290 = vld [vmem:[#allocation2 + $0x120] sm:$0xff]
    %v7291 = vld [vmem:[#allocation2 + $0x128] sm:$0xf]
    %v7292 = vld [vmem:[#allocation2 + $0x134] sm:$0xff]
    %v7293 = vld [vmem:[#allocation2 + $0x13c] sm:$0xf]
    %v7294 = vld [vmem:[#allocation2 + $0x148] sm:$0xff]
    %v7295 = vld [vmem:[#allocation2 + $0x150] sm:$0xf]
    %v7296 = vld [vmem:[#allocation2 + $0x15c] sm:$0xff]
    %v7297 = vld [vmem:[#allocation2 + $0x164] sm:$0xf]
    %v7298 = vld [vmem:[#allocation2 + $0x170] sm:$0xff]
    %v7299 = vld [vmem:[#allocation2 + $0x178] sm:$0xf]
    %v7300 = vld [vmem:[#allocation2 + $0x184] sm:$0xff]
    %v7301 = vld [vmem:[#allocation2 + $0x18c] sm:$0xf]
    %v7302 = vld [vmem:[#allocation2 + $0x198] sm:$0xff]
    %v7303 = vld [vmem:[#allocation2 + $0x1a0] sm:$0xf]
    %v7304 = vld [vmem:[#allocation2 + $0x1ac] sm:$0xff]
    %v7305 = vld [vmem:[#allocation2 + $0x1b4] sm:$0xf]
    %v7306 = vld [vmem:[#allocation2 + $0x1c0] sm:$0xff]
    %v7307 = vld [vmem:[#allocation2 + $0x1c8] sm:$0xf]
    %v7308 = vld [vmem:[#allocation2 + $0x1d4] sm:$0xff]
    %v7309 = vld [vmem:[#allocation2 + $0x1dc] sm:$0xf]
    %v7310 = vld [vmem:[#allocation2 + $0x1e8] sm:$0xff]
    %v7311 = vld [vmem:[#allocation2 + $0x1f0] sm:$0xf]
    %v7312 = vld [vmem:[#allocation2 + $0x1fc] sm:$0xff]
    %v7313 = vld [vmem:[#allocation2 + $0x204] sm:$0xf]
    %v7314 = vld [vmem:[#allocation2 + $0x210] sm:$0xff]
    %v7315 = vld [vmem:[#allocation2 + $0x218] sm:$0xf]
    %v7316 = vld [vmem:[#allocation2 + $0x224] sm:$0xff]
    %v7317 = vld [vmem:[#allocation2 + $0x22c] sm:$0xf]
    %v7318 = vld [vmem:[#allocation2 + $0x238] sm:$0xff]
    %v7319 = vld [vmem:[#allocation2 + $0x240] sm:$0xf]
    %v7320 = vld [vmem:[#allocation2 + $0x24c] sm:$0xff]
    %v7321 = vld [vmem:[#allocation2 + $0x254] sm:$0xf]
    %v7322 = vld [vmem:[#allocation2 + $0x260] sm:$0xff]
    %v7323 = vld [vmem:[#allocation2 + $0x268] sm:$0xf]
    %v7324 = vld [vmem:[#allocation2 + $0x274] sm:$0xff]
    %v7325 = vld [vmem:[#allocation2 + $0x27c] sm:$0xf]
    %v7326 = vld [vmem:[#allocation2 + $0x288] sm:$0xff]
    %v7327 = vld [vmem:[#allocation2 + $0x290] sm:$0xf]
    %v7328 = vld [vmem:[#allocation2 + $0x29c] sm:$0xff]
    %v7329 = vld [vmem:[#allocation2 + $0x2a4] sm:$0xf]
    %v7330 = vld [vmem:[#allocation2 + $0x2b0] sm:$0xff]
    %v7331 = vld [vmem:[#allocation2 + $0x2b8] sm:$0xf]
    %v7332 = vld [vmem:[#allocation2 + $0x2c4] sm:$0xff]
    %v7333 = vld [vmem:[#allocation2 + $0x2cc] sm:$0xf]
    %v7334 = vld [vmem:[#allocation2 + $0x2d8] sm:$0xff]
    %v7335 = vld [vmem:[#allocation2 + $0x2e0] sm:$0xf]
    %v7336 = vld [vmem:[#allocation2 + $0x2ec] sm:$0xff]
    %v7337 = vld [vmem:[#allocation2 + $0x2f4] sm:$0xf]
    %v7338 = vld [vmem:[#allocation2 + $0x300] sm:$0xff]
    %v7339 = vld [vmem:[#allocation2 + $0x308] sm:$0xf]
    %v7340 = vld [vmem:[#allocation2 + $0x314] sm:$0xff]
    %v7341 = vld [vmem:[#allocation2 + $0x31c] sm:$0xf]
    %v7342 = vld [vmem:[#allocation2 + $0x328] sm:$0xff]
    %v7343 = vld [vmem:[#allocation2 + $0x330] sm:$0xf]
    %v7344 = vld [vmem:[#allocation2 + $0x33c] sm:$0xff]
    %v7345 = vld [vmem:[#allocation2 + $0x344] sm:$0xf]
    %v7346 = vld [vmem:[#allocation2 + $0x350] sm:$0xff]
    %v7347 = vld [vmem:[#allocation2 + $0x358] sm:$0xf]
    %v7348 = vld [vmem:[#allocation2 + $0x364] sm:$0xff]
    %v7349 = vld [vmem:[#allocation2 + $0x36c] sm:$0xf]
    %v7350 = vld [vmem:[#allocation2 + $0x378] sm:$0xff]
    %v7351 = vld [vmem:[#allocation2 + $0x380] sm:$0xf]
    %v7352 = vld [vmem:[#allocation2 + $0x38c] sm:$0xff]
    %v7353 = vld [vmem:[#allocation2 + $0x394] sm:$0xf]
    %v7354 = vld [vmem:[#allocation2 + $0x3a0] sm:$0xff]
    %v7355 = vld [vmem:[#allocation2 + $0x3a8] sm:$0xf]
    %v7356 = vld [vmem:[#allocation2 + $0x3b4] sm:$0xff]
    %v7357 = vld [vmem:[#allocation2 + $0x3bc] sm:$0xf]
    %v7358 = vld [vmem:[#allocation2 + $0x3c8] sm:$0xff]
    %v7359 = vld [vmem:[#allocation2 + $0x3d0] sm:$0xf]
    %v7360 = vld [vmem:[#allocation2 + $0x3dc] sm:$0xff]
    %v7361 = vld [vmem:[#allocation2 + $0x3e4] sm:$0xf]
    %v7362 = vld [vmem:[#allocation2 + $0x3f0] sm:$0xff]
    %v7363 = vld [vmem:[#allocation2 + $0x3f8] sm:$0xf]
    %v7364 = vld [vmem:[#allocation2 + $0x404] sm:$0xff]
    %v7365 = vld [vmem:[#allocation2 + $0x40c] sm:$0xf]
    %v7366 = vld [vmem:[#allocation2 + $0x418] sm:$0xff]
    %v7367 = vld [vmem:[#allocation2 + $0x420] sm:$0xf]
    %v7368 = vld [vmem:[#allocation2 + $0x42c] sm:$0xff]
    %v7369 = vld [vmem:[#allocation2 + $0x434] sm:$0xf]
    %v7370 = vld [vmem:[#allocation2 + $0x440] sm:$0xff]
    %v7371 = vld [vmem:[#allocation2 + $0x448] sm:$0xf]
    %v7372 = vld [vmem:[#allocation2 + $0x454] sm:$0xff]
    %v7373 = vld [vmem:[#allocation2 + $0x45c] sm:$0xf]
    %v7374 = vld [vmem:[#allocation2 + $0x468] sm:$0xff]
    %v7375 = vld [vmem:[#allocation2 + $0x470] sm:$0xf]
    %v7376 = vld [vmem:[#allocation2 + $0x47c] sm:$0xff]
    %v7377 = vld [vmem:[#allocation2 + $0x484] sm:$0xf]
    %v7378 = vld [vmem:[#allocation2 + $0x490] sm:$0xff]
    %v7379 = vld [vmem:[#allocation2 + $0x498] sm:$0xf]
    %v7380 = vld [vmem:[#allocation2 + $0x4a4] sm:$0xff]
    %v7381 = vld [vmem:[#allocation2 + $0x4ac] sm:$0xf]
    %v7382 = vld [vmem:[#allocation2 + $0x4b8] sm:$0xff]
    %v7383 = vld [vmem:[#allocation2 + $0x4c0] sm:$0xf]
    %v7384 = vld [vmem:[#allocation2 + $0x4cc] sm:$0xff]
    %v7385 = vld [vmem:[#allocation2 + $0x4d4] sm:$0xf]
    %v7386 = vld [vmem:[#allocation2 + $0x4e0] sm:$0xff]
    %v7387 = vld [vmem:[#allocation2 + $0x4e8] sm:$0xf]
    %v7388 = vld [vmem:[#allocation2 + $0x4f4] sm:$0xff]
    %v7389 = vld [vmem:[#allocation2 + $0x4fc] sm:$0xf]
    %v7390 = vld [vmem:[#allocation2 + $0x508] sm:$0xff]
    %v7391 = vld [vmem:[#allocation2 + $0x510] sm:$0xf]
    %v7392 = vld [vmem:[#allocation2 + $0x51c] sm:$0xff]
    %v7393 = vld [vmem:[#allocation2 + $0x524] sm:$0xf]
    %v7394 = vld [vmem:[#allocation2 + $0x530] sm:$0xff]
    %v7395 = vld [vmem:[#allocation2 + $0x538] sm:$0xf]
    %v7396 = vld [vmem:[#allocation2 + $0x544] sm:$0xff]
    %v7397 = vld [vmem:[#allocation2 + $0x54c] sm:$0xf]
    %v7398 = vld [vmem:[#allocation2 + $0x558] sm:$0xff]
    %v7399 = vld [vmem:[#allocation2 + $0x560] sm:$0xf]
    %v7400 = vld [vmem:[#allocation2 + $0x56c] sm:$0xff]
    %v7401 = vld [vmem:[#allocation2 + $0x574] sm:$0xf]
    %v7402 = vld [vmem:[#allocation2 + $0x580] sm:$0xff]
    %v7403 = vld [vmem:[#allocation2 + $0x588] sm:$0xf]
    %v7404 = vld [vmem:[#allocation2 + $0x594] sm:$0xff]
    %v7405 = vld [vmem:[#allocation2 + $0x59c] sm:$0xf]
    %v7406 = vld [vmem:[#allocation2 + $0x5a8] sm:$0xff]
    %v7407 = vld [vmem:[#allocation2 + $0x5b0] sm:$0xf]
    %v7408 = vld [vmem:[#allocation2 + $0x5bc] sm:$0xff]
    %v7409 = vld [vmem:[#allocation2 + $0x5c4] sm:$0xf]
    %v7410 = vld [vmem:[#allocation2 + $0x5d0] sm:$0xff]
    %v7411 = vld [vmem:[#allocation2 + $0x5d8] sm:$0xf]
    %v7412 = vld [vmem:[#allocation2 + $0x5e4] sm:$0xff]
    %v7413 = vld [vmem:[#allocation2 + $0x5ec] sm:$0xf]
    %v7414 = vld [vmem:[#allocation2 + $0x5f8] sm:$0xff]
    %v7415 = vld [vmem:[#allocation2 + $0x600] sm:$0xf]
    %v7416 = vld [vmem:[#allocation2 + $0x60c] sm:$0xff]
    %v7417 = vld [vmem:[#allocation2 + $0x614] sm:$0xf]
    %v7418 = vld [vmem:[#allocation2 + $0x620] sm:$0xff]
    %v7419 = vld [vmem:[#allocation2 + $0x628] sm:$0xf]
    %v7420 = vld [vmem:[#allocation2 + $0x634] sm:$0xff]
    %v7421 = vld [vmem:[#allocation2 + $0x63c] sm:$0xf]
    %v7422 = vld [vmem:[#allocation2 + $0x648] sm:$0xff]
    %v7423 = vld [vmem:[#allocation2 + $0x650] sm:$0xf]
    %v7424 = vld [vmem:[#allocation2 + $0x65c] sm:$0xff]
    %v7425 = vld [vmem:[#allocation2 + $0x664] sm:$0xf]
    %v7426 = vld [vmem:[#allocation2 + $0x670] sm:$0xff]
    %v7427 = vld [vmem:[#allocation2 + $0x678] sm:$0xf]
    %v7428 = vld [vmem:[#allocation2 + $0x684] sm:$0xff]
    %v7429 = vld [vmem:[#allocation2 + $0x68c] sm:$0xf]
    %v7430 = vld [vmem:[#allocation2 + $0x698] sm:$0xff]
    %v7431 = vld [vmem:[#allocation2 + $0x6a0] sm:$0xf]
    %v7432 = vld [vmem:[#allocation2 + $0x6ac] sm:$0xff]
    %v7433 = vld [vmem:[#allocation2 + $0x6b4] sm:$0xf]
    %v7434 = vld [vmem:[#allocation2 + $0x6c0] sm:$0xff]
    %v7435 = vld [vmem:[#allocation2 + $0x6c8] sm:$0xf]
    %v7436 = vld [vmem:[#allocation2 + $0x6d4] sm:$0xff]
    %v7437 = vld [vmem:[#allocation2 + $0x6dc] sm:$0xf]
    %v7438 = vld [vmem:[#allocation2 + $0x6e8] sm:$0xff]
    %v7439 = vld [vmem:[#allocation2 + $0x6f0] sm:$0xf]
    %v7440 = vld [vmem:[#allocation2 + $0x6fc] sm:$0xff]
    %v7441 = vld [vmem:[#allocation2 + $0x704] sm:$0xf]
    %v7442 = vld [vmem:[#allocation2 + $0x710] sm:$0xff]
    %v7443 = vld [vmem:[#allocation2 + $0x718] sm:$0xf]
    %v7444 = vld [vmem:[#allocation2 + $0x724] sm:$0xff]
    %v7445 = vld [vmem:[#allocation2 + $0x72c] sm:$0xf]
    %v7446 = vld [vmem:[#allocation2 + $0x738] sm:$0xff]
    %v7447 = vld [vmem:[#allocation2 + $0x740] sm:$0xf]
    %v7448 = vld [vmem:[#allocation2 + $0x74c] sm:$0xff]
    %v7449 = vld [vmem:[#allocation2 + $0x754] sm:$0xf]
    %v7450 = vld [vmem:[#allocation2 + $0x760] sm:$0xff]
    %v7451 = vld [vmem:[#allocation2 + $0x768] sm:$0xf]
    %v7452 = vld [vmem:[#allocation2 + $0x774] sm:$0xff]
    %v7453 = vld [vmem:[#allocation2 + $0x77c] sm:$0xf]
    %v7646 = vunpack.c.l.b16 %v7262
    %v7647 = vunpack.c.h.b16 %v7262
    %v7648 = vunpack.c.l.b16 %v7263
    %v7649 = vunpack.c.l.b16 %v7264
    %v7650 = vunpack.c.h.b16 %v7264
    %v7651 = vunpack.c.l.b16 %v7265
    %v7652 = vunpack.c.l.b16 %v7266
    %v7653 = vunpack.c.h.b16 %v7266
    %v7654 = vunpack.c.l.b16 %v7267
    %v7655 = vunpack.c.l.b16 %v7268
    %v7656 = vunpack.c.h.b16 %v7268
    %v7657 = vunpack.c.l.b16 %v7269
    %v7658 = vunpack.c.l.b16 %v7270
    %v7659 = vunpack.c.h.b16 %v7270
    %v7660 = vunpack.c.l.b16 %v7271
    %v7661 = vunpack.c.l.b16 %v7272
    %v7662 = vunpack.c.h.b16 %v7272
    %v7663 = vunpack.c.l.b16 %v7273
    %v7664 = vunpack.c.l.b16 %v7274
    %v7665 = vunpack.c.h.b16 %v7274
    %v7666 = vunpack.c.l.b16 %v7275
    %v7667 = vunpack.c.l.b16 %v7276
    %v7668 = vunpack.c.h.b16 %v7276
    %v7669 = vunpack.c.l.b16 %v7277
    %v7670 = vunpack.c.l.b16 %v7278
    %v7671 = vunpack.c.h.b16 %v7278
    %v7672 = vunpack.c.l.b16 %v7279
    %v7673 = vunpack.c.l.b16 %v7280
    %v7674 = vunpack.c.h.b16 %v7280
    %v7675 = vunpack.c.l.b16 %v7281
    %v7676 = vunpack.c.l.b16 %v7282
    %v7677 = vunpack.c.h.b16 %v7282
    %v7678 = vunpack.c.l.b16 %v7283
    %v7679 = vunpack.c.l.b16 %v7284
    %v7680 = vunpack.c.h.b16 %v7284
    %v7681 = vunpack.c.l.b16 %v7285
    %v7682 = vunpack.c.l.b16 %v7286
    %v7683 = vunpack.c.h.b16 %v7286
    %v7684 = vunpack.c.l.b16 %v7287
    %v7685 = vunpack.c.l.b16 %v7288
    %v7686 = vunpack.c.h.b16 %v7288
    %v7687 = vunpack.c.l.b16 %v7289
    %v7688 = vunpack.c.l.b16 %v7290
    %v7689 = vunpack.c.h.b16 %v7290
    %v7690 = vunpack.c.l.b16 %v7291
    %v7691 = vunpack.c.l.b16 %v7292
    %v7692 = vunpack.c.h.b16 %v7292
    %v7693 = vunpack.c.l.b16 %v7293
    %v7694 = vunpack.c.l.b16 %v7294
    %v7695 = vunpack.c.h.b16 %v7294
    %v7696 = vunpack.c.l.b16 %v7295
    %v7697 = vunpack.c.l.b16 %v7296
    %v7698 = vunpack.c.h.b16 %v7296
    %v7699 = vunpack.c.l.b16 %v7297
    %v7700 = vunpack.c.l.b16 %v7298
    %v7701 = vunpack.c.h.b16 %v7298
    %v7702 = vunpack.c.l.b16 %v7299
    %v7703 = vunpack.c.l.b16 %v7300
    %v7704 = vunpack.c.h.b16 %v7300
    %v7705 = vunpack.c.l.b16 %v7301
    %v7706 = vunpack.c.l.b16 %v7302
    %v7707 = vunpack.c.h.b16 %v7302
    %v7708 = vunpack.c.l.b16 %v7303
    %v7709 = vunpack.c.l.b16 %v7304
    %v7710 = vunpack.c.h.b16 %v7304
    %v7711 = vunpack.c.l.b16 %v7305
    %v7712 = vunpack.c.l.b16 %v7306
    %v7713 = vunpack.c.h.b16 %v7306
    %v7714 = vunpack.c.l.b16 %v7307
    %v7715 = vunpack.c.l.b16 %v7308
    %v7716 = vunpack.c.h.b16 %v7308
    %v7717 = vunpack.c.l.b16 %v7309
    %v7718 = vunpack.c.l.b16 %v7310
    %v7719 = vunpack.c.h.b16 %v7310
    %v7720 = vunpack.c.l.b16 %v7311
    %v7721 = vunpack.c.l.b16 %v7312
    %v7722 = vunpack.c.h.b16 %v7312
    %v7723 = vunpack.c.l.b16 %v7313
    %v7724 = vunpack.c.l.b16 %v7314
    %v7725 = vunpack.c.h.b16 %v7314
    %v7726 = vunpack.c.l.b16 %v7315
    %v7727 = vunpack.c.l.b16 %v7316
    %v7728 = vunpack.c.h.b16 %v7316
    %v7729 = vunpack.c.l.b16 %v7317
    %v7730 = vunpack.c.l.b16 %v7318
    %v7731 = vunpack.c.h.b16 %v7318
    %v7732 = vunpack.c.l.b16 %v7319
    %v7733 = vunpack.c.l.b16 %v7320
    %v7734 = vunpack.c.h.b16 %v7320
    %v7735 = vunpack.c.l.b16 %v7321
    %v7736 = vunpack.c.l.b16 %v7322
    %v7737 = vunpack.c.h.b16 %v7322
    %v7738 = vunpack.c.l.b16 %v7323
    %v7739 = vunpack.c.l.b16 %v7324
    %v7740 = vunpack.c.h.b16 %v7324
    %v7741 = vunpack.c.l.b16 %v7325
    %v7742 = vunpack.c.l.b16 %v7326
    %v7743 = vunpack.c.h.b16 %v7326
    %v7744 = vunpack.c.l.b16 %v7327
    %v7745 = vunpack.c.l.b16 %v7328
    %v7746 = vunpack.c.h.b16 %v7328
    %v7747 = vunpack.c.l.b16 %v7329
    %v7748 = vunpack.c.l.b16 %v7330
    %v7749 = vunpack.c.h.b16 %v7330
    %v7750 = vunpack.c.l.b16 %v7331
    %v7751 = vunpack.c.l.b16 %v7332
    %v7752 = vunpack.c.h.b16 %v7332
    %v7753 = vunpack.c.l.b16 %v7333
    %v7754 = vunpack.c.l.b16 %v7334
    %v7755 = vunpack.c.h.b16 %v7334
    %v7756 = vunpack.c.l.b16 %v7335
    %v7757 = vunpack.c.l.b16 %v7336
    %v7758 = vunpack.c.h.b16 %v7336
    %v7759 = vunpack.c.l.b16 %v7337
    %v7760 = vunpack.c.l.b16 %v7338
    %v7761 = vunpack.c.h.b16 %v7338
    %v7762 = vunpack.c.l.b16 %v7339
    %v7763 = vunpack.c.l.b16 %v7340
    %v7764 = vunpack.c.h.b16 %v7340
    %v7765 = vunpack.c.l.b16 %v7341
    %v7766 = vunpack.c.l.b16 %v7342
    %v7767 = vunpack.c.h.b16 %v7342
    %v7768 = vunpack.c.l.b16 %v7343
    %v7769 = vunpack.c.l.b16 %v7344
    %v7770 = vunpack.c.h.b16 %v7344
    %v7771 = vunpack.c.l.b16 %v7345
    %v7772 = vunpack.c.l.b16 %v7346
    %v7773 = vunpack.c.h.b16 %v7346
    %v7774 = vunpack.c.l.b16 %v7347
    %v7775 = vunpack.c.l.b16 %v7348
    %v7776 = vunpack.c.h.b16 %v7348
    %v7777 = vunpack.c.l.b16 %v7349
    %v7778 = vunpack.c.l.b16 %v7350
    %v7779 = vunpack.c.h.b16 %v7350
    %v7780 = vunpack.c.l.b16 %v7351
    %v7781 = vunpack.c.l.b16 %v7352
    %v7782 = vunpack.c.h.b16 %v7352
    %v7783 = vunpack.c.l.b16 %v7353
    %v7784 = vunpack.c.l.b16 %v7354
    %v7785 = vunpack.c.h.b16 %v7354
    %v7786 = vunpack.c.l.b16 %v7355
    %v7787 = vunpack.c.l.b16 %v7356
    %v7788 = vunpack.c.h.b16 %v7356
    %v7789 = vunpack.c.l.b16 %v7357
    %v7790 = vunpack.c.l.b16 %v7358
    %v7791 = vunpack.c.h.b16 %v7358
    %v7792 = vunpack.c.l.b16 %v7359
    %v7793 = vunpack.c.l.b16 %v7360
    %v7794 = vunpack.c.h.b16 %v7360
    %v7795 = vunpack.c.l.b16 %v7361
    %v7796 = vunpack.c.l.b16 %v7362
    %v7797 = vunpack.c.h.b16 %v7362
    %v7798 = vunpack.c.l.b16 %v7363
    %v7799 = vunpack.c.l.b16 %v7364
    %v7800 = vunpack.c.h.b16 %v7364
    %v7801 = vunpack.c.l.b16 %v7365
    %v7802 = vunpack.c.l.b16 %v7366
    %v7803 = vunpack.c.h.b16 %v7366
    %v7804 = vunpack.c.l.b16 %v7367
    %v7805 = vunpack.c.l.b16 %v7368
    %v7806 = vunpack.c.h.b16 %v7368
    %v7807 = vunpack.c.l.b16 %v7369
    %v7808 = vunpack.c.l.b16 %v7370
    %v7809 = vunpack.c.h.b16 %v7370
    %v7810 = vunpack.c.l.b16 %v7371
    %v7811 = vunpack.c.l.b16 %v7372
    %v7812 = vunpack.c.h.b16 %v7372
    %v7813 = vunpack.c.l.b16 %v7373
    %v7814 = vunpack.c.l.b16 %v7374
    %v7815 = vunpack.c.h.b16 %v7374
    %v7816 = vunpack.c.l.b16 %v7375
    %v7817 = vunpack.c.l.b16 %v7376
    %v7818 = vunpack.c.h.b16 %v7376
    %v7819 = vunpack.c.l.b16 %v7377
    %v7820 = vunpack.c.l.b16 %v7378
    %v7821 = vunpack.c.h.b16 %v7378
    %v7822 = vunpack.c.l.b16 %v7379
    %v7823 = vunpack.c.l.b16 %v7380
    %v7824 = vunpack.c.h.b16 %v7380
    %v7825 = vunpack.c.l.b16 %v7381
    %v7826 = vunpack.c.l.b16 %v7382
    %v7827 = vunpack.c.h.b16 %v7382
    %v7828 = vunpack.c.l.b16 %v7383
    %v7829 = vunpack.c.l.b16 %v7384
    %v7830 = vunpack.c.h.b16 %v7384
    %v7831 = vunpack.c.l.b16 %v7385
    %v7832 = vunpack.c.l.b16 %v7386
    %v7833 = vunpack.c.h.b16 %v7386
    %v7834 = vunpack.c.l.b16 %v7387
    %v7835 = vunpack.c.l.b16 %v7388
    %v7836 = vunpack.c.h.b16 %v7388
    %v7837 = vunpack.c.l.b16 %v7389
    %v7838 = vunpack.c.l.b16 %v7390
    %v7839 = vunpack.c.h.b16 %v7390
    %v7840 = vunpack.c.l.b16 %v7391
    %v7841 = vunpack.c.l.b16 %v7392
    %v7842 = vunpack.c.h.b16 %v7392
    %v7843 = vunpack.c.l.b16 %v7393
    %v7844 = vunpack.c.l.b16 %v7394
    %v7845 = vunpack.c.h.b16 %v7394
    %v7846 = vunpack.c.l.b16 %v7395
    %v7847 = vunpack.c.l.b16 %v7396
    %v7848 = vunpack.c.h.b16 %v7396
    %v7849 = vunpack.c.l.b16 %v7397
    %v7850 = vunpack.c.l.b16 %v7398
    %v7851 = vunpack.c.h.b16 %v7398
    %v7852 = vunpack.c.l.b16 %v7399
    %v7853 = vunpack.c.l.b16 %v7400
    %v7854 = vunpack.c.h.b16 %v7400
    %v7855 = vunpack.c.l.b16 %v7401
    %v7856 = vunpack.c.l.b16 %v7402
    %v7857 = vunpack.c.h.b16 %v7402
    %v7858 = vunpack.c.l.b16 %v7403
    %v7859 = vunpack.c.l.b16 %v7404
    %v7860 = vunpack.c.h.b16 %v7404
    %v7861 = vunpack.c.l.b16 %v7405
    %v7862 = vunpack.c.l.b16 %v7406
    %v7863 = vunpack.c.h.b16 %v7406
    %v7864 = vunpack.c.l.b16 %v7407
    %v7865 = vunpack.c.l.b16 %v7408
    %v7866 = vunpack.c.h.b16 %v7408
    %v7867 = vunpack.c.l.b16 %v7409
    %v7868 = vunpack.c.l.b16 %v7410
    %v7869 = vunpack.c.h.b16 %v7410
    %v7870 = vunpack.c.l.b16 %v7411
    %v7871 = vunpack.c.l.b16 %v7412
    %v7872 = vunpack.c.h.b16 %v7412
    %v7873 = vunpack.c.l.b16 %v7413
    %v7874 = vunpack.c.l.b16 %v7414
    %v7875 = vunpack.c.h.b16 %v7414
    %v7876 = vunpack.c.l.b16 %v7415
    %v7877 = vunpack.c.l.b16 %v7416
    %v7878 = vunpack.c.h.b16 %v7416
    %v7879 = vunpack.c.l.b16 %v7417
    %v7880 = vunpack.c.l.b16 %v7418
    %v7881 = vunpack.c.h.b16 %v7418
    %v7882 = vunpack.c.l.b16 %v7419
    %v7883 = vunpack.c.l.b16 %v7420
    %v7884 = vunpack.c.h.b16 %v7420
    %v7885 = vunpack.c.l.b16 %v7421
    %v7886 = vunpack.c.l.b16 %v7422
    %v7887 = vunpack.c.h.b16 %v7422
    %v7888 = vunpack.c.l.b16 %v7423
    %v7889 = vunpack.c.l.b16 %v7424
    %v7890 = vunpack.c.h.b16 %v7424
    %v7891 = vunpack.c.l.b16 %v7425
    %v7892 = vunpack.c.l.b16 %v7426
    %v7893 = vunpack.c.h.b16 %v7426
    %v7894 = vunpack.c.l.b16 %v7427
    %v7895 = vunpack.c.l.b16 %v7428
    %v7896 = vunpack.c.h.b16 %v7428
    %v7897 = vunpack.c.l.b16 %v7429
    %v7898 = vunpack.c.l.b16 %v7430
    %v7899 = vunpack.c.h.b16 %v7430
    %v7900 = vunpack.c.l.b16 %v7431
    %v7901 = vunpack.c.l.b16 %v7432
    %v7902 = vunpack.c.h.b16 %v7432
    %v7903 = vunpack.c.l.b16 %v7433
    %v7904 = vunpack.c.l.b16 %v7434
    %v7905 = vunpack.c.h.b16 %v7434
    %v7906 = vunpack.c.l.b16 %v7435
    %v7907 = vunpack.c.l.b16 %v7436
    %v7908 = vunpack.c.h.b16 %v7436
    %v7909 = vunpack.c.l.b16 %v7437
    %v7910 = vunpack.c.l.b16 %v7438
    %v7911 = vunpack.c.h.b16 %v7438
    %v7912 = vunpack.c.l.b16 %v7439
    %v7913 = vunpack.c.l.b16 %v7440
    %v7914 = vunpack.c.h.b16 %v7440
    %v7915 = vunpack.c.l.b16 %v7441
    %v7916 = vunpack.c.l.b16 %v7442
    %v7917 = vunpack.c.h.b16 %v7442
    %v7918 = vunpack.c.l.b16 %v7443
    %v7919 = vunpack.c.l.b16 %v7444
    %v7920 = vunpack.c.h.b16 %v7444
    %v7921 = vunpack.c.l.b16 %v7445
    %v7922 = vunpack.c.l.b16 %v7446
    %v7923 = vunpack.c.h.b16 %v7446
    %v7924 = vunpack.c.l.b16 %v7447
    %v7925 = vunpack.c.l.b16 %v7448
    %v7926 = vunpack.c.h.b16 %v7448
    %v7927 = vunpack.c.l.b16 %v7449
    %v7928 = vunpack.c.l.b16 %v7450
    %v7929 = vunpack.c.h.b16 %v7450
    %v7930 = vunpack.c.l.b16 %v7451
    %v7931 = vunpack.c.l.b16 %v7452
    %v7932 = vunpack.c.h.b16 %v7452
    %v7933 = vunpack.c.l.b16 %v7453
    %v7934 = vpack.c.b16 %v7649, %v7646
    %v7935 = vpack.c.b16 %v7650, %v7647
    %v7936 = vpack.c.b16 %v7651, %v7648
    %v7937 = vpack.c.b16 %v7655, %v7652
    %v7938 = vpack.c.b16 %v7656, %v7653
    %v7939 = vpack.c.b16 %v7657, %v7654
    %v7940 = vpack.c.b16 %v7661, %v7658
    %v7941 = vpack.c.b16 %v7662, %v7659
    %v7942 = vpack.c.b16 %v7663, %v7660
    %v7943 = vpack.c.b16 %v7667, %v7664
    %v7944 = vpack.c.b16 %v7668, %v7665
    %v7945 = vpack.c.b16 %v7669, %v7666
    %v7946 = vpack.c.b16 %v7673, %v7670
    %v7947 = vpack.c.b16 %v7674, %v7671
    %v7948 = vpack.c.b16 %v7675, %v7672
    %v7949 = vpack.c.b16 %v7679, %v7676
    %v7950 = vpack.c.b16 %v7680, %v7677
    %v7951 = vpack.c.b16 %v7681, %v7678
    %v7952 = vpack.c.b16 %v7685, %v7682
    %v7953 = vpack.c.b16 %v7686, %v7683
    %v7954 = vpack.c.b16 %v7687, %v7684
    %v7955 = vpack.c.b16 %v7691, %v7688
    %v7956 = vpack.c.b16 %v7692, %v7689
    %v7957 = vpack.c.b16 %v7693, %v7690
    %v7958 = vpack.c.b16 %v7697, %v7694
    %v7959 = vpack.c.b16 %v7698, %v7695
    %v7960 = vpack.c.b16 %v7699, %v7696
    %v7961 = vpack.c.b16 %v7703, %v7700
    %v7962 = vpack.c.b16 %v7704, %v7701
    %v7963 = vpack.c.b16 %v7705, %v7702
    %v7964 = vpack.c.b16 %v7709, %v7706
    %v7965 = vpack.c.b16 %v7710, %v7707
    %v7966 = vpack.c.b16 %v7711, %v7708
    %v7967 = vpack.c.b16 %v7715, %v7712
    %v7968 = vpack.c.b16 %v7716, %v7713
    %v7969 = vpack.c.b16 %v7717, %v7714
    %v7970 = vpack.c.b16 %v7721, %v7718
    %v7971 = vpack.c.b16 %v7722, %v7719
    %v7972 = vpack.c.b16 %v7723, %v7720
    %v7973 = vpack.c.b16 %v7727, %v7724
    %v7974 = vpack.c.b16 %v7728, %v7725
    %v7975 = vpack.c.b16 %v7729, %v7726
    %v7976 = vpack.c.b16 %v7733, %v7730
    %v7977 = vpack.c.b16 %v7734, %v7731
    %v7978 = vpack.c.b16 %v7735, %v7732
    %v7979 = vpack.c.b16 %v7739, %v7736
    %v7980 = vpack.c.b16 %v7740, %v7737
    %v7981 = vpack.c.b16 %v7741, %v7738
    %v7982 = vpack.c.b16 %v7745, %v7742
    %v7983 = vpack.c.b16 %v7746, %v7743
    %v7984 = vpack.c.b16 %v7747, %v7744
    %v7985 = vpack.c.b16 %v7751, %v7748
    %v7986 = vpack.c.b16 %v7752, %v7749
    %v7987 = vpack.c.b16 %v7753, %v7750
    %v7988 = vpack.c.b16 %v7757, %v7754
    %v7989 = vpack.c.b16 %v7758, %v7755
    %v7990 = vpack.c.b16 %v7759, %v7756
    %v7991 = vpack.c.b16 %v7763, %v7760
    %v7992 = vpack.c.b16 %v7764, %v7761
    %v7993 = vpack.c.b16 %v7765, %v7762
    %v7994 = vpack.c.b16 %v7769, %v7766
    %v7995 = vpack.c.b16 %v7770, %v7767
    %v7996 = vpack.c.b16 %v7771, %v7768
    %v7997 = vpack.c.b16 %v7775, %v7772
    %v7998 = vpack.c.b16 %v7776, %v7773
    %v7999 = vpack.c.b16 %v7777, %v7774
    %v8000 = vpack.c.b16 %v7781, %v7778
    %v8001 = vpack.c.b16 %v7782, %v7779
    %v8002 = vpack.c.b16 %v7783, %v7780
    %v8003 = vpack.c.b16 %v7787, %v7784
    %v8004 = vpack.c.b16 %v7788, %v7785
    %v8005 = vpack.c.b16 %v7789, %v7786
    %v8006 = vpack.c.b16 %v7793, %v7790
    %v8007 = vpack.c.b16 %v7794, %v7791
    %v8008 = vpack.c.b16 %v7795, %v7792
    %v8009 = vpack.c.b16 %v7799, %v7796
    %v8010 = vpack.c.b16 %v7800, %v7797
    %v8011 = vpack.c.b16 %v7801, %v7798
    %v8012 = vpack.c.b16 %v7805, %v7802
    %v8013 = vpack.c.b16 %v7806, %v7803
    %v8014 = vpack.c.b16 %v7807, %v7804
    %v8015 = vpack.c.b16 %v7811, %v7808
    %v8016 = vpack.c.b16 %v7812, %v7809
    %v8017 = vpack.c.b16 %v7813, %v7810
    %v8018 = vpack.c.b16 %v7817, %v7814
    %v8019 = vpack.c.b16 %v7818, %v7815
    %v8020 = vpack.c.b16 %v7819, %v7816
    %v8021 = vpack.c.b16 %v7823, %v7820
    %v8022 = vpack.c.b16 %v7824, %v7821
    %v8023 = vpack.c.b16 %v7825, %v7822
    %v8024 = vpack.c.b16 %v7829, %v7826
    %v8025 = vpack.c.b16 %v7830, %v7827
    %v8026 = vpack.c.b16 %v7831, %v7828
    %v8027 = vpack.c.b16 %v7835, %v7832
    %v8028 = vpack.c.b16 %v7836, %v7833
    %v8029 = vpack.c.b16 %v7837, %v7834
    %v8030 = vpack.c.b16 %v7841, %v7838
    %v8031 = vpack.c.b16 %v7842, %v7839
    %v8032 = vpack.c.b16 %v7843, %v7840
    %v8033 = vpack.c.b16 %v7847, %v7844
    %v8034 = vpack.c.b16 %v7848, %v7845
    %v8035 = vpack.c.b16 %v7849, %v7846
    %v8036 = vpack.c.b16 %v7853, %v7850
    %v8037 = vpack.c.b16 %v7854, %v7851
    %v8038 = vpack.c.b16 %v7855, %v7852
    %v8039 = vpack.c.b16 %v7859, %v7856
    %v8040 = vpack.c.b16 %v7860, %v7857
    %v8041 = vpack.c.b16 %v7861, %v7858
    %v8042 = vpack.c.b16 %v7865, %v7862
    %v8043 = vpack.c.b16 %v7866, %v7863
    %v8044 = vpack.c.b16 %v7867, %v7864
    %v8045 = vpack.c.b16 %v7871, %v7868
    %v8046 = vpack.c.b16 %v7872, %v7869
    %v8047 = vpack.c.b16 %v7873, %v7870
    %v8048 = vpack.c.b16 %v7877, %v7874
    %v8049 = vpack.c.b16 %v7878, %v7875
    %v8050 = vpack.c.b16 %v7879, %v7876
    %v8051 = vpack.c.b16 %v7883, %v7880
    %v8052 = vpack.c.b16 %v7884, %v7881
    %v8053 = vpack.c.b16 %v7885, %v7882
    %v8054 = vpack.c.b16 %v7889, %v7886
    %v8055 = vpack.c.b16 %v7890, %v7887
    %v8056 = vpack.c.b16 %v7891, %v7888
    %v8057 = vpack.c.b16 %v7895, %v7892
    %v8058 = vpack.c.b16 %v7896, %v7893
    %v8059 = vpack.c.b16 %v7897, %v7894
    %v8060 = vpack.c.b16 %v7901, %v7898
    %v8061 = vpack.c.b16 %v7902, %v7899
    %v8062 = vpack.c.b16 %v7903, %v7900
    %v8063 = vpack.c.b16 %v7907, %v7904
    %v8064 = vpack.c.b16 %v7908, %v7905
    %v8065 = vpack.c.b16 %v7909, %v7906
    %v8066 = vpack.c.b16 %v7913, %v7910
    %v8067 = vpack.c.b16 %v7914, %v7911
    %v8068 = vpack.c.b16 %v7915, %v7912
    %v8069 = vpack.c.b16 %v7919, %v7916
    %v8070 = vpack.c.b16 %v7920, %v7917
    %v8071 = vpack.c.b16 %v7921, %v7918
    %v8072 = vpack.c.b16 %v7925, %v7922
    %v8073 = vpack.c.b16 %v7926, %v7923
    %v8074 = vpack.c.b16 %v7927, %v7924
    %v8075 = vpack.c.b16 %v7931, %v7928
    %v8076 = vpack.c.b16 %v7932, %v7929
    %v8077 = vpack.c.b16 %v7933, %v7930
    %8222 = vmatpush.bf16.msra.mxu0 %v7955
    %8223 = vmatpush.bf16.msra.mxu0 %v7952
    %8224 = vmatpush.bf16.msra.mxu0 %v7949
    %8225 = vmatpush.bf16.msra.mxu0 %v7946
    %8226 = vmatpush.bf16.msra.mxu0 %v7943
    %8227 = vmatpush.bf16.msra.mxu0 %v7940
    %8228 = vmatpush.bf16.msra.mxu0 %v7937
    %8229 = vmatpush.bf16.msra.mxu0 %v7934
    %8230 = vmatmul.bf16.gmra.mxu0 %v7166
    %v8231 = vpop.f32.mrf.mxu0
    %v8232 = vadd.f32 0.0, %v8231
    %v8233 = vpop.f32.mrf.mxu0
    %v8234 = vadd.f32 0.0, %v8233
    %8235 = vmatmul.bf16.gmra.mxu0 %v7172
    %v8236 = vpop.f32.mrf.mxu0
    %v8237 = vadd.f32 0.0, %v8236
    %v8238 = vpop.f32.mrf.mxu0
    %v8239 = vadd.f32 0.0, %v8238
    %8240 = vmatmul.bf16.gmra.mxu0 %v7178
    %v8241 = vpop.f32.mrf.mxu0
    %v8242 = vadd.f32 0.0, %v8241
    %v8243 = vpop.f32.mrf.mxu0
    %v8244 = vadd.f32 0.0, %v8243
    %8245 = vmatmul.bf16.gmra.mxu0 %v7184
    %v8246 = vpop.f32.mrf.mxu0
    %v8247 = vadd.f32 0.0, %v8246
    %v8248 = vpop.f32.mrf.mxu0
    %v8249 = vadd.f32 0.0, %v8248
    %8250 = vmatmul.bf16.gmra.mxu0 %v7190
    %v8251 = vpop.f32.mrf.mxu0
    %v8252 = vadd.f32 0.0, %v8251
    %v8253 = vpop.f32.mrf.mxu0
    %v8254 = vadd.f32 0.0, %v8253
    %8255 = vmatmul.bf16.gmra.mxu0 %v7196
    %v8256 = vpop.f32.mrf.mxu0
    %v8257 = vadd.f32 0.0, %v8256
    %v8258 = vpop.f32.mrf.mxu0
    %v8259 = vadd.f32 0.0, %v8258
    %8260 = vmatmul.bf16.gmra.mxu0 %v7202
    %v8261 = vpop.f32.mrf.mxu0
    %v8262 = vadd.f32 0.0, %v8261
    %v8263 = vpop.f32.mrf.mxu0
    %v8264 = vadd.f32 0.0, %v8263
    %8265 = vmatmul.bf16.gmra.mxu0 %v7208
    %v8266 = vpop.f32.mrf.mxu0
    %v8267 = vadd.f32 0.0, %v8266
    %v8268 = vpop.f32.mrf.mxu0
    %v8269 = vadd.f32 0.0, %v8268
    %8270 = vmatmul.bf16.gmra.mxu0 %v7214
    %v8271 = vpop.f32.mrf.mxu0
    %v8272 = vadd.f32 0.0, %v8271
    %v8273 = vpop.f32.mrf.mxu0
    %v8274 = vadd.f32 0.0, %v8273
    %8275 = vmatmul.bf16.gmra.mxu0 %v7220
    %v8276 = vpop.f32.mrf.mxu0
    %v8277 = vadd.f32 0.0, %v8276
    %v8278 = vpop.f32.mrf.mxu0
    %v8279 = vadd.f32 0.0, %v8278
    %8280 = vmatmul.bf16.gmra.mxu0 %v7226
    %v8281 = vpop.f32.mrf.mxu0
    %v8282 = vadd.f32 0.0, %v8281
    %v8283 = vpop.f32.mrf.mxu0
    %v8284 = vadd.f32 0.0, %v8283
    %8285 = vmatmul.bf16.gmra.mxu0 %v7232
    %v8286 = vpop.f32.mrf.mxu0
    %v8287 = vadd.f32 0.0, %v8286
    %v8288 = vpop.f32.mrf.mxu0
    %v8289 = vadd.f32 0.0, %v8288
    %8290 = vmatmul.bf16.gmra.mxu0 %v7238
    %v8291 = vpop.f32.mrf.mxu0
    %v8292 = vadd.f32 0.0, %v8291
    %v8293 = vpop.f32.mrf.mxu0
    %v8294 = vadd.f32 0.0, %v8293
    %8295 = vmatmul.bf16.gmra.mxu0 %v7244
    %v8296 = vpop.f32.mrf.mxu0
    %v8297 = vadd.f32 0.0, %v8296
    %v8298 = vpop.f32.mrf.mxu0
    %v8299 = vadd.f32 0.0, %v8298
    %8300 = vmatmul.bf16.gmra.mxu0 %v7250
    %v8301 = vpop.f32.mrf.mxu0
    %v8302 = vadd.f32 0.0, %v8301
    %v8303 = vpop.f32.mrf.mxu0
    %v8304 = vadd.f32 0.0, %v8303
    %8305 = vmatmul.bf16.gmra.mxu0 %v7256
    %v8306 = vpop.f32.mrf.mxu0
    %v8307 = vadd.f32 0.0, %v8306
    %v8308 = vpop.f32.mrf.mxu0
    %v8309 = vadd.f32 0.0, %v8308
    %8310 = vdwg.mxu0
    %8311 = vmatpush.bf16.msra.mxu0 %v7979
    %8312 = vmatpush.bf16.msra.mxu0 %v7976
    %8313 = vmatpush.bf16.msra.mxu0 %v7973
    %8314 = vmatpush.bf16.msra.mxu0 %v7970
    %8315 = vmatpush.bf16.msra.mxu0 %v7967
    %8316 = vmatpush.bf16.msra.mxu0 %v7964
    %8317 = vmatpush.bf16.msra.mxu0 %v7961
    %8318 = vmatpush.bf16.msra.mxu0 %v7958
    %8319 = vmatmul.bf16.gmra.mxu0 %v7167
    %v8320 = vpop.f32.mrf.mxu0
    %v8321 = vadd.f32 %v8232, %v8320
    %v8322 = vpop.f32.mrf.mxu0
    %v8323 = vadd.f32 %v8234, %v8322
    %8324 = vmatmul.bf16.gmra.mxu0 %v7173
    %v8325 = vpop.f32.mrf.mxu0
    %v8326 = vadd.f32 %v8237, %v8325
    %v8327 = vpop.f32.mrf.mxu0
    %v8328 = vadd.f32 %v8239, %v8327
    %8329 = vmatmul.bf16.gmra.mxu0 %v7179
    %v8330 = vpop.f32.mrf.mxu0
    %v8331 = vadd.f32 %v8242, %v8330
    %v8332 = vpop.f32.mrf.mxu0
    %v8333 = vadd.f32 %v8244, %v8332
    %8334 = vmatmul.bf16.gmra.mxu0 %v7185
    %v8335 = vpop.f32.mrf.mxu0
    %v8336 = vadd.f32 %v8247, %v8335
    %v8337 = vpop.f32.mrf.mxu0
    %v8338 = vadd.f32 %v8249, %v8337
    %8339 = vmatmul.bf16.gmra.mxu0 %v7191
    %v8340 = vpop.f32.mrf.mxu0
    %v8341 = vadd.f32 %v8252, %v8340
    %v8342 = vpop.f32.mrf.mxu0
    %v8343 = vadd.f32 %v8254, %v8342
    %8344 = vmatmul.bf16.gmra.mxu0 %v7197
    %v8345 = vpop.f32.mrf.mxu0
    %v8346 = vadd.f32 %v8257, %v8345
    %v8347 = vpop.f32.mrf.mxu0
    %v8348 = vadd.f32 %v8259, %v8347
    %8349 = vmatmul.bf16.gmra.mxu0 %v7203
    %v8350 = vpop.f32.mrf.mxu0
    %v8351 = vadd.f32 %v8262, %v8350
    %v8352 = vpop.f32.mrf.mxu0
    %v8353 = vadd.f32 %v8264, %v8352
    %8354 = vmatmul.bf16.gmra.mxu0 %v7209
    %v8355 = vpop.f32.mrf.mxu0
    %v8356 = vadd.f32 %v8267, %v8355
    %v8357 = vpop.f32.mrf.mxu0
    %v8358 = vadd.f32 %v8269, %v8357
    %8359 = vmatmul.bf16.gmra.mxu0 %v7215
    %v8360 = vpop.f32.mrf.mxu0
    %v8361 = vadd.f32 %v8272, %v8360
    %v8362 = vpop.f32.mrf.mxu0
    %v8363 = vadd.f32 %v8274, %v8362
    %8364 = vmatmul.bf16.gmra.mxu0 %v7221
    %v8365 = vpop.f32.mrf.mxu0
    %v8366 = vadd.f32 %v8277, %v8365
    %v8367 = vpop.f32.mrf.mxu0
    %v8368 = vadd.f32 %v8279, %v8367
    %8369 = vmatmul.bf16.gmra.mxu0 %v7227
    %v8370 = vpop.f32.mrf.mxu0
    %v8371 = vadd.f32 %v8282, %v8370
    %v8372 = vpop.f32.mrf.mxu0
    %v8373 = vadd.f32 %v8284, %v8372
    %8374 = vmatmul.bf16.gmra.mxu0 %v7233
    %v8375 = vpop.f32.mrf.mxu0
    %v8376 = vadd.f32 %v8287, %v8375
    %v8377 = vpop.f32.mrf.mxu0
    %v8378 = vadd.f32 %v8289, %v8377
    %8379 = vmatmul.bf16.gmra.mxu0 %v7239
    %v8380 = vpop.f32.mrf.mxu0
    %v8381 = vadd.f32 %v8292, %v8380
    %v8382 = vpop.f32.mrf.mxu0
    %v8383 = vadd.f32 %v8294, %v8382
    %8384 = vmatmul.bf16.gmra.mxu0 %v7245
    %v8385 = vpop.f32.mrf.mxu0
    %v8386 = vadd.f32 %v8297, %v8385
    %v8387 = vpop.f32.mrf.mxu0
    %v8388 = vadd.f32 %v8299, %v8387
    %8389 = vmatmul.bf16.gmra.mxu0 %v7251
    %v8390 = vpop.f32.mrf.mxu0
    %v8391 = vadd.f32 %v8302, %v8390
    %v8392 = vpop.f32.mrf.mxu0
    %v8393 = vadd.f32 %v8304, %v8392
    %8394 = vmatmul.bf16.gmra.mxu0 %v7257
    %v8395 = vpop.f32.mrf.mxu0
    %v8396 = vadd.f32 %v8307, %v8395
    %v8397 = vpop.f32.mrf.mxu0
    %v8398 = vadd.f32 %v8309, %v8397
    %8399 = vdwg.mxu0
    %8400 = vmatpush.bf16.msra.mxu0 %v8003
    %8401 = vmatpush.bf16.msra.mxu0 %v8000
    %8402 = vmatpush.bf16.msra.mxu0 %v7997
    %8403 = vmatpush.bf16.msra.mxu0 %v7994
    %8404 = vmatpush.bf16.msra.mxu0 %v7991
    %8405 = vmatpush.bf16.msra.mxu0 %v7988
    %8406 = vmatpush.bf16.msra.mxu0 %v7985
    %8407 = vmatpush.bf16.msra.mxu0 %v7982
    %8408 = vmatmul.bf16.gmra.mxu0 %v7168
    %v8409 = vpop.f32.mrf.mxu0
    %v8410 = vadd.f32 %v8321, %v8409
    %v8411 = vpop.f32.mrf.mxu0
    %v8412 = vadd.f32 %v8323, %v8411
    %8413 = vmatmul.bf16.gmra.mxu0 %v7174
    %v8414 = vpop.f32.mrf.mxu0
    %v8415 = vadd.f32 %v8326, %v8414
    %v8416 = vpop.f32.mrf.mxu0
    %v8417 = vadd.f32 %v8328, %v8416
    %8418 = vmatmul.bf16.gmra.mxu0 %v7180
    %v8419 = vpop.f32.mrf.mxu0
    %v8420 = vadd.f32 %v8331, %v8419
    %v8421 = vpop.f32.mrf.mxu0
    %v8422 = vadd.f32 %v8333, %v8421
    %8423 = vmatmul.bf16.gmra.mxu0 %v7186
    %v8424 = vpop.f32.mrf.mxu0
    %v8425 = vadd.f32 %v8336, %v8424
    %v8426 = vpop.f32.mrf.mxu0
    %v8427 = vadd.f32 %v8338, %v8426
    %8428 = vmatmul.bf16.gmra.mxu0 %v7192
    %v8429 = vpop.f32.mrf.mxu0
    %v8430 = vadd.f32 %v8341, %v8429
    %v8431 = vpop.f32.mrf.mxu0
    %v8432 = vadd.f32 %v8343, %v8431
    %8433 = vmatmul.bf16.gmra.mxu0 %v7198
    %v8434 = vpop.f32.mrf.mxu0
    %v8435 = vadd.f32 %v8346, %v8434
    %v8436 = vpop.f32.mrf.mxu0
    %v8437 = vadd.f32 %v8348, %v8436
    %8438 = vmatmul.bf16.gmra.mxu0 %v7204
    %v8439 = vpop.f32.mrf.mxu0
    %v8440 = vadd.f32 %v8351, %v8439
    %v8441 = vpop.f32.mrf.mxu0
    %v8442 = vadd.f32 %v8353, %v8441
    %8443 = vmatmul.bf16.gmra.mxu0 %v7210
    %v8444 = vpop.f32.mrf.mxu0
    %v8445 = vadd.f32 %v8356, %v8444
    %v8446 = vpop.f32.mrf.mxu0
    %v8447 = vadd.f32 %v8358, %v8446
    %8448 = vmatmul.bf16.gmra.mxu0 %v7216
    %v8449 = vpop.f32.mrf.mxu0
    %v8450 = vadd.f32 %v8361, %v8449
    %v8451 = vpop.f32.mrf.mxu0
    %v8452 = vadd.f32 %v8363, %v8451
    %8453 = vmatmul.bf16.gmra.mxu0 %v7222
    %v8454 = vpop.f32.mrf.mxu0
    %v8455 = vadd.f32 %v8366, %v8454
    %v8456 = vpop.f32.mrf.mxu0
    %v8457 = vadd.f32 %v8368, %v8456
    %8458 = vmatmul.bf16.gmra.mxu0 %v7228
    %v8459 = vpop.f32.mrf.mxu0
    %v8460 = vadd.f32 %v8371, %v8459
    %v8461 = vpop.f32.mrf.mxu0
    %v8462 = vadd.f32 %v8373, %v8461
    %8463 = vmatmul.bf16.gmra.mxu0 %v7234
    %v8464 = vpop.f32.mrf.mxu0
    %v8465 = vadd.f32 %v8376, %v8464
    %v8466 = vpop.f32.mrf.mxu0
    %v8467 = vadd.f32 %v8378, %v8466
    %8468 = vmatmul.bf16.gmra.mxu0 %v7240
    %v8469 = vpop.f32.mrf.mxu0
    %v8470 = vadd.f32 %v8381, %v8469
    %v8471 = vpop.f32.mrf.mxu0
    %v8472 = vadd.f32 %v8383, %v8471
    %8473 = vmatmul.bf16.gmra.mxu0 %v7246
    %v8474 = vpop.f32.mrf.mxu0
    %v8475 = vadd.f32 %v8386, %v8474
    %v8476 = vpop.f32.mrf.mxu0
    %v8477 = vadd.f32 %v8388, %v8476
    %8478 = vmatmul.bf16.gmra.mxu0 %v7252
    %v8479 = vpop.f32.mrf.mxu0
    %v8480 = vadd.f32 %v8391, %v8479
    %v8481 = vpop.f32.mrf.mxu0
    %v8482 = vadd.f32 %v8393, %v8481
    %8483 = vmatmul.bf16.gmra.mxu0 %v7258
    %v8484 = vpop.f32.mrf.mxu0
    %v8485 = vadd.f32 %v8396, %v8484
    %v8486 = vpop.f32.mrf.mxu0
    %v8487 = vadd.f32 %v8398, %v8486
    %8488 = vdwg.mxu0
    %8489 = vmatpush.bf16.msra.mxu0 %v8027
    %8490 = vmatpush.bf16.msra.mxu0 %v8024
    %8491 = vmatpush.bf16.msra.mxu0 %v8021
    %8492 = vmatpush.bf16.msra.mxu0 %v8018
    %8493 = vmatpush.bf16.msra.mxu0 %v8015
    %8494 = vmatpush.bf16.msra.mxu0 %v8012
    %8495 = vmatpush.bf16.msra.mxu0 %v8009
    %8496 = vmatpush.bf16.msra.mxu0 %v8006
    %8497 = vmatmul.bf16.gmra.mxu0 %v7169
    %v8498 = vpop.f32.mrf.mxu0
    %v8499 = vadd.f32 %v8410, %v8498
    %v8500 = vpop.f32.mrf.mxu0
    %v8501 = vadd.f32 %v8412, %v8500
    %8502 = vmatmul.bf16.gmra.mxu0 %v7175
    %v8503 = vpop.f32.mrf.mxu0
    %v8504 = vadd.f32 %v8415, %v8503
    %v8505 = vpop.f32.mrf.mxu0
    %v8506 = vadd.f32 %v8417, %v8505
    %8507 = vmatmul.bf16.gmra.mxu0 %v7181
    %v8508 = vpop.f32.mrf.mxu0
    %v8509 = vadd.f32 %v8420, %v8508
    %v8510 = vpop.f32.mrf.mxu0
    %v8511 = vadd.f32 %v8422, %v8510
    %8512 = vmatmul.bf16.gmra.mxu0 %v7187
    %v8513 = vpop.f32.mrf.mxu0
    %v8514 = vadd.f32 %v8425, %v8513
    %v8515 = vpop.f32.mrf.mxu0
    %v8516 = vadd.f32 %v8427, %v8515
    %8517 = vmatmul.bf16.gmra.mxu0 %v7193
    %v8518 = vpop.f32.mrf.mxu0
    %v8519 = vadd.f32 %v8430, %v8518
    %v8520 = vpop.f32.mrf.mxu0
    %v8521 = vadd.f32 %v8432, %v8520
    %8522 = vmatmul.bf16.gmra.mxu0 %v7199
    %v8523 = vpop.f32.mrf.mxu0
    %v8524 = vadd.f32 %v8435, %v8523
    %v8525 = vpop.f32.mrf.mxu0
    %v8526 = vadd.f32 %v8437, %v8525
    %8527 = vmatmul.bf16.gmra.mxu0 %v7205
    %v8528 = vpop.f32.mrf.mxu0
    %v8529 = vadd.f32 %v8440, %v8528
    %v8530 = vpop.f32.mrf.mxu0
    %v8531 = vadd.f32 %v8442, %v8530
    %8532 = vmatmul.bf16.gmra.mxu0 %v7211
    %v8533 = vpop.f32.mrf.mxu0
    %v8534 = vadd.f32 %v8445, %v8533
    %v8535 = vpop.f32.mrf.mxu0
    %v8536 = vadd.f32 %v8447, %v8535
    %8537 = vmatmul.bf16.gmra.mxu0 %v7217
    %v8538 = vpop.f32.mrf.mxu0
    %v8539 = vadd.f32 %v8450, %v8538
    %v8540 = vpop.f32.mrf.mxu0
    %v8541 = vadd.f32 %v8452, %v8540
    %8542 = vmatmul.bf16.gmra.mxu0 %v7223
    %v8543 = vpop.f32.mrf.mxu0
    %v8544 = vadd.f32 %v8455, %v8543
    %v8545 = vpop.f32.mrf.mxu0
    %v8546 = vadd.f32 %v8457, %v8545
    %8547 = vmatmul.bf16.gmra.mxu0 %v7229
    %v8548 = vpop.f32.mrf.mxu0
    %v8549 = vadd.f32 %v8460, %v8548
    %v8550 = vpop.f32.mrf.mxu0
    %v8551 = vadd.f32 %v8462, %v8550
    %8552 = vmatmul.bf16.gmra.mxu0 %v7235
    %v8553 = vpop.f32.mrf.mxu0
    %v8554 = vadd.f32 %v8465, %v8553
    %v8555 = vpop.f32.mrf.mxu0
    %v8556 = vadd.f32 %v8467, %v8555
    %8557 = vmatmul.bf16.gmra.mxu0 %v7241
    %v8558 = vpop.f32.mrf.mxu0
    %v8559 = vadd.f32 %v8470, %v8558
    %v8560 = vpop.f32.mrf.mxu0
    %v8561 = vadd.f32 %v8472, %v8560
    %8562 = vmatmul.bf16.gmra.mxu0 %v7247
    %v8563 = vpop.f32.mrf.mxu0
    %v8564 = vadd.f32 %v8475, %v8563
    %v8565 = vpop.f32.mrf.mxu0
    %v8566 = vadd.f32 %v8477, %v8565
    %8567 = vmatmul.bf16.gmra.mxu0 %v7253
    %v8568 = vpop.f32.mrf.mxu0
    %v8569 = vadd.f32 %v8480, %v8568
    %v8570 = vpop.f32.mrf.mxu0
    %v8571 = vadd.f32 %v8482, %v8570
    %8572 = vmatmul.bf16.gmra.mxu0 %v7259
    %v8573 = vpop.f32.mrf.mxu0
    %v8574 = vadd.f32 %v8485, %v8573
    %v8575 = vpop.f32.mrf.mxu0
    %v8576 = vadd.f32 %v8487, %v8575
    %8577 = vdwg.mxu0
    %8578 = vmatpush.bf16.msra.mxu0 %v8051
    %8579 = vmatpush.bf16.msra.mxu0 %v8048
    %8580 = vmatpush.bf16.msra.mxu0 %v8045
    %8581 = vmatpush.bf16.msra.mxu0 %v8042
    %8582 = vmatpush.bf16.msra.mxu0 %v8039
    %8583 = vmatpush.bf16.msra.mxu0 %v8036
    %8584 = vmatpush.bf16.msra.mxu0 %v8033
    %8585 = vmatpush.bf16.msra.mxu0 %v8030
    %8586 = vmatmul.bf16.gmra.mxu0 %v7170
    %v8587 = vpop.f32.mrf.mxu0
    %v8588 = vadd.f32 %v8499, %v8587
    %v8589 = vpop.f32.mrf.mxu0
    %v8590 = vadd.f32 %v8501, %v8589
    %8591 = vmatmul.bf16.gmra.mxu0 %v7176
    %v8592 = vpop.f32.mrf.mxu0
    %v8593 = vadd.f32 %v8504, %v8592
    %v8594 = vpop.f32.mrf.mxu0
    %v8595 = vadd.f32 %v8506, %v8594
    %8596 = vmatmul.bf16.gmra.mxu0 %v7182
    %v8597 = vpop.f32.mrf.mxu0
    %v8598 = vadd.f32 %v8509, %v8597
    %v8599 = vpop.f32.mrf.mxu0
    %v8600 = vadd.f32 %v8511, %v8599
    %8601 = vmatmul.bf16.gmra.mxu0 %v7188
    %v8602 = vpop.f32.mrf.mxu0
    %v8603 = vadd.f32 %v8514, %v8602
    %v8604 = vpop.f32.mrf.mxu0
    %v8605 = vadd.f32 %v8516, %v8604
    %8606 = vmatmul.bf16.gmra.mxu0 %v7194
    %v8607 = vpop.f32.mrf.mxu0
    %v8608 = vadd.f32 %v8519, %v8607
    %v8609 = vpop.f32.mrf.mxu0
    %v8610 = vadd.f32 %v8521, %v8609
    %8611 = vmatmul.bf16.gmra.mxu0 %v7200
    %v8612 = vpop.f32.mrf.mxu0
    %v8613 = vadd.f32 %v8524, %v8612
    %v8614 = vpop.f32.mrf.mxu0
    %v8615 = vadd.f32 %v8526, %v8614
    %8616 = vmatmul.bf16.gmra.mxu0 %v7206
    %v8617 = vpop.f32.mrf.mxu0
    %v8618 = vadd.f32 %v8529, %v8617
    %v8619 = vpop.f32.mrf.mxu0
    %v8620 = vadd.f32 %v8531, %v8619
    %8621 = vmatmul.bf16.gmra.mxu0 %v7212
    %v8622 = vpop.f32.mrf.mxu0
    %v8623 = vadd.f32 %v8534, %v8622
    %v8624 = vpop.f32.mrf.mxu0
    %v8625 = vadd.f32 %v8536, %v8624
    %8626 = vmatmul.bf16.gmra.mxu0 %v7218
    %v8627 = vpop.f32.mrf.mxu0
    %v8628 = vadd.f32 %v8539, %v8627
    %v8629 = vpop.f32.mrf.mxu0
    %v8630 = vadd.f32 %v8541, %v8629
    %8631 = vmatmul.bf16.gmra.mxu0 %v7224
    %v8632 = vpop.f32.mrf.mxu0
    %v8633 = vadd.f32 %v8544, %v8632
    %v8634 = vpop.f32.mrf.mxu0
    %v8635 = vadd.f32 %v8546, %v8634
    %8636 = vmatmul.bf16.gmra.mxu0 %v7230
    %v8637 = vpop.f32.mrf.mxu0
    %v8638 = vadd.f32 %v8549, %v8637
    %v8639 = vpop.f32.mrf.mxu0
    %v8640 = vadd.f32 %v8551, %v8639
    %8641 = vmatmul.bf16.gmra.mxu0 %v7236
    %v8642 = vpop.f32.mrf.mxu0
    %v8643 = vadd.f32 %v8554, %v8642
    %v8644 = vpop.f32.mrf.mxu0
    %v8645 = vadd.f32 %v8556, %v8644
    %8646 = vmatmul.bf16.gmra.mxu0 %v7242
    %v8647 = vpop.f32.mrf.mxu0
    %v8648 = vadd.f32 %v8559, %v8647
    %v8649 = vpop.f32.mrf.mxu0
    %v8650 = vadd.f32 %v8561, %v8649
    %8651 = vmatmul.bf16.gmra.mxu0 %v7248
    %v8652 = vpop.f32.mrf.mxu0
    %v8653 = vadd.f32 %v8564, %v8652
    %v8654 = vpop.f32.mrf.mxu0
    %v8655 = vadd.f32 %v8566, %v8654
    %8656 = vmatmul.bf16.gmra.mxu0 %v7254
    %v8657 = vpop.f32.mrf.mxu0
    %v8658 = vadd.f32 %v8569, %v8657
    %v8659 = vpop.f32.mrf.mxu0
    %v8660 = vadd.f32 %v8571, %v8659
    %8661 = vmatmul.bf16.gmra.mxu0 %v7260
    %v8662 = vpop.f32.mrf.mxu0
    %v8663 = vadd.f32 %v8574, %v8662
    %v8664 = vpop.f32.mrf.mxu0
    %v8665 = vadd.f32 %v8576, %v8664
    %8666 = vdwg.mxu0
    %8667 = vmatpush.bf16.msra.mxu0 %v8075
    %8668 = vmatpush.bf16.msra.mxu0 %v8072
    %8669 = vmatpush.bf16.msra.mxu0 %v8069
    %8670 = vmatpush.bf16.msra.mxu0 %v8066
    %8671 = vmatpush.bf16.msra.mxu0 %v8063
    %8672 = vmatpush.bf16.msra.mxu0 %v8060
    %8673 = vmatpush.bf16.msra.mxu0 %v8057
    %8674 = vmatpush.bf16.msra.mxu0 %v8054
    %8675 = vmatmul.bf16.gmra.mxu0 %v7171
    %v8676 = vpop.f32.mrf.mxu0
    %v8677 = vadd.f32 %v8588, %v8676
    %v8678 = vpop.f32.mrf.mxu0
    %v8679 = vadd.f32 %v8590, %v8678
    %8680 = vmatmul.bf16.gmra.mxu0 %v7177
    %v8681 = vpop.f32.mrf.mxu0
    %v8682 = vadd.f32 %v8593, %v8681
    %v8683 = vpop.f32.mrf.mxu0
    %v8684 = vadd.f32 %v8595, %v8683
    %8685 = vmatmul.bf16.gmra.mxu0 %v7183
    %v8686 = vpop.f32.mrf.mxu0
    %v8687 = vadd.f32 %v8598, %v8686
    %v8688 = vpop.f32.mrf.mxu0
    %v8689 = vadd.f32 %v8600, %v8688
    %8690 = vmatmul.bf16.gmra.mxu0 %v7189
    %v8691 = vpop.f32.mrf.mxu0
    %v8692 = vadd.f32 %v8603, %v8691
    %v8693 = vpop.f32.mrf.mxu0
    %v8694 = vadd.f32 %v8605, %v8693
    %8695 = vmatmul.bf16.gmra.mxu0 %v7195
    %v8696 = vpop.f32.mrf.mxu0
    %v8697 = vadd.f32 %v8608, %v8696
    %v8698 = vpop.f32.mrf.mxu0
    %v8699 = vadd.f32 %v8610, %v8698
    %8700 = vmatmul.bf16.gmra.mxu0 %v7201
    %v8701 = vpop.f32.mrf.mxu0
    %v8702 = vadd.f32 %v8613, %v8701
    %v8703 = vpop.f32.mrf.mxu0
    %v8704 = vadd.f32 %v8615, %v8703
    %8705 = vmatmul.bf16.gmra.mxu0 %v7207
    %v8706 = vpop.f32.mrf.mxu0
    %v8707 = vadd.f32 %v8618, %v8706
    %v8708 = vpop.f32.mrf.mxu0
    %v8709 = vadd.f32 %v8620, %v8708
    %8710 = vmatmul.bf16.gmra.mxu0 %v7213
    %v8711 = vpop.f32.mrf.mxu0
    %v8712 = vadd.f32 %v8623, %v8711
    %v8713 = vpop.f32.mrf.mxu0
    %v8714 = vadd.f32 %v8625, %v8713
    %8715 = vmatmul.bf16.gmra.mxu0 %v7219
    %v8716 = vpop.f32.mrf.mxu0
    %v8717 = vadd.f32 %v8628, %v8716
    %v8718 = vpop.f32.mrf.mxu0
    %v8719 = vadd.f32 %v8630, %v8718
    %8720 = vmatmul.bf16.gmra.mxu0 %v7225
    %v8721 = vpop.f32.mrf.mxu0
    %v8722 = vadd.f32 %v8633, %v8721
    %v8723 = vpop.f32.mrf.mxu0
    %v8724 = vadd.f32 %v8635, %v8723
    %8725 = vmatmul.bf16.gmra.mxu0 %v7231
    %v8726 = vpop.f32.mrf.mxu0
    %v8727 = vadd.f32 %v8638, %v8726
    %v8728 = vpop.f32.mrf.mxu0
    %v8729 = vadd.f32 %v8640, %v8728
    %8730 = vmatmul.bf16.gmra.mxu0 %v7237
    %v8731 = vpop.f32.mrf.mxu0
    %v8732 = vadd.f32 %v8643, %v8731
    %v8733 = vpop.f32.mrf.mxu0
    %v8734 = vadd.f32 %v8645, %v8733
    %8735 = vmatmul.bf16.gmra.mxu0 %v7243
    %v8736 = vpop.f32.mrf.mxu0
    %v8737 = vadd.f32 %v8648, %v8736
    %v8738 = vpop.f32.mrf.mxu0
    %v8739 = vadd.f32 %v8650, %v8738
    %8740 = vmatmul.bf16.gmra.mxu0 %v7249
    %v8741 = vpop.f32.mrf.mxu0
    %v8742 = vadd.f32 %v8653, %v8741
    %v8743 = vpop.f32.mrf.mxu0
    %v8744 = vadd.f32 %v8655, %v8743
    %8745 = vmatmul.bf16.gmra.mxu0 %v7255
    %v8746 = vpop.f32.mrf.mxu0
    %v8747 = vadd.f32 %v8658, %v8746
    %v8748 = vpop.f32.mrf.mxu0
    %v8749 = vadd.f32 %v8660, %v8748
    %8750 = vmatmul.bf16.gmra.mxu0 %v7261
    %v8751 = vpop.f32.mrf.mxu0
    %v8752 = vadd.f32 %v8663, %v8751
    %v8753 = vpop.f32.mrf.mxu0
    %v8754 = vadd.f32 %v8665, %v8753
    %8755 = vdwg.mxu0
    %8756 = vmatpush.bf16.msra.mxu0 %v7956
    %8757 = vmatpush.bf16.msra.mxu0 %v7953
    %8758 = vmatpush.bf16.msra.mxu0 %v7950
    %8759 = vmatpush.bf16.msra.mxu0 %v7947
    %8760 = vmatpush.bf16.msra.mxu0 %v7944
    %8761 = vmatpush.bf16.msra.mxu0 %v7941
    %8762 = vmatpush.bf16.msra.mxu0 %v7938
    %8763 = vmatpush.bf16.msra.mxu0 %v7935
    %8764 = vmatmul.bf16.gmra.mxu0 %v7166
    %v8765 = vpop.f32.mrf.mxu0
    %v8766 = vadd.f32 0.0, %v8765
    %v8767 = vpop.f32.mrf.mxu0
    %v8768 = vadd.f32 0.0, %v8767
    %8769 = vmatmul.bf16.gmra.mxu0 %v7172
    %v8770 = vpop.f32.mrf.mxu0
    %v8771 = vadd.f32 0.0, %v8770
    %v8772 = vpop.f32.mrf.mxu0
    %v8773 = vadd.f32 0.0, %v8772
    %8774 = vmatmul.bf16.gmra.mxu0 %v7178
    %v8775 = vpop.f32.mrf.mxu0
    %v8776 = vadd.f32 0.0, %v8775
    %v8777 = vpop.f32.mrf.mxu0
    %v8778 = vadd.f32 0.0, %v8777
    %8779 = vmatmul.bf16.gmra.mxu0 %v7184
    %v8780 = vpop.f32.mrf.mxu0
    %v8781 = vadd.f32 0.0, %v8780
    %v8782 = vpop.f32.mrf.mxu0
    %v8783 = vadd.f32 0.0, %v8782
    %8784 = vmatmul.bf16.gmra.mxu0 %v7190
    %v8785 = vpop.f32.mrf.mxu0
    %v8786 = vadd.f32 0.0, %v8785
    %v8787 = vpop.f32.mrf.mxu0
    %v8788 = vadd.f32 0.0, %v8787
    %8789 = vmatmul.bf16.gmra.mxu0 %v7196
    %v8790 = vpop.f32.mrf.mxu0
    %v8791 = vadd.f32 0.0, %v8790
    %v8792 = vpop.f32.mrf.mxu0
    %v8793 = vadd.f32 0.0, %v8792
    %8794 = vmatmul.bf16.gmra.mxu0 %v7202
    %v8795 = vpop.f32.mrf.mxu0
    %v8796 = vadd.f32 0.0, %v8795
    %v8797 = vpop.f32.mrf.mxu0
    %v8798 = vadd.f32 0.0, %v8797
    %8799 = vmatmul.bf16.gmra.mxu0 %v7208
    %v8800 = vpop.f32.mrf.mxu0
    %v8801 = vadd.f32 0.0, %v8800
    %v8802 = vpop.f32.mrf.mxu0
    %v8803 = vadd.f32 0.0, %v8802
    %8804 = vmatmul.bf16.gmra.mxu0 %v7214
    %v8805 = vpop.f32.mrf.mxu0
    %v8806 = vadd.f32 0.0, %v8805
    %v8807 = vpop.f32.mrf.mxu0
    %v8808 = vadd.f32 0.0, %v8807
    %8809 = vmatmul.bf16.gmra.mxu0 %v7220
    %v8810 = vpop.f32.mrf.mxu0
    %v8811 = vadd.f32 0.0, %v8810
    %v8812 = vpop.f32.mrf.mxu0
    %v8813 = vadd.f32 0.0, %v8812
    %8814 = vmatmul.bf16.gmra.mxu0 %v7226
    %v8815 = vpop.f32.mrf.mxu0
    %v8816 = vadd.f32 0.0, %v8815
    %v8817 = vpop.f32.mrf.mxu0
    %v8818 = vadd.f32 0.0, %v8817
    %8819 = vmatmul.bf16.gmra.mxu0 %v7232
    %v8820 = vpop.f32.mrf.mxu0
    %v8821 = vadd.f32 0.0, %v8820
    %v8822 = vpop.f32.mrf.mxu0
    %v8823 = vadd.f32 0.0, %v8822
    %8824 = vmatmul.bf16.gmra.mxu0 %v7238
    %v8825 = vpop.f32.mrf.mxu0
    %v8826 = vadd.f32 0.0, %v8825
    %v8827 = vpop.f32.mrf.mxu0
    %v8828 = vadd.f32 0.0, %v8827
    %8829 = vmatmul.bf16.gmra.mxu0 %v7244
    %v8830 = vpop.f32.mrf.mxu0
    %v8831 = vadd.f32 0.0, %v8830
    %v8832 = vpop.f32.mrf.mxu0
    %v8833 = vadd.f32 0.0, %v8832
    %8834 = vmatmul.bf16.gmra.mxu0 %v7250
    %v8835 = vpop.f32.mrf.mxu0
    %v8836 = vadd.f32 0.0, %v8835
    %v8837 = vpop.f32.mrf.mxu0
    %v8838 = vadd.f32 0.0, %v8837
    %8839 = vmatmul.bf16.gmra.mxu0 %v7256
    %v8840 = vpop.f32.mrf.mxu0
    %v8841 = vadd.f32 0.0, %v8840
    %v8842 = vpop.f32.mrf.mxu0
    %v8843 = vadd.f32 0.0, %v8842
    %8844 = vdwg.mxu0
    %8845 = vmatpush.bf16.msra.mxu0 %v7980
    %8846 = vmatpush.bf16.msra.mxu0 %v7977
    %8847 = vmatpush.bf16.msra.mxu0 %v7974
    %8848 = vmatpush.bf16.msra.mxu0 %v7971
    %8849 = vmatpush.bf16.msra.mxu0 %v7968
    %8850 = vmatpush.bf16.msra.mxu0 %v7965
    %8851 = vmatpush.bf16.msra.mxu0 %v7962
    %8852 = vmatpush.bf16.msra.mxu0 %v7959
    %8853 = vmatmul.bf16.gmra.mxu0 %v7167
    %v8854 = vpop.f32.mrf.mxu0
    %v8855 = vadd.f32 %v8766, %v8854
    %v8856 = vpop.f32.mrf.mxu0
    %v8857 = vadd.f32 %v8768, %v8856
    %8858 = vmatmul.bf16.gmra.mxu0 %v7173
    %v8859 = vpop.f32.mrf.mxu0
    %v8860 = vadd.f32 %v8771, %v8859
    %v8861 = vpop.f32.mrf.mxu0
    %v8862 = vadd.f32 %v8773, %v8861
    %8863 = vmatmul.bf16.gmra.mxu0 %v7179
    %v8864 = vpop.f32.mrf.mxu0
    %v8865 = vadd.f32 %v8776, %v8864
    %v8866 = vpop.f32.mrf.mxu0
    %v8867 = vadd.f32 %v8778, %v8866
    %8868 = vmatmul.bf16.gmra.mxu0 %v7185
    %v8869 = vpop.f32.mrf.mxu0
    %v8870 = vadd.f32 %v8781, %v8869
    %v8871 = vpop.f32.mrf.mxu0
    %v8872 = vadd.f32 %v8783, %v8871
    %8873 = vmatmul.bf16.gmra.mxu0 %v7191
    %v8874 = vpop.f32.mrf.mxu0
    %v8875 = vadd.f32 %v8786, %v8874
    %v8876 = vpop.f32.mrf.mxu0
    %v8877 = vadd.f32 %v8788, %v8876
    %8878 = vmatmul.bf16.gmra.mxu0 %v7197
    %v8879 = vpop.f32.mrf.mxu0
    %v8880 = vadd.f32 %v8791, %v8879
    %v8881 = vpop.f32.mrf.mxu0
    %v8882 = vadd.f32 %v8793, %v8881
    %8883 = vmatmul.bf16.gmra.mxu0 %v7203
    %v8884 = vpop.f32.mrf.mxu0
    %v8885 = vadd.f32 %v8796, %v8884
    %v8886 = vpop.f32.mrf.mxu0
    %v8887 = vadd.f32 %v8798, %v8886
    %8888 = vmatmul.bf16.gmra.mxu0 %v7209
    %v8889 = vpop.f32.mrf.mxu0
    %v8890 = vadd.f32 %v8801, %v8889
    %v8891 = vpop.f32.mrf.mxu0
    %v8892 = vadd.f32 %v8803, %v8891
    %8893 = vmatmul.bf16.gmra.mxu0 %v7215
    %v8894 = vpop.f32.mrf.mxu0
    %v8895 = vadd.f32 %v8806, %v8894
    %v8896 = vpop.f32.mrf.mxu0
    %v8897 = vadd.f32 %v8808, %v8896
    %8898 = vmatmul.bf16.gmra.mxu0 %v7221
    %v8899 = vpop.f32.mrf.mxu0
    %v8900 = vadd.f32 %v8811, %v8899
    %v8901 = vpop.f32.mrf.mxu0
    %v8902 = vadd.f32 %v8813, %v8901
    %8903 = vmatmul.bf16.gmra.mxu0 %v7227
    %v8904 = vpop.f32.mrf.mxu0
    %v8905 = vadd.f32 %v8816, %v8904
    %v8906 = vpop.f32.mrf.mxu0
    %v8907 = vadd.f32 %v8818, %v8906
    %8908 = vmatmul.bf16.gmra.mxu0 %v7233
    %v8909 = vpop.f32.mrf.mxu0
    %v8910 = vadd.f32 %v8821, %v8909
    %v8911 = vpop.f32.mrf.mxu0
    %v8912 = vadd.f32 %v8823, %v8911
    %8913 = vmatmul.bf16.gmra.mxu0 %v7239
    %v8914 = vpop.f32.mrf.mxu0
    %v8915 = vadd.f32 %v8826, %v8914
    %v8916 = vpop.f32.mrf.mxu0
    %v8917 = vadd.f32 %v8828, %v8916
    %8918 = vmatmul.bf16.gmra.mxu0 %v7245
    %v8919 = vpop.f32.mrf.mxu0
    %v8920 = vadd.f32 %v8831, %v8919
    %v8921 = vpop.f32.mrf.mxu0
    %v8922 = vadd.f32 %v8833, %v8921
    %8923 = vmatmul.bf16.gmra.mxu0 %v7251
    %v8924 = vpop.f32.mrf.mxu0
    %v8925 = vadd.f32 %v8836, %v8924
    %v8926 = vpop.f32.mrf.mxu0
    %v8927 = vadd.f32 %v8838, %v8926
    %8928 = vmatmul.bf16.gmra.mxu0 %v7257
    %v8929 = vpop.f32.mrf.mxu0
    %v8930 = vadd.f32 %v8841, %v8929
    %v8931 = vpop.f32.mrf.mxu0
    %v8932 = vadd.f32 %v8843, %v8931
    %8933 = vdwg.mxu0
    %8934 = vmatpush.bf16.msra.mxu0 %v8004
    %8935 = vmatpush.bf16.msra.mxu0 %v8001
    %8936 = vmatpush.bf16.msra.mxu0 %v7998
    %8937 = vmatpush.bf16.msra.mxu0 %v7995
    %8938 = vmatpush.bf16.msra.mxu0 %v7992
    %8939 = vmatpush.bf16.msra.mxu0 %v7989
    %8940 = vmatpush.bf16.msra.mxu0 %v7986
    %8941 = vmatpush.bf16.msra.mxu0 %v7983
    %8942 = vmatmul.bf16.gmra.mxu0 %v7168
    %v8943 = vpop.f32.mrf.mxu0
    %v8944 = vadd.f32 %v8855, %v8943
    %v8945 = vpop.f32.mrf.mxu0
    %v8946 = vadd.f32 %v8857, %v8945
    %8947 = vmatmul.bf16.gmra.mxu0 %v7174
    %v8948 = vpop.f32.mrf.mxu0
    %v8949 = vadd.f32 %v8860, %v8948
    %v8950 = vpop.f32.mrf.mxu0
    %v8951 = vadd.f32 %v8862, %v8950
    %8952 = vmatmul.bf16.gmra.mxu0 %v7180
    %v8953 = vpop.f32.mrf.mxu0
    %v8954 = vadd.f32 %v8865, %v8953
    %v8955 = vpop.f32.mrf.mxu0
    %v8956 = vadd.f32 %v8867, %v8955
    %8957 = vmatmul.bf16.gmra.mxu0 %v7186
    %v8958 = vpop.f32.mrf.mxu0
    %v8959 = vadd.f32 %v8870, %v8958
    %v8960 = vpop.f32.mrf.mxu0
    %v8961 = vadd.f32 %v8872, %v8960
    %8962 = vmatmul.bf16.gmra.mxu0 %v7192
    %v8963 = vpop.f32.mrf.mxu0
    %v8964 = vadd.f32 %v8875, %v8963
    %v8965 = vpop.f32.mrf.mxu0
    %v8966 = vadd.f32 %v8877, %v8965
    %8967 = vmatmul.bf16.gmra.mxu0 %v7198
    %v8968 = vpop.f32.mrf.mxu0
    %v8969 = vadd.f32 %v8880, %v8968
    %v8970 = vpop.f32.mrf.mxu0
    %v8971 = vadd.f32 %v8882, %v8970
    %8972 = vmatmul.bf16.gmra.mxu0 %v7204
    %v8973 = vpop.f32.mrf.mxu0
    %v8974 = vadd.f32 %v8885, %v8973
    %v8975 = vpop.f32.mrf.mxu0
    %v8976 = vadd.f32 %v8887, %v8975
    %8977 = vmatmul.bf16.gmra.mxu0 %v7210
    %v8978 = vpop.f32.mrf.mxu0
    %v8979 = vadd.f32 %v8890, %v8978
    %v8980 = vpop.f32.mrf.mxu0
    %v8981 = vadd.f32 %v8892, %v8980
    %8982 = vmatmul.bf16.gmra.mxu0 %v7216
    %v8983 = vpop.f32.mrf.mxu0
    %v8984 = vadd.f32 %v8895, %v8983
    %v8985 = vpop.f32.mrf.mxu0
    %v8986 = vadd.f32 %v8897, %v8985
    %8987 = vmatmul.bf16.gmra.mxu0 %v7222
    %v8988 = vpop.f32.mrf.mxu0
    %v8989 = vadd.f32 %v8900, %v8988
    %v8990 = vpop.f32.mrf.mxu0
    %v8991 = vadd.f32 %v8902, %v8990
    %8992 = vmatmul.bf16.gmra.mxu0 %v7228
    %v8993 = vpop.f32.mrf.mxu0
    %v8994 = vadd.f32 %v8905, %v8993
    %v8995 = vpop.f32.mrf.mxu0
    %v8996 = vadd.f32 %v8907, %v8995
    %8997 = vmatmul.bf16.gmra.mxu0 %v7234
    %v8998 = vpop.f32.mrf.mxu0
    %v8999 = vadd.f32 %v8910, %v8998
    %v9000 = vpop.f32.mrf.mxu0
    %v9001 = vadd.f32 %v8912, %v9000
    %9002 = vmatmul.bf16.gmra.mxu0 %v7240
    %v9003 = vpop.f32.mrf.mxu0
    %v9004 = vadd.f32 %v8915, %v9003
    %v9005 = vpop.f32.mrf.mxu0
    %v9006 = vadd.f32 %v8917, %v9005
    %9007 = vmatmul.bf16.gmra.mxu0 %v7246
    %v9008 = vpop.f32.mrf.mxu0
    %v9009 = vadd.f32 %v8920, %v9008
    %v9010 = vpop.f32.mrf.mxu0
    %v9011 = vadd.f32 %v8922, %v9010
    %9012 = vmatmul.bf16.gmra.mxu0 %v7252
    %v9013 = vpop.f32.mrf.mxu0
    %v9014 = vadd.f32 %v8925, %v9013
    %v9015 = vpop.f32.mrf.mxu0
    %v9016 = vadd.f32 %v8927, %v9015
    %9017 = vmatmul.bf16.gmra.mxu0 %v7258
    %v9018 = vpop.f32.mrf.mxu0
    %v9019 = vadd.f32 %v8930, %v9018
    %v9020 = vpop.f32.mrf.mxu0
    %v9021 = vadd.f32 %v8932, %v9020
    %9022 = vdwg.mxu0
    %9023 = vmatpush.bf16.msra.mxu0 %v8028
    %9024 = vmatpush.bf16.msra.mxu0 %v8025
    %9025 = vmatpush.bf16.msra.mxu0 %v8022
    %9026 = vmatpush.bf16.msra.mxu0 %v8019
    %9027 = vmatpush.bf16.msra.mxu0 %v8016
    %9028 = vmatpush.bf16.msra.mxu0 %v8013
    %9029 = vmatpush.bf16.msra.mxu0 %v8010
    %9030 = vmatpush.bf16.msra.mxu0 %v8007
    %9031 = vmatmul.bf16.gmra.mxu0 %v7169
    %v9032 = vpop.f32.mrf.mxu0
    %v9033 = vadd.f32 %v8944, %v9032
    %v9034 = vpop.f32.mrf.mxu0
    %v9035 = vadd.f32 %v8946, %v9034
    %9036 = vmatmul.bf16.gmra.mxu0 %v7175
    %v9037 = vpop.f32.mrf.mxu0
    %v9038 = vadd.f32 %v8949, %v9037
    %v9039 = vpop.f32.mrf.mxu0
    %v9040 = vadd.f32 %v8951, %v9039
    %9041 = vmatmul.bf16.gmra.mxu0 %v7181
    %v9042 = vpop.f32.mrf.mxu0
    %v9043 = vadd.f32 %v8954, %v9042
    %v9044 = vpop.f32.mrf.mxu0
    %v9045 = vadd.f32 %v8956, %v9044
    %9046 = vmatmul.bf16.gmra.mxu0 %v7187
    %v9047 = vpop.f32.mrf.mxu0
    %v9048 = vadd.f32 %v8959, %v9047
    %v9049 = vpop.f32.mrf.mxu0
    %v9050 = vadd.f32 %v8961, %v9049
    %9051 = vmatmul.bf16.gmra.mxu0 %v7193
    %v9052 = vpop.f32.mrf.mxu0
    %v9053 = vadd.f32 %v8964, %v9052
    %v9054 = vpop.f32.mrf.mxu0
    %v9055 = vadd.f32 %v8966, %v9054
    %9056 = vmatmul.bf16.gmra.mxu0 %v7199
    %v9057 = vpop.f32.mrf.mxu0
    %v9058 = vadd.f32 %v8969, %v9057
    %v9059 = vpop.f32.mrf.mxu0
    %v9060 = vadd.f32 %v8971, %v9059
    %9061 = vmatmul.bf16.gmra.mxu0 %v7205
    %v9062 = vpop.f32.mrf.mxu0
    %v9063 = vadd.f32 %v8974, %v9062
    %v9064 = vpop.f32.mrf.mxu0
    %v9065 = vadd.f32 %v8976, %v9064
    %9066 = vmatmul.bf16.gmra.mxu0 %v7211
    %v9067 = vpop.f32.mrf.mxu0
    %v9068 = vadd.f32 %v8979, %v9067
    %v9069 = vpop.f32.mrf.mxu0
    %v9070 = vadd.f32 %v8981, %v9069
    %9071 = vmatmul.bf16.gmra.mxu0 %v7217
    %v9072 = vpop.f32.mrf.mxu0
    %v9073 = vadd.f32 %v8984, %v9072
    %v9074 = vpop.f32.mrf.mxu0
    %v9075 = vadd.f32 %v8986, %v9074
    %9076 = vmatmul.bf16.gmra.mxu0 %v7223
    %v9077 = vpop.f32.mrf.mxu0
    %v9078 = vadd.f32 %v8989, %v9077
    %v9079 = vpop.f32.mrf.mxu0
    %v9080 = vadd.f32 %v8991, %v9079
    %9081 = vmatmul.bf16.gmra.mxu0 %v7229
    %v9082 = vpop.f32.mrf.mxu0
    %v9083 = vadd.f32 %v8994, %v9082
    %v9084 = vpop.f32.mrf.mxu0
    %v9085 = vadd.f32 %v8996, %v9084
    %9086 = vmatmul.bf16.gmra.mxu0 %v7235
    %v9087 = vpop.f32.mrf.mxu0
    %v9088 = vadd.f32 %v8999, %v9087
    %v9089 = vpop.f32.mrf.mxu0
    %v9090 = vadd.f32 %v9001, %v9089
    %9091 = vmatmul.bf16.gmra.mxu0 %v7241
    %v9092 = vpop.f32.mrf.mxu0
    %v9093 = vadd.f32 %v9004, %v9092
    %v9094 = vpop.f32.mrf.mxu0
    %v9095 = vadd.f32 %v9006, %v9094
    %9096 = vmatmul.bf16.gmra.mxu0 %v7247
    %v9097 = vpop.f32.mrf.mxu0
    %v9098 = vadd.f32 %v9009, %v9097
    %v9099 = vpop.f32.mrf.mxu0
    %v9100 = vadd.f32 %v9011, %v9099
    %9101 = vmatmul.bf16.gmra.mxu0 %v7253
    %v9102 = vpop.f32.mrf.mxu0
    %v9103 = vadd.f32 %v9014, %v9102
    %v9104 = vpop.f32.mrf.mxu0
    %v9105 = vadd.f32 %v9016, %v9104
    %9106 = vmatmul.bf16.gmra.mxu0 %v7259
    %v9107 = vpop.f32.mrf.mxu0
    %v9108 = vadd.f32 %v9019, %v9107
    %v9109 = vpop.f32.mrf.mxu0
    %v9110 = vadd.f32 %v9021, %v9109
    %9111 = vdwg.mxu0
    %9112 = vmatpush.bf16.msra.mxu0 %v8052
    %9113 = vmatpush.bf16.msra.mxu0 %v8049
    %9114 = vmatpush.bf16.msra.mxu0 %v8046
    %9115 = vmatpush.bf16.msra.mxu0 %v8043
    %9116 = vmatpush.bf16.msra.mxu0 %v8040
    %9117 = vmatpush.bf16.msra.mxu0 %v8037
    %9118 = vmatpush.bf16.msra.mxu0 %v8034
    %9119 = vmatpush.bf16.msra.mxu0 %v8031
    %9120 = vmatmul.bf16.gmra.mxu0 %v7170
    %v9121 = vpop.f32.mrf.mxu0
    %v9122 = vadd.f32 %v9033, %v9121
    %v9123 = vpop.f32.mrf.mxu0
    %v9124 = vadd.f32 %v9035, %v9123
    %9125 = vmatmul.bf16.gmra.mxu0 %v7176
    %v9126 = vpop.f32.mrf.mxu0
    %v9127 = vadd.f32 %v9038, %v9126
    %v9128 = vpop.f32.mrf.mxu0
    %v9129 = vadd.f32 %v9040, %v9128
    %9130 = vmatmul.bf16.gmra.mxu0 %v7182
    %v9131 = vpop.f32.mrf.mxu0
    %v9132 = vadd.f32 %v9043, %v9131
    %v9133 = vpop.f32.mrf.mxu0
    %v9134 = vadd.f32 %v9045, %v9133
    %9135 = vmatmul.bf16.gmra.mxu0 %v7188
    %v9136 = vpop.f32.mrf.mxu0
    %v9137 = vadd.f32 %v9048, %v9136
    %v9138 = vpop.f32.mrf.mxu0
    %v9139 = vadd.f32 %v9050, %v9138
    %9140 = vmatmul.bf16.gmra.mxu0 %v7194
    %v9141 = vpop.f32.mrf.mxu0
    %v9142 = vadd.f32 %v9053, %v9141
    %v9143 = vpop.f32.mrf.mxu0
    %v9144 = vadd.f32 %v9055, %v9143
    %9145 = vmatmul.bf16.gmra.mxu0 %v7200
    %v9146 = vpop.f32.mrf.mxu0
    %v9147 = vadd.f32 %v9058, %v9146
    %v9148 = vpop.f32.mrf.mxu0
    %v9149 = vadd.f32 %v9060, %v9148
    %9150 = vmatmul.bf16.gmra.mxu0 %v7206
    %v9151 = vpop.f32.mrf.mxu0
    %v9152 = vadd.f32 %v9063, %v9151
    %v9153 = vpop.f32.mrf.mxu0
    %v9154 = vadd.f32 %v9065, %v9153
    %9155 = vmatmul.bf16.gmra.mxu0 %v7212
    %v9156 = vpop.f32.mrf.mxu0
    %v9157 = vadd.f32 %v9068, %v9156
    %v9158 = vpop.f32.mrf.mxu0
    %v9159 = vadd.f32 %v9070, %v9158
    %9160 = vmatmul.bf16.gmra.mxu0 %v7218
    %v9161 = vpop.f32.mrf.mxu0
    %v9162 = vadd.f32 %v9073, %v9161
    %v9163 = vpop.f32.mrf.mxu0
    %v9164 = vadd.f32 %v9075, %v9163
    %9165 = vmatmul.bf16.gmra.mxu0 %v7224
    %v9166 = vpop.f32.mrf.mxu0
    %v9167 = vadd.f32 %v9078, %v9166
    %v9168 = vpop.f32.mrf.mxu0
    %v9169 = vadd.f32 %v9080, %v9168
    %9170 = vmatmul.bf16.gmra.mxu0 %v7230
    %v9171 = vpop.f32.mrf.mxu0
    %v9172 = vadd.f32 %v9083, %v9171
    %v9173 = vpop.f32.mrf.mxu0
    %v9174 = vadd.f32 %v9085, %v9173
    %9175 = vmatmul.bf16.gmra.mxu0 %v7236
    %v9176 = vpop.f32.mrf.mxu0
    %v9177 = vadd.f32 %v9088, %v9176
    %v9178 = vpop.f32.mrf.mxu0
    %v9179 = vadd.f32 %v9090, %v9178
    %9180 = vmatmul.bf16.gmra.mxu0 %v7242
    %v9181 = vpop.f32.mrf.mxu0
    %v9182 = vadd.f32 %v9093, %v9181
    %v9183 = vpop.f32.mrf.mxu0
    %v9184 = vadd.f32 %v9095, %v9183
    %9185 = vmatmul.bf16.gmra.mxu0 %v7248
    %v9186 = vpop.f32.mrf.mxu0
    %v9187 = vadd.f32 %v9098, %v9186
    %v9188 = vpop.f32.mrf.mxu0
    %v9189 = vadd.f32 %v9100, %v9188
    %9190 = vmatmul.bf16.gmra.mxu0 %v7254
    %v9191 = vpop.f32.mrf.mxu0
    %v9192 = vadd.f32 %v9103, %v9191
    %v9193 = vpop.f32.mrf.mxu0
    %v9194 = vadd.f32 %v9105, %v9193
    %9195 = vmatmul.bf16.gmra.mxu0 %v7260
    %v9196 = vpop.f32.mrf.mxu0
    %v9197 = vadd.f32 %v9108, %v9196
    %v9198 = vpop.f32.mrf.mxu0
    %v9199 = vadd.f32 %v9110, %v9198
    %9200 = vdwg.mxu0
    %9201 = vmatpush.bf16.msra.mxu0 %v8076
    %9202 = vmatpush.bf16.msra.mxu0 %v8073
    %9203 = vmatpush.bf16.msra.mxu0 %v8070
    %9204 = vmatpush.bf16.msra.mxu0 %v8067
    %9205 = vmatpush.bf16.msra.mxu0 %v8064
    %9206 = vmatpush.bf16.msra.mxu0 %v8061
    %9207 = vmatpush.bf16.msra.mxu0 %v8058
    %9208 = vmatpush.bf16.msra.mxu0 %v8055
    %9209 = vmatmul.bf16.gmra.mxu0 %v7171
    %v9210 = vpop.f32.mrf.mxu0
    %v9211 = vadd.f32 %v9122, %v9210
    %v9212 = vpop.f32.mrf.mxu0
    %v9213 = vadd.f32 %v9124, %v9212
    %9214 = vmatmul.bf16.gmra.mxu0 %v7177
    %v9215 = vpop.f32.mrf.mxu0
    %v9216 = vadd.f32 %v9127, %v9215
    %v9217 = vpop.f32.mrf.mxu0
    %v9218 = vadd.f32 %v9129, %v9217
    %9219 = vmatmul.bf16.gmra.mxu0 %v7183
    %v9220 = vpop.f32.mrf.mxu0
    %v9221 = vadd.f32 %v9132, %v9220
    %v9222 = vpop.f32.mrf.mxu0
    %v9223 = vadd.f32 %v9134, %v9222
    %9224 = vmatmul.bf16.gmra.mxu0 %v7189
    %v9225 = vpop.f32.mrf.mxu0
    %v9226 = vadd.f32 %v9137, %v9225
    %v9227 = vpop.f32.mrf.mxu0
    %v9228 = vadd.f32 %v9139, %v9227
    %9229 = vmatmul.bf16.gmra.mxu0 %v7195
    %v9230 = vpop.f32.mrf.mxu0
    %v9231 = vadd.f32 %v9142, %v9230
    %v9232 = vpop.f32.mrf.mxu0
    %v9233 = vadd.f32 %v9144, %v9232
    %9234 = vmatmul.bf16.gmra.mxu0 %v7201
    %v9235 = vpop.f32.mrf.mxu0
    %v9236 = vadd.f32 %v9147, %v9235
    %v9237 = vpop.f32.mrf.mxu0
    %v9238 = vadd.f32 %v9149, %v9237
    %9239 = vmatmul.bf16.gmra.mxu0 %v7207
    %v9240 = vpop.f32.mrf.mxu0
    %v9241 = vadd.f32 %v9152, %v9240
    %v9242 = vpop.f32.mrf.mxu0
    %v9243 = vadd.f32 %v9154, %v9242
    %9244 = vmatmul.bf16.gmra.mxu0 %v7213
    %v9245 = vpop.f32.mrf.mxu0
    %v9246 = vadd.f32 %v9157, %v9245
    %v9247 = vpop.f32.mrf.mxu0
    %v9248 = vadd.f32 %v9159, %v9247
    %9249 = vmatmul.bf16.gmra.mxu0 %v7219
    %v9250 = vpop.f32.mrf.mxu0
    %v9251 = vadd.f32 %v9162, %v9250
    %v9252 = vpop.f32.mrf.mxu0
    %v9253 = vadd.f32 %v9164, %v9252
    %9254 = vmatmul.bf16.gmra.mxu0 %v7225
    %v9255 = vpop.f32.mrf.mxu0
    %v9256 = vadd.f32 %v9167, %v9255
    %v9257 = vpop.f32.mrf.mxu0
    %v9258 = vadd.f32 %v9169, %v9257
    %9259 = vmatmul.bf16.gmra.mxu0 %v7231
    %v9260 = vpop.f32.mrf.mxu0
    %v9261 = vadd.f32 %v9172, %v9260
    %v9262 = vpop.f32.mrf.mxu0
    %v9263 = vadd.f32 %v9174, %v9262
    %9264 = vmatmul.bf16.gmra.mxu0 %v7237
    %v9265 = vpop.f32.mrf.mxu0
    %v9266 = vadd.f32 %v9177, %v9265
    %v9267 = vpop.f32.mrf.mxu0
    %v9268 = vadd.f32 %v9179, %v9267
    %9269 = vmatmul.bf16.gmra.mxu0 %v7243
    %v9270 = vpop.f32.mrf.mxu0
    %v9271 = vadd.f32 %v9182, %v9270
    %v9272 = vpop.f32.mrf.mxu0
    %v9273 = vadd.f32 %v9184, %v9272
    %9274 = vmatmul.bf16.gmra.mxu0 %v7249
    %v9275 = vpop.f32.mrf.mxu0
    %v9276 = vadd.f32 %v9187, %v9275
    %v9277 = vpop.f32.mrf.mxu0
    %v9278 = vadd.f32 %v9189, %v9277
    %9279 = vmatmul.bf16.gmra.mxu0 %v7255
    %v9280 = vpop.f32.mrf.mxu0
    %v9281 = vadd.f32 %v9192, %v9280
    %v9282 = vpop.f32.mrf.mxu0
    %v9283 = vadd.f32 %v9194, %v9282
    %9284 = vmatmul.bf16.gmra.mxu0 %v7261
    %v9285 = vpop.f32.mrf.mxu0
    %v9286 = vadd.f32 %v9197, %v9285
    %v9287 = vpop.f32.mrf.mxu0
    %v9288 = vadd.f32 %v9199, %v9287
    %9289 = vdwg.mxu0
    %9290 = vmatpush.bf16.msra.mxu0 %v7957
    %9291 = vmatpush.bf16.msra.mxu0 %v7954
    %9292 = vmatpush.bf16.msra.mxu0 %v7951
    %9293 = vmatpush.bf16.msra.mxu0 %v7948
    %9294 = vmatpush.bf16.msra.mxu0 %v7945
    %9295 = vmatpush.bf16.msra.mxu0 %v7942
    %9296 = vmatpush.bf16.msra.mxu0 %v7939
    %9297 = vmatpush.bf16.msra.mxu0 %v7936
    %9298 = vmatmul.bf16.gmra.mxu0 %v7166
    %v9299 = vpop.f32.mrf.mxu0
    %v9300 = vadd.f32 0.0, %v9299
    %v9301 = vpop.f32.mrf.mxu0
    %v9302 = vadd.f32 0.0, %v9301
    %9303 = vmatmul.bf16.gmra.mxu0 %v7172
    %v9304 = vpop.f32.mrf.mxu0
    %v9305 = vadd.f32 0.0, %v9304
    %v9306 = vpop.f32.mrf.mxu0
    %v9307 = vadd.f32 0.0, %v9306
    %9308 = vmatmul.bf16.gmra.mxu0 %v7178
    %v9309 = vpop.f32.mrf.mxu0
    %v9310 = vadd.f32 0.0, %v9309
    %v9311 = vpop.f32.mrf.mxu0
    %v9312 = vadd.f32 0.0, %v9311
    %9313 = vmatmul.bf16.gmra.mxu0 %v7184
    %v9314 = vpop.f32.mrf.mxu0
    %v9315 = vadd.f32 0.0, %v9314
    %v9316 = vpop.f32.mrf.mxu0
    %v9317 = vadd.f32 0.0, %v9316
    %9318 = vmatmul.bf16.gmra.mxu0 %v7190
    %v9319 = vpop.f32.mrf.mxu0
    %v9320 = vadd.f32 0.0, %v9319
    %v9321 = vpop.f32.mrf.mxu0
    %v9322 = vadd.f32 0.0, %v9321
    %9323 = vmatmul.bf16.gmra.mxu0 %v7196
    %v9324 = vpop.f32.mrf.mxu0
    %v9325 = vadd.f32 0.0, %v9324
    %v9326 = vpop.f32.mrf.mxu0
    %v9327 = vadd.f32 0.0, %v9326
    %9328 = vmatmul.bf16.gmra.mxu0 %v7202
    %v9329 = vpop.f32.mrf.mxu0
    %v9330 = vadd.f32 0.0, %v9329
    %v9331 = vpop.f32.mrf.mxu0
    %v9332 = vadd.f32 0.0, %v9331
    %9333 = vmatmul.bf16.gmra.mxu0 %v7208
    %v9334 = vpop.f32.mrf.mxu0
    %v9335 = vadd.f32 0.0, %v9334
    %v9336 = vpop.f32.mrf.mxu0
    %v9337 = vadd.f32 0.0, %v9336
    %9338 = vmatmul.bf16.gmra.mxu0 %v7214
    %v9339 = vpop.f32.mrf.mxu0
    %v9340 = vadd.f32 0.0, %v9339
    %v9341 = vpop.f32.mrf.mxu0
    %v9342 = vadd.f32 0.0, %v9341
    %9343 = vmatmul.bf16.gmra.mxu0 %v7220
    %v9344 = vpop.f32.mrf.mxu0
    %v9345 = vadd.f32 0.0, %v9344
    %v9346 = vpop.f32.mrf.mxu0
    %v9347 = vadd.f32 0.0, %v9346
    %9348 = vmatmul.bf16.gmra.mxu0 %v7226
    %v9349 = vpop.f32.mrf.mxu0
    %v9350 = vadd.f32 0.0, %v9349
    %v9351 = vpop.f32.mrf.mxu0
    %v9352 = vadd.f32 0.0, %v9351
    %9353 = vmatmul.bf16.gmra.mxu0 %v7232
    %v9354 = vpop.f32.mrf.mxu0
    %v9355 = vadd.f32 0.0, %v9354
    %v9356 = vpop.f32.mrf.mxu0
    %v9357 = vadd.f32 0.0, %v9356
    %9358 = vmatmul.bf16.gmra.mxu0 %v7238
    %v9359 = vpop.f32.mrf.mxu0
    %v9360 = vadd.f32 0.0, %v9359
    %v9361 = vpop.f32.mrf.mxu0
    %v9362 = vadd.f32 0.0, %v9361
    %9363 = vmatmul.bf16.gmra.mxu0 %v7244
    %v9364 = vpop.f32.mrf.mxu0
    %v9365 = vadd.f32 0.0, %v9364
    %v9366 = vpop.f32.mrf.mxu0
    %v9367 = vadd.f32 0.0, %v9366
    %9368 = vmatmul.bf16.gmra.mxu0 %v7250
    %v9369 = vpop.f32.mrf.mxu0
    %v9370 = vadd.f32 0.0, %v9369
    %v9371 = vpop.f32.mrf.mxu0
    %v9372 = vadd.f32 0.0, %v9371
    %9373 = vmatmul.bf16.gmra.mxu0 %v7256
    %v9374 = vpop.f32.mrf.mxu0
    %v9375 = vadd.f32 0.0, %v9374
    %v9376 = vpop.f32.mrf.mxu0
    %v9377 = vadd.f32 0.0, %v9376
    %9378 = vdwg.mxu0
    %9379 = vmatpush.bf16.msra.mxu0 %v7981
    %9380 = vmatpush.bf16.msra.mxu0 %v7978
    %9381 = vmatpush.bf16.msra.mxu0 %v7975
    %9382 = vmatpush.bf16.msra.mxu0 %v7972
    %9383 = vmatpush.bf16.msra.mxu0 %v7969
    %9384 = vmatpush.bf16.msra.mxu0 %v7966
    %9385 = vmatpush.bf16.msra.mxu0 %v7963
    %9386 = vmatpush.bf16.msra.mxu0 %v7960
    %9387 = vmatmul.bf16.gmra.mxu0 %v7167
    %v9388 = vpop.f32.mrf.mxu0
    %v9389 = vadd.f32 %v9300, %v9388
    %v9390 = vpop.f32.mrf.mxu0
    %v9391 = vadd.f32 %v9302, %v9390
    %9392 = vmatmul.bf16.gmra.mxu0 %v7173
    %v9393 = vpop.f32.mrf.mxu0
    %v9394 = vadd.f32 %v9305, %v9393
    %v9395 = vpop.f32.mrf.mxu0
    %v9396 = vadd.f32 %v9307, %v9395
    %9397 = vmatmul.bf16.gmra.mxu0 %v7179
    %v9398 = vpop.f32.mrf.mxu0
    %v9399 = vadd.f32 %v9310, %v9398
    %v9400 = vpop.f32.mrf.mxu0
    %v9401 = vadd.f32 %v9312, %v9400
    %9402 = vmatmul.bf16.gmra.mxu0 %v7185
    %v9403 = vpop.f32.mrf.mxu0
    %v9404 = vadd.f32 %v9315, %v9403
    %v9405 = vpop.f32.mrf.mxu0
    %v9406 = vadd.f32 %v9317, %v9405
    %9407 = vmatmul.bf16.gmra.mxu0 %v7191
    %v9408 = vpop.f32.mrf.mxu0
    %v9409 = vadd.f32 %v9320, %v9408
    %v9410 = vpop.f32.mrf.mxu0
    %v9411 = vadd.f32 %v9322, %v9410
    %9412 = vmatmul.bf16.gmra.mxu0 %v7197
    %v9413 = vpop.f32.mrf.mxu0
    %v9414 = vadd.f32 %v9325, %v9413
    %v9415 = vpop.f32.mrf.mxu0
    %v9416 = vadd.f32 %v9327, %v9415
    %9417 = vmatmul.bf16.gmra.mxu0 %v7203
    %v9418 = vpop.f32.mrf.mxu0
    %v9419 = vadd.f32 %v9330, %v9418
    %v9420 = vpop.f32.mrf.mxu0
    %v9421 = vadd.f32 %v9332, %v9420
    %9422 = vmatmul.bf16.gmra.mxu0 %v7209
    %v9423 = vpop.f32.mrf.mxu0
    %v9424 = vadd.f32 %v9335, %v9423
    %v9425 = vpop.f32.mrf.mxu0
    %v9426 = vadd.f32 %v9337, %v9425
    %9427 = vmatmul.bf16.gmra.mxu0 %v7215
    %v9428 = vpop.f32.mrf.mxu0
    %v9429 = vadd.f32 %v9340, %v9428
    %v9430 = vpop.f32.mrf.mxu0
    %v9431 = vadd.f32 %v9342, %v9430
    %9432 = vmatmul.bf16.gmra.mxu0 %v7221
    %v9433 = vpop.f32.mrf.mxu0
    %v9434 = vadd.f32 %v9345, %v9433
    %v9435 = vpop.f32.mrf.mxu0
    %v9436 = vadd.f32 %v9347, %v9435
    %9437 = vmatmul.bf16.gmra.mxu0 %v7227
    %v9438 = vpop.f32.mrf.mxu0
    %v9439 = vadd.f32 %v9350, %v9438
    %v9440 = vpop.f32.mrf.mxu0
    %v9441 = vadd.f32 %v9352, %v9440
    %9442 = vmatmul.bf16.gmra.mxu0 %v7233
    %v9443 = vpop.f32.mrf.mxu0
    %v9444 = vadd.f32 %v9355, %v9443
    %v9445 = vpop.f32.mrf.mxu0
    %v9446 = vadd.f32 %v9357, %v9445
    %9447 = vmatmul.bf16.gmra.mxu0 %v7239
    %v9448 = vpop.f32.mrf.mxu0
    %v9449 = vadd.f32 %v9360, %v9448
    %v9450 = vpop.f32.mrf.mxu0
    %v9451 = vadd.f32 %v9362, %v9450
    %9452 = vmatmul.bf16.gmra.mxu0 %v7245
    %v9453 = vpop.f32.mrf.mxu0
    %v9454 = vadd.f32 %v9365, %v9453
    %v9455 = vpop.f32.mrf.mxu0
    %v9456 = vadd.f32 %v9367, %v9455
    %9457 = vmatmul.bf16.gmra.mxu0 %v7251
    %v9458 = vpop.f32.mrf.mxu0
    %v9459 = vadd.f32 %v9370, %v9458
    %v9460 = vpop.f32.mrf.mxu0
    %v9461 = vadd.f32 %v9372, %v9460
    %9462 = vmatmul.bf16.gmra.mxu0 %v7257
    %v9463 = vpop.f32.mrf.mxu0
    %v9464 = vadd.f32 %v9375, %v9463
    %v9465 = vpop.f32.mrf.mxu0
    %v9466 = vadd.f32 %v9377, %v9465
    %9467 = vdwg.mxu0
    %9468 = vmatpush.bf16.msra.mxu0 %v8005
    %9469 = vmatpush.bf16.msra.mxu0 %v8002
    %9470 = vmatpush.bf16.msra.mxu0 %v7999
    %9471 = vmatpush.bf16.msra.mxu0 %v7996
    %9472 = vmatpush.bf16.msra.mxu0 %v7993
    %9473 = vmatpush.bf16.msra.mxu0 %v7990
    %9474 = vmatpush.bf16.msra.mxu0 %v7987
    %9475 = vmatpush.bf16.msra.mxu0 %v7984
    %9476 = vmatmul.bf16.gmra.mxu0 %v7168
    %v9477 = vpop.f32.mrf.mxu0
    %v9478 = vadd.f32 %v9389, %v9477
    %v9479 = vpop.f32.mrf.mxu0
    %v9480 = vadd.f32 %v9391, %v9479
    %9481 = vmatmul.bf16.gmra.mxu0 %v7174
    %v9482 = vpop.f32.mrf.mxu0
    %v9483 = vadd.f32 %v9394, %v9482
    %v9484 = vpop.f32.mrf.mxu0
    %v9485 = vadd.f32 %v9396, %v9484
    %9486 = vmatmul.bf16.gmra.mxu0 %v7180
    %v9487 = vpop.f32.mrf.mxu0
    %v9488 = vadd.f32 %v9399, %v9487
    %v9489 = vpop.f32.mrf.mxu0
    %v9490 = vadd.f32 %v9401, %v9489
    %9491 = vmatmul.bf16.gmra.mxu0 %v7186
    %v9492 = vpop.f32.mrf.mxu0
    %v9493 = vadd.f32 %v9404, %v9492
    %v9494 = vpop.f32.mrf.mxu0
    %v9495 = vadd.f32 %v9406, %v9494
    %9496 = vmatmul.bf16.gmra.mxu0 %v7192
    %v9497 = vpop.f32.mrf.mxu0
    %v9498 = vadd.f32 %v9409, %v9497
    %v9499 = vpop.f32.mrf.mxu0
    %v9500 = vadd.f32 %v9411, %v9499
    %9501 = vmatmul.bf16.gmra.mxu0 %v7198
    %v9502 = vpop.f32.mrf.mxu0
    %v9503 = vadd.f32 %v9414, %v9502
    %v9504 = vpop.f32.mrf.mxu0
    %v9505 = vadd.f32 %v9416, %v9504
    %9506 = vmatmul.bf16.gmra.mxu0 %v7204
    %v9507 = vpop.f32.mrf.mxu0
    %v9508 = vadd.f32 %v9419, %v9507
    %v9509 = vpop.f32.mrf.mxu0
    %v9510 = vadd.f32 %v9421, %v9509
    %9511 = vmatmul.bf16.gmra.mxu0 %v7210
    %v9512 = vpop.f32.mrf.mxu0
    %v9513 = vadd.f32 %v9424, %v9512
    %v9514 = vpop.f32.mrf.mxu0
    %v9515 = vadd.f32 %v9426, %v9514
    %9516 = vmatmul.bf16.gmra.mxu0 %v7216
    %v9517 = vpop.f32.mrf.mxu0
    %v9518 = vadd.f32 %v9429, %v9517
    %v9519 = vpop.f32.mrf.mxu0
    %v9520 = vadd.f32 %v9431, %v9519
    %9521 = vmatmul.bf16.gmra.mxu0 %v7222
    %v9522 = vpop.f32.mrf.mxu0
    %v9523 = vadd.f32 %v9434, %v9522
    %v9524 = vpop.f32.mrf.mxu0
    %v9525 = vadd.f32 %v9436, %v9524
    %9526 = vmatmul.bf16.gmra.mxu0 %v7228
    %v9527 = vpop.f32.mrf.mxu0
    %v9528 = vadd.f32 %v9439, %v9527
    %v9529 = vpop.f32.mrf.mxu0
    %v9530 = vadd.f32 %v9441, %v9529
    %9531 = vmatmul.bf16.gmra.mxu0 %v7234
    %v9532 = vpop.f32.mrf.mxu0
    %v9533 = vadd.f32 %v9444, %v9532
    %v9534 = vpop.f32.mrf.mxu0
    %v9535 = vadd.f32 %v9446, %v9534
    %9536 = vmatmul.bf16.gmra.mxu0 %v7240
    %v9537 = vpop.f32.mrf.mxu0
    %v9538 = vadd.f32 %v9449, %v9537
    %v9539 = vpop.f32.mrf.mxu0
    %v9540 = vadd.f32 %v9451, %v9539
    %9541 = vmatmul.bf16.gmra.mxu0 %v7246
    %v9542 = vpop.f32.mrf.mxu0
    %v9543 = vadd.f32 %v9454, %v9542
    %v9544 = vpop.f32.mrf.mxu0
    %v9545 = vadd.f32 %v9456, %v9544
    %9546 = vmatmul.bf16.gmra.mxu0 %v7252
    %v9547 = vpop.f32.mrf.mxu0
    %v9548 = vadd.f32 %v9459, %v9547
    %v9549 = vpop.f32.mrf.mxu0
    %v9550 = vadd.f32 %v9461, %v9549
    %9551 = vmatmul.bf16.gmra.mxu0 %v7258
    %v9552 = vpop.f32.mrf.mxu0
    %v9553 = vadd.f32 %v9464, %v9552
    %v9554 = vpop.f32.mrf.mxu0
    %v9555 = vadd.f32 %v9466, %v9554
    %9556 = vdwg.mxu0
    %9557 = vmatpush.bf16.msra.mxu0 %v8029
    %9558 = vmatpush.bf16.msra.mxu0 %v8026
    %9559 = vmatpush.bf16.msra.mxu0 %v8023
    %9560 = vmatpush.bf16.msra.mxu0 %v8020
    %9561 = vmatpush.bf16.msra.mxu0 %v8017
    %9562 = vmatpush.bf16.msra.mxu0 %v8014
    %9563 = vmatpush.bf16.msra.mxu0 %v8011
    %9564 = vmatpush.bf16.msra.mxu0 %v8008
    %9565 = vmatmul.bf16.gmra.mxu0 %v7169
    %v9566 = vpop.f32.mrf.mxu0
    %v9567 = vadd.f32 %v9478, %v9566
    %v9568 = vpop.f32.mrf.mxu0
    %v9569 = vadd.f32 %v9480, %v9568
    %9570 = vmatmul.bf16.gmra.mxu0 %v7175
    %v9571 = vpop.f32.mrf.mxu0
    %v9572 = vadd.f32 %v9483, %v9571
    %v9573 = vpop.f32.mrf.mxu0
    %v9574 = vadd.f32 %v9485, %v9573
    %9575 = vmatmul.bf16.gmra.mxu0 %v7181
    %v9576 = vpop.f32.mrf.mxu0
    %v9577 = vadd.f32 %v9488, %v9576
    %v9578 = vpop.f32.mrf.mxu0
    %v9579 = vadd.f32 %v9490, %v9578
    %9580 = vmatmul.bf16.gmra.mxu0 %v7187
    %v9581 = vpop.f32.mrf.mxu0
    %v9582 = vadd.f32 %v9493, %v9581
    %v9583 = vpop.f32.mrf.mxu0
    %v9584 = vadd.f32 %v9495, %v9583
    %9585 = vmatmul.bf16.gmra.mxu0 %v7193
    %v9586 = vpop.f32.mrf.mxu0
    %v9587 = vadd.f32 %v9498, %v9586
    %v9588 = vpop.f32.mrf.mxu0
    %v9589 = vadd.f32 %v9500, %v9588
    %9590 = vmatmul.bf16.gmra.mxu0 %v7199
    %v9591 = vpop.f32.mrf.mxu0
    %v9592 = vadd.f32 %v9503, %v9591
    %v9593 = vpop.f32.mrf.mxu0
    %v9594 = vadd.f32 %v9505, %v9593
    %9595 = vmatmul.bf16.gmra.mxu0 %v7205
    %v9596 = vpop.f32.mrf.mxu0
    %v9597 = vadd.f32 %v9508, %v9596
    %v9598 = vpop.f32.mrf.mxu0
    %v9599 = vadd.f32 %v9510, %v9598
    %9600 = vmatmul.bf16.gmra.mxu0 %v7211
    %v9601 = vpop.f32.mrf.mxu0
    %v9602 = vadd.f32 %v9513, %v9601
    %v9603 = vpop.f32.mrf.mxu0
    %v9604 = vadd.f32 %v9515, %v9603
    %9605 = vmatmul.bf16.gmra.mxu0 %v7217
    %v9606 = vpop.f32.mrf.mxu0
    %v9607 = vadd.f32 %v9518, %v9606
    %v9608 = vpop.f32.mrf.mxu0
    %v9609 = vadd.f32 %v9520, %v9608
    %9610 = vmatmul.bf16.gmra.mxu0 %v7223
    %v9611 = vpop.f32.mrf.mxu0
    %v9612 = vadd.f32 %v9523, %v9611
    %v9613 = vpop.f32.mrf.mxu0
    %v9614 = vadd.f32 %v9525, %v9613
    %9615 = vmatmul.bf16.gmra.mxu0 %v7229
    %v9616 = vpop.f32.mrf.mxu0
    %v9617 = vadd.f32 %v9528, %v9616
    %v9618 = vpop.f32.mrf.mxu0
    %v9619 = vadd.f32 %v9530, %v9618
    %9620 = vmatmul.bf16.gmra.mxu0 %v7235
    %v9621 = vpop.f32.mrf.mxu0
    %v9622 = vadd.f32 %v9533, %v9621
    %v9623 = vpop.f32.mrf.mxu0
    %v9624 = vadd.f32 %v9535, %v9623
    %9625 = vmatmul.bf16.gmra.mxu0 %v7241
    %v9626 = vpop.f32.mrf.mxu0
    %v9627 = vadd.f32 %v9538, %v9626
    %v9628 = vpop.f32.mrf.mxu0
    %v9629 = vadd.f32 %v9540, %v9628
    %9630 = vmatmul.bf16.gmra.mxu0 %v7247
    %v9631 = vpop.f32.mrf.mxu0
    %v9632 = vadd.f32 %v9543, %v9631
    %v9633 = vpop.f32.mrf.mxu0
    %v9634 = vadd.f32 %v9545, %v9633
    %9635 = vmatmul.bf16.gmra.mxu0 %v7253
    %v9636 = vpop.f32.mrf.mxu0
    %v9637 = vadd.f32 %v9548, %v9636
    %v9638 = vpop.f32.mrf.mxu0
    %v9639 = vadd.f32 %v9550, %v9638
    %9640 = vmatmul.bf16.gmra.mxu0 %v7259
    %v9641 = vpop.f32.mrf.mxu0
    %v9642 = vadd.f32 %v9553, %v9641
    %v9643 = vpop.f32.mrf.mxu0
    %v9644 = vadd.f32 %v9555, %v9643
    %9645 = vdwg.mxu0
    %9646 = vmatpush.bf16.msra.mxu0 %v8053
    %9647 = vmatpush.bf16.msra.mxu0 %v8050
    %9648 = vmatpush.bf16.msra.mxu0 %v8047
    %9649 = vmatpush.bf16.msra.mxu0 %v8044
    %9650 = vmatpush.bf16.msra.mxu0 %v8041
    %9651 = vmatpush.bf16.msra.mxu0 %v8038
    %9652 = vmatpush.bf16.msra.mxu0 %v8035
    %9653 = vmatpush.bf16.msra.mxu0 %v8032
    %9654 = vmatmul.bf16.gmra.mxu0 %v7170
    %v9655 = vpop.f32.mrf.mxu0
    %v9656 = vadd.f32 %v9567, %v9655
    %v9657 = vpop.f32.mrf.mxu0
    %v9658 = vadd.f32 %v9569, %v9657
    %9659 = vmatmul.bf16.gmra.mxu0 %v7176
    %v9660 = vpop.f32.mrf.mxu0
    %v9661 = vadd.f32 %v9572, %v9660
    %v9662 = vpop.f32.mrf.mxu0
    %v9663 = vadd.f32 %v9574, %v9662
    %9664 = vmatmul.bf16.gmra.mxu0 %v7182
    %v9665 = vpop.f32.mrf.mxu0
    %v9666 = vadd.f32 %v9577, %v9665
    %v9667 = vpop.f32.mrf.mxu0
    %v9668 = vadd.f32 %v9579, %v9667
    %9669 = vmatmul.bf16.gmra.mxu0 %v7188
    %v9670 = vpop.f32.mrf.mxu0
    %v9671 = vadd.f32 %v9582, %v9670
    %v9672 = vpop.f32.mrf.mxu0
    %v9673 = vadd.f32 %v9584, %v9672
    %9674 = vmatmul.bf16.gmra.mxu0 %v7194
    %v9675 = vpop.f32.mrf.mxu0
    %v9676 = vadd.f32 %v9587, %v9675
    %v9677 = vpop.f32.mrf.mxu0
    %v9678 = vadd.f32 %v9589, %v9677
    %9679 = vmatmul.bf16.gmra.mxu0 %v7200
    %v9680 = vpop.f32.mrf.mxu0
    %v9681 = vadd.f32 %v9592, %v9680
    %v9682 = vpop.f32.mrf.mxu0
    %v9683 = vadd.f32 %v9594, %v9682
    %9684 = vmatmul.bf16.gmra.mxu0 %v7206
    %v9685 = vpop.f32.mrf.mxu0
    %v9686 = vadd.f32 %v9597, %v9685
    %v9687 = vpop.f32.mrf.mxu0
    %v9688 = vadd.f32 %v9599, %v9687
    %9689 = vmatmul.bf16.gmra.mxu0 %v7212
    %v9690 = vpop.f32.mrf.mxu0
    %v9691 = vadd.f32 %v9602, %v9690
    %v9692 = vpop.f32.mrf.mxu0
    %v9693 = vadd.f32 %v9604, %v9692
    %9694 = vmatmul.bf16.gmra.mxu0 %v7218
    %v9695 = vpop.f32.mrf.mxu0
    %v9696 = vadd.f32 %v9607, %v9695
    %v9697 = vpop.f32.mrf.mxu0
    %v9698 = vadd.f32 %v9609, %v9697
    %9699 = vmatmul.bf16.gmra.mxu0 %v7224
    %v9700 = vpop.f32.mrf.mxu0
    %v9701 = vadd.f32 %v9612, %v9700
    %v9702 = vpop.f32.mrf.mxu0
    %v9703 = vadd.f32 %v9614, %v9702
    %9704 = vmatmul.bf16.gmra.mxu0 %v7230
    %v9705 = vpop.f32.mrf.mxu0
    %v9706 = vadd.f32 %v9617, %v9705
    %v9707 = vpop.f32.mrf.mxu0
    %v9708 = vadd.f32 %v9619, %v9707
    %9709 = vmatmul.bf16.gmra.mxu0 %v7236
    %v9710 = vpop.f32.mrf.mxu0
    %v9711 = vadd.f32 %v9622, %v9710
    %v9712 = vpop.f32.mrf.mxu0
    %v9713 = vadd.f32 %v9624, %v9712
    %9714 = vmatmul.bf16.gmra.mxu0 %v7242
    %v9715 = vpop.f32.mrf.mxu0
    %v9716 = vadd.f32 %v9627, %v9715
    %v9717 = vpop.f32.mrf.mxu0
    %v9718 = vadd.f32 %v9629, %v9717
    %9719 = vmatmul.bf16.gmra.mxu0 %v7248
    %v9720 = vpop.f32.mrf.mxu0
    %v9721 = vadd.f32 %v9632, %v9720
    %v9722 = vpop.f32.mrf.mxu0
    %v9723 = vadd.f32 %v9634, %v9722
    %9724 = vmatmul.bf16.gmra.mxu0 %v7254
    %v9725 = vpop.f32.mrf.mxu0
    %v9726 = vadd.f32 %v9637, %v9725
    %v9727 = vpop.f32.mrf.mxu0
    %v9728 = vadd.f32 %v9639, %v9727
    %9729 = vmatmul.bf16.gmra.mxu0 %v7260
    %v9730 = vpop.f32.mrf.mxu0
    %v9731 = vadd.f32 %v9642, %v9730
    %v9732 = vpop.f32.mrf.mxu0
    %v9733 = vadd.f32 %v9644, %v9732
    %9734 = vdwg.mxu0
    %9735 = vmatpush.bf16.msra.mxu0 %v8077
    %9736 = vmatpush.bf16.msra.mxu0 %v8074
    %9737 = vmatpush.bf16.msra.mxu0 %v8071
    %9738 = vmatpush.bf16.msra.mxu0 %v8068
    %9739 = vmatpush.bf16.msra.mxu0 %v8065
    %9740 = vmatpush.bf16.msra.mxu0 %v8062
    %9741 = vmatpush.bf16.msra.mxu0 %v8059
    %9742 = vmatpush.bf16.msra.mxu0 %v8056
    %9743 = vmatmul.bf16.gmra.mxu0 %v7171
    %v9744 = vpop.f32.mrf.mxu0
    %v9745 = vadd.f32 %v9656, %v9744
    %v9746 = vpop.f32.mrf.mxu0
    %v9747 = vadd.f32 %v9658, %v9746
    %9748 = vmatmul.bf16.gmra.mxu0 %v7177
    %v9749 = vpop.f32.mrf.mxu0
    %v9750 = vadd.f32 %v9661, %v9749
    %v9751 = vpop.f32.mrf.mxu0
    %v9752 = vadd.f32 %v9663, %v9751
    %9753 = vmatmul.bf16.gmra.mxu0 %v7183
    %v9754 = vpop.f32.mrf.mxu0
    %v9755 = vadd.f32 %v9666, %v9754
    %v9756 = vpop.f32.mrf.mxu0
    %v9757 = vadd.f32 %v9668, %v9756
    %9758 = vmatmul.bf16.gmra.mxu0 %v7189
    %v9759 = vpop.f32.mrf.mxu0
    %v9760 = vadd.f32 %v9671, %v9759
    %v9761 = vpop.f32.mrf.mxu0
    %v9762 = vadd.f32 %v9673, %v9761
    %9763 = vmatmul.bf16.gmra.mxu0 %v7195
    %v9764 = vpop.f32.mrf.mxu0
    %v9765 = vadd.f32 %v9676, %v9764
    %v9766 = vpop.f32.mrf.mxu0
    %v9767 = vadd.f32 %v9678, %v9766
    %9768 = vmatmul.bf16.gmra.mxu0 %v7201
    %v9769 = vpop.f32.mrf.mxu0
    %v9770 = vadd.f32 %v9681, %v9769
    %v9771 = vpop.f32.mrf.mxu0
    %v9772 = vadd.f32 %v9683, %v9771
    %9773 = vmatmul.bf16.gmra.mxu0 %v7207
    %v9774 = vpop.f32.mrf.mxu0
    %v9775 = vadd.f32 %v9686, %v9774
    %v9776 = vpop.f32.mrf.mxu0
    %v9777 = vadd.f32 %v9688, %v9776
    %9778 = vmatmul.bf16.gmra.mxu0 %v7213
    %v9779 = vpop.f32.mrf.mxu0
    %v9780 = vadd.f32 %v9691, %v9779
    %v9781 = vpop.f32.mrf.mxu0
    %v9782 = vadd.f32 %v9693, %v9781
    %9783 = vmatmul.bf16.gmra.mxu0 %v7219
    %v9784 = vpop.f32.mrf.mxu0
    %v9785 = vadd.f32 %v9696, %v9784
    %v9786 = vpop.f32.mrf.mxu0
    %v9787 = vadd.f32 %v9698, %v9786
    %9788 = vmatmul.bf16.gmra.mxu0 %v7225
    %v9789 = vpop.f32.mrf.mxu0
    %v9790 = vadd.f32 %v9701, %v9789
    %v9791 = vpop.f32.mrf.mxu0
    %v9792 = vadd.f32 %v9703, %v9791
    %9793 = vmatmul.bf16.gmra.mxu0 %v7231
    %v9794 = vpop.f32.mrf.mxu0
    %v9795 = vadd.f32 %v9706, %v9794
    %v9796 = vpop.f32.mrf.mxu0
    %v9797 = vadd.f32 %v9708, %v9796
    %9798 = vmatmul.bf16.gmra.mxu0 %v7237
    %v9799 = vpop.f32.mrf.mxu0
    %v9800 = vadd.f32 %v9711, %v9799
    %v9801 = vpop.f32.mrf.mxu0
    %v9802 = vadd.f32 %v9713, %v9801
    %9803 = vmatmul.bf16.gmra.mxu0 %v7243
    %v9804 = vpop.f32.mrf.mxu0
    %v9805 = vadd.f32 %v9716, %v9804
    %v9806 = vpop.f32.mrf.mxu0
    %v9807 = vadd.f32 %v9718, %v9806
    %9808 = vmatmul.bf16.gmra.mxu0 %v7249
    %v9809 = vpop.f32.mrf.mxu0
    %v9810 = vadd.f32 %v9721, %v9809
    %v9811 = vpop.f32.mrf.mxu0
    %v9812 = vadd.f32 %v9723, %v9811
    %9813 = vmatmul.bf16.gmra.mxu0 %v7255
    %v9814 = vpop.f32.mrf.mxu0
    %v9815 = vadd.f32 %v9726, %v9814
    %v9816 = vpop.f32.mrf.mxu0
    %v9817 = vadd.f32 %v9728, %v9816
    %9818 = vmatmul.bf16.gmra.mxu0 %v7261
    %v9819 = vpop.f32.mrf.mxu0
    %v9820 = vadd.f32 %v9731, %v9819
    %v9821 = vpop.f32.mrf.mxu0
    %v9822 = vadd.f32 %v9733, %v9821
    %9823 = vdwg.mxu0
    %v9824 = vtanh.pop %v8677
    %v9825 = vtanh.pop %v9211
    %v9826 = vtanh.pop %v9745
    %v9827 = vtanh.pop %v8679
    %v9828 = vtanh.pop %v9213
    %v9829 = vtanh.pop %v9747
    %v9830 = vtanh.pop %v8682
    %v9831 = vtanh.pop %v9216
    %v9832 = vtanh.pop %v9750
    %v9833 = vtanh.pop %v8684
    %v9834 = vtanh.pop %v9218
    %v9835 = vtanh.pop %v9752
    %v9836 = vtanh.pop %v8687
    %v9837 = vtanh.pop %v9221
    %v9838 = vtanh.pop %v9755
    %v9839 = vtanh.pop %v8689
    %v9840 = vtanh.pop %v9223
    %v9841 = vtanh.pop %v9757
    %v9842 = vtanh.pop %v8692
    %v9843 = vtanh.pop %v9226
    %v9844 = vtanh.pop %v9760
    %v9845 = vtanh.pop %v8694
    %v9846 = vtanh.pop %v9228
    %v9847 = vtanh.pop %v9762
    %v9848 = vtanh.pop %v8697
    %v9849 = vtanh.pop %v9231
    %v9850 = vtanh.pop %v9765
    %v9851 = vtanh.pop %v8699
    %v9852 = vtanh.pop %v9233
    %v9853 = vtanh.pop %v9767
    %v9854 = vtanh.pop %v8702
    %v9855 = vtanh.pop %v9236
    %v9856 = vtanh.pop %v9770
    %v9857 = vtanh.pop %v8704
    %v9858 = vtanh.pop %v9238
    %v9859 = vtanh.pop %v9772
    %v9860 = vtanh.pop %v8707
    %v9861 = vtanh.pop %v9241
    %v9862 = vtanh.pop %v9775
    %v9863 = vtanh.pop %v8709
    %v9864 = vtanh.pop %v9243
    %v9865 = vtanh.pop %v9777
    %v9866 = vtanh.pop %v8712
    %v9867 = vtanh.pop %v9246
    %v9868 = vtanh.pop %v9780
    %v9869 = vtanh.pop %v8714
    %v9870 = vtanh.pop %v9248
    %v9871 = vtanh.pop %v9782
    %v9872 = vtanh.pop %v8717
    %v9873 = vtanh.pop %v9251
    %v9874 = vtanh.pop %v9785
    %v9875 = vtanh.pop %v8719
    %v9876 = vtanh.pop %v9253
    %v9877 = vtanh.pop %v9787
    %v9878 = vtanh.pop %v8722
    %v9879 = vtanh.pop %v9256
    %v9880 = vtanh.pop %v9790
    %v9881 = vtanh.pop %v8724
    %v9882 = vtanh.pop %v9258
    %v9883 = vtanh.pop %v9792
    %v9884 = vtanh.pop %v8727
    %v9885 = vtanh.pop %v9261
    %v9886 = vtanh.pop %v9795
    %v9887 = vtanh.pop %v8729
    %v9888 = vtanh.pop %v9263
    %v9889 = vtanh.pop %v9797
    %v9890 = vtanh.pop %v8732
    %v9891 = vtanh.pop %v9266
    %v9892 = vtanh.pop %v9800
    %v9893 = vtanh.pop %v8734
    %v9894 = vtanh.pop %v9268
    %v9895 = vtanh.pop %v9802
    %v9896 = vtanh.pop %v8737
    %v9897 = vtanh.pop %v9271
    %v9898 = vtanh.pop %v9805
    %v9899 = vtanh.pop %v8739
    %v9900 = vtanh.pop %v9273
    %v9901 = vtanh.pop %v9807
    %v9902 = vtanh.pop %v8742
    %v9903 = vtanh.pop %v9276
    %v9904 = vtanh.pop %v9810
    %v9905 = vtanh.pop %v8744
    %v9906 = vtanh.pop %v9278
    %v9907 = vtanh.pop %v9812
    %v9908 = vtanh.pop %v8747
    %v9909 = vtanh.pop %v9281
    %v9910 = vtanh.pop %v9815
    %v9911 = vtanh.pop %v8749
    %v9912 = vtanh.pop %v9283
    %v9913 = vtanh.pop %v9817
    %v9914 = vtanh.pop %v8752
    %v9915 = vtanh.pop %v9286
    %v9916 = vtanh.pop %v9820
    %v9917 = vtanh.pop %v8754
    %v9918 = vtanh.pop %v9288
    %v9919 = vtanh.pop %v9822
    %9920 = vst [vmem:[#allocation19] sm:$0xff] %v9824
    %9921 = vst [vmem:[#allocation19 + $0x8] sm:$0xff] %v9827
    %9922 = vst [vmem:[#allocation19 + $0x10] sm:$0xff] %v9830
    %9923 = vst [vmem:[#allocation19 + $0x18] sm:$0xff] %v9833
    %9924 = vst [vmem:[#allocation19 + $0x20] sm:$0xff] %v9836
    %9925 = vst [vmem:[#allocation19 + $0x28] sm:$0xff] %v9839
    %9926 = vst [vmem:[#allocation19 + $0x30] sm:$0xff] %v9842
    %9927 = vst [vmem:[#allocation19 + $0x38] sm:$0xff] %v9845
    %9928 = vst [vmem:[#allocation19 + $0x40] sm:$0xff] %v9848
    %9929 = vst [vmem:[#allocation19 + $0x48] sm:$0xff] %v9851
    %9930 = vst [vmem:[#allocation19 + $0x50] sm:$0xff] %v9854
    %9931 = vst [vmem:[#allocation19 + $0x58] sm:$0xff] %v9857
    %9932 = vst [vmem:[#allocation19 + $0x60] sm:$0xff] %v9860
    %9933 = vst [vmem:[#allocation19 + $0x68] sm:$0xff] %v9863
    %9934 = vst [vmem:[#allocation19 + $0x70] sm:$0xff] %v9866
    %9935 = vst [vmem:[#allocation19 + $0x78] sm:$0xff] %v9869
    %s9936 = scalar_lea.vmem [#allocation19], 128
    %9937 = vst [vmem:[%s9936] sm:$0xff] %v9825
    %9938 = vst [vmem:[%s9936 + $0x8] sm:$0xff] %v9828
    %9939 = vst [vmem:[%s9936 + $0x10] sm:$0xff] %v9831
    %9940 = vst [vmem:[%s9936 + $0x18] sm:$0xff] %v9834
    %9941 = vst [vmem:[%s9936 + $0x20] sm:$0xff] %v9837
    %9942 = vst [vmem:[%s9936 + $0x28] sm:$0xff] %v9840
    %9943 = vst [vmem:[%s9936 + $0x30] sm:$0xff] %v9843
    %9944 = vst [vmem:[%s9936 + $0x38] sm:$0xff] %v9846
    %9945 = vst [vmem:[%s9936 + $0x40] sm:$0xff] %v9849
    %9946 = vst [vmem:[%s9936 + $0x48] sm:$0xff] %v9852
    %9947 = vst [vmem:[%s9936 + $0x50] sm:$0xff] %v9855
    %9948 = vst [vmem:[%s9936 + $0x58] sm:$0xff] %v9858
    %9949 = vst [vmem:[%s9936 + $0x60] sm:$0xff] %v9861
    %9950 = vst [vmem:[%s9936 + $0x68] sm:$0xff] %v9864
    %9951 = vst [vmem:[%s9936 + $0x70] sm:$0xff] %v9867
    %9952 = vst [vmem:[%s9936 + $0x78] sm:$0xff] %v9870
    %s9953 = scalar_lea.vmem [#allocation19], 256
    %9954 = vst [vmem:[%s9953] sm:$0xff] %v9826
    %9955 = vst [vmem:[%s9953 + $0x8] sm:$0xff] %v9829
    %9956 = vst [vmem:[%s9953 + $0x10] sm:$0xff] %v9832
    %9957 = vst [vmem:[%s9953 + $0x18] sm:$0xff] %v9835
    %9958 = vst [vmem:[%s9953 + $0x20] sm:$0xff] %v9838
    %9959 = vst [vmem:[%s9953 + $0x28] sm:$0xff] %v9841
    %9960 = vst [vmem:[%s9953 + $0x30] sm:$0xff] %v9844
    %9961 = vst [vmem:[%s9953 + $0x38] sm:$0xff] %v9847
    %9962 = vst [vmem:[%s9953 + $0x40] sm:$0xff] %v9850
    %9963 = vst [vmem:[%s9953 + $0x48] sm:$0xff] %v9853
    %9964 = vst [vmem:[%s9953 + $0x50] sm:$0xff] %v9856
    %9965 = vst [vmem:[%s9953 + $0x58] sm:$0xff] %v9859
    %9966 = vst [vmem:[%s9953 + $0x60] sm:$0xff] %v9862
    %9967 = vst [vmem:[%s9953 + $0x68] sm:$0xff] %v9865
    %9968 = vst [vmem:[%s9953 + $0x70] sm:$0xff] %v9868
    %9969 = vst [vmem:[%s9953 + $0x78] sm:$0xff] %v9871
    %s9970 = scalar_lea.vmem [#allocation19], 384
    %9971 = vst [vmem:[%s9970] sm:$0xff] %v9872
    %9972 = vst [vmem:[%s9970 + $0x8] sm:$0xff] %v9875
    %9973 = vst [vmem:[%s9970 + $0x10] sm:$0xff] %v9878
    %9974 = vst [vmem:[%s9970 + $0x18] sm:$0xff] %v9881
    %9975 = vst [vmem:[%s9970 + $0x20] sm:$0xff] %v9884
    %9976 = vst [vmem:[%s9970 + $0x28] sm:$0xff] %v9887
    %9977 = vst [vmem:[%s9970 + $0x30] sm:$0xff] %v9890
    %9978 = vst [vmem:[%s9970 + $0x38] sm:$0xff] %v9893
    %9979 = vst [vmem:[%s9970 + $0x40] sm:$0xff] %v9896
    %9980 = vst [vmem:[%s9970 + $0x48] sm:$0xff] %v9899
    %9981 = vst [vmem:[%s9970 + $0x50] sm:$0xff] %v9902
    %9982 = vst [vmem:[%s9970 + $0x58] sm:$0xff] %v9905
    %9983 = vst [vmem:[%s9970 + $0x60] sm:$0xff] %v9908
    %9984 = vst [vmem:[%s9970 + $0x68] sm:$0xff] %v9911
    %9985 = vst [vmem:[%s9970 + $0x70] sm:$0xff] %v9914
    %9986 = vst [vmem:[%s9970 + $0x78] sm:$0xff] %v9917
    %s9987 = scalar_lea.vmem [#allocation19], 512
    %9988 = vst [vmem:[%s9987] sm:$0xff] %v9873
    %9989 = vst [vmem:[%s9987 + $0x8] sm:$0xff] %v9876
    %9990 = vst [vmem:[%s9987 + $0x10] sm:$0xff] %v9879
    %9991 = vst [vmem:[%s9987 + $0x18] sm:$0xff] %v9882
    %9992 = vst [vmem:[%s9987 + $0x20] sm:$0xff] %v9885
    %9993 = vst [vmem:[%s9987 + $0x28] sm:$0xff] %v9888
    %9994 = vst [vmem:[%s9987 + $0x30] sm:$0xff] %v9891
    %9995 = vst [vmem:[%s9987 + $0x38] sm:$0xff] %v9894
    %9996 = vst [vmem:[%s9987 + $0x40] sm:$0xff] %v9897
    %9997 = vst [vmem:[%s9987 + $0x48] sm:$0xff] %v9900
    %9998 = vst [vmem:[%s9987 + $0x50] sm:$0xff] %v9903
    %9999 = vst [vmem:[%s9987 + $0x58] sm:$0xff] %v9906
    %10000 = vst [vmem:[%s9987 + $0x60] sm:$0xff] %v9909
    %10001 = vst [vmem:[%s9987 + $0x68] sm:$0xff] %v9912
    %10002 = vst [vmem:[%s9987 + $0x70] sm:$0xff] %v9915
    %10003 = vst [vmem:[%s9987 + $0x78] sm:$0xff] %v9918
    %s10004 = scalar_lea.vmem [#allocation19], 640
    %10005 = vst [vmem:[%s10004] sm:$0xff] %v9874
    %10006 = vst [vmem:[%s10004 + $0x8] sm:$0xff] %v9877
    %10007 = vst [vmem:[%s10004 + $0x10] sm:$0xff] %v9880
    %10008 = vst [vmem:[%s10004 + $0x18] sm:$0xff] %v9883
    %10009 = vst [vmem:[%s10004 + $0x20] sm:$0xff] %v9886
    %10010 = vst [vmem:[%s10004 + $0x28] sm:$0xff] %v9889
    %10011 = vst [vmem:[%s10004 + $0x30] sm:$0xff] %v9892
    %10012 = vst [vmem:[%s10004 + $0x38] sm:$0xff] %v9895
    %10013 = vst [vmem:[%s10004 + $0x40] sm:$0xff] %v9898
    %10014 = vst [vmem:[%s10004 + $0x48] sm:$0xff] %v9901
    %10015 = vst [vmem:[%s10004 + $0x50] sm:$0xff] %v9904
    %10016 = vst [vmem:[%s10004 + $0x58] sm:$0xff] %v9907
    %10017 = vst [vmem:[%s10004 + $0x60] sm:$0xff] %v9910
    %10018 = vst [vmem:[%s10004 + $0x68] sm:$0xff] %v9913
    %10019 = vst [vmem:[%s10004 + $0x70] sm:$0xff] %v9916
    %10020 = vst [vmem:[%s10004 + $0x78] sm:$0xff] %v9919
    // Predicated region
    $region82: #{generator_forward.1} parent=1 // pred_check
      _
    $region83: #{generator_forward.1} parent=1 // pred_check_branch
      %10022 = sbr.rel (0) target = $region85
    $region84: #{generator_forward.1} parent=1 // pred_region
      %10024 = vsyncadd [#allocation6], 0
      %s10025 = sshll.u32 [#allocation19], 4
      %s10026 = int_to_ptr.vmem [resolvable:$true] %s10025
      %s10027 = sshll.u32 %s11, 4
      %s10028 = int_to_ptr.hbm [resolvable:$true] %s10027
      %10033 = dma.vmem_to_hbm [thread:$0]  %s10026, 12288, %s10028, [#allocation6], 128, 128, 8
    $region85: #{generator_forward.1} parent=1 // pred_fallthru
      _
    // Predicated region
    $region86: #{generator_forward.1} parent=1 // pred_check
      _
    $region87: #{generator_forward.1} parent=1 // pred_check_branch
      %10035 = sbr.rel (0) target = $region89
    $region88: #{generator_forward.1} parent=1 // pred_region
      %10037 = dma.done [#allocation6], 12288
    $region89: #{generator_forward.1} parent=1 // pred_fallthru
      _
    %10038 = vsyncpa [#allocation5], 1
    %10039 = vsyncpa [#allocation8], 1
    %10040 = vsyncpa [#allocation11], 1
    %10041 = vsyncpa [#allocation14], 1
    %10042 = vsyncpa [#allocation17], 1
    %10043 = vsyncpa [#allocation6], 1
  %10044 = vsyncmov [#allocation3]
  %s10045 = vpop.sfrf %10044
  %p10046 = scmp.eq.s32.totalorder %s10045, 0
  %p10047 = pneg %p10046
  %10049 = shalt.err (%p10047)

</llo_original>
